<compile_context>
chip_gen: v7x
topology: tpu7x:2x2x1
jax: 0.10.0
libtpu: 0.0.40
codegen_flags: <defaults>
</compile_context>

<pallas_src>
import jax
import jax.numpy as jnp
from jax import lax
from jax.experimental import pallas as pl
from jax.experimental.pallas import tpu as pltpu

# --- small, TPU-friendly hyperparameters (scaled-down version of the module) ---
N_EMBD   = 128      # module uses 384
N_HEAD   = 4        # module uses 8
HEAD_SZ  = N_EMBD // N_HEAD
N_LAYER  = 2        # module uses 8
BLOCK_T  = 64       # == real block_size
VOCAB    = 256
FF_DIM   = 4 * N_EMBD
LN_EPS   = 1e-5
PAD_ID   = 0
NEG_INF  = -1e30    # finite "-inf" so masked rows can never produce NaN

B_BLK    = 4        # sequences per grid row-block -> M = B_BLK*BLOCK_T = 256 rows


def _layernorm(y, gamma, beta):
    mu = jnp.mean(y, axis=-1, keepdims=True)
    d = y - mu
    var = jnp.mean(d * d, axis=-1, keepdims=True)
    return d * lax.rsqrt(var + LN_EPS) * gamma + beta


def transformer_layer_kernel(x_ref, wqkv_ref, wo_ref, bo_ref, ln1g_ref, ln1b_ref,
                             w1_ref, b1_ref, w2_ref, b2_ref, ln2g_ref, ln2b_ref,
                             lnfg_ref, lnfb_ref, hw_ref, hb_ref,
                             o_ref, act_ref, attn_ref):
    """One transformer Block per grid step; final LN + lm head on the last layer."""
    l = pl.program_id(1)
    n_layers = pl.num_programs(1)
    Bb, T, C = x_ref.shape
    BT = Bb * T

    # layer 0 of this row block: load (tok+pos) embeddings into the VMEM carry
    @pl.when(l == 0)
    def _():
        act_ref[...] = x_ref[...].reshape(BT, C)

    x = act_ref[...]                                   # (BT, C) f32 activations

    # static additive causal mask; scale folded into q once
    rows = lax.broadcasted_iota(jnp.int32, (T, T), 0)
    cols = lax.broadcasted_iota(jnp.int32, (T, T), 1)
    mask_bias = jnp.where(cols <= rows, 0.0, NEG_INF).astype(jnp.float32)
    scale = HEAD_SZ ** -0.5

    # ---------- multi-head causal self-attention ----------
    # fused QKV projection: one (BT, C) @ (C, 3C) MXU matmul
    qkv = jnp.dot(x.astype(jnp.bfloat16), wqkv_ref[0],
                  preferred_element_type=jnp.float32)            # (BT, 3C)
    q = (qkv[:, :C] * scale).reshape(Bb, T, C).astype(jnp.bfloat16)
    k = qkv[:, C:2 * C].reshape(Bb, T, C).astype(jnp.bfloat16)
    v = qkv[:, 2 * C:].reshape(Bb, T, C).astype(jnp.bfloat16)

    for h in range(N_HEAD):                            # static loop over heads
        sl = slice(h * HEAD_SZ, (h + 1) * HEAD_SZ)
        qh, kh, vh = q[:, :, sl], k[:, :, sl], v[:, :, sl]
        # q . k^T, bf16 inputs / f32 accumulation, no materialized transpose
        s = jnp.einsum('bqd,bkd->bqk', qh, kh,
                       preferred_element_type=jnp.float32) + mask_bias
        s = s - jnp.max(s, axis=-1, keepdims=True)
        p = jnp.exp(s)
        p = p * pl.reciprocal(jnp.sum(p, axis=-1, keepdims=True), approx=True)
        # dropout on attention weights: identity in eval mode
        oh = jnp.einsum('bqk,bkd->bqd', p.astype(jnp.bfloat16), vh,
                        preferred_element_type=jnp.float32)      # (Bb, T, Dh)
        attn_ref[:, :, sl] = oh                        # contiguous head concat

    # ONE output projection over the full C=128 contraction depth
    heads = attn_ref[...].reshape(BT, C)
    sa = jnp.dot(heads.astype(jnp.bfloat16), wo_ref[0],
                 preferred_element_type=jnp.float32) + bo_ref[0]
    x = _layernorm(x + sa, ln1g_ref[0], ln1b_ref[0])   # post-LN residual

    # ---------- feed-forward (Linear - ReLU - Linear) ----------
    h1 = jnp.dot(x.astype(jnp.bfloat16), w1_ref[0],
                 preferred_element_type=jnp.float32) + b1_ref[0]
    h1 = jnp.maximum(h1, 0.0)
    y = jnp.dot(h1.astype(jnp.bfloat16), w2_ref[0],
                preferred_element_type=jnp.float32) + b2_ref[0]
    x = _layernorm(x + y, ln2g_ref[0], ln2b_ref[0])
    act_ref[...] = x                                   # carry to next layer

    # ---------- final LayerNorm + vocab projection ----------
    @pl.when(l == n_layers - 1)
    def _():
        xn = _layernorm(x, lnfg_ref[...], lnfb_ref[...])
        logits = jnp.dot(xn.astype(jnp.bfloat16), hw_ref[...],
                         preferred_element_type=jnp.float32) + hb_ref[...]
        o_ref[...] = logits.reshape(o_ref.shape)


# ----------------------------------------------------------------------------
# pallas_call wrapper: row blocks on a "parallel" axis, layers streamed on an
# "arbitrary" axis with per-layer weight BlockSpecs (auto double-buffering).
# ----------------------------------------------------------------------------
def _layer_spec(shape):
    nd = len(shape)
    return pl.BlockSpec((1,) + tuple(shape[1:]),
                        lambda r, l, _nd=nd: (l,) + (0,) * (_nd - 1))


def _resident_spec(shape):
    nd = len(shape)
    return pl.BlockSpec(tuple(shape), lambda r, l, _nd=nd: (0,) * _nd)


@jax.jit
def transformer_lm_forward(params, index):
    """Equivalent of TransformerLanguageModel.forward(index, targets=None)[0]."""
    B, T = index.shape
    assert T == BLOCK_T and B % B_BLK == 0
    # embedding gather + position add: host/XLA glue outside the kernel
    tok_emb = jnp.take(params["tok_emb"], index, axis=0)         # (B, T, C)
    x = tok_emb + params["pos_emb"][:T][None]                    # (B, T, C) f32

    in_specs = [
        pl.BlockSpec((B_BLK, T, N_EMBD), lambda r, l: (r, 0, 0)),  # x (per row block)
        _layer_spec(params["wqkv"].shape),
        _layer_spec(params["wo"].shape),
        _layer_spec(params["bo"].shape),
        _layer_spec(params["ln1_g"].shape),
        _layer_spec(params["ln1_b"].shape),
        _layer_spec(params["w1"].shape),
        _layer_spec(params["b1"].shape),
        _layer_spec(params["w2"].shape),
        _layer_spec(params["b2"].shape),
        _layer_spec(params["ln2_g"].shape),
        _layer_spec(params["ln2_b"].shape),
        _resident_spec(params["lnf_g"].shape),
        _resident_spec(params["lnf_b"].shape),
        _resident_spec(params["head_w"].shape),
        _resident_spec(params["head_b"].shape),
    ]

    logits = pl.pallas_call(
        transformer_layer_kernel,
        out_shape=jax.ShapeDtypeStruct((B, T, VOCAB), jnp.float32),
        grid=(B // B_BLK, N_LAYER),
        in_specs=in_specs,
        out_specs=pl.BlockSpec((B_BLK, T, VOCAB), lambda r, l: (r, 0, 0)),
        scratch_shapes=[
            pltpu.VMEM((B_BLK * BLOCK_T, N_EMBD), jnp.float32),   # activation carry
            pltpu.VMEM((B_BLK, BLOCK_T, N_EMBD), jnp.float32),    # head-concat buffer
        ],
        compiler_params=pltpu.CompilerParams(
            dimension_semantics=("parallel", "arbitrary"),
            vmem_limit_bytes=64 * 1024 * 1024),
    )(x,
      params["wqkv"], params["wo"], params["bo"],
      params["ln1_g"], params["ln1_b"],
      params["w1"], params["b1"], params["w2"], params["b2"],
      params["ln2_g"], params["ln2_b"],
      params["lnf_g"], params["lnf_b"],
      params["head_w"], params["head_b"])
    # TODO(synk): cross_entropy loss (targets path) and multinomial generate()
    # are host-side / training glue, not implemented as kernels.
    return logits


# ----------------------------------------------------------------------------
# Parameter init (matmul weights bf16, biases / LN params / embeddings f32)
# ----------------------------------------------------------------------------
def init_params(key):
    ks = jax.random.split(key, 11)

    def randn(k, shape, dtype, scale=0.02):
        return (jax.random.normal(k, shape, jnp.float32) * scale).astype(dtype)

    C, L, F, V = N_EMBD, N_LAYER, FF_DIM, VOCAB
    params = {}
    tok = randn(ks[0], (V, C), jnp.float32)
    params["tok_emb"] = tok.at[PAD_ID].set(0.0)                  # padding_idx row = 0
    params["pos_emb"] = randn(ks[1], (BLOCK_T, C), jnp.float32)

    params["wqkv"]  = randn(ks[2], (L, C, 3 * C), jnp.bfloat16)  # fused q|k|v (no bias)
    params["wo"]    = randn(ks[3], (L, C, C), jnp.bfloat16)
    params["bo"]    = randn(ks[4], (L, 1, C), jnp.float32)
    params["ln1_g"] = jnp.ones((L, 1, C), jnp.float32)
    params["ln1_b"] = jnp.zeros((L, 1, C), jnp.float32)
    params["w1"]    = randn(ks[5], (L, C, F), jnp.bfloat16)
    params["b1"]    = randn(ks[6], (L, 1, F), jnp.float32)
    params["w2"]    = randn(ks[7], (L, F, C), jnp.bfloat16)
    params["b2"]    = randn(ks[8], (L, 1, C), jnp.float32)
    params["ln2_g"] = jnp.ones((L, 1, C), jnp.float32)
    params["ln2_b"] = jnp.zeros((L, 1, C), jnp.float32)

    params["lnf_g"]  = jnp.ones((1, C), jnp.float32)
    params["lnf_b"]  = jnp.zeros((1, C), jnp.float32)
    params["head_w"] = randn(ks[9], (C, V), jnp.bfloat16)
    params["head_b"] = randn(ks[10], (1, V), jnp.float32)
    return params


if __name__ == "__main__":
    key = jax.random.PRNGKey(0)
    pkey, ikey = jax.random.split(key)
    params = init_params(pkey)

    B, T = 2 * B_BLK, BLOCK_T     # 8 sequences of 64 tokens -> 2 parallel row blocks
    index = jax.random.randint(ikey, (B, T), 0, VOCAB, dtype=jnp.int32)

    logits = transformer_lm_forward(params, index)
    jax.block_until_ready(logits)
    assert logits.shape == (B, T, VOCAB), logits.shape
    assert bool(jnp.all(jnp.isfinite(logits)))
    print("KERNEL_OK")
</pallas_src>

<mosaic_0001>
module attributes {stable_mosaic.version = 11 : i64} {
  func.func @transformer_layer_kernel(%arg0: i32, %arg1: i32, %arg2: memref<4x64x128xf32, #tpu.memory_space<vmem>>, %arg3: memref<1x128x384xbf16, #tpu.memory_space<vmem>>, %arg4: memref<1x128x128xbf16, #tpu.memory_space<vmem>>, %arg5: memref<1x1x128xf32, #tpu.memory_space<vmem>>, %arg6: memref<1x1x128xf32, #tpu.memory_space<vmem>>, %arg7: memref<1x1x128xf32, #tpu.memory_space<vmem>>, %arg8: memref<1x128x512xbf16, #tpu.memory_space<vmem>>, %arg9: memref<1x1x512xf32, #tpu.memory_space<vmem>>, %arg10: memref<1x512x128xbf16, #tpu.memory_space<vmem>>, %arg11: memref<1x1x128xf32, #tpu.memory_space<vmem>>, %arg12: memref<1x1x128xf32, #tpu.memory_space<vmem>>, %arg13: memref<1x1x128xf32, #tpu.memory_space<vmem>>, %arg14: memref<1x128xf32, #tpu.memory_space<vmem>>, %arg15: memref<1x128xf32, #tpu.memory_space<vmem>>, %arg16: memref<128x256xbf16, #tpu.memory_space<vmem>>, %arg17: memref<1x256xf32, #tpu.memory_space<vmem>>, %arg18: memref<4x64x256xf32, #tpu.memory_space<vmem>>, %arg19: memref<256x128xf32, #tpu.memory_space<vmem>>, %arg20: memref<4x64x128xf32, #tpu.memory_space<vmem>>) attributes {dimension_semantics = [#tpu.dimension_semantics<parallel>, #tpu.dimension_semantics<arbitrary>], iteration_bounds = array<i64: 2, 2>, scalar_prefetch = 0 : i64, scratch_operands = 2 : i64, tpu.core_type = #tpu.core_type<tc>, window_params = [{transform_indices = @transform_0, window_bounds = array<i64: 4, 64, 128>}, {transform_indices = @transform_1, window_bounds = array<i64: 1, 128, 384>}, {transform_indices = @transform_2, window_bounds = array<i64: 1, 128, 128>}, {transform_indices = @transform_3, window_bounds = array<i64: 1, 1, 128>}, {transform_indices = @transform_4, window_bounds = array<i64: 1, 1, 128>}, {transform_indices = @transform_5, window_bounds = array<i64: 1, 1, 128>}, {transform_indices = @transform_6, window_bounds = array<i64: 1, 128, 512>}, {transform_indices = @transform_7, window_bounds = array<i64: 1, 1, 512>}, {transform_indices = @transform_8, window_bounds = array<i64: 1, 512, 128>}, {transform_indices = @transform_9, window_bounds = array<i64: 1, 1, 128>}, {transform_indices = @transform_10, window_bounds = array<i64: 1, 1, 128>}, {transform_indices = @transform_11, window_bounds = array<i64: 1, 1, 128>}, {pipeline_mode = #tpu.pipeline_mode<synchronous>, transform_indices = @transform_12, window_bounds = array<i64: 1, 128>}, {pipeline_mode = #tpu.pipeline_mode<synchronous>, transform_indices = @transform_13, window_bounds = array<i64: 1, 128>}, {pipeline_mode = #tpu.pipeline_mode<synchronous>, transform_indices = @transform_14, window_bounds = array<i64: 128, 256>}, {pipeline_mode = #tpu.pipeline_mode<synchronous>, transform_indices = @transform_15, window_bounds = array<i64: 1, 256>}, {transform_indices = @transform_16, window_bounds = array<i64: 4, 64, 256>}]} {
    %c0_i32 = arith.constant 0 : i32
    %0 = arith.cmpi eq, %arg1, %c0_i32 : i32
    %1 = arith.extui %0 : i1 to i32
    %c0_i32_0 = arith.constant 0 : i32
    %2 = arith.cmpi ne, %1, %c0_i32_0 : i32
    scf.if %2 {
      %c0_83 = arith.constant 0 : index
      %c0_84 = arith.constant 0 : index
      %c0_85 = arith.constant 0 : index
      %187 = vector.load %arg2[%c0_83, %c0_84, %c0_85] : memref<4x64x128xf32, #tpu.memory_space<vmem>>, vector<4x64x128xf32>
      %188 = vector.shape_cast %187 : vector<4x64x128xf32> to vector<256x128xf32>
      %c0_86 = arith.constant 0 : index
      %c0_87 = arith.constant 0 : index
      %189 = vector.load %arg19[%c0_86, %c0_87] : memref<256x128xf32, #tpu.memory_space<vmem>>, vector<256x128xf32>
      tpu.vector_store %arg19[%c0_86, %c0_87], %188 {strides = array<i32>} : memref<256x128xf32, #tpu.memory_space<vmem>>, vector<256x128xf32>,
    } else {
    }
    %c0 = arith.constant 0 : index
    %c0_1 = arith.constant 0 : index
    %3 = vector.load %arg19[%c0, %c0_1] : memref<256x128xf32, #tpu.memory_space<vmem>>, vector<256x128xf32>
    %4 = tpu.iota {dimensions = array<i32: 0>} : vector<64x64xi32>
    %5 = tpu.iota {dimensions = array<i32: 1>} : vector<64x64xi32>
    %6 = arith.cmpi sle, %5, %4 : vector<64x64xi32>
    %cst = arith.constant 0.000000e+00 : f32
    %cst_2 = arith.constant -1.000000e+30 : f32
    %7 = vector.broadcast %cst : f32 to vector<64x64xf32>
    %8 = vector.broadcast %cst_2 : f32 to vector<64x64xf32>
    %9 = arith.select %6, %7, %8 : vector<64x64xi1>, vector<64x64xf32>
    %10 = arith.truncf %3 : vector<256x128xf32> to vector<256x128xbf16>
    %c0_3 = arith.constant 0 : index
    %c0_4 = arith.constant 0 : index
    %c0_5 = arith.constant 0 : index
    %11 = vector.load %arg3[%c0_3, %c0_4, %c0_5] : memref<1x128x384xbf16, #tpu.memory_space<vmem>>, vector<1x128x384xbf16>
    %12 = vector.shape_cast %11 : vector<1x128x384xbf16> to vector<128x384xbf16>
    %cst_6 = arith.constant dense<0.000000e+00> : vector<256x384xf32>
    %13 = tpu.matmul %10, %12, %cst_6 {dimension_numbers = #tpu.dot_dimension_numbers<[1], [0], [0], [1], [0, 0, 1, 1], [], []>} : vector<256x128xbf16>, vector<128x384xbf16>, vector<256x384xf32> -> vector<256x384xf32>
    %14 = vector.extract_strided_slice %13 {offsets = [0, 0], sizes = [256, 128], strides = [1, 1]} : vector<256x384xf32> to vector<256x128xf32>
    %cst_7 = arith.constant 0.176776692 : f32
    %15 = vector.broadcast %cst_7 : f32 to vector<256x128xf32>
    %16 = arith.mulf %14, %15 : vector<256x128xf32>
    %17 = vector.shape_cast %16 : vector<256x128xf32> to vector<4x64x128xf32>
    %18 = arith.truncf %17 : vector<4x64x128xf32> to vector<4x64x128xbf16>
    %19 = vector.extract_strided_slice %13 {offsets = [0, 128], sizes = [256, 128], strides = [1, 1]} : vector<256x384xf32> to vector<256x128xf32>
    %20 = vector.shape_cast %19 : vector<256x128xf32> to vector<4x64x128xf32>
    %21 = arith.truncf %20 : vector<4x64x128xf32> to vector<4x64x128xbf16>
    %22 = vector.extract_strided_slice %13 {offsets = [0, 256], sizes = [256, 128], strides = [1, 1]} : vector<256x384xf32> to vector<256x128xf32>
    %23 = vector.shape_cast %22 : vector<256x128xf32> to vector<4x64x128xf32>
    %24 = arith.truncf %23 : vector<4x64x128xf32> to vector<4x64x128xbf16>
    %25 = vector.extract_strided_slice %18 {offsets = [0, 0, 0], sizes = [4, 64, 32], strides = [1, 1, 1]} : vector<4x64x128xbf16> to vector<4x64x32xbf16>
    %26 = vector.extract_strided_slice %21 {offsets = [0, 0, 0], sizes = [4, 64, 32], strides = [1, 1, 1]} : vector<4x64x128xbf16> to vector<4x64x32xbf16>
    %27 = vector.extract_strided_slice %24 {offsets = [0, 0, 0], sizes = [4, 64, 32], strides = [1, 1, 1]} : vector<4x64x128xbf16> to vector<4x64x32xbf16>
    "tpu.trace_start"() <{level = 10 : i32, message = "bqd,bkd->bqk"}> : () -> ()
    %cst_8 = arith.constant dense<0.000000e+00> : vector<4x64x64xf32>
    %28 = tpu.matmul %25, %26, %cst_8 {dimension_numbers = #tpu.dot_dimension_numbers<[2], [2], [1], [1], [0, 0, 0, 1, 1, 1], [0], [0]>} : vector<4x64x32xbf16>, vector<4x64x32xbf16>, vector<4x64x64xf32> -> vector<4x64x64xf32>
    "tpu.trace_stop"() : () -> ()
    %29 = vector.shape_cast %9 : vector<64x64xf32> to vector<1x64x64xf32>
    %30 = vector.broadcast %29 : vector<1x64x64xf32> to vector<4x64x64xf32>
    %31 = arith.addf %28, %30 : vector<4x64x64xf32>
    %cst_9 = arith.constant dense<0xFF800000> : vector<4x64xf32>
    %32 = vector.multi_reduction <maximumf>, %31, %cst_9 [2] : vector<4x64x64xf32> to vector<4x64xf32>
    %33 = vector.shape_cast %32 : vector<4x64xf32> to vector<4x64x1xf32>
    %34 = vector.broadcast %33 : vector<4x64x1xf32> to vector<4x64x64xf32>
    %35 = arith.subf %31, %34 : vector<4x64x64xf32>
    %36 = math.exp %35 : vector<4x64x64xf32>
    %cst_10 = arith.constant dense<0.000000e+00> : vector<4x64xf32>
    %37 = vector.multi_reduction <add>, %36, %cst_10 [2] : vector<4x64x64xf32> to vector<4x64xf32>
    %38 = vector.shape_cast %37 : vector<4x64xf32> to vector<4x64x1xf32>
    %39 = tpu.reciprocal %38 {approx = true} : vector<4x64x1xf32> -> vector<4x64x1xf32>
    %40 = vector.broadcast %39 : vector<4x64x1xf32> to vector<4x64x64xf32>
    %41 = arith.mulf %36, %40 : vector<4x64x64xf32>
    %42 = arith.truncf %41 : vector<4x64x64xf32> to vector<4x64x64xbf16>
    "tpu.trace_start"() <{level = 10 : i32, message = "bqk,bkd->bqd"}> : () -> ()
    %cst_11 = arith.constant dense<0.000000e+00> : vector<4x64x32xf32>
    %43 = tpu.matmul %42, %27, %cst_11 {dimension_numbers = #tpu.dot_dimension_numbers<[2], [1], [1], [2], [0, 0, 0, 1, 1, 2], [0], [0]>} : vector<4x64x64xbf16>, vector<4x64x32xbf16>, vector<4x64x32xf32> -> vector<4x64x32xf32>
    "tpu.trace_stop"() : () -> ()
    %c0_12 = arith.constant 0 : index
    %c0_13 = arith.constant 0 : index
    %c0_14 = arith.constant 0 : index
    %44 = vector.load %arg20[%c0_12, %c0_13, %c0_14] : memref<4x64x128xf32, #tpu.memory_space<vmem>>, vector<4x64x32xf32>
    tpu.vector_store %arg20[%c0_12, %c0_13, %c0_14], %43 {strides = array<i32>} : memref<4x64x128xf32, #tpu.memory_space<vmem>>, vector<4x64x32xf32>,
    %45 = vector.extract_strided_slice %18 {offsets = [0, 0, 32], sizes = [4, 64, 32], strides = [1, 1, 1]} : vector<4x64x128xbf16> to vector<4x64x32xbf16>
    %46 = vector.extract_strided_slice %21 {offsets = [0, 0, 32], sizes = [4, 64, 32], strides = [1, 1, 1]} : vector<4x64x128xbf16> to vector<4x64x32xbf16>
    %47 = vector.extract_strided_slice %24 {offsets = [0, 0, 32], sizes = [4, 64, 32], strides = [1, 1, 1]} : vector<4x64x128xbf16> to vector<4x64x32xbf16>
    "tpu.trace_start"() <{level = 10 : i32, message = "bqd,bkd->bqk"}> : () -> ()
    %cst_15 = arith.constant dense<0.000000e+00> : vector<4x64x64xf32>
    %48 = tpu.matmul %45, %46, %cst_15 {dimension_numbers = #tpu.dot_dimension_numbers<[2], [2], [1], [1], [0, 0, 0, 1, 1, 1], [0], [0]>} : vector<4x64x32xbf16>, vector<4x64x32xbf16>, vector<4x64x64xf32> -> vector<4x64x64xf32>
    "tpu.trace_stop"() : () -> ()
    %49 = vector.shape_cast %9 : vector<64x64xf32> to vector<1x64x64xf32>
    %50 = vector.broadcast %49 : vector<1x64x64xf32> to vector<4x64x64xf32>
    %51 = arith.addf %48, %50 : vector<4x64x64xf32>
    %cst_16 = arith.constant dense<0xFF800000> : vector<4x64xf32>
    %52 = vector.multi_reduction <maximumf>, %51, %cst_16 [2] : vector<4x64x64xf32> to vector<4x64xf32>
    %53 = vector.shape_cast %52 : vector<4x64xf32> to vector<4x64x1xf32>
    %54 = vector.broadcast %53 : vector<4x64x1xf32> to vector<4x64x64xf32>
    %55 = arith.subf %51, %54 : vector<4x64x64xf32>
    %56 = math.exp %55 : vector<4x64x64xf32>
    %cst_17 = arith.constant dense<0.000000e+00> : vector<4x64xf32>
    %57 = vector.multi_reduction <add>, %56, %cst_17 [2] : vector<4x64x64xf32> to vector<4x64xf32>
    %58 = vector.shape_cast %57 : vector<4x64xf32> to vector<4x64x1xf32>
    %59 = tpu.reciprocal %58 {approx = true} : vector<4x64x1xf32> -> vector<4x64x1xf32>
    %60 = vector.broadcast %59 : vector<4x64x1xf32> to vector<4x64x64xf32>
    %61 = arith.mulf %56, %60 : vector<4x64x64xf32>
    %62 = arith.truncf %61 : vector<4x64x64xf32> to vector<4x64x64xbf16>
    "tpu.trace_start"() <{level = 10 : i32, message = "bqk,bkd->bqd"}> : () -> ()
    %cst_18 = arith.constant dense<0.000000e+00> : vector<4x64x32xf32>
    %63 = tpu.matmul %62, %47, %cst_18 {dimension_numbers = #tpu.dot_dimension_numbers<[2], [1], [1], [2], [0, 0, 0, 1, 1, 2], [0], [0]>} : vector<4x64x64xbf16>, vector<4x64x32xbf16>, vector<4x64x32xf32> -> vector<4x64x32xf32>
    "tpu.trace_stop"() : () -> ()
    %c0_19 = arith.constant 0 : index
    %c0_20 = arith.constant 0 : index
    %c32 = arith.constant 32 : index
    %64 = vector.load %arg20[%c0_19, %c0_20, %c32] : memref<4x64x128xf32, #tpu.memory_space<vmem>>, vector<4x64x32xf32>
    tpu.vector_store %arg20[%c0_19, %c0_20, %c32], %63 {strides = array<i32>} : memref<4x64x128xf32, #tpu.memory_space<vmem>>, vector<4x64x32xf32>,
    %65 = vector.extract_strided_slice %18 {offsets = [0, 0, 64], sizes = [4, 64, 32], strides = [1, 1, 1]} : vector<4x64x128xbf16> to vector<4x64x32xbf16>
    %66 = vector.extract_strided_slice %21 {offsets = [0, 0, 64], sizes = [4, 64, 32], strides = [1, 1, 1]} : vector<4x64x128xbf16> to vector<4x64x32xbf16>
    %67 = vector.extract_strided_slice %24 {offsets = [0, 0, 64], sizes = [4, 64, 32], strides = [1, 1, 1]} : vector<4x64x128xbf16> to vector<4x64x32xbf16>
    "tpu.trace_start"() <{level = 10 : i32, message = "bqd,bkd->bqk"}> : () -> ()
    %cst_21 = arith.constant dense<0.000000e+00> : vector<4x64x64xf32>
    %68 = tpu.matmul %65, %66, %cst_21 {dimension_numbers = #tpu.dot_dimension_numbers<[2], [2], [1], [1], [0, 0, 0, 1, 1, 1], [0], [0]>} : vector<4x64x32xbf16>, vector<4x64x32xbf16>, vector<4x64x64xf32> -> vector<4x64x64xf32>
    "tpu.trace_stop"() : () -> ()
    %69 = vector.shape_cast %9 : vector<64x64xf32> to vector<1x64x64xf32>
    %70 = vector.broadcast %69 : vector<1x64x64xf32> to vector<4x64x64xf32>
    %71 = arith.addf %68, %70 : vector<4x64x64xf32>
    %cst_22 = arith.constant dense<0xFF800000> : vector<4x64xf32>
    %72 = vector.multi_reduction <maximumf>, %71, %cst_22 [2] : vector<4x64x64xf32> to vector<4x64xf32>
    %73 = vector.shape_cast %72 : vector<4x64xf32> to vector<4x64x1xf32>
    %74 = vector.broadcast %73 : vector<4x64x1xf32> to vector<4x64x64xf32>
    %75 = arith.subf %71, %74 : vector<4x64x64xf32>
    %76 = math.exp %75 : vector<4x64x64xf32>
    %cst_23 = arith.constant dense<0.000000e+00> : vector<4x64xf32>
    %77 = vector.multi_reduction <add>, %76, %cst_23 [2] : vector<4x64x64xf32> to vector<4x64xf32>
    %78 = vector.shape_cast %77 : vector<4x64xf32> to vector<4x64x1xf32>
    %79 = tpu.reciprocal %78 {approx = true} : vector<4x64x1xf32> -> vector<4x64x1xf32>
    %80 = vector.broadcast %79 : vector<4x64x1xf32> to vector<4x64x64xf32>
    %81 = arith.mulf %76, %80 : vector<4x64x64xf32>
    %82 = arith.truncf %81 : vector<4x64x64xf32> to vector<4x64x64xbf16>
    "tpu.trace_start"() <{level = 10 : i32, message = "bqk,bkd->bqd"}> : () -> ()
    %cst_24 = arith.constant dense<0.000000e+00> : vector<4x64x32xf32>
    %83 = tpu.matmul %82, %67, %cst_24 {dimension_numbers = #tpu.dot_dimension_numbers<[2], [1], [1], [2], [0, 0, 0, 1, 1, 2], [0], [0]>} : vector<4x64x64xbf16>, vector<4x64x32xbf16>, vector<4x64x32xf32> -> vector<4x64x32xf32>
    "tpu.trace_stop"() : () -> ()
    %c0_25 = arith.constant 0 : index
    %c0_26 = arith.constant 0 : index
    %c64 = arith.constant 64 : index
    %84 = vector.load %arg20[%c0_25, %c0_26, %c64] : memref<4x64x128xf32, #tpu.memory_space<vmem>>, vector<4x64x32xf32>
    tpu.vector_store %arg20[%c0_25, %c0_26, %c64], %83 {strides = array<i32>} : memref<4x64x128xf32, #tpu.memory_space<vmem>>, vector<4x64x32xf32>,
    %85 = vector.extract_strided_slice %18 {offsets = [0, 0, 96], sizes = [4, 64, 32], strides = [1, 1, 1]} : vector<4x64x128xbf16> to vector<4x64x32xbf16>
    %86 = vector.extract_strided_slice %21 {offsets = [0, 0, 96], sizes = [4, 64, 32], strides = [1, 1, 1]} : vector<4x64x128xbf16> to vector<4x64x32xbf16>
    %87 = vector.extract_strided_slice %24 {offsets = [0, 0, 96], sizes = [4, 64, 32], strides = [1, 1, 1]} : vector<4x64x128xbf16> to vector<4x64x32xbf16>
    "tpu.trace_start"() <{level = 10 : i32, message = "bqd,bkd->bqk"}> : () -> ()
    %cst_27 = arith.constant dense<0.000000e+00> : vector<4x64x64xf32>
    %88 = tpu.matmul %85, %86, %cst_27 {dimension_numbers = #tpu.dot_dimension_numbers<[2], [2], [1], [1], [0, 0, 0, 1, 1, 1], [0], [0]>} : vector<4x64x32xbf16>, vector<4x64x32xbf16>, vector<4x64x64xf32> -> vector<4x64x64xf32>
    "tpu.trace_stop"() : () -> ()
    %89 = vector.shape_cast %9 : vector<64x64xf32> to vector<1x64x64xf32>
    %90 = vector.broadcast %89 : vector<1x64x64xf32> to vector<4x64x64xf32>
    %91 = arith.addf %88, %90 : vector<4x64x64xf32>
    %cst_28 = arith.constant dense<0xFF800000> : vector<4x64xf32>
    %92 = vector.multi_reduction <maximumf>, %91, %cst_28 [2] : vector<4x64x64xf32> to vector<4x64xf32>
    %93 = vector.shape_cast %92 : vector<4x64xf32> to vector<4x64x1xf32>
    %94 = vector.broadcast %93 : vector<4x64x1xf32> to vector<4x64x64xf32>
    %95 = arith.subf %91, %94 : vector<4x64x64xf32>
    %96 = math.exp %95 : vector<4x64x64xf32>
    %cst_29 = arith.constant dense<0.000000e+00> : vector<4x64xf32>
    %97 = vector.multi_reduction <add>, %96, %cst_29 [2] : vector<4x64x64xf32> to vector<4x64xf32>
    %98 = vector.shape_cast %97 : vector<4x64xf32> to vector<4x64x1xf32>
    %99 = tpu.reciprocal %98 {approx = true} : vector<4x64x1xf32> -> vector<4x64x1xf32>
    %100 = vector.broadcast %99 : vector<4x64x1xf32> to vector<4x64x64xf32>
    %101 = arith.mulf %96, %100 : vector<4x64x64xf32>
    %102 = arith.truncf %101 : vector<4x64x64xf32> to vector<4x64x64xbf16>
    "tpu.trace_start"() <{level = 10 : i32, message = "bqk,bkd->bqd"}> : () -> ()
    %cst_30 = arith.constant dense<0.000000e+00> : vector<4x64x32xf32>
    %103 = tpu.matmul %102, %87, %cst_30 {dimension_numbers = #tpu.dot_dimension_numbers<[2], [1], [1], [2], [0, 0, 0, 1, 1, 2], [0], [0]>} : vector<4x64x64xbf16>, vector<4x64x32xbf16>, vector<4x64x32xf32> -> vector<4x64x32xf32>
    "tpu.trace_stop"() : () -> ()
    %c0_31 = arith.constant 0 : index
    %c0_32 = arith.constant 0 : index
    %c96 = arith.constant 96 : index
    %104 = vector.load %arg20[%c0_31, %c0_32, %c96] : memref<4x64x128xf32, #tpu.memory_space<vmem>>, vector<4x64x32xf32>
    tpu.vector_store %arg20[%c0_31, %c0_32, %c96], %103 {strides = array<i32>} : memref<4x64x128xf32, #tpu.memory_space<vmem>>, vector<4x64x32xf32>,
    %c0_33 = arith.constant 0 : index
    %c0_34 = arith.constant 0 : index
    %c0_35 = arith.constant 0 : index
    %105 = vector.load %arg20[%c0_33, %c0_34, %c0_35] : memref<4x64x128xf32, #tpu.memory_space<vmem>>, vector<4x64x128xf32>
    %106 = vector.shape_cast %105 : vector<4x64x128xf32> to vector<256x128xf32>
    %107 = arith.truncf %106 : vector<256x128xf32> to vector<256x128xbf16>
    %c0_36 = arith.constant 0 : index
    %c0_37 = arith.constant 0 : index
    %c0_38 = arith.constant 0 : index
    %108 = vector.load %arg4[%c0_36, %c0_37, %c0_38] : memref<1x128x128xbf16, #tpu.memory_space<vmem>>, vector<1x128x128xbf16>
    %109 = vector.shape_cast %108 : vector<1x128x128xbf16> to vector<128x128xbf16>
    %cst_39 = arith.constant dense<0.000000e+00> : vector<256x128xf32>
    %110 = tpu.matmul %107, %109, %cst_39 {dimension_numbers = #tpu.dot_dimension_numbers<[1], [0], [0], [1], [0, 0, 1, 1], [], []>} : vector<256x128xbf16>, vector<128x128xbf16>, vector<256x128xf32> -> vector<256x128xf32>
    %c0_40 = arith.constant 0 : index
    %c0_41 = arith.constant 0 : index
    %c0_42 = arith.constant 0 : index
    %111 = vector.load %arg5[%c0_40, %c0_41, %c0_42] : memref<1x1x128xf32, #tpu.memory_space<vmem>>, vector<1x1x128xf32>
    %112 = vector.shape_cast %111 : vector<1x1x128xf32> to vector<1x128xf32>
    %113 = vector.broadcast %112 : vector<1x128xf32> to vector<256x128xf32>
    %114 = arith.addf %110, %113 : vector<256x128xf32>
    %115 = arith.addf %3, %114 : vector<256x128xf32>
    %c0_43 = arith.constant 0 : index
    %c0_44 = arith.constant 0 : index
    %c0_45 = arith.constant 0 : index
    %116 = vector.load %arg6[%c0_43, %c0_44, %c0_45] : memref<1x1x128xf32, #tpu.memory_space<vmem>>, vector<1x1x128xf32>
    %117 = vector.shape_cast %116 : vector<1x1x128xf32> to vector<1x128xf32>
    %c0_46 = arith.constant 0 : index
    %c0_47 = arith.constant 0 : index
    %c0_48 = arith.constant 0 : index
    %118 = vector.load %arg7[%c0_46, %c0_47, %c0_48] : memref<1x1x128xf32, #tpu.memory_space<vmem>>, vector<1x1x128xf32>
    %119 = vector.shape_cast %118 : vector<1x1x128xf32> to vector<1x128xf32>
    %cst_49 = arith.constant dense<0.000000e+00> : vector<256xf32>
    %120 = vector.multi_reduction <add>, %115, %cst_49 [1] : vector<256x128xf32> to vector<256xf32>
    %121 = vector.shape_cast %120 : vector<256xf32> to vector<256x1xf32>
    %cst_50 = arith.constant 1.280000e+02 : f32
    %122 = vector.broadcast %cst_50 : f32 to vector<256x1xf32>
    %123 = arith.divf %121, %122 : vector<256x1xf32>
    %124 = vector.broadcast %123 : vector<256x1xf32> to vector<256x128xf32>
    %125 = arith.subf %115, %124 : vector<256x128xf32>
    %126 = arith.mulf %125, %125 : vector<256x128xf32>
    %cst_51 = arith.constant dense<0.000000e+00> : vector<256xf32>
    %127 = vector.multi_reduction <add>, %126, %cst_51 [1] : vector<256x128xf32> to vector<256xf32>
    %128 = vector.shape_cast %127 : vector<256xf32> to vector<256x1xf32>
    %cst_52 = arith.constant 1.280000e+02 : f32
    %129 = vector.broadcast %cst_52 : f32 to vector<256x1xf32>
    %130 = arith.divf %128, %129 : vector<256x1xf32>
    %cst_53 = arith.constant 9.99999974E-6 : f32
    %131 = vector.broadcast %cst_53 : f32 to vector<256x1xf32>
    %132 = arith.addf %130, %131 : vector<256x1xf32>
    %133 = math.rsqrt %132 : vector<256x1xf32>
    %134 = vector.broadcast %133 : vector<256x1xf32> to vector<256x128xf32>
    %135 = arith.mulf %125, %134 : vector<256x128xf32>
    %136 = vector.broadcast %117 : vector<1x128xf32> to vector<256x128xf32>
    %137 = arith.mulf %135, %136 : vector<256x128xf32>
    %138 = vector.broadcast %119 : vector<1x128xf32> to vector<256x128xf32>
    %139 = arith.addf %137, %138 : vector<256x128xf32>
    %140 = arith.truncf %139 : vector<256x128xf32> to vector<256x128xbf16>
    %c0_54 = arith.constant 0 : index
    %c0_55 = arith.constant 0 : index
    %c0_56 = arith.constant 0 : index
    %141 = vector.load %arg8[%c0_54, %c0_55, %c0_56] : memref<1x128x512xbf16, #tpu.memory_space<vmem>>, vector<1x128x512xbf16>
    %142 = vector.shape_cast %141 : vector<1x128x512xbf16> to vector<128x512xbf16>
    %cst_57 = arith.constant dense<0.000000e+00> : vector<256x512xf32>
    %143 = tpu.matmul %140, %142, %cst_57 {dimension_numbers = #tpu.dot_dimension_numbers<[1], [0], [0], [1], [0, 0, 1, 1], [], []>} : vector<256x128xbf16>, vector<128x512xbf16>, vector<256x512xf32> -> vector<256x512xf32>
    %c0_58 = arith.constant 0 : index
    %c0_59 = arith.constant 0 : index
    %c0_60 = arith.constant 0 : index
    %144 = vector.load %arg9[%c0_58, %c0_59, %c0_60] : memref<1x1x512xf32, #tpu.memory_space<vmem>>, vector<1x1x512xf32>
    %145 = vector.shape_cast %144 : vector<1x1x512xf32> to vector<1x512xf32>
    %146 = vector.broadcast %145 : vector<1x512xf32> to vector<256x512xf32>
    %147 = arith.addf %143, %146 : vector<256x512xf32>
    %cst_61 = arith.constant 0.000000e+00 : f32
    %148 = vector.broadcast %cst_61 : f32 to vector<256x512xf32>
    %149 = arith.maximumf %147, %148 : vector<256x512xf32>
    %150 = arith.truncf %149 : vector<256x512xf32> to vector<256x512xbf16>
    %c0_62 = arith.constant 0 : index
    %c0_63 = arith.constant 0 : index
    %c0_64 = arith.constant 0 : index
    %151 = vector.load %arg10[%c0_62, %c0_63, %c0_64] : memref<1x512x128xbf16, #tpu.memory_space<vmem>>, vector<1x512x128xbf16>
    %152 = vector.shape_cast %151 : vector<1x512x128xbf16> to vector<512x128xbf16>
    %cst_65 = arith.constant dense<0.000000e+00> : vector<256x128xf32>
    %153 = tpu.matmul %150, %152, %cst_65 {dimension_numbers = #tpu.dot_dimension_numbers<[1], [0], [0], [1], [0, 0, 1, 1], [], []>} : vector<256x512xbf16>, vector<512x128xbf16>, vector<256x128xf32> -> vector<256x128xf32>
    %c0_66 = arith.constant 0 : index
    %c0_67 = arith.constant 0 : index
    %c0_68 = arith.constant 0 : index
    %154 = vector.load %arg11[%c0_66, %c0_67, %c0_68] : memref<1x1x128xf32, #tpu.memory_space<vmem>>, vector<1x1x128xf32>
    %155 = vector.shape_cast %154 : vector<1x1x128xf32> to vector<1x128xf32>
    %156 = vector.broadcast %155 : vector<1x128xf32> to vector<256x128xf32>
    %157 = arith.addf %153, %156 : vector<256x128xf32>
    %158 = arith.addf %139, %157 : vector<256x128xf32>
    %c0_69 = arith.constant 0 : index
    %c0_70 = arith.constant 0 : index
    %c0_71 = arith.constant 0 : index
    %159 = vector.load %arg12[%c0_69, %c0_70, %c0_71] : memref<1x1x128xf32, #tpu.memory_space<vmem>>, vector<1x1x128xf32>
    %160 = vector.shape_cast %159 : vector<1x1x128xf32> to vector<1x128xf32>
    %c0_72 = arith.constant 0 : index
    %c0_73 = arith.constant 0 : index
    %c0_74 = arith.constant 0 : index
    %161 = vector.load %arg13[%c0_72, %c0_73, %c0_74] : memref<1x1x128xf32, #tpu.memory_space<vmem>>, vector<1x1x128xf32>
    %162 = vector.shape_cast %161 : vector<1x1x128xf32> to vector<1x128xf32>
    %cst_75 = arith.constant dense<0.000000e+00> : vector<256xf32>
    %163 = vector.multi_reduction <add>, %158, %cst_75 [1] : vector<256x128xf32> to vector<256xf32>
    %164 = vector.shape_cast %163 : vector<256xf32> to vector<256x1xf32>
    %cst_76 = arith.constant 1.280000e+02 : f32
    %165 = vector.broadcast %cst_76 : f32 to vector<256x1xf32>
    %166 = arith.divf %164, %165 : vector<256x1xf32>
    %167 = vector.broadcast %166 : vector<256x1xf32> to vector<256x128xf32>
    %168 = arith.subf %158, %167 : vector<256x128xf32>
    %169 = arith.mulf %168, %168 : vector<256x128xf32>
    %cst_77 = arith.constant dense<0.000000e+00> : vector<256xf32>
    %170 = vector.multi_reduction <add>, %169, %cst_77 [1] : vector<256x128xf32> to vector<256xf32>
    %171 = vector.shape_cast %170 : vector<256xf32> to vector<256x1xf32>
    %cst_78 = arith.constant 1.280000e+02 : f32
    %172 = vector.broadcast %cst_78 : f32 to vector<256x1xf32>
    %173 = arith.divf %171, %172 : vector<256x1xf32>
    %cst_79 = arith.constant 9.99999974E-6 : f32
    %174 = vector.broadcast %cst_79 : f32 to vector<256x1xf32>
    %175 = arith.addf %173, %174 : vector<256x1xf32>
    %176 = math.rsqrt %175 : vector<256x1xf32>
    %177 = vector.broadcast %176 : vector<256x1xf32> to vector<256x128xf32>
    %178 = arith.mulf %168, %177 : vector<256x128xf32>
    %179 = vector.broadcast %160 : vector<1x128xf32> to vector<256x128xf32>
    %180 = arith.mulf %178, %179 : vector<256x128xf32>
    %181 = vector.broadcast %162 : vector<1x128xf32> to vector<256x128xf32>
    %182 = arith.addf %180, %181 : vector<256x128xf32>
    %c0_80 = arith.constant 0 : index
    %c0_81 = arith.constant 0 : index
    %183 = vector.load %arg19[%c0_80, %c0_81] : memref<256x128xf32, #tpu.memory_space<vmem>>, vector<256x128xf32>
    tpu.vector_store %arg19[%c0_80, %c0_81], %182 {strides = array<i32>} : memref<256x128xf32, #tpu.memory_space<vmem>>, vector<256x128xf32>,
    %c1_i32 = arith.constant 1 : i32
    %184 = arith.cmpi eq, %arg1, %c1_i32 : i32
    %185 = arith.extui %184 : i1 to i32
    %c0_i32_82 = arith.constant 0 : i32
    %186 = arith.cmpi ne, %185, %c0_i32_82 : i32
    scf.if %186 {
      %c0_83 = arith.constant 0 : index
      %c0_84 = arith.constant 0 : index
      %187 = vector.load %arg14[%c0_83, %c0_84] : memref<1x128xf32, #tpu.memory_space<vmem>>, vector<1x128xf32>
      %c0_85 = arith.constant 0 : index
      %c0_86 = arith.constant 0 : index
      %188 = vector.load %arg15[%c0_85, %c0_86] : memref<1x128xf32, #tpu.memory_space<vmem>>, vector<1x128xf32>
      %cst_87 = arith.constant dense<0.000000e+00> : vector<256xf32>
      %189 = vector.multi_reduction <add>, %182, %cst_87 [1] : vector<256x128xf32> to vector<256xf32>
      %190 = vector.shape_cast %189 : vector<256xf32> to vector<256x1xf32>
      %cst_88 = arith.constant 1.280000e+02 : f32
      %191 = vector.broadcast %cst_88 : f32 to vector<256x1xf32>
      %192 = arith.divf %190, %191 : vector<256x1xf32>
      %193 = vector.broadcast %192 : vector<256x1xf32> to vector<256x128xf32>
      %194 = arith.subf %182, %193 : vector<256x128xf32>
      %195 = arith.mulf %194, %194 : vector<256x128xf32>
      %cst_89 = arith.constant dense<0.000000e+00> : vector<256xf32>
      %196 = vector.multi_reduction <add>, %195, %cst_89 [1] : vector<256x128xf32> to vector<256xf32>
      %197 = vector.shape_cast %196 : vector<256xf32> to vector<256x1xf32>
      %cst_90 = arith.constant 1.280000e+02 : f32
      %198 = vector.broadcast %cst_90 : f32 to vector<256x1xf32>
      %199 = arith.divf %197, %198 : vector<256x1xf32>
      %cst_91 = arith.constant 9.99999974E-6 : f32
      %200 = vector.broadcast %cst_91 : f32 to vector<256x1xf32>
      %201 = arith.addf %199, %200 : vector<256x1xf32>
      %202 = math.rsqrt %201 : vector<256x1xf32>
      %203 = vector.broadcast %202 : vector<256x1xf32> to vector<256x128xf32>
      %204 = arith.mulf %194, %203 : vector<256x128xf32>
      %205 = vector.broadcast %187 : vector<1x128xf32> to vector<256x128xf32>
      %206 = arith.mulf %204, %205 : vector<256x128xf32>
      %207 = vector.broadcast %188 : vector<1x128xf32> to vector<256x128xf32>
      %208 = arith.addf %206, %207 : vector<256x128xf32>
      %209 = arith.truncf %208 : vector<256x128xf32> to vector<256x128xbf16>
      %c0_92 = arith.constant 0 : index
      %c0_93 = arith.constant 0 : index
      %210 = vector.load %arg16[%c0_92, %c0_93] : memref<128x256xbf16, #tpu.memory_space<vmem>>, vector<128x256xbf16>
      %cst_94 = arith.constant dense<0.000000e+00> : vector<256x256xf32>
      %211 = tpu.matmul %209, %210, %cst_94 {dimension_numbers = #tpu.dot_dimension_numbers<[1], [0], [0], [1], [0, 0, 1, 1], [], []>} : vector<256x128xbf16>, vector<128x256xbf16>, vector<256x256xf32> -> vector<256x256xf32>
      %c0_95 = arith.constant 0 : index
      %c0_96 = arith.constant 0 : index
      %212 = vector.load %arg17[%c0_95, %c0_96] : memref<1x256xf32, #tpu.memory_space<vmem>>, vector<1x256xf32>
      %213 = vector.broadcast %212 : vector<1x256xf32> to vector<256x256xf32>
      %214 = arith.addf %211, %213 : vector<256x256xf32>
      %215 = vector.shape_cast %214 : vector<256x256xf32> to vector<4x64x256xf32>
      %c0_97 = arith.constant 0 : index
      %c0_98 = arith.constant 0 : index
      %c0_99 = arith.constant 0 : index
      %216 = vector.load %arg18[%c0_97, %c0_98, %c0_99] : memref<4x64x256xf32, #tpu.memory_space<vmem>>, vector<4x64x256xf32>
      tpu.vector_store %arg18[%c0_97, %c0_98, %c0_99], %215 {strides = array<i32>} : memref<4x64x256xf32, #tpu.memory_space<vmem>>, vector<4x64x256xf32>,
    } else {
    }
    return
  }
  func.func @transform_0(%arg0: i32, %arg1: i32) -> (i32, i32, i32) {
    %c0_i32 = arith.constant 0 : i32
    %c0_i32_0 = arith.constant 0 : i32
    %c0_i32_1 = arith.constant 0 : i32
    return %arg0, %c0_i32, %c0_i32_0 : i32, i32, i32
  }
  func.func @transform_1(%arg0: i32, %arg1: i32) -> (i32, i32, i32) {
    %c0_i32 = arith.constant 0 : i32
    %c0_i32_0 = arith.constant 0 : i32
    %c0_i32_1 = arith.constant 0 : i32
    return %arg1, %c0_i32, %c0_i32_0 : i32, i32, i32
  }
  func.func @transform_2(%arg0: i32, %arg1: i32) -> (i32, i32, i32) {
    %c0_i32 = arith.constant 0 : i32
    %c0_i32_0 = arith.constant 0 : i32
    %c0_i32_1 = arith.constant 0 : i32
    return %arg1, %c0_i32, %c0_i32_0 : i32, i32, i32
  }
  func.func @transform_3(%arg0: i32, %arg1: i32) -> (i32, i32, i32) {
    %c0_i32 = arith.constant 0 : i32
    %c0_i32_0 = arith.constant 0 : i32
    %c0_i32_1 = arith.constant 0 : i32
    return %arg1, %c0_i32, %c0_i32_0 : i32, i32, i32
  }
  func.func @transform_4(%arg0: i32, %arg1: i32) -> (i32, i32, i32) {
    %c0_i32 = arith.constant 0 : i32
    %c0_i32_0 = arith.constant 0 : i32
    %c0_i32_1 = arith.constant 0 : i32
    return %arg1, %c0_i32, %c0_i32_0 : i32, i32, i32
  }
  func.func @transform_5(%arg0: i32, %arg1: i32) -> (i32, i32, i32) {
    %c0_i32 = arith.constant 0 : i32
    %c0_i32_0 = arith.constant 0 : i32
    %c0_i32_1 = arith.constant 0 : i32
    return %arg1, %c0_i32, %c0_i32_0 : i32, i32, i32
  }
  func.func @transform_6(%arg0: i32, %arg1: i32) -> (i32, i32, i32) {
    %c0_i32 = arith.constant 0 : i32
    %c0_i32_0 = arith.constant 0 : i32
    %c0_i32_1 = arith.constant 0 : i32
    return %arg1, %c0_i32, %c0_i32_0 : i32, i32, i32
  }
  func.func @transform_7(%arg0: i32, %arg1: i32) -> (i32, i32, i32) {
    %c0_i32 = arith.constant 0 : i32
    %c0_i32_0 = arith.constant 0 : i32
    %c0_i32_1 = arith.constant 0 : i32
    return %arg1, %c0_i32, %c0_i32_0 : i32, i32, i32
  }
  func.func @transform_8(%arg0: i32, %arg1: i32) -> (i32, i32, i32) {
    %c0_i32 = arith.constant 0 : i32
    %c0_i32_0 = arith.constant 0 : i32
    %c0_i32_1 = arith.constant 0 : i32
    return %arg1, %c0_i32, %c0_i32_0 : i32, i32, i32
  }
  func.func @transform_9(%arg0: i32, %arg1: i32) -> (i32, i32, i32) {
    %c0_i32 = arith.constant 0 : i32
    %c0_i32_0 = arith.constant 0 : i32
    %c0_i32_1 = arith.constant 0 : i32
    return %arg1, %c0_i32, %c0_i32_0 : i32, i32, i32
  }
  func.func @transform_10(%arg0: i32, %arg1: i32) -> (i32, i32, i32) {
    %c0_i32 = arith.constant 0 : i32
    %c0_i32_0 = arith.constant 0 : i32
    %c0_i32_1 = arith.constant 0 : i32
    return %arg1, %c0_i32, %c0_i32_0 : i32, i32, i32
  }
  func.func @transform_11(%arg0: i32, %arg1: i32) -> (i32, i32, i32) {
    %c0_i32 = arith.constant 0 : i32
    %c0_i32_0 = arith.constant 0 : i32
    %c0_i32_1 = arith.constant 0 : i32
    return %arg1, %c0_i32, %c0_i32_0 : i32, i32, i32
  }
  func.func @transform_12(%arg0: i32, %arg1: i32) -> (i32, i32) {
    %c0_i32 = arith.constant 0 : i32
    %c0_i32_0 = arith.constant 0 : i32
    %c0_i32_1 = arith.constant 0 : i32
    return %c0_i32, %c0_i32_0 : i32, i32
  }
  func.func @transform_13(%arg0: i32, %arg1: i32) -> (i32, i32) {
    %c0_i32 = arith.constant 0 : i32
    %c0_i32_0 = arith.constant 0 : i32
    %c0_i32_1 = arith.constant 0 : i32
    return %c0_i32, %c0_i32_0 : i32, i32
  }
  func.func @transform_14(%arg0: i32, %arg1: i32) -> (i32, i32) {
    %c0_i32 = arith.constant 0 : i32
    %c0_i32_0 = arith.constant 0 : i32
    %c0_i32_1 = arith.constant 0 : i32
    return %c0_i32, %c0_i32_0 : i32, i32
  }
  func.func @transform_15(%arg0: i32, %arg1: i32) -> (i32, i32) {
    %c0_i32 = arith.constant 0 : i32
    %c0_i32_0 = arith.constant 0 : i32
    %c0_i32_1 = arith.constant 0 : i32
    return %c0_i32, %c0_i32_0 : i32, i32
  }
  func.func @transform_16(%arg0: i32, %arg1: i32) -> (i32, i32, i32) {
    %c0_i32 = arith.constant 0 : i32
    %c0_i32_0 = arith.constant 0 : i32
    %c0_i32_1 = arith.constant 0 : i32
    return %arg0, %c0_i32, %c0_i32_0 : i32, i32, i32
  }
}

</mosaic_0001>

<llo_original>
// kernel: transformer_lm_forward.1
$region0: #{transformer_lm_forward.1}
  #allocation0 [shape = 'u32[]', space=smem, size = 0x4, offset = 0x4, fixed_abs, tag = 'smem constant byte address 0x4 - core index']
  #allocation1 [shape = 'u32[144,128]{1,0:T(1,128)}', space=vmem, size = 0x12000, scoped, tag = 'internal scratch']
  #allocation2 [shape = 'f32[256,128]{1,0:T(8,128)}', space=vmem, size = 0x20000, scoped, tag = 'scratch operand']
  #allocation3 [shape = 'f32[4,64,128]{2,1,0:T(8,128)}', space=vmem, size = 0x20000, scoped, tag = 'scratch operand']
  %s0 = inlined_call_operand.hbm [shape: f32[8,64,128], index: 0, kind: input, shape index: {}]
  %s1 = inlined_call_operand.hbm [shape: bf16[2,128,384], index: 1, kind: input, shape index: {}]
  %s2 = inlined_call_operand.hbm [shape: bf16[2,128,128], index: 2, kind: input, shape index: {}]
  %s3 = inlined_call_operand.hbm [shape: f32[2,1,128], index: 3, kind: input, shape index: {}]
  %s4 = inlined_call_operand.hbm [shape: f32[2,1,128], index: 4, kind: input, shape index: {}]
  %s5 = inlined_call_operand.hbm [shape: f32[2,1,128], index: 5, kind: input, shape index: {}]
  %s6 = inlined_call_operand.hbm [shape: bf16[2,128,512], index: 6, kind: input, shape index: {}]
  %s7 = inlined_call_operand.hbm [shape: f32[2,1,512], index: 7, kind: input, shape index: {}]
  %s8 = inlined_call_operand.hbm [shape: bf16[2,512,128], index: 8, kind: input, shape index: {}]
  %s9 = inlined_call_operand.hbm [shape: f32[2,1,128], index: 9, kind: input, shape index: {}]
  %s10 = inlined_call_operand.hbm [shape: f32[2,1,128], index: 10, kind: input, shape index: {}]
  %s11 = inlined_call_operand.hbm [shape: f32[2,1,128], index: 11, kind: input, shape index: {}]
  %s12 = inlined_call_operand.hbm [shape: f32[1,128], index: 12, kind: input, shape index: {}]
  %s13 = inlined_call_operand.hbm [shape: f32[1,128], index: 13, kind: input, shape index: {}]
  %s14 = inlined_call_operand.hbm [shape: bf16[128,256], index: 14, kind: input, shape index: {}]
  %s15 = inlined_call_operand.hbm [shape: f32[1,256], index: 15, kind: input, shape index: {}]
  %s16 = inlined_call_operand.hbm [shape: f32[8,64,256], index: 16, kind: output, shape index: {}]
  %s17 = sld [smem:[#allocation0]]
  $region169: #{transformer_lm_forward.1} parent=0
    _
  %s19 = ssub.s32 1, %s17
  %s20 = scalar_select 0, %s19, %s17
  $region1: #{transformer_lm_forward.1} parent=0
    #allocation4 [shape = 'u8[262144]{0}', space=vmem, size = 0x40000, scoped, tag = 'input window, operand 0']
    #allocation5 [shape = 's32[2]{0}', space=sflag, size = 0x8, scoped, tag = 'scoped memory for transformer_lm_forward.1']
    #allocation6 [shape = 's32[2]{0}', space=sflag, size = 0x8, scoped, tag = 'scoped memory for transformer_lm_forward.1']
    #allocation7 [shape = 'u8[196608]{0}', space=vmem, size = 0x30000, scoped, tag = 'input window, operand 1']
    #allocation8 [shape = 's32[2]{0}', space=sflag, size = 0x8, scoped, tag = 'scoped memory for transformer_lm_forward.1']
    #allocation9 [shape = 'u8[65536]{0}', space=vmem, size = 0x10000, scoped, tag = 'input window, operand 2']
    #allocation10 [shape = 'u8[1024]{0}', space=vmem, size = 0x400, scoped, tag = 'input window, operand 3']
    #allocation11 [shape = 's32[2]{0}', space=sflag, size = 0x8, scoped, tag = 'scoped memory for transformer_lm_forward.1']
    #allocation12 [shape = 'u8[1024]{0}', space=vmem, size = 0x400, scoped, tag = 'input window, operand 4']
    #allocation13 [shape = 'u8[1024]{0}', space=vmem, size = 0x400, scoped, tag = 'input window, operand 5']
    #allocation14 [shape = 's32[2]{0}', space=sflag, size = 0x8, scoped, tag = 'scoped memory for transformer_lm_forward.1']
    #allocation15 [shape = 'u8[262144]{0}', space=vmem, size = 0x40000, scoped, tag = 'input window, operand 6']
    #allocation16 [shape = 'u8[4096]{0}', space=vmem, size = 0x1000, scoped, tag = 'input window, operand 7']
    #allocation17 [shape = 's32[2]{0}', space=sflag, size = 0x8, scoped, tag = 'scoped memory for transformer_lm_forward.1']
    #allocation18 [shape = 'u8[262144]{0}', space=vmem, size = 0x40000, scoped, tag = 'input window, operand 8']
    #allocation19 [shape = 'u8[1024]{0}', space=vmem, size = 0x400, scoped, tag = 'input window, operand 9']
    #allocation20 [shape = 's32[2]{0}', space=sflag, size = 0x8, scoped, tag = 'scoped memory for transformer_lm_forward.1']
    #allocation21 [shape = 'u8[1024]{0}', space=vmem, size = 0x400, scoped, tag = 'input window, operand 10']
    #allocation22 [shape = 'u8[1024]{0}', space=vmem, size = 0x400, scoped, tag = 'input window, operand 11']
    #allocation23 [shape = 's32[2]{0}', space=sflag, size = 0x8, scoped, tag = 'scoped memory for transformer_lm_forward.1']
    #allocation24 [shape = 'u8[512]{0}', space=vmem, size = 0x400, scoped, tag = 'input window, operand 12, single buffered']
    #allocation25 [shape = 'u8[512]{0}', space=vmem, size = 0x400, scoped, tag = 'input window, operand 13, single buffered']
    #allocation26 [shape = 's32[1]{0}', space=sflag, size = 0x4, scoped, tag = 'scoped memory for transformer_lm_forward.1']
    #allocation27 [shape = 'u8[65536]{0}', space=vmem, size = 0x10000, scoped, tag = 'input window, operand 14, single buffered']
    #allocation28 [shape = 'u8[1024]{0}', space=vmem, size = 0x400, scoped, tag = 'input window, operand 15, single buffered']
    #allocation29 [shape = 's32[1]{0}', space=sflag, size = 0x4, scoped, tag = 'scoped memory for transformer_lm_forward.1']
    #allocation30 [shape = 'u8[524288]{0}', space=vmem, size = 0x80000, scoped, tag = 'output window, operand 0']
    %21 = vsyncpa [#allocation5], 0
    %s22 = scalar_lea.sflag [#allocation5], 1
    %23 = vsyncpa %s22, 0
    %24 = vsyncpa [#allocation8], 0
    %s25 = scalar_lea.sflag [#allocation8], 1
    %26 = vsyncpa %s25, 0
    %27 = vsyncpa [#allocation11], 0
    %s28 = scalar_lea.sflag [#allocation11], 1
    %29 = vsyncpa %s28, 0
    %30 = vsyncpa [#allocation14], 0
    %s31 = scalar_lea.sflag [#allocation14], 1
    %32 = vsyncpa %s31, 0
    %33 = vsyncpa [#allocation17], 0
    %s34 = scalar_lea.sflag [#allocation17], 1
    %35 = vsyncpa %s34, 0
    %36 = vsyncpa [#allocation20], 0
    %s37 = scalar_lea.sflag [#allocation20], 1
    %38 = vsyncpa %s37, 0
    %39 = vsyncpa [#allocation23], 0
    %s40 = scalar_lea.sflag [#allocation23], 1
    %41 = vsyncpa %s40, 0
    %42 = vsyncpa [#allocation26], 0
    %43 = vsyncpa [#allocation29], 0
    %44 = vsyncpa [#allocation6], 0
    %s45 = scalar_lea.sflag [#allocation6], 1
    %46 = vsyncpa %s45, 0
    loop: start=0, step=1, limit=6
    $region2: #{transformer_lm_forward.1} parent=1 // loop_pre_header
      _
    $region3: #{transformer_lm_forward.1} parent=1 // loop_header
      %s48 = sphi 0, %s52
      %p49 = scmp.ge.s32.totalorder %s48, 6
      %s55 = sphi 0, %s67
      %s56 = sphi 0, %s63
      %s57 = sphi 0, %s55
      %s58 = sphi 0, %s56
      %s59 = sphi 0, %s57
      %s60 = sphi 0, %s58
      %s70 = sphi 0, %s72
      %s73 = sphi 0, %s70
      %s74 = sphi 0, %s73
      %s90 = sphi 0, %s74
      %s96 = sphi 0, %s98
      %s99 = sphi 0, %s96
      %s100 = sphi 0, %s99
      %s116 = sphi 0, %s100
      %s122 = sphi 0, %s124
      %s125 = sphi 0, %s122
      %s126 = sphi 0, %s125
      %s142 = sphi 0, %s126
      %s148 = sphi 0, %s150
      %s151 = sphi 0, %s148
      %s152 = sphi 0, %s151
      %s168 = sphi 0, %s152
      %s174 = sphi 0, %s176
      %s177 = sphi 0, %s174
      %s178 = sphi 0, %s177
      %s194 = sphi 0, %s178
      %s200 = sphi 0, %s202
      %s203 = sphi 0, %s200
      %s204 = sphi 0, %s203
      %s220 = sphi 0, %s204
      %s226 = sphi 0, %s228
      %s229 = sphi 0, %s226
      %s230 = sphi 0, %s229
      %s246 = sphi 0, %s230
      %s252 = sphi 0, %s254
      %s255 = sphi 0, %s252
      %s256 = sphi 0, %s255
      %s272 = sphi 0, %s256
      %s278 = sphi 0, %s280
      %s281 = sphi 0, %s278
      %s282 = sphi 0, %s281
      %s298 = sphi 0, %s282
      %s304 = sphi 0, %s306
      %s307 = sphi 0, %s304
      %s308 = sphi 0, %s307
      %s324 = sphi 0, %s308
      %s330 = sphi 0, %s332
      %s333 = sphi 0, %s330
      %s334 = sphi 0, %s333
      %s350 = sphi 0, %s334
      %s356 = sphi 0, %s358
      %s359 = sphi 0, %s356
      %s360 = sphi 0, %s359
      %s376 = sphi 0, %s360
      %s380 = sphi 0, %s380
      %s382 = sphi 0, %s380
      %s383 = sphi 0, %s382
      %s397 = sphi 0, %s383
      %s401 = sphi 0, %s401
      %s403 = sphi 0, %s401
      %s404 = sphi 0, %s403
      %s418 = sphi 0, %s404
      %s422 = sphi 0, %s422
      %s424 = sphi 0, %s422
      %s425 = sphi 0, %s424
      %s439 = sphi 0, %s425
      %s443 = sphi 0, %s443
      %s445 = sphi 0, %s443
      %s446 = sphi 0, %s445
      %s460 = sphi 0, %s446
      %s466 = sphi 0, %s468
      %s469 = sphi 0, %s466
      %s470 = sphi 0, %s469
      %s486 = sphi 0, %s470
    $region4: #{transformer_lm_forward.1} parent=1 // loop_header_branch
      %51 = sbr.rel (%p49) target = $region8
    $region5: #{transformer_lm_forward.1} parent=1 // loop_body
      %s53 = ssub.s32 %s48, 1
      %s54 = ssub.s32 %s48, 2
      %s61 = sadd.s32 1, %s56
      %p62 = scmp.ge.s32.totalorder %s61, 2
      %s63 = scalar_select %p62, 0, %s61
      %s64 = sadd.s32 1, %s55
      %s65 = scalar_select %p62, %s64, %s55
      %p66 = scmp.ge.s32.totalorder %s65, 2
      %s67 = scalar_select %p66, 0, %s65
      %s68 = ssub.s32 %s55, %s67
      %p69 = scmp.eq.s32.totalorder %s68, 0
      %s71 = sadd.s32 %s70, 1
      %s72 = scalar_select %p69, %s70, %s71
      %p75 = pneg %p69
      %p76 = scmp.eq.s32.totalorder %s48, 3
      %p77 = por %p75, %p76
      %p78 = scmp.ne.s32.totalorder %s70, %s73
      %p79 = scmp.eq.s32.totalorder %s48, 0
      %p80 = por %p78, %p79
      %p81 = scmp.ne.s32.totalorder %s70, %s73
      %p82 = scmp.eq.s32.totalorder %s53, 3
      %p83 = por %p81, %p82
      %p84 = scmp.ne.s32.totalorder %s73, %s74
      %p85 = scmp.eq.s32.totalorder %s53, 0
      %p86 = por %p84, %p85
      %p87 = scmp.ne.s32.totalorder %s73, %s74
      %p88 = scmp.eq.s32.totalorder %s54, 3
      %p89 = por %p87, %p88
      %p91 = scmp.ne.s32.totalorder %s74, %s90
      %p92 = scmp.eq.s32.totalorder %s54, 0
      %p93 = por %p91, %p92
      %s94 = ssub.s32 %s56, %s63
      %p95 = scmp.eq.s32.totalorder %s94, 0
      %s97 = sadd.s32 %s96, 1
      %s98 = scalar_select %p95, %s96, %s97
      %p101 = pneg %p95
      %p102 = scmp.eq.s32.totalorder %s48, 3
      %p103 = por %p101, %p102
      %p104 = scmp.ne.s32.totalorder %s96, %s99
      %p105 = scmp.eq.s32.totalorder %s48, 0
      %p106 = por %p104, %p105
      %p107 = scmp.ne.s32.totalorder %s96, %s99
      %p108 = scmp.eq.s32.totalorder %s53, 3
      %p109 = por %p107, %p108
      %p110 = scmp.ne.s32.totalorder %s99, %s100
      %p111 = scmp.eq.s32.totalorder %s53, 0
      %p112 = por %p110, %p111
      %p113 = scmp.ne.s32.totalorder %s99, %s100
      %p114 = scmp.eq.s32.totalorder %s54, 3
      %p115 = por %p113, %p114
      %p117 = scmp.ne.s32.totalorder %s100, %s116
      %p118 = scmp.eq.s32.totalorder %s54, 0
      %p119 = por %p117, %p118
      %s120 = ssub.s32 %s56, %s63
      %p121 = scmp.eq.s32.totalorder %s120, 0
      %s123 = sadd.s32 %s122, 1
      %s124 = scalar_select %p121, %s122, %s123
      %p127 = pneg %p121
      %p128 = scmp.eq.s32.totalorder %s48, 3
      %p129 = por %p127, %p128
      %p130 = scmp.ne.s32.totalorder %s122, %s125
      %p131 = scmp.eq.s32.totalorder %s48, 0
      %p132 = por %p130, %p131
      %p133 = scmp.ne.s32.totalorder %s122, %s125
      %p134 = scmp.eq.s32.totalorder %s53, 3
      %p135 = por %p133, %p134
      %p136 = scmp.ne.s32.totalorder %s125, %s126
      %p137 = scmp.eq.s32.totalorder %s53, 0
      %p138 = por %p136, %p137
      %p139 = scmp.ne.s32.totalorder %s125, %s126
      %p140 = scmp.eq.s32.totalorder %s54, 3
      %p141 = por %p139, %p140
      %p143 = scmp.ne.s32.totalorder %s126, %s142
      %p144 = scmp.eq.s32.totalorder %s54, 0
      %p145 = por %p143, %p144
      %s146 = ssub.s32 %s56, %s63
      %p147 = scmp.eq.s32.totalorder %s146, 0
      %s149 = sadd.s32 %s148, 1
      %s150 = scalar_select %p147, %s148, %s149
      %p153 = pneg %p147
      %p154 = scmp.eq.s32.totalorder %s48, 3
      %p155 = por %p153, %p154
      %p156 = scmp.ne.s32.totalorder %s148, %s151
      %p157 = scmp.eq.s32.totalorder %s48, 0
      %p158 = por %p156, %p157
      %p159 = scmp.ne.s32.totalorder %s148, %s151
      %p160 = scmp.eq.s32.totalorder %s53, 3
      %p161 = por %p159, %p160
      %p162 = scmp.ne.s32.totalorder %s151, %s152
      %p163 = scmp.eq.s32.totalorder %s53, 0
      %p164 = por %p162, %p163
      %p165 = scmp.ne.s32.totalorder %s151, %s152
      %p166 = scmp.eq.s32.totalorder %s54, 3
      %p167 = por %p165, %p166
      %p169 = scmp.ne.s32.totalorder %s152, %s168
      %p170 = scmp.eq.s32.totalorder %s54, 0
      %p171 = por %p169, %p170
      %s172 = ssub.s32 %s56, %s63
      %p173 = scmp.eq.s32.totalorder %s172, 0
      %s175 = sadd.s32 %s174, 1
      %s176 = scalar_select %p173, %s174, %s175
      %p179 = pneg %p173
      %p180 = scmp.eq.s32.totalorder %s48, 3
      %p181 = por %p179, %p180
      %p182 = scmp.ne.s32.totalorder %s174, %s177
      %p183 = scmp.eq.s32.totalorder %s48, 0
      %p184 = por %p182, %p183
      %p185 = scmp.ne.s32.totalorder %s174, %s177
      %p186 = scmp.eq.s32.totalorder %s53, 3
      %p187 = por %p185, %p186
      %p188 = scmp.ne.s32.totalorder %s177, %s178
      %p189 = scmp.eq.s32.totalorder %s53, 0
      %p190 = por %p188, %p189
      %p191 = scmp.ne.s32.totalorder %s177, %s178
      %p192 = scmp.eq.s32.totalorder %s54, 3
      %p193 = por %p191, %p192
      %p195 = scmp.ne.s32.totalorder %s178, %s194
      %p196 = scmp.eq.s32.totalorder %s54, 0
      %p197 = por %p195, %p196
      %s198 = ssub.s32 %s56, %s63
      %p199 = scmp.eq.s32.totalorder %s198, 0
      %s201 = sadd.s32 %s200, 1
      %s202 = scalar_select %p199, %s200, %s201
      %p205 = pneg %p199
      %p206 = scmp.eq.s32.totalorder %s48, 3
      %p207 = por %p205, %p206
      %p208 = scmp.ne.s32.totalorder %s200, %s203
      %p209 = scmp.eq.s32.totalorder %s48, 0
      %p210 = por %p208, %p209
      %p211 = scmp.ne.s32.totalorder %s200, %s203
      %p212 = scmp.eq.s32.totalorder %s53, 3
      %p213 = por %p211, %p212
      %p214 = scmp.ne.s32.totalorder %s203, %s204
      %p215 = scmp.eq.s32.totalorder %s53, 0
      %p216 = por %p214, %p215
      %p217 = scmp.ne.s32.totalorder %s203, %s204
      %p218 = scmp.eq.s32.totalorder %s54, 3
      %p219 = por %p217, %p218
      %p221 = scmp.ne.s32.totalorder %s204, %s220
      %p222 = scmp.eq.s32.totalorder %s54, 0
      %p223 = por %p221, %p222
      %s224 = ssub.s32 %s56, %s63
      %p225 = scmp.eq.s32.totalorder %s224, 0
      %s227 = sadd.s32 %s226, 1
      %s228 = scalar_select %p225, %s226, %s227
      %p231 = pneg %p225
      %p232 = scmp.eq.s32.totalorder %s48, 3
      %p233 = por %p231, %p232
      %p234 = scmp.ne.s32.totalorder %s226, %s229
      %p235 = scmp.eq.s32.totalorder %s48, 0
      %p236 = por %p234, %p235
      %p237 = scmp.ne.s32.totalorder %s226, %s229
      %p238 = scmp.eq.s32.totalorder %s53, 3
      %p239 = por %p237, %p238
      %p240 = scmp.ne.s32.totalorder %s229, %s230
      %p241 = scmp.eq.s32.totalorder %s53, 0
      %p242 = por %p240, %p241
      %p243 = scmp.ne.s32.totalorder %s229, %s230
      %p244 = scmp.eq.s32.totalorder %s54, 3
      %p245 = por %p243, %p244
      %p247 = scmp.ne.s32.totalorder %s230, %s246
      %p248 = scmp.eq.s32.totalorder %s54, 0
      %p249 = por %p247, %p248
      %s250 = ssub.s32 %s56, %s63
      %p251 = scmp.eq.s32.totalorder %s250, 0
      %s253 = sadd.s32 %s252, 1
      %s254 = scalar_select %p251, %s252, %s253
      %p257 = pneg %p251
      %p258 = scmp.eq.s32.totalorder %s48, 3
      %p259 = por %p257, %p258
      %p260 = scmp.ne.s32.totalorder %s252, %s255
      %p261 = scmp.eq.s32.totalorder %s48, 0
      %p262 = por %p260, %p261
      %p263 = scmp.ne.s32.totalorder %s252, %s255
      %p264 = scmp.eq.s32.totalorder %s53, 3
      %p265 = por %p263, %p264
      %p266 = scmp.ne.s32.totalorder %s255, %s256
      %p267 = scmp.eq.s32.totalorder %s53, 0
      %p268 = por %p266, %p267
      %p269 = scmp.ne.s32.totalorder %s255, %s256
      %p270 = scmp.eq.s32.totalorder %s54, 3
      %p271 = por %p269, %p270
      %p273 = scmp.ne.s32.totalorder %s256, %s272
      %p274 = scmp.eq.s32.totalorder %s54, 0
      %p275 = por %p273, %p274
      %s276 = ssub.s32 %s56, %s63
      %p277 = scmp.eq.s32.totalorder %s276, 0
      %s279 = sadd.s32 %s278, 1
      %s280 = scalar_select %p277, %s278, %s279
      %p283 = pneg %p277
      %p284 = scmp.eq.s32.totalorder %s48, 3
      %p285 = por %p283, %p284
      %p286 = scmp.ne.s32.totalorder %s278, %s281
      %p287 = scmp.eq.s32.totalorder %s48, 0
      %p288 = por %p286, %p287
      %p289 = scmp.ne.s32.totalorder %s278, %s281
      %p290 = scmp.eq.s32.totalorder %s53, 3
      %p291 = por %p289, %p290
      %p292 = scmp.ne.s32.totalorder %s281, %s282
      %p293 = scmp.eq.s32.totalorder %s53, 0
      %p294 = por %p292, %p293
      %p295 = scmp.ne.s32.totalorder %s281, %s282
      %p296 = scmp.eq.s32.totalorder %s54, 3
      %p297 = por %p295, %p296
      %p299 = scmp.ne.s32.totalorder %s282, %s298
      %p300 = scmp.eq.s32.totalorder %s54, 0
      %p301 = por %p299, %p300
      %s302 = ssub.s32 %s56, %s63
      %p303 = scmp.eq.s32.totalorder %s302, 0
      %s305 = sadd.s32 %s304, 1
      %s306 = scalar_select %p303, %s304, %s305
      %p309 = pneg %p303
      %p310 = scmp.eq.s32.totalorder %s48, 3
      %p311 = por %p309, %p310
      %p312 = scmp.ne.s32.totalorder %s304, %s307
      %p313 = scmp.eq.s32.totalorder %s48, 0
      %p314 = por %p312, %p313
      %p315 = scmp.ne.s32.totalorder %s304, %s307
      %p316 = scmp.eq.s32.totalorder %s53, 3
      %p317 = por %p315, %p316
      %p318 = scmp.ne.s32.totalorder %s307, %s308
      %p319 = scmp.eq.s32.totalorder %s53, 0
      %p320 = por %p318, %p319
      %p321 = scmp.ne.s32.totalorder %s307, %s308
      %p322 = scmp.eq.s32.totalorder %s54, 3
      %p323 = por %p321, %p322
      %p325 = scmp.ne.s32.totalorder %s308, %s324
      %p326 = scmp.eq.s32.totalorder %s54, 0
      %p327 = por %p325, %p326
      %s328 = ssub.s32 %s56, %s63
      %p329 = scmp.eq.s32.totalorder %s328, 0
      %s331 = sadd.s32 %s330, 1
      %s332 = scalar_select %p329, %s330, %s331
      %p335 = pneg %p329
      %p336 = scmp.eq.s32.totalorder %s48, 3
      %p337 = por %p335, %p336
      %p338 = scmp.ne.s32.totalorder %s330, %s333
      %p339 = scmp.eq.s32.totalorder %s48, 0
      %p340 = por %p338, %p339
      %p341 = scmp.ne.s32.totalorder %s330, %s333
      %p342 = scmp.eq.s32.totalorder %s53, 3
      %p343 = por %p341, %p342
      %p344 = scmp.ne.s32.totalorder %s333, %s334
      %p345 = scmp.eq.s32.totalorder %s53, 0
      %p346 = por %p344, %p345
      %p347 = scmp.ne.s32.totalorder %s333, %s334
      %p348 = scmp.eq.s32.totalorder %s54, 3
      %p349 = por %p347, %p348
      %p351 = scmp.ne.s32.totalorder %s334, %s350
      %p352 = scmp.eq.s32.totalorder %s54, 0
      %p353 = por %p351, %p352
      %s354 = ssub.s32 %s56, %s63
      %p355 = scmp.eq.s32.totalorder %s354, 0
      %s357 = sadd.s32 %s356, 1
      %s358 = scalar_select %p355, %s356, %s357
      %p361 = pneg %p355
      %p362 = scmp.eq.s32.totalorder %s48, 3
      %p363 = por %p361, %p362
      %p364 = scmp.ne.s32.totalorder %s356, %s359
      %p365 = scmp.eq.s32.totalorder %s48, 0
      %p366 = por %p364, %p365
      %p367 = scmp.ne.s32.totalorder %s356, %s359
      %p368 = scmp.eq.s32.totalorder %s53, 3
      %p369 = por %p367, %p368
      %p370 = scmp.ne.s32.totalorder %s359, %s360
      %p371 = scmp.eq.s32.totalorder %s53, 0
      %p372 = por %p370, %p371
      %p373 = scmp.ne.s32.totalorder %s359, %s360
      %p374 = scmp.eq.s32.totalorder %s54, 3
      %p375 = por %p373, %p374
      %p377 = scmp.ne.s32.totalorder %s360, %s376
      %p378 = scmp.eq.s32.totalorder %s54, 0
      %p379 = por %p377, %p378
      %s381 = sadd.s32 %s380, 1
      %p384 = scmp.eq.s32.totalorder %s48, 3
      %p385 = scmp.ne.s32.totalorder %s380, %s382
      %p386 = scmp.eq.s32.totalorder %s48, 0
      %p387 = por %p385, %p386
      %p388 = scmp.ne.s32.totalorder %s380, %s382
      %p389 = scmp.eq.s32.totalorder %s53, 3
      %p390 = por %p388, %p389
      %p391 = scmp.ne.s32.totalorder %s382, %s383
      %p392 = scmp.eq.s32.totalorder %s53, 0
      %p393 = por %p391, %p392
      %p394 = scmp.ne.s32.totalorder %s382, %s383
      %p395 = scmp.eq.s32.totalorder %s54, 3
      %p396 = por %p394, %p395
      %p398 = scmp.ne.s32.totalorder %s383, %s397
      %p399 = scmp.eq.s32.totalorder %s54, 0
      %p400 = por %p398, %p399
      %s402 = sadd.s32 %s401, 1
      %p405 = scmp.eq.s32.totalorder %s48, 3
      %p406 = scmp.ne.s32.totalorder %s401, %s403
      %p407 = scmp.eq.s32.totalorder %s48, 0
      %p408 = por %p406, %p407
      %p409 = scmp.ne.s32.totalorder %s401, %s403
      %p410 = scmp.eq.s32.totalorder %s53, 3
      %p411 = por %p409, %p410
      %p412 = scmp.ne.s32.totalorder %s403, %s404
      %p413 = scmp.eq.s32.totalorder %s53, 0
      %p414 = por %p412, %p413
      %p415 = scmp.ne.s32.totalorder %s403, %s404
      %p416 = scmp.eq.s32.totalorder %s54, 3
      %p417 = por %p415, %p416
      %p419 = scmp.ne.s32.totalorder %s404, %s418
      %p420 = scmp.eq.s32.totalorder %s54, 0
      %p421 = por %p419, %p420
      %s423 = sadd.s32 %s422, 1
      %p426 = scmp.eq.s32.totalorder %s48, 3
      %p427 = scmp.ne.s32.totalorder %s422, %s424
      %p428 = scmp.eq.s32.totalorder %s48, 0
      %p429 = por %p427, %p428
      %p430 = scmp.ne.s32.totalorder %s422, %s424
      %p431 = scmp.eq.s32.totalorder %s53, 3
      %p432 = por %p430, %p431
      %p433 = scmp.ne.s32.totalorder %s424, %s425
      %p434 = scmp.eq.s32.totalorder %s53, 0
      %p435 = por %p433, %p434
      %p436 = scmp.ne.s32.totalorder %s424, %s425
      %p437 = scmp.eq.s32.totalorder %s54, 3
      %p438 = por %p436, %p437
      %p440 = scmp.ne.s32.totalorder %s425, %s439
      %p441 = scmp.eq.s32.totalorder %s54, 0
      %p442 = por %p440, %p441
      %s444 = sadd.s32 %s443, 1
      %p447 = scmp.eq.s32.totalorder %s48, 3
      %p448 = scmp.ne.s32.totalorder %s443, %s445
      %p449 = scmp.eq.s32.totalorder %s48, 0
      %p450 = por %p448, %p449
      %p451 = scmp.ne.s32.totalorder %s443, %s445
      %p452 = scmp.eq.s32.totalorder %s53, 3
      %p453 = por %p451, %p452
      %p454 = scmp.ne.s32.totalorder %s445, %s446
      %p455 = scmp.eq.s32.totalorder %s53, 0
      %p456 = por %p454, %p455
      %p457 = scmp.ne.s32.totalorder %s445, %s446
      %p458 = scmp.eq.s32.totalorder %s54, 3
      %p459 = por %p457, %p458
      %p461 = scmp.ne.s32.totalorder %s446, %s460
      %p462 = scmp.eq.s32.totalorder %s54, 0
      %p463 = por %p461, %p462
      %s464 = ssub.s32 %s55, %s67
      %p465 = scmp.eq.s32.totalorder %s464, 0
      %s467 = sadd.s32 %s466, 1
      %s468 = scalar_select %p465, %s466, %s467
      %p471 = pneg %p465
      %p472 = scmp.eq.s32.totalorder %s48, 3
      %p473 = por %p471, %p472
      %p474 = scmp.ne.s32.totalorder %s466, %s469
      %p475 = scmp.eq.s32.totalorder %s48, 0
      %p476 = por %p474, %p475
      %p477 = scmp.ne.s32.totalorder %s466, %s469
      %p478 = scmp.eq.s32.totalorder %s53, 3
      %p479 = por %p477, %p478
      %p480 = scmp.ne.s32.totalorder %s469, %s470
      %p481 = scmp.eq.s32.totalorder %s53, 0
      %p482 = por %p480, %p481
      %p483 = scmp.ne.s32.totalorder %s469, %s470
      %p484 = scmp.eq.s32.totalorder %s54, 3
      %p485 = por %p483, %p484
      %p487 = scmp.ne.s32.totalorder %s470, %s486
      %p488 = scmp.eq.s32.totalorder %s54, 0
      %p489 = por %p487, %p488
      %p490 = scmp.le.s32.totalorder 1, %s48
      %p491 = scmp.lt.s32.totalorder %s48, 5
      %p492 = pnand %p490, %p491
      %p493 = pneg %p492
      // Predicated region
      $region9: #{transformer_lm_forward.1} parent=5 // pred_check
        _
      $region10: #{transformer_lm_forward.1} parent=5 // pred_check_branch
        %495 = sbr.rel (%p492) target = $region12
      $region11: #{transformer_lm_forward.1} parent=5 // pred_region
        %s496 = ssub.s32 %s48, 1
        // Predicated region
        $region13: #{transformer_lm_forward.1} parent=11 // pred_check
          %p497 = pneg %p393
        $region14: #{transformer_lm_forward.1} parent=11 // pred_check_branch
          %499 = sbr.rel (%p497) target = $region16
        $region15: #{transformer_lm_forward.1} parent=11 // pred_region
          %s501 = ssub.s32 16, 16
          %502 = vsyncadd [#allocation23], %s501
          %s504 = sshll.u32 [#allocation24], 4
          %s505 = int_to_ptr.vmem [resolvable:$true] %s504
          %507 = dma.hbm_to_vmem [thread:$0]  %s12, 16, %s505, [#allocation23]
        $region16: #{transformer_lm_forward.1} parent=11 // pred_fallthru
          _
        // Predicated region
        $region17: #{transformer_lm_forward.1} parent=11 // pred_check
          %p508 = pneg %p414
        $region18: #{transformer_lm_forward.1} parent=11 // pred_check_branch
          %510 = sbr.rel (%p508) target = $region20
        $region19: #{transformer_lm_forward.1} parent=11 // pred_region
          %s512 = ssub.s32 16, 16
          %513 = vsyncadd [#allocation26], %s512
          %s515 = sshll.u32 [#allocation25], 4
          %s516 = int_to_ptr.vmem [resolvable:$true] %s515
          %518 = dma.hbm_to_vmem [thread:$0]  %s13, 16, %s516, [#allocation26]
        $region20: #{transformer_lm_forward.1} parent=11 // pred_fallthru
          _
        // Predicated region
        $region21: #{transformer_lm_forward.1} parent=11 // pred_check
          %p519 = pneg %p435
        $region22: #{transformer_lm_forward.1} parent=11 // pred_check_branch
          %521 = sbr.rel (%p519) target = $region24
        $region23: #{transformer_lm_forward.1} parent=11 // pred_region
          %s523 = ssub.s32 2048, 2048
          %524 = vsyncadd [#allocation26], %s523
          %s525 = sshll.u32 [#allocation27], 4
          %s526 = int_to_ptr.vmem [resolvable:$true] %s525
          %531 = dma.hbm_to_vmem [thread:$0]  %s14, 2048, %s526, [#allocation26], 128, 128, 8
        $region24: #{transformer_lm_forward.1} parent=11 // pred_fallthru
          _
        // Predicated region
        $region25: #{transformer_lm_forward.1} parent=11 // pred_check
          %p532 = pneg %p456
        $region26: #{transformer_lm_forward.1} parent=11 // pred_check_branch
          %534 = sbr.rel (%p532) target = $region28
        $region27: #{transformer_lm_forward.1} parent=11 // pred_region
          %s536 = ssub.s32 32, 32
          %537 = vsyncadd [#allocation29], %s536
          %s539 = sshll.u32 [#allocation28], 4
          %s540 = int_to_ptr.vmem [resolvable:$true] %s539
          %542 = dma.hbm_to_vmem [thread:$0]  %s15, 32, %s540, [#allocation29]
        $region28: #{transformer_lm_forward.1} parent=11 // pred_fallthru
          _
      $region12: #{transformer_lm_forward.1} parent=5 // pred_fallthru
        _
      %p543 = scmp.lt.s32.totalorder %s48, 4
      // Predicated region
      $region29: #{transformer_lm_forward.1} parent=5 // pred_check
        %p544 = pneg %p543
      $region30: #{transformer_lm_forward.1} parent=5 // pred_check_branch
        %546 = sbr.rel (%p544) target = $region32
      $region31: #{transformer_lm_forward.1} parent=5 // pred_region
        // Predicated region
        $region33: #{transformer_lm_forward.1} parent=31 // pred_check
          %p547 = pneg %p80
        $region34: #{transformer_lm_forward.1} parent=31 // pred_check_branch
          %549 = sbr.rel (%p547) target = $region36
        $region35: #{transformer_lm_forward.1} parent=31 // pred_region
          %s550 = sand.u32 %s70, 1
          %s551 = scalar_lea.sflag [#allocation5], %s550
          %s552 = sand.u32 %s70, 1
          %s553 = smul.addr %s552, 256
          %s554 = scalar_lea.vmem [#allocation4], %s553
          %s555 = smul.u32 4, %s55
          %s557 = ssub.s32 4096, 4096
          %558 = vsyncadd %s551, %s557
          %s559 = smul.addr %s555, 8
          %s560 = smul.addr %s559, 128
          %s561 = scalar_lea.hbm %s0, %s560
          %s562 = sshll.u32 %s554, 4
          %s563 = int_to_ptr.vmem [resolvable:$true] %s562
          %568 = dma.hbm_to_vmem [thread:$0]  %s561, 4096, %s563, %s551, 128, 128, 8
        $region36: #{transformer_lm_forward.1} parent=31 // pred_fallthru
          _
        // Predicated region
        $region37: #{transformer_lm_forward.1} parent=31 // pred_check
          %p569 = pneg %p106
        $region38: #{transformer_lm_forward.1} parent=31 // pred_check_branch
          %571 = sbr.rel (%p569) target = $region40
        $region39: #{transformer_lm_forward.1} parent=31 // pred_region
          %s572 = sand.u32 %s48, 1
          %s573 = scalar_lea.sflag [#allocation8], %s572
          %s574 = sand.u32 %s96, 1
          %s575 = smul.addr %s574, 192
          %s576 = scalar_lea.vmem [#allocation7], %s575
          %s578 = ssub.s32 3072, 3072
          %579 = vsyncadd %s573, %s578
          %s580 = smul.addr %s56, 48
          %s581 = smul.addr %s580, 64
          %s582 = scalar_lea.hbm %s1, %s581
          %s583 = sshll.u32 %s576, 4
          %s584 = int_to_ptr.vmem [resolvable:$true] %s583
          %589 = dma.hbm_to_vmem [thread:$0]  %s582, 3072, %s584, %s573, 192, 192, 12
        $region40: #{transformer_lm_forward.1} parent=31 // pred_fallthru
          _
        // Predicated region
        $region41: #{transformer_lm_forward.1} parent=31 // pred_check
          %p590 = pneg %p132
        $region42: #{transformer_lm_forward.1} parent=31 // pred_check_branch
          %592 = sbr.rel (%p590) target = $region44
        $region43: #{transformer_lm_forward.1} parent=31 // pred_region
          %s593 = sand.u32 %s48, 1
          %s594 = scalar_lea.sflag [#allocation8], %s593
          %s595 = sand.u32 %s122, 1
          %s596 = smul.addr %s595, 64
          %s597 = scalar_lea.vmem [#allocation9], %s596
          %s599 = ssub.s32 1024, 1024
          %600 = vsyncadd %s594, %s599
          %s601 = smul.addr %s56, 16
          %s602 = smul.addr %s601, 64
          %s603 = scalar_lea.hbm %s2, %s602
          %s604 = sshll.u32 %s597, 4
          %s605 = int_to_ptr.vmem [resolvable:$true] %s604
          %610 = dma.hbm_to_vmem [thread:$0]  %s603, 1024, %s605, %s594, 64, 64, 4
        $region44: #{transformer_lm_forward.1} parent=31 // pred_fallthru
          _
        // Predicated region
        $region45: #{transformer_lm_forward.1} parent=31 // pred_check
          %p611 = pneg %p158
        $region46: #{transformer_lm_forward.1} parent=31 // pred_check_branch
          %613 = sbr.rel (%p611) target = $region48
        $region47: #{transformer_lm_forward.1} parent=31 // pred_region
          %s614 = sand.u32 %s48, 1
          %s615 = scalar_lea.sflag [#allocation11], %s614
          %s616 = sand.u32 %s148, 1
          %s617 = scalar_lea.vmem [#allocation10], %s616
          %s619 = ssub.s32 16, 16
          %620 = vsyncadd %s615, %s619
          %s621 = smul.addr %s56, 16
          %s622 = scalar_lea.hbm %s3, %s621
          %s624 = sshll.u32 %s617, 4
          %s625 = int_to_ptr.vmem [resolvable:$true] %s624
          %627 = dma.hbm_to_vmem [thread:$0]  %s622, 16, %s625, %s615
        $region48: #{transformer_lm_forward.1} parent=31 // pred_fallthru
          _
        // Predicated region
        $region49: #{transformer_lm_forward.1} parent=31 // pred_check
          %p628 = pneg %p184
        $region50: #{transformer_lm_forward.1} parent=31 // pred_check_branch
          %630 = sbr.rel (%p628) target = $region52
        $region51: #{transformer_lm_forward.1} parent=31 // pred_region
          %s631 = sand.u32 %s48, 1
          %s632 = scalar_lea.sflag [#allocation11], %s631
          %s633 = sand.u32 %s174, 1
          %s634 = scalar_lea.vmem [#allocation12], %s633
          %s636 = ssub.s32 16, 16
          %637 = vsyncadd %s632, %s636
          %s638 = smul.addr %s56, 16
          %s639 = scalar_lea.hbm %s4, %s638
          %s641 = sshll.u32 %s634, 4
          %s642 = int_to_ptr.vmem [resolvable:$true] %s641
          %644 = dma.hbm_to_vmem [thread:$0]  %s639, 16, %s642, %s632
        $region52: #{transformer_lm_forward.1} parent=31 // pred_fallthru
          _
        // Predicated region
        $region53: #{transformer_lm_forward.1} parent=31 // pred_check
          %p645 = pneg %p210
        $region54: #{transformer_lm_forward.1} parent=31 // pred_check_branch
          %647 = sbr.rel (%p645) target = $region56
        $region55: #{transformer_lm_forward.1} parent=31 // pred_region
          %s648 = sand.u32 %s48, 1
          %s649 = scalar_lea.sflag [#allocation14], %s648
          %s650 = sand.u32 %s200, 1
          %s651 = scalar_lea.vmem [#allocation13], %s650
          %s653 = ssub.s32 16, 16
          %654 = vsyncadd %s649, %s653
          %s655 = smul.addr %s56, 16
          %s656 = scalar_lea.hbm %s5, %s655
          %s658 = sshll.u32 %s651, 4
          %s659 = int_to_ptr.vmem [resolvable:$true] %s658
          %661 = dma.hbm_to_vmem [thread:$0]  %s656, 16, %s659, %s649
        $region56: #{transformer_lm_forward.1} parent=31 // pred_fallthru
          _
        // Predicated region
        $region57: #{transformer_lm_forward.1} parent=31 // pred_check
          %p662 = pneg %p236
        $region58: #{transformer_lm_forward.1} parent=31 // pred_check_branch
          %664 = sbr.rel (%p662) target = $region60
        $region59: #{transformer_lm_forward.1} parent=31 // pred_region
          %s665 = sand.u32 %s48, 1
          %s666 = scalar_lea.sflag [#allocation14], %s665
          %s667 = sand.u32 %s226, 1
          %s668 = smul.addr %s667, 256
          %s669 = scalar_lea.vmem [#allocation15], %s668
          %s671 = ssub.s32 4096, 4096
          %672 = vsyncadd %s666, %s671
          %s673 = smul.addr %s56, 64
          %s674 = smul.addr %s673, 64
          %s675 = scalar_lea.hbm %s6, %s674
          %s676 = sshll.u32 %s669, 4
          %s677 = int_to_ptr.vmem [resolvable:$true] %s676
          %682 = dma.hbm_to_vmem [thread:$0]  %s675, 4096, %s677, %s666, 256, 256, 16
        $region60: #{transformer_lm_forward.1} parent=31 // pred_fallthru
          _
        // Predicated region
        $region61: #{transformer_lm_forward.1} parent=31 // pred_check
          %p683 = pneg %p262
        $region62: #{transformer_lm_forward.1} parent=31 // pred_check_branch
          %685 = sbr.rel (%p683) target = $region64
        $region63: #{transformer_lm_forward.1} parent=31 // pred_region
          %s686 = sand.u32 %s48, 1
          %s687 = scalar_lea.sflag [#allocation17], %s686
          %s688 = sand.u32 %s252, 1
          %s689 = smul.addr %s688, 4
          %s690 = scalar_lea.vmem [#allocation16], %s689
          %s692 = ssub.s32 64, 64
          %693 = vsyncadd %s687, %s692
          %s694 = smul.addr %s56, 4
          %s695 = smul.addr %s694, 16
          %s696 = scalar_lea.hbm %s7, %s695
          %s698 = sshll.u32 %s690, 4
          %s699 = int_to_ptr.vmem [resolvable:$true] %s698
          %701 = dma.hbm_to_vmem [thread:$0]  %s696, 64, %s699, %s687
        $region64: #{transformer_lm_forward.1} parent=31 // pred_fallthru
          _
        // Predicated region
        $region65: #{transformer_lm_forward.1} parent=31 // pred_check
          %p702 = pneg %p288
        $region66: #{transformer_lm_forward.1} parent=31 // pred_check_branch
          %704 = sbr.rel (%p702) target = $region68
        $region67: #{transformer_lm_forward.1} parent=31 // pred_region
          %s705 = sand.u32 %s48, 1
          %s706 = scalar_lea.sflag [#allocation17], %s705
          %s707 = sand.u32 %s278, 1
          %s708 = smul.addr %s707, 256
          %s709 = scalar_lea.vmem [#allocation18], %s708
          %s711 = ssub.s32 4096, 4096
          %712 = vsyncadd %s706, %s711
          %s713 = smul.addr %s56, 64
          %s714 = smul.addr %s713, 64
          %s715 = scalar_lea.hbm %s8, %s714
          %s716 = sshll.u32 %s709, 4
          %s717 = int_to_ptr.vmem [resolvable:$true] %s716
          %722 = dma.hbm_to_vmem [thread:$0]  %s715, 4096, %s717, %s706, 64, 64, 4
        $region68: #{transformer_lm_forward.1} parent=31 // pred_fallthru
          _
        // Predicated region
        $region69: #{transformer_lm_forward.1} parent=31 // pred_check
          %p723 = pneg %p314
        $region70: #{transformer_lm_forward.1} parent=31 // pred_check_branch
          %725 = sbr.rel (%p723) target = $region72
        $region71: #{transformer_lm_forward.1} parent=31 // pred_region
          %s726 = sand.u32 %s48, 1
          %s727 = scalar_lea.sflag [#allocation20], %s726
          %s728 = sand.u32 %s304, 1
          %s729 = scalar_lea.vmem [#allocation19], %s728
          %s731 = ssub.s32 16, 16
          %732 = vsyncadd %s727, %s731
          %s733 = smul.addr %s56, 16
          %s734 = scalar_lea.hbm %s9, %s733
          %s736 = sshll.u32 %s729, 4
          %s737 = int_to_ptr.vmem [resolvable:$true] %s736
          %739 = dma.hbm_to_vmem [thread:$0]  %s734, 16, %s737, %s727
        $region72: #{transformer_lm_forward.1} parent=31 // pred_fallthru
          _
        // Predicated region
        $region73: #{transformer_lm_forward.1} parent=31 // pred_check
          %p740 = pneg %p340
        $region74: #{transformer_lm_forward.1} parent=31 // pred_check_branch
          %742 = sbr.rel (%p740) target = $region76
        $region75: #{transformer_lm_forward.1} parent=31 // pred_region
          %s743 = sand.u32 %s48, 1
          %s744 = scalar_lea.sflag [#allocation20], %s743
          %s745 = sand.u32 %s330, 1
          %s746 = scalar_lea.vmem [#allocation21], %s745
          %s748 = ssub.s32 16, 16
          %749 = vsyncadd %s744, %s748
          %s750 = smul.addr %s56, 16
          %s751 = scalar_lea.hbm %s10, %s750
          %s753 = sshll.u32 %s746, 4
          %s754 = int_to_ptr.vmem [resolvable:$true] %s753
          %756 = dma.hbm_to_vmem [thread:$0]  %s751, 16, %s754, %s744
        $region76: #{transformer_lm_forward.1} parent=31 // pred_fallthru
          _
        // Predicated region
        $region77: #{transformer_lm_forward.1} parent=31 // pred_check
          %p757 = pneg %p366
        $region78: #{transformer_lm_forward.1} parent=31 // pred_check_branch
          %759 = sbr.rel (%p757) target = $region80
        $region79: #{transformer_lm_forward.1} parent=31 // pred_region
          %s760 = sand.u32 %s48, 1
          %s761 = scalar_lea.sflag [#allocation23], %s760
          %s762 = sand.u32 %s356, 1
          %s763 = scalar_lea.vmem [#allocation22], %s762
          %s765 = ssub.s32 16, 16
          %766 = vsyncadd %s761, %s765
          %s767 = smul.addr %s56, 16
          %s768 = scalar_lea.hbm %s11, %s767
          %s770 = sshll.u32 %s763, 4
          %s771 = int_to_ptr.vmem [resolvable:$true] %s770
          %773 = dma.hbm_to_vmem [thread:$0]  %s768, 16, %s771, %s761
        $region80: #{transformer_lm_forward.1} parent=31 // pred_fallthru
          _
      $region32: #{transformer_lm_forward.1} parent=5 // pred_fallthru
        _
      %p774 = scmp.le.s32.totalorder 1, %s48
      %p775 = scmp.lt.s32.totalorder %s48, 5
      %p776 = pnand %p774, %p775
      %p777 = pneg %p776
      // Predicated region
      $region81: #{transformer_lm_forward.1} parent=5 // pred_check
        _
      $region82: #{transformer_lm_forward.1} parent=5 // pred_check_branch
        %779 = sbr.rel (%p776) target = $region84
      $region83: #{transformer_lm_forward.1} parent=5 // pred_region
        %s780 = ssub.s32 %s48, 1
        %s781 = sand.u32 %s73, 1
        %s782 = scalar_lea.sflag [#allocation5], %s781
        %s783 = sand.u32 %s73, 1
        %s784 = smul.addr %s783, 256
        %s785 = scalar_lea.vmem [#allocation4], %s784
        // Predicated region
        $region85: #{transformer_lm_forward.1} parent=83 // pred_check
          %p786 = pneg %p86
        $region86: #{transformer_lm_forward.1} parent=83 // pred_check_branch
          %788 = sbr.rel (%p786) target = $region88
        $region87: #{transformer_lm_forward.1} parent=83 // pred_region
          %789 = dma.done %s782, 4096
        $region88: #{transformer_lm_forward.1} parent=83 // pred_fallthru
          _
        %s790 = sand.u32 %s53, 1
        %s791 = scalar_lea.sflag [#allocation8], %s790
        %s792 = sand.u32 %s99, 1
        %s793 = smul.addr %s792, 192
        %s794 = scalar_lea.vmem [#allocation7], %s793
        // Predicated region
        $region89: #{transformer_lm_forward.1} parent=83 // pred_check
          %p795 = pneg %p112
        $region90: #{transformer_lm_forward.1} parent=83 // pred_check_branch
          %797 = sbr.rel (%p795) target = $region92
        $region91: #{transformer_lm_forward.1} parent=83 // pred_region
          %798 = dma.done %s791, 3072
        $region92: #{transformer_lm_forward.1} parent=83 // pred_fallthru
          _
        %s799 = sand.u32 %s53, 1
        %s800 = scalar_lea.sflag [#allocation8], %s799
        %s801 = sand.u32 %s125, 1
        %s802 = smul.addr %s801, 64
        %s803 = scalar_lea.vmem [#allocation9], %s802
        // Predicated region
        $region93: #{transformer_lm_forward.1} parent=83 // pred_check
          %p804 = pneg %p138
        $region94: #{transformer_lm_forward.1} parent=83 // pred_check_branch
          %806 = sbr.rel (%p804) target = $region96
        $region95: #{transformer_lm_forward.1} parent=83 // pred_region
          %807 = dma.done %s800, 1024
        $region96: #{transformer_lm_forward.1} parent=83 // pred_fallthru
          _
        %s808 = sand.u32 %s53, 1
        %s809 = scalar_lea.sflag [#allocation11], %s808
        %s810 = sand.u32 %s151, 1
        %s811 = scalar_lea.vmem [#allocation10], %s810
        // Predicated region
        $region97: #{transformer_lm_forward.1} parent=83 // pred_check
          %p812 = pneg %p164
        $region98: #{transformer_lm_forward.1} parent=83 // pred_check_branch
          %814 = sbr.rel (%p812) target = $region100
        $region99: #{transformer_lm_forward.1} parent=83 // pred_region
          %815 = dma.done %s809, 16
        $region100: #{transformer_lm_forward.1} parent=83 // pred_fallthru
          _
        %s816 = sand.u32 %s53, 1
        %s817 = scalar_lea.sflag [#allocation11], %s816
        %s818 = sand.u32 %s177, 1
        %s819 = scalar_lea.vmem [#allocation12], %s818
        // Predicated region
        $region101: #{transformer_lm_forward.1} parent=83 // pred_check
          %p820 = pneg %p190
        $region102: #{transformer_lm_forward.1} parent=83 // pred_check_branch
          %822 = sbr.rel (%p820) target = $region104
        $region103: #{transformer_lm_forward.1} parent=83 // pred_region
          %823 = dma.done %s817, 16
        $region104: #{transformer_lm_forward.1} parent=83 // pred_fallthru
          _
        %s824 = sand.u32 %s53, 1
        %s825 = scalar_lea.sflag [#allocation14], %s824
        %s826 = sand.u32 %s203, 1
        %s827 = scalar_lea.vmem [#allocation13], %s826
        // Predicated region
        $region105: #{transformer_lm_forward.1} parent=83 // pred_check
          %p828 = pneg %p216
        $region106: #{transformer_lm_forward.1} parent=83 // pred_check_branch
          %830 = sbr.rel (%p828) target = $region108
        $region107: #{transformer_lm_forward.1} parent=83 // pred_region
          %831 = dma.done %s825, 16
        $region108: #{transformer_lm_forward.1} parent=83 // pred_fallthru
          _
        %s832 = sand.u32 %s53, 1
        %s833 = scalar_lea.sflag [#allocation14], %s832
        %s834 = sand.u32 %s229, 1
        %s835 = smul.addr %s834, 256
        %s836 = scalar_lea.vmem [#allocation15], %s835
        // Predicated region
        $region109: #{transformer_lm_forward.1} parent=83 // pred_check
          %p837 = pneg %p242
        $region110: #{transformer_lm_forward.1} parent=83 // pred_check_branch
          %839 = sbr.rel (%p837) target = $region112
        $region111: #{transformer_lm_forward.1} parent=83 // pred_region
          %840 = dma.done %s833, 4096
        $region112: #{transformer_lm_forward.1} parent=83 // pred_fallthru
          _
        %s841 = sand.u32 %s53, 1
        %s842 = scalar_lea.sflag [#allocation17], %s841
        %s843 = sand.u32 %s255, 1
        %s844 = smul.addr %s843, 4
        %s845 = scalar_lea.vmem [#allocation16], %s844
        // Predicated region
        $region113: #{transformer_lm_forward.1} parent=83 // pred_check
          %p846 = pneg %p268
        $region114: #{transformer_lm_forward.1} parent=83 // pred_check_branch
          %848 = sbr.rel (%p846) target = $region116
        $region115: #{transformer_lm_forward.1} parent=83 // pred_region
          %849 = dma.done %s842, 64
        $region116: #{transformer_lm_forward.1} parent=83 // pred_fallthru
          _
        %s850 = sand.u32 %s53, 1
        %s851 = scalar_lea.sflag [#allocation17], %s850
        %s852 = sand.u32 %s281, 1
        %s853 = smul.addr %s852, 256
        %s854 = scalar_lea.vmem [#allocation18], %s853
        // Predicated region
        $region117: #{transformer_lm_forward.1} parent=83 // pred_check
          %p855 = pneg %p294
        $region118: #{transformer_lm_forward.1} parent=83 // pred_check_branch
          %857 = sbr.rel (%p855) target = $region120
        $region119: #{transformer_lm_forward.1} parent=83 // pred_region
          %858 = dma.done %s851, 4096
        $region120: #{transformer_lm_forward.1} parent=83 // pred_fallthru
          _
        %s859 = sand.u32 %s53, 1
        %s860 = scalar_lea.sflag [#allocation20], %s859
        %s861 = sand.u32 %s307, 1
        %s862 = scalar_lea.vmem [#allocation19], %s861
        // Predicated region
        $region121: #{transformer_lm_forward.1} parent=83 // pred_check
          %p863 = pneg %p320
        $region122: #{transformer_lm_forward.1} parent=83 // pred_check_branch
          %865 = sbr.rel (%p863) target = $region124
        $region123: #{transformer_lm_forward.1} parent=83 // pred_region
          %866 = dma.done %s860, 16
        $region124: #{transformer_lm_forward.1} parent=83 // pred_fallthru
          _
        %s867 = sand.u32 %s53, 1
        %s868 = scalar_lea.sflag [#allocation20], %s867
        %s869 = sand.u32 %s333, 1
        %s870 = scalar_lea.vmem [#allocation21], %s869
        // Predicated region
        $region125: #{transformer_lm_forward.1} parent=83 // pred_check
          %p871 = pneg %p346
        $region126: #{transformer_lm_forward.1} parent=83 // pred_check_branch
          %873 = sbr.rel (%p871) target = $region128
        $region127: #{transformer_lm_forward.1} parent=83 // pred_region
          %874 = dma.done %s868, 16
        $region128: #{transformer_lm_forward.1} parent=83 // pred_fallthru
          _
        %s875 = sand.u32 %s53, 1
        %s876 = scalar_lea.sflag [#allocation23], %s875
        %s877 = sand.u32 %s359, 1
        %s878 = scalar_lea.vmem [#allocation22], %s877
        // Predicated region
        $region129: #{transformer_lm_forward.1} parent=83 // pred_check
          %p879 = pneg %p372
        $region130: #{transformer_lm_forward.1} parent=83 // pred_check_branch
          %881 = sbr.rel (%p879) target = $region132
        $region131: #{transformer_lm_forward.1} parent=83 // pred_region
          %882 = dma.done %s876, 16
        $region132: #{transformer_lm_forward.1} parent=83 // pred_fallthru
          _
        // Predicated region
        $region133: #{transformer_lm_forward.1} parent=83 // pred_check
          %p883 = pneg %p393
        $region134: #{transformer_lm_forward.1} parent=83 // pred_check_branch
          %885 = sbr.rel (%p883) target = $region136
        $region135: #{transformer_lm_forward.1} parent=83 // pred_region
          %886 = dma.done [#allocation23], 16
        $region136: #{transformer_lm_forward.1} parent=83 // pred_fallthru
          _
        // Predicated region
        $region137: #{transformer_lm_forward.1} parent=83 // pred_check
          %p887 = pneg %p414
        $region138: #{transformer_lm_forward.1} parent=83 // pred_check_branch
          %889 = sbr.rel (%p887) target = $region140
        $region139: #{transformer_lm_forward.1} parent=83 // pred_region
          %890 = dma.done [#allocation26], 16
        $region140: #{transformer_lm_forward.1} parent=83 // pred_fallthru
          _
        // Predicated region
        $region141: #{transformer_lm_forward.1} parent=83 // pred_check
          %p891 = pneg %p435
        $region142: #{transformer_lm_forward.1} parent=83 // pred_check_branch
          %893 = sbr.rel (%p891) target = $region144
        $region143: #{transformer_lm_forward.1} parent=83 // pred_region
          %894 = dma.done [#allocation26], 2048
        $region144: #{transformer_lm_forward.1} parent=83 // pred_fallthru
          _
        // Predicated region
        $region145: #{transformer_lm_forward.1} parent=83 // pred_check
          %p895 = pneg %p456
        $region146: #{transformer_lm_forward.1} parent=83 // pred_check_branch
          %897 = sbr.rel (%p895) target = $region148
        $region147: #{transformer_lm_forward.1} parent=83 // pred_region
          %898 = dma.done [#allocation29], 32
        $region148: #{transformer_lm_forward.1} parent=83 // pred_fallthru
          _
        %s899 = sand.u32 %s73, 1
        %s900 = scalar_lea.sflag [#allocation5], %s899
        %s901 = sand.u32 %s73, 1
        %s902 = smul.addr %s901, 256
        %s903 = scalar_lea.vmem [#allocation4], %s902
        %p904 = pneg %p86
        %p905 = pneg %p83
        %s906 = sand.u32 %s53, 1
        %s907 = scalar_lea.sflag [#allocation8], %s906
        %s908 = sand.u32 %s99, 1
        %s909 = smul.addr %s908, 192
        %s910 = scalar_lea.vmem [#allocation7], %s909
        %p911 = pneg %p112
        %p912 = pneg %p109
        %s913 = sand.u32 %s53, 1
        %s914 = scalar_lea.sflag [#allocation8], %s913
        %s915 = sand.u32 %s125, 1
        %s916 = smul.addr %s915, 64
        %s917 = scalar_lea.vmem [#allocation9], %s916
        %p918 = pneg %p138
        %p919 = pneg %p135
        %s920 = sand.u32 %s53, 1
        %s921 = scalar_lea.sflag [#allocation11], %s920
        %s922 = sand.u32 %s151, 1
        %s923 = scalar_lea.vmem [#allocation10], %s922
        %p924 = pneg %p164
        %p925 = pneg %p161
        %s926 = sand.u32 %s53, 1
        %s927 = scalar_lea.sflag [#allocation11], %s926
        %s928 = sand.u32 %s177, 1
        %s929 = scalar_lea.vmem [#allocation12], %s928
        %p930 = pneg %p190
        %p931 = pneg %p187
        %s932 = sand.u32 %s53, 1
        %s933 = scalar_lea.sflag [#allocation14], %s932
        %s934 = sand.u32 %s203, 1
        %s935 = scalar_lea.vmem [#allocation13], %s934
        %p936 = pneg %p216
        %p937 = pneg %p213
        %s938 = sand.u32 %s53, 1
        %s939 = scalar_lea.sflag [#allocation14], %s938
        %s940 = sand.u32 %s229, 1
        %s941 = smul.addr %s940, 256
        %s942 = scalar_lea.vmem [#allocation15], %s941
        %p943 = pneg %p242
        %p944 = pneg %p239
        %s945 = sand.u32 %s53, 1
        %s946 = scalar_lea.sflag [#allocation17], %s945
        %s947 = sand.u32 %s255, 1
        %s948 = smul.addr %s947, 4
        %s949 = scalar_lea.vmem [#allocation16], %s948
        %p950 = pneg %p268
        %p951 = pneg %p265
        %s952 = sand.u32 %s53, 1
        %s953 = scalar_lea.sflag [#allocation17], %s952
        %s954 = sand.u32 %s281, 1
        %s955 = smul.addr %s954, 256
        %s956 = scalar_lea.vmem [#allocation18], %s955
        %p957 = pneg %p294
        %p958 = pneg %p291
        %s959 = sand.u32 %s53, 1
        %s960 = scalar_lea.sflag [#allocation20], %s959
        %s961 = sand.u32 %s307, 1
        %s962 = scalar_lea.vmem [#allocation19], %s961
        %p963 = pneg %p320
        %p964 = pneg %p317
        %s965 = sand.u32 %s53, 1
        %s966 = scalar_lea.sflag [#allocation20], %s965
        %s967 = sand.u32 %s333, 1
        %s968 = scalar_lea.vmem [#allocation21], %s967
        %p969 = pneg %p346
        %p970 = pneg %p343
        %s971 = sand.u32 %s53, 1
        %s972 = scalar_lea.sflag [#allocation23], %s971
        %s973 = sand.u32 %s359, 1
        %s974 = scalar_lea.vmem [#allocation22], %s973
        %p975 = pneg %p372
        %p976 = pneg %p369
        %p977 = pneg %p393
        %p978 = pneg %p390
        %p979 = pneg %p414
        %p980 = pneg %p411
        %p981 = pneg %p435
        %p982 = pneg %p432
        %p983 = pneg %p456
        %p984 = pneg %p453
        %p985 = pneg %p482
        %p986 = pneg %p479
        %s987 = sand.u32 %s469, 1
        %s988 = scalar_lea.sflag [#allocation6], %s987
        %s989 = sand.u32 %s469, 1
        %s990 = smul.addr %s989, 512
        %s991 = scalar_lea.vmem [#allocation30], %s990
        %s992 = smul.u32 4, %s57
        %s993 = smul.u32 4, %s57
        %p995 = scmp.eq.s32.totalorder %s58, 0
        // Predicated region
        $region149: #{transformer_lm_forward.1} parent=83 // pred_check
          %p996 = pneg %p995
        $region150: #{transformer_lm_forward.1} parent=83 // pred_check_branch
          %998 = sbr.rel (%p996) target = $region152
        $region151: #{transformer_lm_forward.1} parent=83 // pred_region
          %v999 = vld [vmem:[%s785] sm:$0xff]
          %v1000 = vld [vmem:[%s785 + $0x8] sm:$0xff]
          %v1001 = vld [vmem:[%s785 + $0x10] sm:$0xff]
          %v1002 = vld [vmem:[%s785 + $0x18] sm:$0xff]
          %v1003 = vld [vmem:[%s785 + $0x20] sm:$0xff]
          %v1004 = vld [vmem:[%s785 + $0x28] sm:$0xff]
          %v1005 = vld [vmem:[%s785 + $0x30] sm:$0xff]
          %v1006 = vld [vmem:[%s785 + $0x38] sm:$0xff]
          %v1007 = vld [vmem:[%s785 + $0x40] sm:$0xff]
          %v1008 = vld [vmem:[%s785 + $0x48] sm:$0xff]
          %v1009 = vld [vmem:[%s785 + $0x50] sm:$0xff]
          %v1010 = vld [vmem:[%s785 + $0x58] sm:$0xff]
          %v1011 = vld [vmem:[%s785 + $0x60] sm:$0xff]
          %v1012 = vld [vmem:[%s785 + $0x68] sm:$0xff]
          %v1013 = vld [vmem:[%s785 + $0x70] sm:$0xff]
          %v1014 = vld [vmem:[%s785 + $0x78] sm:$0xff]
          %v1015 = vld [vmem:[%s785 + $0x80] sm:$0xff]
          %v1016 = vld [vmem:[%s785 + $0x88] sm:$0xff]
          %v1017 = vld [vmem:[%s785 + $0x90] sm:$0xff]
          %v1018 = vld [vmem:[%s785 + $0x98] sm:$0xff]
          %v1019 = vld [vmem:[%s785 + $0xa0] sm:$0xff]
          %v1020 = vld [vmem:[%s785 + $0xa8] sm:$0xff]
          %v1021 = vld [vmem:[%s785 + $0xb0] sm:$0xff]
          %v1022 = vld [vmem:[%s785 + $0xb8] sm:$0xff]
          %v1023 = vld [vmem:[%s785 + $0xc0] sm:$0xff]
          %v1024 = vld [vmem:[%s785 + $0xc8] sm:$0xff]
          %v1025 = vld [vmem:[%s785 + $0xd0] sm:$0xff]
          %v1026 = vld [vmem:[%s785 + $0xd8] sm:$0xff]
          %v1027 = vld [vmem:[%s785 + $0xe0] sm:$0xff]
          %v1028 = vld [vmem:[%s785 + $0xe8] sm:$0xff]
          %v1029 = vld [vmem:[%s785 + $0xf0] sm:$0xff]
          %v1030 = vld [vmem:[%s785 + $0xf8] sm:$0xff]
          %1031 = vst [vmem:[#allocation2] sm:$0xff] %v999
          %1032 = vst [vmem:[#allocation2 + $0x8] sm:$0xff] %v1000
          %1033 = vst [vmem:[#allocation2 + $0x10] sm:$0xff] %v1001
          %1034 = vst [vmem:[#allocation2 + $0x18] sm:$0xff] %v1002
          %1035 = vst [vmem:[#allocation2 + $0x20] sm:$0xff] %v1003
          %1036 = vst [vmem:[#allocation2 + $0x28] sm:$0xff] %v1004
          %1037 = vst [vmem:[#allocation2 + $0x30] sm:$0xff] %v1005
          %1038 = vst [vmem:[#allocation2 + $0x38] sm:$0xff] %v1006
          %1039 = vst [vmem:[#allocation2 + $0x40] sm:$0xff] %v1007
          %1040 = vst [vmem:[#allocation2 + $0x48] sm:$0xff] %v1008
          %1041 = vst [vmem:[#allocation2 + $0x50] sm:$0xff] %v1009
          %1042 = vst [vmem:[#allocation2 + $0x58] sm:$0xff] %v1010
          %1043 = vst [vmem:[#allocation2 + $0x60] sm:$0xff] %v1011
          %1044 = vst [vmem:[#allocation2 + $0x68] sm:$0xff] %v1012
          %1045 = vst [vmem:[#allocation2 + $0x70] sm:$0xff] %v1013
          %1046 = vst [vmem:[#allocation2 + $0x78] sm:$0xff] %v1014
          %1047 = vst [vmem:[#allocation2 + $0x80] sm:$0xff] %v1015
          %1048 = vst [vmem:[#allocation2 + $0x88] sm:$0xff] %v1016
          %1049 = vst [vmem:[#allocation2 + $0x90] sm:$0xff] %v1017
          %1050 = vst [vmem:[#allocation2 + $0x98] sm:$0xff] %v1018
          %1051 = vst [vmem:[#allocation2 + $0xa0] sm:$0xff] %v1019
          %1052 = vst [vmem:[#allocation2 + $0xa8] sm:$0xff] %v1020
          %1053 = vst [vmem:[#allocation2 + $0xb0] sm:$0xff] %v1021
          %1054 = vst [vmem:[#allocation2 + $0xb8] sm:$0xff] %v1022
          %1055 = vst [vmem:[#allocation2 + $0xc0] sm:$0xff] %v1023
          %1056 = vst [vmem:[#allocation2 + $0xc8] sm:$0xff] %v1024
          %1057 = vst [vmem:[#allocation2 + $0xd0] sm:$0xff] %v1025
          %1058 = vst [vmem:[#allocation2 + $0xd8] sm:$0xff] %v1026
          %1059 = vst [vmem:[#allocation2 + $0xe0] sm:$0xff] %v1027
          %1060 = vst [vmem:[#allocation2 + $0xe8] sm:$0xff] %v1028
          %1061 = vst [vmem:[#allocation2 + $0xf0] sm:$0xff] %v1029
          %1062 = vst [vmem:[#allocation2 + $0xf8] sm:$0xff] %v1030
        $region152: #{transformer_lm_forward.1} parent=83 // pred_fallthru
          _
        %v1063 = vld [vmem:[#allocation2] sm:$0xff]
        %v1064 = vld [vmem:[#allocation2 + $0x8] sm:$0xff]
        %v1065 = vld [vmem:[#allocation2 + $0x10] sm:$0xff]
        %v1066 = vld [vmem:[#allocation2 + $0x18] sm:$0xff]
        %v1067 = vld [vmem:[#allocation2 + $0x20] sm:$0xff]
        %v1068 = vld [vmem:[#allocation2 + $0x28] sm:$0xff]
        %v1069 = vld [vmem:[#allocation2 + $0x30] sm:$0xff]
        %v1070 = vld [vmem:[#allocation2 + $0x38] sm:$0xff]
        %v1071 = vld [vmem:[#allocation2 + $0x40] sm:$0xff]
        %v1072 = vld [vmem:[#allocation2 + $0x48] sm:$0xff]
        %v1073 = vld [vmem:[#allocation2 + $0x50] sm:$0xff]
        %v1074 = vld [vmem:[#allocation2 + $0x58] sm:$0xff]
        %v1075 = vld [vmem:[#allocation2 + $0x60] sm:$0xff]
        %v1076 = vld [vmem:[#allocation2 + $0x68] sm:$0xff]
        %v1077 = vld [vmem:[#allocation2 + $0x70] sm:$0xff]
        %v1078 = vld [vmem:[#allocation2 + $0x78] sm:$0xff]
        %v1079 = vld [vmem:[#allocation2 + $0x80] sm:$0xff]
        %v1080 = vld [vmem:[#allocation2 + $0x88] sm:$0xff]
        %v1081 = vld [vmem:[#allocation2 + $0x90] sm:$0xff]
        %v1082 = vld [vmem:[#allocation2 + $0x98] sm:$0xff]
        %v1083 = vld [vmem:[#allocation2 + $0xa0] sm:$0xff]
        %v1084 = vld [vmem:[#allocation2 + $0xa8] sm:$0xff]
        %v1085 = vld [vmem:[#allocation2 + $0xb0] sm:$0xff]
        %v1086 = vld [vmem:[#allocation2 + $0xb8] sm:$0xff]
        %v1087 = vld [vmem:[#allocation2 + $0xc0] sm:$0xff]
        %v1088 = vld [vmem:[#allocation2 + $0xc8] sm:$0xff]
        %v1089 = vld [vmem:[#allocation2 + $0xd0] sm:$0xff]
        %v1090 = vld [vmem:[#allocation2 + $0xd8] sm:$0xff]
        %v1091 = vld [vmem:[#allocation2 + $0xe0] sm:$0xff]
        %v1092 = vld [vmem:[#allocation2 + $0xe8] sm:$0xff]
        %v1093 = vld [vmem:[#allocation2 + $0xf0] sm:$0xff]
        %v1094 = vld [vmem:[#allocation2 + $0xf8] sm:$0xff]
        %v1095 = vlaneseq
        %v1096 = vshrl.u32 %v1095, 7
        %v1097 = vadd.s32 %v1096, 8
        %v1098 = vadd.s32 %v1096, 16
        %v1099 = vadd.s32 %v1096, 24
        %v1100 = vadd.s32 %v1096, 32
        %v1101 = vadd.s32 %v1096, 40
        %v1102 = vadd.s32 %v1096, 48
        %v1103 = vadd.s32 %v1096, 56
        %v1104 = vlaneseq
        %v1105 = vand.u32 %v1104, 127
        %vm1106 = vcmp.le.s32.totalorder %v1105, %v1096
        %vm1107 = vcmp.le.s32.totalorder %v1105, %v1097
        %vm1108 = vcmp.le.s32.totalorder %v1105, %v1098
        %vm1109 = vcmp.le.s32.totalorder %v1105, %v1099
        %vm1110 = vcmp.le.s32.totalorder %v1105, %v1100
        %vm1111 = vcmp.le.s32.totalorder %v1105, %v1101
        %vm1112 = vcmp.le.s32.totalorder %v1105, %v1102
        %vm1113 = vcmp.le.s32.totalorder %v1105, %v1103
        %v1114 = vsel %vm1106, 0.0, -1e+30
        %v1115 = vsel %vm1107, 0.0, -1e+30
        %v1116 = vsel %vm1108, 0.0, -1e+30
        %v1117 = vsel %vm1109, 0.0, -1e+30
        %v1118 = vsel %vm1110, 0.0, -1e+30
        %v1119 = vsel %vm1111, 0.0, -1e+30
        %v1120 = vsel %vm1112, 0.0, -1e+30
        %v1121 = vsel %vm1113, 0.0, -1e+30
        %v1122 = vpack.c.bf16 %v1064, %v1063
        %v1123 = vpack.c.bf16 %v1066, %v1065
        %v1124 = vpack.c.bf16 %v1068, %v1067
        %v1125 = vpack.c.bf16 %v1070, %v1069
        %v1126 = vpack.c.bf16 %v1072, %v1071
        %v1127 = vpack.c.bf16 %v1074, %v1073
        %v1128 = vpack.c.bf16 %v1076, %v1075
        %v1129 = vpack.c.bf16 %v1078, %v1077
        %v1130 = vpack.c.bf16 %v1080, %v1079
        %v1131 = vpack.c.bf16 %v1082, %v1081
        %v1132 = vpack.c.bf16 %v1084, %v1083
        %v1133 = vpack.c.bf16 %v1086, %v1085
        %v1134 = vpack.c.bf16 %v1088, %v1087
        %v1135 = vpack.c.bf16 %v1090, %v1089
        %v1136 = vpack.c.bf16 %v1092, %v1091
        %v1137 = vpack.c.bf16 %v1094, %v1093
        %v1138 = vld [vmem:[%s794] sm:$0xff]
        %v1139 = vld [vmem:[%s794 + $0x8] sm:$0xf]
        %v1140 = vld [vmem:[%s794 + $0xc] sm:$0xff]
        %v1141 = vld [vmem:[%s794 + $0x14] sm:$0xf]
        %v1142 = vld [vmem:[%s794 + $0x18] sm:$0xff]
        %v1143 = vld [vmem:[%s794 + $0x20] sm:$0xf]
        %v1144 = vld [vmem:[%s794 + $0x24] sm:$0xff]
        %v1145 = vld [vmem:[%s794 + $0x2c] sm:$0xf]
        %v1146 = vld [vmem:[%s794 + $0x30] sm:$0xff]
        %v1147 = vld [vmem:[%s794 + $0x38] sm:$0xf]
        %v1148 = vld [vmem:[%s794 + $0x3c] sm:$0xff]
        %v1149 = vld [vmem:[%s794 + $0x44] sm:$0xf]
        %v1150 = vld [vmem:[%s794 + $0x48] sm:$0xff]
        %v1151 = vld [vmem:[%s794 + $0x50] sm:$0xf]
        %v1152 = vld [vmem:[%s794 + $0x54] sm:$0xff]
        %v1153 = vld [vmem:[%s794 + $0x5c] sm:$0xf]
        %v1154 = vld [vmem:[%s794 + $0x60] sm:$0xff]
        %v1155 = vld [vmem:[%s794 + $0x68] sm:$0xf]
        %v1156 = vld [vmem:[%s794 + $0x6c] sm:$0xff]
        %v1157 = vld [vmem:[%s794 + $0x74] sm:$0xf]
        %v1158 = vld [vmem:[%s794 + $0x78] sm:$0xff]
        %v1159 = vld [vmem:[%s794 + $0x80] sm:$0xf]
        %v1160 = vld [vmem:[%s794 + $0x84] sm:$0xff]
        %v1161 = vld [vmem:[%s794 + $0x8c] sm:$0xf]
        %v1162 = vld [vmem:[%s794 + $0x90] sm:$0xff]
        %v1163 = vld [vmem:[%s794 + $0x98] sm:$0xf]
        %v1164 = vld [vmem:[%s794 + $0x9c] sm:$0xff]
        %v1165 = vld [vmem:[%s794 + $0xa4] sm:$0xf]
        %v1166 = vld [vmem:[%s794 + $0xa8] sm:$0xff]
        %v1167 = vld [vmem:[%s794 + $0xb0] sm:$0xf]
        %v1168 = vld [vmem:[%s794 + $0xb4] sm:$0xff]
        %v1169 = vld [vmem:[%s794 + $0xbc] sm:$0xf]
        %v1202 = vunpack.c.l.b16 %v1138
        %v1203 = vunpack.c.h.b16 %v1138
        %v1204 = vunpack.c.l.b16 %v1139
        %v1205 = vunpack.c.l.b16 %v1140
        %v1206 = vunpack.c.h.b16 %v1140
        %v1207 = vunpack.c.l.b16 %v1141
        %v1208 = vunpack.c.l.b16 %v1142
        %v1209 = vunpack.c.h.b16 %v1142
        %v1210 = vunpack.c.l.b16 %v1143
        %v1211 = vunpack.c.l.b16 %v1144
        %v1212 = vunpack.c.h.b16 %v1144
        %v1213 = vunpack.c.l.b16 %v1145
        %v1214 = vunpack.c.l.b16 %v1146
        %v1215 = vunpack.c.h.b16 %v1146
        %v1216 = vunpack.c.l.b16 %v1147
        %v1217 = vunpack.c.l.b16 %v1148
        %v1218 = vunpack.c.h.b16 %v1148
        %v1219 = vunpack.c.l.b16 %v1149
        %v1220 = vunpack.c.l.b16 %v1150
        %v1221 = vunpack.c.h.b16 %v1150
        %v1222 = vunpack.c.l.b16 %v1151
        %v1223 = vunpack.c.l.b16 %v1152
        %v1224 = vunpack.c.h.b16 %v1152
        %v1225 = vunpack.c.l.b16 %v1153
        %v1226 = vunpack.c.l.b16 %v1154
        %v1227 = vunpack.c.h.b16 %v1154
        %v1228 = vunpack.c.l.b16 %v1155
        %v1229 = vunpack.c.l.b16 %v1156
        %v1230 = vunpack.c.h.b16 %v1156
        %v1231 = vunpack.c.l.b16 %v1157
        %v1232 = vunpack.c.l.b16 %v1158
        %v1233 = vunpack.c.h.b16 %v1158
        %v1234 = vunpack.c.l.b16 %v1159
        %v1235 = vunpack.c.l.b16 %v1160
        %v1236 = vunpack.c.h.b16 %v1160
        %v1237 = vunpack.c.l.b16 %v1161
        %v1238 = vunpack.c.l.b16 %v1162
        %v1239 = vunpack.c.h.b16 %v1162
        %v1240 = vunpack.c.l.b16 %v1163
        %v1241 = vunpack.c.l.b16 %v1164
        %v1242 = vunpack.c.h.b16 %v1164
        %v1243 = vunpack.c.l.b16 %v1165
        %v1244 = vunpack.c.l.b16 %v1166
        %v1245 = vunpack.c.h.b16 %v1166
        %v1246 = vunpack.c.l.b16 %v1167
        %v1247 = vunpack.c.l.b16 %v1168
        %v1248 = vunpack.c.h.b16 %v1168
        %v1249 = vunpack.c.l.b16 %v1169
        %v1250 = vpack.c.b16 %v1205, %v1202
        %v1251 = vpack.c.b16 %v1206, %v1203
        %v1252 = vpack.c.b16 %v1207, %v1204
        %v1253 = vpack.c.b16 %v1211, %v1208
        %v1254 = vpack.c.b16 %v1212, %v1209
        %v1255 = vpack.c.b16 %v1213, %v1210
        %v1256 = vpack.c.b16 %v1217, %v1214
        %v1257 = vpack.c.b16 %v1218, %v1215
        %v1258 = vpack.c.b16 %v1219, %v1216
        %v1259 = vpack.c.b16 %v1223, %v1220
        %v1260 = vpack.c.b16 %v1224, %v1221
        %v1261 = vpack.c.b16 %v1225, %v1222
        %v1262 = vpack.c.b16 %v1229, %v1226
        %v1263 = vpack.c.b16 %v1230, %v1227
        %v1264 = vpack.c.b16 %v1231, %v1228
        %v1265 = vpack.c.b16 %v1235, %v1232
        %v1266 = vpack.c.b16 %v1236, %v1233
        %v1267 = vpack.c.b16 %v1237, %v1234
        %v1268 = vpack.c.b16 %v1241, %v1238
        %v1269 = vpack.c.b16 %v1242, %v1239
        %v1270 = vpack.c.b16 %v1243, %v1240
        %v1271 = vpack.c.b16 %v1247, %v1244
        %v1272 = vpack.c.b16 %v1248, %v1245
        %v1273 = vpack.c.b16 %v1249, %v1246
        %1298 = vmatprep.subr.bf16.mxu0 %v1251
        %1299 = vmatpush1.bf16.msra.mxu0 %v1250
        %1300 = vmatprep.subr.bf16.mxu0 %v1254
        %1301 = vmatpush1.bf16.msra.mxu0 %v1253
        %1302 = vmatprep.subr.bf16.mxu0 %v1257
        %1303 = vmatpush1.bf16.msra.mxu0 %v1256
        %1304 = vmatprep.subr.bf16.mxu0 %v1260
        %1305 = vmatpush1.bf16.msra.mxu0 %v1259
        %1306 = vmatprep.subr.bf16.mxu0 %v1263
        %1307 = vmatpush1.bf16.msra.mxu0 %v1262
        %1308 = vmatprep.subr.bf16.mxu0 %v1266
        %1309 = vmatpush1.bf16.msra.mxu0 %v1265
        %1310 = vmatprep.subr.bf16.mxu0 %v1269
        %1311 = vmatpush1.bf16.msra.mxu0 %v1268
        %1312 = vmatprep.subr.bf16.mxu0 %v1272
        %1313 = vmatpush1.bf16.msra.mxu0 %v1271
        %1314 = vmatprep.subr.bf16.mxu0 0
        %1315 = vmatpush1.bf16.msra.mxu0 0
        %1316 = vmatprep.subr.bf16.mxu0 0
        %1317 = vmatpush1.bf16.msra.mxu0 0
        %1318 = vmatprep.subr.bf16.mxu0 0
        %1319 = vmatpush1.bf16.msra.mxu0 0
        %1320 = vmatprep.subr.bf16.mxu0 0
        %1321 = vmatpush1.bf16.msra.mxu0 0
        %1322 = vmatprep.subr.bf16.mxu0 0
        %1323 = vmatpush1.bf16.msra.mxu0 0
        %1324 = vmatprep.subr.bf16.mxu0 0
        %1325 = vmatpush1.bf16.msra.mxu0 0
        %1326 = vmatprep.subr.bf16.mxu0 0
        %1327 = vmatpush1.bf16.msra.mxu0 0
        %1328 = vmatprep.subr.bf16.mxu0 0
        %1329 = vmatpush1.bf16.msra.mxu0 0
        %1330 = vmatprep.mubr.bf16.mxu0 0
        %1331 = vmatmul.mubr.bf16.gmra.mrb[0].mxu0 %v1122
        %v1332 = vpop.f32.mrb[0].mxu0
        %v1333 = vadd.f32 0.0, %v1332
        %v1334 = vpop.f32.mrb[0].mxu0
        %v1335 = vadd.f32 0.0, %v1334
        %v1336 = vpop.f32.mrb[0].mxu0
        %v1337 = vadd.f32 0.0, %v1336
        %v1338 = vpop.f32.mrb[0].mxu0
        %v1339 = vadd.f32 0.0, %v1338
        %1340 = vmatprep.mubr.bf16.mxu0 0
        %1341 = vmatmul.mubr.bf16.gmra.mrb[0].mxu0 %v1123
        %v1342 = vpop.f32.mrb[0].mxu0
        %v1343 = vadd.f32 0.0, %v1342
        %v1344 = vpop.f32.mrb[0].mxu0
        %v1345 = vadd.f32 0.0, %v1344
        %v1346 = vpop.f32.mrb[0].mxu0
        %v1347 = vadd.f32 0.0, %v1346
        %v1348 = vpop.f32.mrb[0].mxu0
        %v1349 = vadd.f32 0.0, %v1348
        %1350 = vmatprep.mubr.bf16.mxu0 0
        %1351 = vmatmul.mubr.bf16.gmra.mrb[0].mxu0 %v1124
        %v1352 = vpop.f32.mrb[0].mxu0
        %v1353 = vadd.f32 0.0, %v1352
        %v1354 = vpop.f32.mrb[0].mxu0
        %v1355 = vadd.f32 0.0, %v1354
        %v1356 = vpop.f32.mrb[0].mxu0
        %v1357 = vadd.f32 0.0, %v1356
        %v1358 = vpop.f32.mrb[0].mxu0
        %v1359 = vadd.f32 0.0, %v1358
        %1360 = vmatprep.mubr.bf16.mxu0 0
        %1361 = vmatmul.mubr.bf16.gmra.mrb[0].mxu0 %v1125
        %v1362 = vpop.f32.mrb[0].mxu0
        %v1363 = vadd.f32 0.0, %v1362
        %v1364 = vpop.f32.mrb[0].mxu0
        %v1365 = vadd.f32 0.0, %v1364
        %v1366 = vpop.f32.mrb[0].mxu0
        %v1367 = vadd.f32 0.0, %v1366
        %v1368 = vpop.f32.mrb[0].mxu0
        %v1369 = vadd.f32 0.0, %v1368
        %1370 = vmatprep.mubr.bf16.mxu0 0
        %1371 = vmatmul.mubr.bf16.gmra.mrb[0].mxu0 %v1126
        %v1372 = vpop.f32.mrb[0].mxu0
        %v1373 = vadd.f32 0.0, %v1372
        %v1374 = vpop.f32.mrb[0].mxu0
        %v1375 = vadd.f32 0.0, %v1374
        %v1376 = vpop.f32.mrb[0].mxu0
        %v1377 = vadd.f32 0.0, %v1376
        %v1378 = vpop.f32.mrb[0].mxu0
        %v1379 = vadd.f32 0.0, %v1378
        %1380 = vmatprep.mubr.bf16.mxu0 0
        %1381 = vmatmul.mubr.bf16.gmra.mrb[0].mxu0 %v1127
        %v1382 = vpop.f32.mrb[0].mxu0
        %v1383 = vadd.f32 0.0, %v1382
        %v1384 = vpop.f32.mrb[0].mxu0
        %v1385 = vadd.f32 0.0, %v1384
        %v1386 = vpop.f32.mrb[0].mxu0
        %v1387 = vadd.f32 0.0, %v1386
        %v1388 = vpop.f32.mrb[0].mxu0
        %v1389 = vadd.f32 0.0, %v1388
        %1390 = vmatprep.mubr.bf16.mxu0 0
        %1391 = vmatmul.mubr.bf16.gmra.mrb[0].mxu0 %v1128
        %v1392 = vpop.f32.mrb[0].mxu0
        %v1393 = vadd.f32 0.0, %v1392
        %v1394 = vpop.f32.mrb[0].mxu0
        %v1395 = vadd.f32 0.0, %v1394
        %v1396 = vpop.f32.mrb[0].mxu0
        %v1397 = vadd.f32 0.0, %v1396
        %v1398 = vpop.f32.mrb[0].mxu0
        %v1399 = vadd.f32 0.0, %v1398
        %1400 = vmatprep.mubr.bf16.mxu0 0
        %1401 = vmatmul.mubr.bf16.gmra.mrb[0].mxu0 %v1129
        %v1402 = vpop.f32.mrb[0].mxu0
        %v1403 = vadd.f32 0.0, %v1402
        %v1404 = vpop.f32.mrb[0].mxu0
        %v1405 = vadd.f32 0.0, %v1404
        %v1406 = vpop.f32.mrb[0].mxu0
        %v1407 = vadd.f32 0.0, %v1406
        %v1408 = vpop.f32.mrb[0].mxu0
        %v1409 = vadd.f32 0.0, %v1408
        %1410 = vmatprep.mubr.bf16.mxu0 0
        %1411 = vmatmul.mubr.bf16.gmra.mrb[0].mxu0 %v1130
        %v1412 = vpop.f32.mrb[0].mxu0
        %v1413 = vadd.f32 0.0, %v1412
        %v1414 = vpop.f32.mrb[0].mxu0
        %v1415 = vadd.f32 0.0, %v1414
        %v1416 = vpop.f32.mrb[0].mxu0
        %v1417 = vadd.f32 0.0, %v1416
        %v1418 = vpop.f32.mrb[0].mxu0
        %v1419 = vadd.f32 0.0, %v1418
        %1420 = vmatprep.mubr.bf16.mxu0 0
        %1421 = vmatmul.mubr.bf16.gmra.mrb[0].mxu0 %v1131
        %v1422 = vpop.f32.mrb[0].mxu0
        %v1423 = vadd.f32 0.0, %v1422
        %v1424 = vpop.f32.mrb[0].mxu0
        %v1425 = vadd.f32 0.0, %v1424
        %v1426 = vpop.f32.mrb[0].mxu0
        %v1427 = vadd.f32 0.0, %v1426
        %v1428 = vpop.f32.mrb[0].mxu0
        %v1429 = vadd.f32 0.0, %v1428
        %1430 = vmatprep.mubr.bf16.mxu0 0
        %1431 = vmatmul.mubr.bf16.gmra.mrb[0].mxu0 %v1132
        %v1432 = vpop.f32.mrb[0].mxu0
        %v1433 = vadd.f32 0.0, %v1432
        %v1434 = vpop.f32.mrb[0].mxu0
        %v1435 = vadd.f32 0.0, %v1434
        %v1436 = vpop.f32.mrb[0].mxu0
        %v1437 = vadd.f32 0.0, %v1436
        %v1438 = vpop.f32.mrb[0].mxu0
        %v1439 = vadd.f32 0.0, %v1438
        %1440 = vmatprep.mubr.bf16.mxu0 0
        %1441 = vmatmul.mubr.bf16.gmra.mrb[0].mxu0 %v1133
        %v1442 = vpop.f32.mrb[0].mxu0
        %v1443 = vadd.f32 0.0, %v1442
        %v1444 = vpop.f32.mrb[0].mxu0
        %v1445 = vadd.f32 0.0, %v1444
        %v1446 = vpop.f32.mrb[0].mxu0
        %v1447 = vadd.f32 0.0, %v1446
        %v1448 = vpop.f32.mrb[0].mxu0
        %v1449 = vadd.f32 0.0, %v1448
        %1450 = vmatprep.mubr.bf16.mxu0 0
        %1451 = vmatmul.mubr.bf16.gmra.mrb[0].mxu0 %v1134
        %v1452 = vpop.f32.mrb[0].mxu0
        %v1453 = vadd.f32 0.0, %v1452
        %v1454 = vpop.f32.mrb[0].mxu0
        %v1455 = vadd.f32 0.0, %v1454
        %v1456 = vpop.f32.mrb[0].mxu0
        %v1457 = vadd.f32 0.0, %v1456
        %v1458 = vpop.f32.mrb[0].mxu0
        %v1459 = vadd.f32 0.0, %v1458
        %1460 = vmatprep.mubr.bf16.mxu0 0
        %1461 = vmatmul.mubr.bf16.gmra.mrb[0].mxu0 %v1135
        %v1462 = vpop.f32.mrb[0].mxu0
        %v1463 = vadd.f32 0.0, %v1462
        %v1464 = vpop.f32.mrb[0].mxu0
        %v1465 = vadd.f32 0.0, %v1464
        %v1466 = vpop.f32.mrb[0].mxu0
        %v1467 = vadd.f32 0.0, %v1466
        %v1468 = vpop.f32.mrb[0].mxu0
        %v1469 = vadd.f32 0.0, %v1468
        %1470 = vmatprep.mubr.bf16.mxu0 0
        %1471 = vmatmul.mubr.bf16.gmra.mrb[0].mxu0 %v1136
        %v1472 = vpop.f32.mrb[0].mxu0
        %v1473 = vadd.f32 0.0, %v1472
        %v1474 = vpop.f32.mrb[0].mxu0
        %v1475 = vadd.f32 0.0, %v1474
        %v1476 = vpop.f32.mrb[0].mxu0
        %v1477 = vadd.f32 0.0, %v1476
        %v1478 = vpop.f32.mrb[0].mxu0
        %v1479 = vadd.f32 0.0, %v1478
        %1480 = vmatprep.mubr.bf16.mxu0 0
        %1481 = vmatmul.mubr.bf16.gmra.mrb[0].mxu0 %v1137
        %v1482 = vpop.f32.mrb[0].mxu0
        %v1483 = vadd.f32 0.0, %v1482
        %v1484 = vpop.f32.mrb[0].mxu0
        %v1485 = vadd.f32 0.0, %v1484
        %v1486 = vpop.f32.mrb[0].mxu0
        %v1487 = vadd.f32 0.0, %v1486
        %v1488 = vpop.f32.mrb[0].mxu0
        %v1489 = vadd.f32 0.0, %v1488
        %1490 = vdwg.mxu0
        %1491 = vmatprep.subr.bf16.mxu0 0
        %1492 = vmatpush1.bf16.msra.mxu0 %v1252
        %1493 = vmatprep.subr.bf16.mxu0 0
        %1494 = vmatpush1.bf16.msra.mxu0 %v1255
        %1495 = vmatprep.subr.bf16.mxu0 0
        %1496 = vmatpush1.bf16.msra.mxu0 %v1258
        %1497 = vmatprep.subr.bf16.mxu0 0
        %1498 = vmatpush1.bf16.msra.mxu0 %v1261
        %1499 = vmatprep.subr.bf16.mxu0 0
        %1500 = vmatpush1.bf16.msra.mxu0 %v1264
        %1501 = vmatprep.subr.bf16.mxu0 0
        %1502 = vmatpush1.bf16.msra.mxu0 %v1267
        %1503 = vmatprep.subr.bf16.mxu0 0
        %1504 = vmatpush1.bf16.msra.mxu0 %v1270
        %1505 = vmatprep.subr.bf16.mxu0 0
        %1506 = vmatpush1.bf16.msra.mxu0 %v1273
        %1507 = vmatprep.subr.bf16.mxu0 0
        %1508 = vmatpush1.bf16.msra.mxu0 0
        %1509 = vmatprep.subr.bf16.mxu0 0
        %1510 = vmatpush1.bf16.msra.mxu0 0
        %1511 = vmatprep.subr.bf16.mxu0 0
        %1512 = vmatpush1.bf16.msra.mxu0 0
        %1513 = vmatprep.subr.bf16.mxu0 0
        %1514 = vmatpush1.bf16.msra.mxu0 0
        %1515 = vmatprep.subr.bf16.mxu0 0
        %1516 = vmatpush1.bf16.msra.mxu0 0
        %1517 = vmatprep.subr.bf16.mxu0 0
        %1518 = vmatpush1.bf16.msra.mxu0 0
        %1519 = vmatprep.subr.bf16.mxu0 0
        %1520 = vmatpush1.bf16.msra.mxu0 0
        %1521 = vmatprep.subr.bf16.mxu0 0
        %1522 = vmatpush1.bf16.msra.mxu0 0
        %1523 = vmatprep.mubr.bf16.mxu0 0
        %1524 = vmatmul.mubr.bf16.gmra.mrb[0].mxu0 %v1122
        %v1525 = vpop.f32.mrb[0].mxu0
        %v1526 = vadd.f32 0.0, %v1525
        %v1527 = vpop.f32.mrb[0].mxu0
        %v1528 = vpop.f32.mrb[0].mxu0
        %v1529 = vadd.f32 0.0, %v1528
        %v1530 = vpop.f32.mrb[0].mxu0
        %1531 = vmatprep.mubr.bf16.mxu0 0
        %1532 = vmatmul.mubr.bf16.gmra.mrb[0].mxu0 %v1123
        %v1533 = vpop.f32.mrb[0].mxu0
        %v1534 = vadd.f32 0.0, %v1533
        %v1535 = vpop.f32.mrb[0].mxu0
        %v1536 = vpop.f32.mrb[0].mxu0
        %v1537 = vadd.f32 0.0, %v1536
        %v1538 = vpop.f32.mrb[0].mxu0
        %1539 = vmatprep.mubr.bf16.mxu0 0
        %1540 = vmatmul.mubr.bf16.gmra.mrb[0].mxu0 %v1124
        %v1541 = vpop.f32.mrb[0].mxu0
        %v1542 = vadd.f32 0.0, %v1541
        %v1543 = vpop.f32.mrb[0].mxu0
        %v1544 = vpop.f32.mrb[0].mxu0
        %v1545 = vadd.f32 0.0, %v1544
        %v1546 = vpop.f32.mrb[0].mxu0
        %1547 = vmatprep.mubr.bf16.mxu0 0
        %1548 = vmatmul.mubr.bf16.gmra.mrb[0].mxu0 %v1125
        %v1549 = vpop.f32.mrb[0].mxu0
        %v1550 = vadd.f32 0.0, %v1549
        %v1551 = vpop.f32.mrb[0].mxu0
        %v1552 = vpop.f32.mrb[0].mxu0
        %v1553 = vadd.f32 0.0, %v1552
        %v1554 = vpop.f32.mrb[0].mxu0
        %1555 = vmatprep.mubr.bf16.mxu0 0
        %1556 = vmatmul.mubr.bf16.gmra.mrb[0].mxu0 %v1126
        %v1557 = vpop.f32.mrb[0].mxu0
        %v1558 = vadd.f32 0.0, %v1557
        %v1559 = vpop.f32.mrb[0].mxu0
        %v1560 = vpop.f32.mrb[0].mxu0
        %v1561 = vadd.f32 0.0, %v1560
        %v1562 = vpop.f32.mrb[0].mxu0
        %1563 = vmatprep.mubr.bf16.mxu0 0
        %1564 = vmatmul.mubr.bf16.gmra.mrb[0].mxu0 %v1127
        %v1565 = vpop.f32.mrb[0].mxu0
        %v1566 = vadd.f32 0.0, %v1565
        %v1567 = vpop.f32.mrb[0].mxu0
        %v1568 = vpop.f32.mrb[0].mxu0
        %v1569 = vadd.f32 0.0, %v1568
        %v1570 = vpop.f32.mrb[0].mxu0
        %1571 = vmatprep.mubr.bf16.mxu0 0
        %1572 = vmatmul.mubr.bf16.gmra.mrb[0].mxu0 %v1128
        %v1573 = vpop.f32.mrb[0].mxu0
        %v1574 = vadd.f32 0.0, %v1573
        %v1575 = vpop.f32.mrb[0].mxu0
        %v1576 = vpop.f32.mrb[0].mxu0
        %v1577 = vadd.f32 0.0, %v1576
        %v1578 = vpop.f32.mrb[0].mxu0
        %1579 = vmatprep.mubr.bf16.mxu0 0
        %1580 = vmatmul.mubr.bf16.gmra.mrb[0].mxu0 %v1129
        %v1581 = vpop.f32.mrb[0].mxu0
        %v1582 = vadd.f32 0.0, %v1581
        %v1583 = vpop.f32.mrb[0].mxu0
        %v1584 = vpop.f32.mrb[0].mxu0
        %v1585 = vadd.f32 0.0, %v1584
        %v1586 = vpop.f32.mrb[0].mxu0
        %1587 = vmatprep.mubr.bf16.mxu0 0
        %1588 = vmatmul.mubr.bf16.gmra.mrb[0].mxu0 %v1130
        %v1589 = vpop.f32.mrb[0].mxu0
        %v1590 = vadd.f32 0.0, %v1589
        %v1591 = vpop.f32.mrb[0].mxu0
        %v1592 = vpop.f32.mrb[0].mxu0
        %v1593 = vadd.f32 0.0, %v1592
        %v1594 = vpop.f32.mrb[0].mxu0
        %1595 = vmatprep.mubr.bf16.mxu0 0
        %1596 = vmatmul.mubr.bf16.gmra.mrb[0].mxu0 %v1131
        %v1597 = vpop.f32.mrb[0].mxu0
        %v1598 = vadd.f32 0.0, %v1597
        %v1599 = vpop.f32.mrb[0].mxu0
        %v1600 = vpop.f32.mrb[0].mxu0
        %v1601 = vadd.f32 0.0, %v1600
        %v1602 = vpop.f32.mrb[0].mxu0
        %1603 = vmatprep.mubr.bf16.mxu0 0
        %1604 = vmatmul.mubr.bf16.gmra.mrb[0].mxu0 %v1132
        %v1605 = vpop.f32.mrb[0].mxu0
        %v1606 = vadd.f32 0.0, %v1605
        %v1607 = vpop.f32.mrb[0].mxu0
        %v1608 = vpop.f32.mrb[0].mxu0
        %v1609 = vadd.f32 0.0, %v1608
        %v1610 = vpop.f32.mrb[0].mxu0
        %1611 = vmatprep.mubr.bf16.mxu0 0
        %1612 = vmatmul.mubr.bf16.gmra.mrb[0].mxu0 %v1133
        %v1613 = vpop.f32.mrb[0].mxu0
        %v1614 = vadd.f32 0.0, %v1613
        %v1615 = vpop.f32.mrb[0].mxu0
        %v1616 = vpop.f32.mrb[0].mxu0
        %v1617 = vadd.f32 0.0, %v1616
        %v1618 = vpop.f32.mrb[0].mxu0
        %1619 = vmatprep.mubr.bf16.mxu0 0
        %1620 = vmatmul.mubr.bf16.gmra.mrb[0].mxu0 %v1134
        %v1621 = vpop.f32.mrb[0].mxu0
        %v1622 = vadd.f32 0.0, %v1621
        %v1623 = vpop.f32.mrb[0].mxu0
        %v1624 = vpop.f32.mrb[0].mxu0
        %v1625 = vadd.f32 0.0, %v1624
        %v1626 = vpop.f32.mrb[0].mxu0
        %1627 = vmatprep.mubr.bf16.mxu0 0
        %1628 = vmatmul.mubr.bf16.gmra.mrb[0].mxu0 %v1135
        %v1629 = vpop.f32.mrb[0].mxu0
        %v1630 = vadd.f32 0.0, %v1629
        %v1631 = vpop.f32.mrb[0].mxu0
        %v1632 = vpop.f32.mrb[0].mxu0
        %v1633 = vadd.f32 0.0, %v1632
        %v1634 = vpop.f32.mrb[0].mxu0
        %1635 = vmatprep.mubr.bf16.mxu0 0
        %1636 = vmatmul.mubr.bf16.gmra.mrb[0].mxu0 %v1136
        %v1637 = vpop.f32.mrb[0].mxu0
        %v1638 = vadd.f32 0.0, %v1637
        %v1639 = vpop.f32.mrb[0].mxu0
        %v1640 = vpop.f32.mrb[0].mxu0
        %v1641 = vadd.f32 0.0, %v1640
        %v1642 = vpop.f32.mrb[0].mxu0
        %1643 = vmatprep.mubr.bf16.mxu0 0
        %1644 = vmatmul.mubr.bf16.gmra.mrb[0].mxu0 %v1137
        %v1645 = vpop.f32.mrb[0].mxu0
        %v1646 = vadd.f32 0.0, %v1645
        %v1647 = vpop.f32.mrb[0].mxu0
        %v1648 = vpop.f32.mrb[0].mxu0
        %v1649 = vadd.f32 0.0, %v1648
        %v1650 = vpop.f32.mrb[0].mxu0
        %1651 = vdwg.mxu0
        %v1652 = vmul.f32 %v1333, 0.17677669
        %v1653 = vmul.f32 %v1337, 0.17677669
        %v1654 = vmul.f32 %v1343, 0.17677669
        %v1655 = vmul.f32 %v1347, 0.17677669
        %v1656 = vmul.f32 %v1353, 0.17677669
        %v1657 = vmul.f32 %v1357, 0.17677669
        %v1658 = vmul.f32 %v1363, 0.17677669
        %v1659 = vmul.f32 %v1367, 0.17677669
        %v1660 = vmul.f32 %v1373, 0.17677669
        %v1661 = vmul.f32 %v1377, 0.17677669
        %v1662 = vmul.f32 %v1383, 0.17677669
        %v1663 = vmul.f32 %v1387, 0.17677669
        %v1664 = vmul.f32 %v1393, 0.17677669
        %v1665 = vmul.f32 %v1397, 0.17677669
        %v1666 = vmul.f32 %v1403, 0.17677669
        %v1667 = vmul.f32 %v1407, 0.17677669
        %v1668 = vmul.f32 %v1413, 0.17677669
        %v1669 = vmul.f32 %v1417, 0.17677669
        %v1670 = vmul.f32 %v1423, 0.17677669
        %v1671 = vmul.f32 %v1427, 0.17677669
        %v1672 = vmul.f32 %v1433, 0.17677669
        %v1673 = vmul.f32 %v1437, 0.17677669
        %v1674 = vmul.f32 %v1443, 0.17677669
        %v1675 = vmul.f32 %v1447, 0.17677669
        %v1676 = vmul.f32 %v1453, 0.17677669
        %v1677 = vmul.f32 %v1457, 0.17677669
        %v1678 = vmul.f32 %v1463, 0.17677669
        %v1679 = vmul.f32 %v1467, 0.17677669
        %v1680 = vmul.f32 %v1473, 0.17677669
        %v1681 = vmul.f32 %v1477, 0.17677669
        %v1682 = vmul.f32 %v1483, 0.17677669
        %v1683 = vmul.f32 %v1487, 0.17677669
        %v1684 = vpack.c.bf16 %v1653, %v1652
        %v1685 = vpack.c.bf16 %v1655, %v1654
        %v1686 = vpack.c.bf16 %v1657, %v1656
        %v1687 = vpack.c.bf16 %v1659, %v1658
        %v1688 = vpack.c.bf16 %v1661, %v1660
        %v1689 = vpack.c.bf16 %v1663, %v1662
        %v1690 = vpack.c.bf16 %v1665, %v1664
        %v1691 = vpack.c.bf16 %v1667, %v1666
        %v1692 = vpack.c.bf16 %v1669, %v1668
        %v1693 = vpack.c.bf16 %v1671, %v1670
        %v1694 = vpack.c.bf16 %v1673, %v1672
        %v1695 = vpack.c.bf16 %v1675, %v1674
        %v1696 = vpack.c.bf16 %v1677, %v1676
        %v1697 = vpack.c.bf16 %v1679, %v1678
        %v1698 = vpack.c.bf16 %v1681, %v1680
        %v1699 = vpack.c.bf16 %v1683, %v1682
        %v1700 = vpack.c.bf16 %v1339, %v1335
        %v1701 = vpack.c.bf16 %v1349, %v1345
        %v1702 = vpack.c.bf16 %v1359, %v1355
        %v1703 = vpack.c.bf16 %v1369, %v1365
        %v1704 = vpack.c.bf16 %v1379, %v1375
        %v1705 = vpack.c.bf16 %v1389, %v1385
        %v1706 = vpack.c.bf16 %v1399, %v1395
        %v1707 = vpack.c.bf16 %v1409, %v1405
        %v1708 = vpack.c.bf16 %v1419, %v1415
        %v1709 = vpack.c.bf16 %v1429, %v1425
        %v1710 = vpack.c.bf16 %v1439, %v1435
        %v1711 = vpack.c.bf16 %v1449, %v1445
        %v1712 = vpack.c.bf16 %v1459, %v1455
        %v1713 = vpack.c.bf16 %v1469, %v1465
        %v1714 = vpack.c.bf16 %v1479, %v1475
        %v1715 = vpack.c.bf16 %v1489, %v1485
        %v1716 = vpack.c.bf16 %v1529, %v1526
        %v1717 = vpack.c.bf16 %v1537, %v1534
        %v1718 = vpack.c.bf16 %v1545, %v1542
        %v1719 = vpack.c.bf16 %v1553, %v1550
        %v1720 = vpack.c.bf16 %v1561, %v1558
        %v1721 = vpack.c.bf16 %v1569, %v1566
        %v1722 = vpack.c.bf16 %v1577, %v1574
        %v1723 = vpack.c.bf16 %v1585, %v1582
        %v1724 = vpack.c.bf16 %v1593, %v1590
        %v1725 = vpack.c.bf16 %v1601, %v1598
        %v1726 = vpack.c.bf16 %v1609, %v1606
        %v1727 = vpack.c.bf16 %v1617, %v1614
        %v1728 = vpack.c.bf16 %v1625, %v1622
        %v1729 = vpack.c.bf16 %v1633, %v1630
        %v1730 = vpack.c.bf16 %v1641, %v1638
        %v1731 = vpack.c.bf16 %v1649, %v1646
        %vm1732 = vcmask 261120
        %v1734 = vsel %vm1732, %v1684, 0
        %v1737 = vsel %vm1732, %v1685, 0
        %v1740 = vsel %vm1732, %v1686, 0
        %v1743 = vsel %vm1732, %v1687, 0
        %v1746 = vsel %vm1732, %v1700, 0
        %v1749 = vsel %vm1732, %v1701, 0
        %v1752 = vsel %vm1732, %v1702, 0
        %v1755 = vsel %vm1732, %v1703, 0
        %1757 = vmatprep.subr.bf16.mxu0 0
        %1758 = vmatpush1.bf16.xpose.msra.mxu0 %v1746
        %1759 = vmatprep.subr.bf16.mxu0 0
        %1760 = vmatpush1.bf16.xpose.msra.mxu0 %v1749
        %1761 = vmatprep.subr.bf16.mxu0 0
        %1762 = vmatpush1.bf16.xpose.msra.mxu0 %v1752
        %1763 = vmatprep.subr.bf16.mxu0 0
        %1764 = vmatpush1.bf16.xpose.msra.mxu0 %v1755
        %1765 = vmatprep.subr.bf16.mxu0 0
        %1766 = vmatpush1.bf16.xpose.msra.mxu0 0
        %1767 = vmatprep.subr.bf16.mxu0 0
        %1768 = vmatpush1.bf16.xpose.msra.mxu0 0
        %1769 = vmatprep.subr.bf16.mxu0 0
        %1770 = vmatpush1.bf16.xpose.msra.mxu0 0
        %1771 = vmatprep.subr.bf16.mxu0 0
        %1772 = vmatpush1.bf16.xpose.msra.mxu0 0
        %1773 = vmatprep.subr.bf16.mxu0 0
        %1774 = vmatpush1.bf16.xpose.msra.mxu0 0
        %1775 = vmatprep.subr.bf16.mxu0 0
        %1776 = vmatpush1.bf16.xpose.msra.mxu0 0
        %1777 = vmatprep.subr.bf16.mxu0 0
        %1778 = vmatpush1.bf16.xpose.msra.mxu0 0
        %1779 = vmatprep.subr.bf16.mxu0 0
        %1780 = vmatpush1.bf16.xpose.msra.mxu0 0
        %1781 = vmatprep.subr.bf16.mxu0 0
        %1782 = vmatpush1.bf16.xpose.msra.mxu0 0
        %1783 = vmatprep.subr.bf16.mxu0 0
        %1784 = vmatpush1.bf16.xpose.msra.mxu0 0
        %1785 = vmatprep.subr.bf16.mxu0 0
        %1786 = vmatpush1.bf16.xpose.msra.mxu0 0
        %1787 = vmatprep.subr.bf16.mxu0 0
        %1788 = vmatpush1.bf16.xpose.msra.mxu0 0
        %1789 = vmatprep.mubr.bf16.mxu0 0
        %1790 = vmatmul.mubr.bf16.gmra.mrb[0].mxu0 %v1734
        %v1791 = vpop.f32.mrb[0].mxu0
        %v1792 = vadd.f32 %v1114, %v1791
        %v1793 = vpop.f32.mrb[0].mxu0
        %v1794 = vpop.f32.mrb[0].mxu0
        %v1795 = vadd.f32 %v1115, %v1794
        %v1796 = vpop.f32.mrb[0].mxu0
        %1797 = vmatprep.mubr.bf16.mxu0 0
        %1798 = vmatmul.mubr.bf16.gmra.mrb[0].mxu0 %v1737
        %v1799 = vpop.f32.mrb[0].mxu0
        %v1800 = vadd.f32 %v1116, %v1799
        %v1801 = vpop.f32.mrb[0].mxu0
        %v1802 = vpop.f32.mrb[0].mxu0
        %v1803 = vadd.f32 %v1117, %v1802
        %v1804 = vpop.f32.mrb[0].mxu0
        %1805 = vmatprep.mubr.bf16.mxu0 0
        %1806 = vmatmul.mubr.bf16.gmra.mrb[0].mxu0 %v1740
        %v1807 = vpop.f32.mrb[0].mxu0
        %v1808 = vadd.f32 %v1118, %v1807
        %v1809 = vpop.f32.mrb[0].mxu0
        %v1810 = vpop.f32.mrb[0].mxu0
        %v1811 = vadd.f32 %v1119, %v1810
        %v1812 = vpop.f32.mrb[0].mxu0
        %1813 = vmatprep.mubr.bf16.mxu0 0
        %1814 = vmatmul.mubr.bf16.gmra.mrb[0].mxu0 %v1743
        %v1815 = vpop.f32.mrb[0].mxu0
        %v1816 = vadd.f32 %v1120, %v1815
        %v1817 = vpop.f32.mrb[0].mxu0
        %v1818 = vpop.f32.mrb[0].mxu0
        %v1819 = vadd.f32 %v1121, %v1818
        %v1820 = vpop.f32.mrb[0].mxu0
        %1821 = vdwg.mxu0
        %v1823 = vsel %vm1732, %v1688, 0
        %v1826 = vsel %vm1732, %v1689, 0
        %v1829 = vsel %vm1732, %v1690, 0
        %v1832 = vsel %vm1732, %v1691, 0
        %v1835 = vsel %vm1732, %v1704, 0
        %v1838 = vsel %vm1732, %v1705, 0
        %v1841 = vsel %vm1732, %v1706, 0
        %v1844 = vsel %vm1732, %v1707, 0
        %1846 = vmatprep.subr.bf16.mxu0 0
        %1847 = vmatpush1.bf16.xpose.msra.mxu0 %v1835
        %1848 = vmatprep.subr.bf16.mxu0 0
        %1849 = vmatpush1.bf16.xpose.msra.mxu0 %v1838
        %1850 = vmatprep.subr.bf16.mxu0 0
        %1851 = vmatpush1.bf16.xpose.msra.mxu0 %v1841
        %1852 = vmatprep.subr.bf16.mxu0 0
        %1853 = vmatpush1.bf16.xpose.msra.mxu0 %v1844
        %1854 = vmatprep.subr.bf16.mxu0 0
        %1855 = vmatpush1.bf16.xpose.msra.mxu0 0
        %1856 = vmatprep.subr.bf16.mxu0 0
        %1857 = vmatpush1.bf16.xpose.msra.mxu0 0
        %1858 = vmatprep.subr.bf16.mxu0 0
        %1859 = vmatpush1.bf16.xpose.msra.mxu0 0
        %1860 = vmatprep.subr.bf16.mxu0 0
        %1861 = vmatpush1.bf16.xpose.msra.mxu0 0
        %1862 = vmatprep.subr.bf16.mxu0 0
        %1863 = vmatpush1.bf16.xpose.msra.mxu0 0
        %1864 = vmatprep.subr.bf16.mxu0 0
        %1865 = vmatpush1.bf16.xpose.msra.mxu0 0
        %1866 = vmatprep.subr.bf16.mxu0 0
        %1867 = vmatpush1.bf16.xpose.msra.mxu0 0
        %1868 = vmatprep.subr.bf16.mxu0 0
        %1869 = vmatpush1.bf16.xpose.msra.mxu0 0
        %1870 = vmatprep.subr.bf16.mxu0 0
        %1871 = vmatpush1.bf16.xpose.msra.mxu0 0
        %1872 = vmatprep.subr.bf16.mxu0 0
        %1873 = vmatpush1.bf16.xpose.msra.mxu0 0
        %1874 = vmatprep.subr.bf16.mxu0 0
        %1875 = vmatpush1.bf16.xpose.msra.mxu0 0
        %1876 = vmatprep.subr.bf16.mxu0 0
        %1877 = vmatpush1.bf16.xpose.msra.mxu0 0
        %1878 = vmatprep.mubr.bf16.mxu0 0
        %1879 = vmatmul.mubr.bf16.gmra.mrb[0].mxu0 %v1823
        %v1880 = vpop.f32.mrb[0].mxu0
        %v1881 = vadd.f32 %v1114, %v1880
        %v1882 = vpop.f32.mrb[0].mxu0
        %v1883 = vpop.f32.mrb[0].mxu0
        %v1884 = vadd.f32 %v1115, %v1883
        %v1885 = vpop.f32.mrb[0].mxu0
        %1886 = vmatprep.mubr.bf16.mxu0 0
        %1887 = vmatmul.mubr.bf16.gmra.mrb[0].mxu0 %v1826
        %v1888 = vpop.f32.mrb[0].mxu0
        %v1889 = vadd.f32 %v1116, %v1888
        %v1890 = vpop.f32.mrb[0].mxu0
        %v1891 = vpop.f32.mrb[0].mxu0
        %v1892 = vadd.f32 %v1117, %v1891
        %v1893 = vpop.f32.mrb[0].mxu0
        %1894 = vmatprep.mubr.bf16.mxu0 0
        %1895 = vmatmul.mubr.bf16.gmra.mrb[0].mxu0 %v1829
        %v1896 = vpop.f32.mrb[0].mxu0
        %v1897 = vadd.f32 %v1118, %v1896
        %v1898 = vpop.f32.mrb[0].mxu0
        %v1899 = vpop.f32.mrb[0].mxu0
        %v1900 = vadd.f32 %v1119, %v1899
        %v1901 = vpop.f32.mrb[0].mxu0
        %1902 = vmatprep.mubr.bf16.mxu0 0
        %1903 = vmatmul.mubr.bf16.gmra.mrb[0].mxu0 %v1832
        %v1904 = vpop.f32.mrb[0].mxu0
        %v1905 = vadd.f32 %v1120, %v1904
        %v1906 = vpop.f32.mrb[0].mxu0
        %v1907 = vpop.f32.mrb[0].mxu0
        %v1908 = vadd.f32 %v1121, %v1907
        %v1909 = vpop.f32.mrb[0].mxu0
        %1910 = vdwg.mxu0
        %v1912 = vsel %vm1732, %v1692, 0
        %v1915 = vsel %vm1732, %v1693, 0
        %v1918 = vsel %vm1732, %v1694, 0
        %v1921 = vsel %vm1732, %v1695, 0
        %v1924 = vsel %vm1732, %v1708, 0
        %v1927 = vsel %vm1732, %v1709, 0
        %v1930 = vsel %vm1732, %v1710, 0
        %v1933 = vsel %vm1732, %v1711, 0
        %1935 = vmatprep.subr.bf16.mxu0 0
        %1936 = vmatpush1.bf16.xpose.msra.mxu0 %v1924
        %1937 = vmatprep.subr.bf16.mxu0 0
        %1938 = vmatpush1.bf16.xpose.msra.mxu0 %v1927
        %1939 = vmatprep.subr.bf16.mxu0 0
        %1940 = vmatpush1.bf16.xpose.msra.mxu0 %v1930
        %1941 = vmatprep.subr.bf16.mxu0 0
        %1942 = vmatpush1.bf16.xpose.msra.mxu0 %v1933
        %1943 = vmatprep.subr.bf16.mxu0 0
        %1944 = vmatpush1.bf16.xpose.msra.mxu0 0
        %1945 = vmatprep.subr.bf16.mxu0 0
        %1946 = vmatpush1.bf16.xpose.msra.mxu0 0
        %1947 = vmatprep.subr.bf16.mxu0 0
        %1948 = vmatpush1.bf16.xpose.msra.mxu0 0
        %1949 = vmatprep.subr.bf16.mxu0 0
        %1950 = vmatpush1.bf16.xpose.msra.mxu0 0
        %1951 = vmatprep.subr.bf16.mxu0 0
        %1952 = vmatpush1.bf16.xpose.msra.mxu0 0
        %1953 = vmatprep.subr.bf16.mxu0 0
        %1954 = vmatpush1.bf16.xpose.msra.mxu0 0
        %1955 = vmatprep.subr.bf16.mxu0 0
        %1956 = vmatpush1.bf16.xpose.msra.mxu0 0
        %1957 = vmatprep.subr.bf16.mxu0 0
        %1958 = vmatpush1.bf16.xpose.msra.mxu0 0
        %1959 = vmatprep.subr.bf16.mxu0 0
        %1960 = vmatpush1.bf16.xpose.msra.mxu0 0
        %1961 = vmatprep.subr.bf16.mxu0 0
        %1962 = vmatpush1.bf16.xpose.msra.mxu0 0
        %1963 = vmatprep.subr.bf16.mxu0 0
        %1964 = vmatpush1.bf16.xpose.msra.mxu0 0
        %1965 = vmatprep.subr.bf16.mxu0 0
        %1966 = vmatpush1.bf16.xpose.msra.mxu0 0
        %1967 = vmatprep.mubr.bf16.mxu0 0
        %1968 = vmatmul.mubr.bf16.gmra.mrb[0].mxu0 %v1912
        %v1969 = vpop.f32.mrb[0].mxu0
        %v1970 = vadd.f32 %v1114, %v1969
        %v1971 = vpop.f32.mrb[0].mxu0
        %v1972 = vpop.f32.mrb[0].mxu0
        %v1973 = vadd.f32 %v1115, %v1972
        %v1974 = vpop.f32.mrb[0].mxu0
        %1975 = vmatprep.mubr.bf16.mxu0 0
        %1976 = vmatmul.mubr.bf16.gmra.mrb[0].mxu0 %v1915
        %v1977 = vpop.f32.mrb[0].mxu0
        %v1978 = vadd.f32 %v1116, %v1977
        %v1979 = vpop.f32.mrb[0].mxu0
        %v1980 = vpop.f32.mrb[0].mxu0
        %v1981 = vadd.f32 %v1117, %v1980
        %v1982 = vpop.f32.mrb[0].mxu0
        %1983 = vmatprep.mubr.bf16.mxu0 0
        %1984 = vmatmul.mubr.bf16.gmra.mrb[0].mxu0 %v1918
        %v1985 = vpop.f32.mrb[0].mxu0
        %v1986 = vadd.f32 %v1118, %v1985
        %v1987 = vpop.f32.mrb[0].mxu0
        %v1988 = vpop.f32.mrb[0].mxu0
        %v1989 = vadd.f32 %v1119, %v1988
        %v1990 = vpop.f32.mrb[0].mxu0
        %1991 = vmatprep.mubr.bf16.mxu0 0
        %1992 = vmatmul.mubr.bf16.gmra.mrb[0].mxu0 %v1921
        %v1993 = vpop.f32.mrb[0].mxu0
        %v1994 = vadd.f32 %v1120, %v1993
        %v1995 = vpop.f32.mrb[0].mxu0
        %v1996 = vpop.f32.mrb[0].mxu0
        %v1997 = vadd.f32 %v1121, %v1996
        %v1998 = vpop.f32.mrb[0].mxu0
        %1999 = vdwg.mxu0
        %v2001 = vsel %vm1732, %v1696, 0
        %v2004 = vsel %vm1732, %v1697, 0
        %v2007 = vsel %vm1732, %v1698, 0
        %v2010 = vsel %vm1732, %v1699, 0
        %v2013 = vsel %vm1732, %v1712, 0
        %v2016 = vsel %vm1732, %v1713, 0
        %v2019 = vsel %vm1732, %v1714, 0
        %v2022 = vsel %vm1732, %v1715, 0
        %2024 = vmatprep.subr.bf16.mxu0 0
        %2025 = vmatpush1.bf16.xpose.msra.mxu0 %v2013
        %2026 = vmatprep.subr.bf16.mxu0 0
        %2027 = vmatpush1.bf16.xpose.msra.mxu0 %v2016
        %2028 = vmatprep.subr.bf16.mxu0 0
        %2029 = vmatpush1.bf16.xpose.msra.mxu0 %v2019
        %2030 = vmatprep.subr.bf16.mxu0 0
        %2031 = vmatpush1.bf16.xpose.msra.mxu0 %v2022
        %2032 = vmatprep.subr.bf16.mxu0 0
        %2033 = vmatpush1.bf16.xpose.msra.mxu0 0
        %2034 = vmatprep.subr.bf16.mxu0 0
        %2035 = vmatpush1.bf16.xpose.msra.mxu0 0
        %2036 = vmatprep.subr.bf16.mxu0 0
        %2037 = vmatpush1.bf16.xpose.msra.mxu0 0
        %2038 = vmatprep.subr.bf16.mxu0 0
        %2039 = vmatpush1.bf16.xpose.msra.mxu0 0
        %2040 = vmatprep.subr.bf16.mxu0 0
        %2041 = vmatpush1.bf16.xpose.msra.mxu0 0
        %2042 = vmatprep.subr.bf16.mxu0 0
        %2043 = vmatpush1.bf16.xpose.msra.mxu0 0
        %2044 = vmatprep.subr.bf16.mxu0 0
        %2045 = vmatpush1.bf16.xpose.msra.mxu0 0
        %2046 = vmatprep.subr.bf16.mxu0 0
        %2047 = vmatpush1.bf16.xpose.msra.mxu0 0
        %2048 = vmatprep.subr.bf16.mxu0 0
        %2049 = vmatpush1.bf16.xpose.msra.mxu0 0
        %2050 = vmatprep.subr.bf16.mxu0 0
        %2051 = vmatpush1.bf16.xpose.msra.mxu0 0
        %2052 = vmatprep.subr.bf16.mxu0 0
        %2053 = vmatpush1.bf16.xpose.msra.mxu0 0
        %2054 = vmatprep.subr.bf16.mxu0 0
        %2055 = vmatpush1.bf16.xpose.msra.mxu0 0
        %2056 = vmatprep.mubr.bf16.mxu0 0
        %2057 = vmatmul.mubr.bf16.gmra.mrb[0].mxu0 %v2001
        %v2058 = vpop.f32.mrb[0].mxu0
        %v2059 = vadd.f32 %v1114, %v2058
        %v2060 = vpop.f32.mrb[0].mxu0
        %v2061 = vpop.f32.mrb[0].mxu0
        %v2062 = vadd.f32 %v1115, %v2061
        %v2063 = vpop.f32.mrb[0].mxu0
        %2064 = vmatprep.mubr.bf16.mxu0 0
        %2065 = vmatmul.mubr.bf16.gmra.mrb[0].mxu0 %v2004
        %v2066 = vpop.f32.mrb[0].mxu0
        %v2067 = vadd.f32 %v1116, %v2066
        %v2068 = vpop.f32.mrb[0].mxu0
        %v2069 = vpop.f32.mrb[0].mxu0
        %v2070 = vadd.f32 %v1117, %v2069
        %v2071 = vpop.f32.mrb[0].mxu0
        %2072 = vmatprep.mubr.bf16.mxu0 0
        %2073 = vmatmul.mubr.bf16.gmra.mrb[0].mxu0 %v2007
        %v2074 = vpop.f32.mrb[0].mxu0
        %v2075 = vadd.f32 %v1118, %v2074
        %v2076 = vpop.f32.mrb[0].mxu0
        %v2077 = vpop.f32.mrb[0].mxu0
        %v2078 = vadd.f32 %v1119, %v2077
        %v2079 = vpop.f32.mrb[0].mxu0
        %2080 = vmatprep.mubr.bf16.mxu0 0
        %2081 = vmatmul.mubr.bf16.gmra.mrb[0].mxu0 %v2010
        %v2082 = vpop.f32.mrb[0].mxu0
        %v2083 = vadd.f32 %v1120, %v2082
        %v2084 = vpop.f32.mrb[0].mxu0
        %v2085 = vpop.f32.mrb[0].mxu0
        %v2086 = vadd.f32 %v1121, %v2085
        %v2087 = vpop.f32.mrb[0].mxu0
        %2088 = vdwg.mxu0
        %vm2089 = vcmask 523264
        %v2090 = vsel %vm2089, %v1792, -inf
        %2091 = vmax.xlane.f32.xlu0 %v2090
        %v2092 = vpop.xlane.xlu0 %2091
        %v2093 = vsel %vm2089, %v1795, -inf
        %2094 = vmax.xlane.f32.xlu0 %v2093
        %v2095 = vpop.xlane.xlu0 %2094
        %v2096 = vsel %vm2089, %v1800, -inf
        %2097 = vmax.xlane.f32.xlu0 %v2096
        %v2098 = vpop.xlane.xlu0 %2097
        %v2099 = vsel %vm2089, %v1803, -inf
        %2100 = vmax.xlane.f32.xlu0 %v2099
        %v2101 = vpop.xlane.xlu0 %2100
        %v2102 = vsel %vm2089, %v1808, -inf
        %2103 = vmax.xlane.f32.xlu0 %v2102
        %v2104 = vpop.xlane.xlu0 %2103
        %v2105 = vsel %vm2089, %v1811, -inf
        %2106 = vmax.xlane.f32.xlu0 %v2105
        %v2107 = vpop.xlane.xlu0 %2106
        %v2108 = vsel %vm2089, %v1816, -inf
        %2109 = vmax.xlane.f32.xlu0 %v2108
        %v2110 = vpop.xlane.xlu0 %2109
        %v2111 = vsel %vm2089, %v1819, -inf
        %2112 = vmax.xlane.f32.xlu0 %v2111
        %v2113 = vpop.xlane.xlu0 %2112
        %v2114 = vsel %vm2089, %v1881, -inf
        %2115 = vmax.xlane.f32.xlu0 %v2114
        %v2116 = vpop.xlane.xlu0 %2115
        %v2117 = vsel %vm2089, %v1884, -inf
        %2118 = vmax.xlane.f32.xlu0 %v2117
        %v2119 = vpop.xlane.xlu0 %2118
        %v2120 = vsel %vm2089, %v1889, -inf
        %2121 = vmax.xlane.f32.xlu0 %v2120
        %v2122 = vpop.xlane.xlu0 %2121
        %v2123 = vsel %vm2089, %v1892, -inf
        %2124 = vmax.xlane.f32.xlu0 %v2123
        %v2125 = vpop.xlane.xlu0 %2124
        %v2126 = vsel %vm2089, %v1897, -inf
        %2127 = vmax.xlane.f32.xlu0 %v2126
        %v2128 = vpop.xlane.xlu0 %2127
        %v2129 = vsel %vm2089, %v1900, -inf
        %2130 = vmax.xlane.f32.xlu0 %v2129
        %v2131 = vpop.xlane.xlu0 %2130
        %v2132 = vsel %vm2089, %v1905, -inf
        %2133 = vmax.xlane.f32.xlu0 %v2132
        %v2134 = vpop.xlane.xlu0 %2133
        %v2135 = vsel %vm2089, %v1908, -inf
        %2136 = vmax.xlane.f32.xlu0 %v2135
        %v2137 = vpop.xlane.xlu0 %2136
        %v2138 = vsel %vm2089, %v1970, -inf
        %2139 = vmax.xlane.f32.xlu0 %v2138
        %v2140 = vpop.xlane.xlu0 %2139
        %v2141 = vsel %vm2089, %v1973, -inf
        %2142 = vmax.xlane.f32.xlu0 %v2141
        %v2143 = vpop.xlane.xlu0 %2142
        %v2144 = vsel %vm2089, %v1978, -inf
        %2145 = vmax.xlane.f32.xlu0 %v2144
        %v2146 = vpop.xlane.xlu0 %2145
        %v2147 = vsel %vm2089, %v1981, -inf
        %2148 = vmax.xlane.f32.xlu0 %v2147
        %v2149 = vpop.xlane.xlu0 %2148
        %v2150 = vsel %vm2089, %v1986, -inf
        %2151 = vmax.xlane.f32.xlu0 %v2150
        %v2152 = vpop.xlane.xlu0 %2151
        %v2153 = vsel %vm2089, %v1989, -inf
        %2154 = vmax.xlane.f32.xlu0 %v2153
        %v2155 = vpop.xlane.xlu0 %2154
        %v2156 = vsel %vm2089, %v1994, -inf
        %2157 = vmax.xlane.f32.xlu0 %v2156
        %v2158 = vpop.xlane.xlu0 %2157
        %v2159 = vsel %vm2089, %v1997, -inf
        %2160 = vmax.xlane.f32.xlu0 %v2159
        %v2161 = vpop.xlane.xlu0 %2160
        %v2162 = vsel %vm2089, %v2059, -inf
        %2163 = vmax.xlane.f32.xlu0 %v2162
        %v2164 = vpop.xlane.xlu0 %2163
        %v2165 = vsel %vm2089, %v2062, -inf
        %2166 = vmax.xlane.f32.xlu0 %v2165
        %v2167 = vpop.xlane.xlu0 %2166
        %v2168 = vsel %vm2089, %v2067, -inf
        %2169 = vmax.xlane.f32.xlu0 %v2168
        %v2170 = vpop.xlane.xlu0 %2169
        %v2171 = vsel %vm2089, %v2070, -inf
        %2172 = vmax.xlane.f32.xlu0 %v2171
        %v2173 = vpop.xlane.xlu0 %2172
        %v2174 = vsel %vm2089, %v2075, -inf
        %2175 = vmax.xlane.f32.xlu0 %v2174
        %v2176 = vpop.xlane.xlu0 %2175
        %v2177 = vsel %vm2089, %v2078, -inf
        %2178 = vmax.xlane.f32.xlu0 %v2177
        %v2179 = vpop.xlane.xlu0 %2178
        %v2180 = vsel %vm2089, %v2083, -inf
        %2181 = vmax.xlane.f32.xlu0 %v2180
        %v2182 = vpop.xlane.xlu0 %2181
        %v2183 = vsel %vm2089, %v2086, -inf
        %2184 = vmax.xlane.f32.xlu0 %v2183
        %v2185 = vpop.xlane.xlu0 %2184
        %v2186 = vsub.f32 %v1792, %v2092
        %v2187 = vsub.f32 %v1795, %v2095
        %v2188 = vsub.f32 %v1800, %v2098
        %v2189 = vsub.f32 %v1803, %v2101
        %v2190 = vsub.f32 %v1808, %v2104
        %v2191 = vsub.f32 %v1811, %v2107
        %v2192 = vsub.f32 %v1816, %v2110
        %v2193 = vsub.f32 %v1819, %v2113
        %v2194 = vsub.f32 %v1881, %v2116
        %v2195 = vsub.f32 %v1884, %v2119
        %v2196 = vsub.f32 %v1889, %v2122
        %v2197 = vsub.f32 %v1892, %v2125
        %v2198 = vsub.f32 %v1897, %v2128
        %v2199 = vsub.f32 %v1900, %v2131
        %v2200 = vsub.f32 %v1905, %v2134
        %v2201 = vsub.f32 %v1908, %v2137
        %v2202 = vsub.f32 %v1970, %v2140
        %v2203 = vsub.f32 %v1973, %v2143
        %v2204 = vsub.f32 %v1978, %v2146
        %v2205 = vsub.f32 %v1981, %v2149
        %v2206 = vsub.f32 %v1986, %v2152
        %v2207 = vsub.f32 %v1989, %v2155
        %v2208 = vsub.f32 %v1994, %v2158
        %v2209 = vsub.f32 %v1997, %v2161
        %v2210 = vsub.f32 %v2059, %v2164
        %v2211 = vsub.f32 %v2062, %v2167
        %v2212 = vsub.f32 %v2067, %v2170
        %v2213 = vsub.f32 %v2070, %v2173
        %v2214 = vsub.f32 %v2075, %v2176
        %v2215 = vsub.f32 %v2078, %v2179
        %v2216 = vsub.f32 %v2083, %v2182
        %v2217 = vsub.f32 %v2086, %v2185
        %v2218 = vmul.f32 %v2186, 1.442695
        %v2219 = vpow.pop %v2218
        %v2220 = vmul.f32 %v2187, 1.442695
        %v2221 = vpow.pop %v2220
        %v2222 = vmul.f32 %v2188, 1.442695
        %v2223 = vpow.pop %v2222
        %v2224 = vmul.f32 %v2189, 1.442695
        %v2225 = vpow.pop %v2224
        %v2226 = vmul.f32 %v2190, 1.442695
        %v2227 = vpow.pop %v2226
        %v2228 = vmul.f32 %v2191, 1.442695
        %v2229 = vpow.pop %v2228
        %v2230 = vmul.f32 %v2192, 1.442695
        %v2231 = vpow.pop %v2230
        %v2232 = vmul.f32 %v2193, 1.442695
        %v2233 = vpow.pop %v2232
        %v2234 = vmul.f32 %v2194, 1.442695
        %v2235 = vpow.pop %v2234
        %v2236 = vmul.f32 %v2195, 1.442695
        %v2237 = vpow.pop %v2236
        %v2238 = vmul.f32 %v2196, 1.442695
        %v2239 = vpow.pop %v2238
        %v2240 = vmul.f32 %v2197, 1.442695
        %v2241 = vpow.pop %v2240
        %v2242 = vmul.f32 %v2198, 1.442695
        %v2243 = vpow.pop %v2242
        %v2244 = vmul.f32 %v2199, 1.442695
        %v2245 = vpow.pop %v2244
        %v2246 = vmul.f32 %v2200, 1.442695
        %v2247 = vpow.pop %v2246
        %v2248 = vmul.f32 %v2201, 1.442695
        %v2249 = vpow.pop %v2248
        %v2250 = vmul.f32 %v2202, 1.442695
        %v2251 = vpow.pop %v2250
        %v2252 = vmul.f32 %v2203, 1.442695
        %v2253 = vpow.pop %v2252
        %v2254 = vmul.f32 %v2204, 1.442695
        %v2255 = vpow.pop %v2254
        %v2256 = vmul.f32 %v2205, 1.442695
        %v2257 = vpow.pop %v2256
        %v2258 = vmul.f32 %v2206, 1.442695
        %v2259 = vpow.pop %v2258
        %v2260 = vmul.f32 %v2207, 1.442695
        %v2261 = vpow.pop %v2260
        %v2262 = vmul.f32 %v2208, 1.442695
        %v2263 = vpow.pop %v2262
        %v2264 = vmul.f32 %v2209, 1.442695
        %v2265 = vpow.pop %v2264
        %v2266 = vmul.f32 %v2210, 1.442695
        %v2267 = vpow.pop %v2266
        %v2268 = vmul.f32 %v2211, 1.442695
        %v2269 = vpow.pop %v2268
        %v2270 = vmul.f32 %v2212, 1.442695
        %v2271 = vpow.pop %v2270
        %v2272 = vmul.f32 %v2213, 1.442695
        %v2273 = vpow.pop %v2272
        %v2274 = vmul.f32 %v2214, 1.442695
        %v2275 = vpow.pop %v2274
        %v2276 = vmul.f32 %v2215, 1.442695
        %v2277 = vpow.pop %v2276
        %v2278 = vmul.f32 %v2216, 1.442695
        %v2279 = vpow.pop %v2278
        %v2280 = vmul.f32 %v2217, 1.442695
        %v2281 = vpow.pop %v2280
        %v2282 = vsel %vm2089, %v2219, 0.0
        %2283 = vadd.xlane.f32.xlu0 %v2282
        %v2284 = vpop.xlane.xlu0 %2283
        %v2285 = vsel %vm2089, %v2221, 0.0
        %2286 = vadd.xlane.f32.xlu0 %v2285
        %v2287 = vpop.xlane.xlu0 %2286
        %v2288 = vsel %vm2089, %v2223, 0.0
        %2289 = vadd.xlane.f32.xlu0 %v2288
        %v2290 = vpop.xlane.xlu0 %2289
        %v2291 = vsel %vm2089, %v2225, 0.0
        %2292 = vadd.xlane.f32.xlu0 %v2291
        %v2293 = vpop.xlane.xlu0 %2292
        %v2294 = vsel %vm2089, %v2227, 0.0
        %2295 = vadd.xlane.f32.xlu0 %v2294
        %v2296 = vpop.xlane.xlu0 %2295
        %v2297 = vsel %vm2089, %v2229, 0.0
        %2298 = vadd.xlane.f32.xlu0 %v2297
        %v2299 = vpop.xlane.xlu0 %2298
        %v2300 = vsel %vm2089, %v2231, 0.0
        %2301 = vadd.xlane.f32.xlu0 %v2300
        %v2302 = vpop.xlane.xlu0 %2301
        %v2303 = vsel %vm2089, %v2233, 0.0
        %2304 = vadd.xlane.f32.xlu0 %v2303
        %v2305 = vpop.xlane.xlu0 %2304
        %v2306 = vsel %vm2089, %v2235, 0.0
        %2307 = vadd.xlane.f32.xlu0 %v2306
        %v2308 = vpop.xlane.xlu0 %2307
        %v2309 = vsel %vm2089, %v2237, 0.0
        %2310 = vadd.xlane.f32.xlu0 %v2309
        %v2311 = vpop.xlane.xlu0 %2310
        %v2312 = vsel %vm2089, %v2239, 0.0
        %2313 = vadd.xlane.f32.xlu0 %v2312
        %v2314 = vpop.xlane.xlu0 %2313
        %v2315 = vsel %vm2089, %v2241, 0.0
        %2316 = vadd.xlane.f32.xlu0 %v2315
        %v2317 = vpop.xlane.xlu0 %2316
        %v2318 = vsel %vm2089, %v2243, 0.0
        %2319 = vadd.xlane.f32.xlu0 %v2318
        %v2320 = vpop.xlane.xlu0 %2319
        %v2321 = vsel %vm2089, %v2245, 0.0
        %2322 = vadd.xlane.f32.xlu0 %v2321
        %v2323 = vpop.xlane.xlu0 %2322
        %v2324 = vsel %vm2089, %v2247, 0.0
        %2325 = vadd.xlane.f32.xlu0 %v2324
        %v2326 = vpop.xlane.xlu0 %2325
        %v2327 = vsel %vm2089, %v2249, 0.0
        %2328 = vadd.xlane.f32.xlu0 %v2327
        %v2329 = vpop.xlane.xlu0 %2328
        %v2330 = vsel %vm2089, %v2251, 0.0
        %2331 = vadd.xlane.f32.xlu0 %v2330
        %v2332 = vpop.xlane.xlu0 %2331
        %v2333 = vsel %vm2089, %v2253, 0.0
        %2334 = vadd.xlane.f32.xlu0 %v2333
        %v2335 = vpop.xlane.xlu0 %2334
        %v2336 = vsel %vm2089, %v2255, 0.0
        %2337 = vadd.xlane.f32.xlu0 %v2336
        %v2338 = vpop.xlane.xlu0 %2337
        %v2339 = vsel %vm2089, %v2257, 0.0
        %2340 = vadd.xlane.f32.xlu0 %v2339
        %v2341 = vpop.xlane.xlu0 %2340
        %v2342 = vsel %vm2089, %v2259, 0.0
        %2343 = vadd.xlane.f32.xlu0 %v2342
        %v2344 = vpop.xlane.xlu0 %2343
        %v2345 = vsel %vm2089, %v2261, 0.0
        %2346 = vadd.xlane.f32.xlu0 %v2345
        %v2347 = vpop.xlane.xlu0 %2346
        %v2348 = vsel %vm2089, %v2263, 0.0
        %2349 = vadd.xlane.f32.xlu0 %v2348
        %v2350 = vpop.xlane.xlu0 %2349
        %v2351 = vsel %vm2089, %v2265, 0.0
        %2352 = vadd.xlane.f32.xlu0 %v2351
        %v2353 = vpop.xlane.xlu0 %2352
        %v2354 = vsel %vm2089, %v2267, 0.0
        %2355 = vadd.xlane.f32.xlu0 %v2354
        %v2356 = vpop.xlane.xlu0 %2355
        %v2357 = vsel %vm2089, %v2269, 0.0
        %2358 = vadd.xlane.f32.xlu0 %v2357
        %v2359 = vpop.xlane.xlu0 %2358
        %v2360 = vsel %vm2089, %v2271, 0.0
        %2361 = vadd.xlane.f32.xlu0 %v2360
        %v2362 = vpop.xlane.xlu0 %2361
        %v2363 = vsel %vm2089, %v2273, 0.0
        %2364 = vadd.xlane.f32.xlu0 %v2363
        %v2365 = vpop.xlane.xlu0 %2364
        %v2366 = vsel %vm2089, %v2275, 0.0
        %2367 = vadd.xlane.f32.xlu0 %v2366
        %v2368 = vpop.xlane.xlu0 %2367
        %v2369 = vsel %vm2089, %v2277, 0.0
        %2370 = vadd.xlane.f32.xlu0 %v2369
        %v2371 = vpop.xlane.xlu0 %2370
        %v2372 = vsel %vm2089, %v2279, 0.0
        %2373 = vadd.xlane.f32.xlu0 %v2372
        %v2374 = vpop.xlane.xlu0 %2373
        %v2375 = vsel %vm2089, %v2281, 0.0
        %2376 = vadd.xlane.f32.xlu0 %v2375
        %v2377 = vpop.xlane.xlu0 %2376
        %v2378 = vrcp.pop %v2284
        %v2379 = vrcp.pop %v2287
        %v2380 = vrcp.pop %v2290
        %v2381 = vrcp.pop %v2293
        %v2382 = vrcp.pop %v2296
        %v2383 = vrcp.pop %v2299
        %v2384 = vrcp.pop %v2302
        %v2385 = vrcp.pop %v2305
        %v2386 = vrcp.pop %v2308
        %v2387 = vrcp.pop %v2311
        %v2388 = vrcp.pop %v2314
        %v2389 = vrcp.pop %v2317
        %v2390 = vrcp.pop %v2320
        %v2391 = vrcp.pop %v2323
        %v2392 = vrcp.pop %v2326
        %v2393 = vrcp.pop %v2329
        %v2394 = vrcp.pop %v2332
        %v2395 = vrcp.pop %v2335
        %v2396 = vrcp.pop %v2338
        %v2397 = vrcp.pop %v2341
        %v2398 = vrcp.pop %v2344
        %v2399 = vrcp.pop %v2347
        %v2400 = vrcp.pop %v2350
        %v2401 = vrcp.pop %v2353
        %v2402 = vrcp.pop %v2356
        %v2403 = vrcp.pop %v2359
        %v2404 = vrcp.pop %v2362
        %v2405 = vrcp.pop %v2365
        %v2406 = vrcp.pop %v2368
        %v2407 = vrcp.pop %v2371
        %v2408 = vrcp.pop %v2374
        %v2409 = vrcp.pop %v2377
        %v2410 = vmul.f32 %v2219, %v2378
        %v2411 = vmul.f32 %v2221, %v2379
        %v2412 = vmul.f32 %v2223, %v2380
        %v2413 = vmul.f32 %v2225, %v2381
        %v2414 = vmul.f32 %v2227, %v2382
        %v2415 = vmul.f32 %v2229, %v2383
        %v2416 = vmul.f32 %v2231, %v2384
        %v2417 = vmul.f32 %v2233, %v2385
        %v2418 = vmul.f32 %v2235, %v2386
        %v2419 = vmul.f32 %v2237, %v2387
        %v2420 = vmul.f32 %v2239, %v2388
        %v2421 = vmul.f32 %v2241, %v2389
        %v2422 = vmul.f32 %v2243, %v2390
        %v2423 = vmul.f32 %v2245, %v2391
        %v2424 = vmul.f32 %v2247, %v2392
        %v2425 = vmul.f32 %v2249, %v2393
        %v2426 = vmul.f32 %v2251, %v2394
        %v2427 = vmul.f32 %v2253, %v2395
        %v2428 = vmul.f32 %v2255, %v2396
        %v2429 = vmul.f32 %v2257, %v2397
        %v2430 = vmul.f32 %v2259, %v2398
        %v2431 = vmul.f32 %v2261, %v2399
        %v2432 = vmul.f32 %v2263, %v2400
        %v2433 = vmul.f32 %v2265, %v2401
        %v2434 = vmul.f32 %v2267, %v2402
        %v2435 = vmul.f32 %v2269, %v2403
        %v2436 = vmul.f32 %v2271, %v2404
        %v2437 = vmul.f32 %v2273, %v2405
        %v2438 = vmul.f32 %v2275, %v2406
        %v2439 = vmul.f32 %v2277, %v2407
        %v2440 = vmul.f32 %v2279, %v2408
        %v2441 = vmul.f32 %v2281, %v2409
        %v2442 = vpack.c.bf16 %v2411, %v2410
        %v2443 = vpack.c.bf16 %v2413, %v2412
        %v2444 = vpack.c.bf16 %v2415, %v2414
        %v2445 = vpack.c.bf16 %v2417, %v2416
        %v2446 = vpack.c.bf16 %v2419, %v2418
        %v2447 = vpack.c.bf16 %v2421, %v2420
        %v2448 = vpack.c.bf16 %v2423, %v2422
        %v2449 = vpack.c.bf16 %v2425, %v2424
        %v2450 = vpack.c.bf16 %v2427, %v2426
        %v2451 = vpack.c.bf16 %v2429, %v2428
        %v2452 = vpack.c.bf16 %v2431, %v2430
        %v2453 = vpack.c.bf16 %v2433, %v2432
        %v2454 = vpack.c.bf16 %v2435, %v2434
        %v2455 = vpack.c.bf16 %v2437, %v2436
        %v2456 = vpack.c.bf16 %v2439, %v2438
        %v2457 = vpack.c.bf16 %v2441, %v2440
        %v2459 = vsel %vm2089, %v2442, 0
        %v2462 = vsel %vm2089, %v2443, 0
        %v2465 = vsel %vm2089, %v2444, 0
        %v2468 = vsel %vm2089, %v2445, 0
        %2470 = vmatprep.subr.bf16.mxu0 0
        %2471 = vmatpush1.bf16.msra.mxu0 %v1716
        %2472 = vmatprep.subr.bf16.mxu0 0
        %2473 = vmatpush1.bf16.msra.mxu0 %v1717
        %2474 = vmatprep.subr.bf16.mxu0 0
        %2475 = vmatpush1.bf16.msra.mxu0 %v1718
        %2476 = vmatprep.subr.bf16.mxu0 0
        %2477 = vmatpush1.bf16.msra.mxu0 %v1719
        %2478 = vmatprep.subr.bf16.mxu0 0
        %2479 = vmatpush1.bf16.msra.mxu0 0
        %2480 = vmatprep.subr.bf16.mxu0 0
        %2481 = vmatpush1.bf16.msra.mxu0 0
        %2482 = vmatprep.subr.bf16.mxu0 0
        %2483 = vmatpush1.bf16.msra.mxu0 0
        %2484 = vmatprep.subr.bf16.mxu0 0
        %2485 = vmatpush1.bf16.msra.mxu0 0
        %2486 = vmatprep.subr.bf16.mxu0 0
        %2487 = vmatpush1.bf16.msra.mxu0 0
        %2488 = vmatprep.subr.bf16.mxu0 0
        %2489 = vmatpush1.bf16.msra.mxu0 0
        %2490 = vmatprep.subr.bf16.mxu0 0
        %2491 = vmatpush1.bf16.msra.mxu0 0
        %2492 = vmatprep.subr.bf16.mxu0 0
        %2493 = vmatpush1.bf16.msra.mxu0 0
        %2494 = vmatprep.subr.bf16.mxu0 0
        %2495 = vmatpush1.bf16.msra.mxu0 0
        %2496 = vmatprep.subr.bf16.mxu0 0
        %2497 = vmatpush1.bf16.msra.mxu0 0
        %2498 = vmatprep.subr.bf16.mxu0 0
        %2499 = vmatpush1.bf16.msra.mxu0 0
        %2500 = vmatprep.subr.bf16.mxu0 0
        %2501 = vmatpush1.bf16.msra.mxu0 0
        %2502 = vmatprep.mubr.bf16.mxu0 0
        %2503 = vmatmul.mubr.bf16.gmra.mrb[0].mxu0 %v2459
        %v2504 = vpop.f32.mrb[0].mxu0
        %v2505 = vadd.f32 0.0, %v2504
        %v2506 = vpop.f32.mrb[0].mxu0
        %v2507 = vpop.f32.mrb[0].mxu0
        %v2508 = vadd.f32 0.0, %v2507
        %v2509 = vpop.f32.mrb[0].mxu0
        %2510 = vmatprep.mubr.bf16.mxu0 0
        %2511 = vmatmul.mubr.bf16.gmra.mrb[0].mxu0 %v2462
        %v2512 = vpop.f32.mrb[0].mxu0
        %v2513 = vadd.f32 0.0, %v2512
        %v2514 = vpop.f32.mrb[0].mxu0
        %v2515 = vpop.f32.mrb[0].mxu0
        %v2516 = vadd.f32 0.0, %v2515
        %v2517 = vpop.f32.mrb[0].mxu0
        %2518 = vmatprep.mubr.bf16.mxu0 0
        %2519 = vmatmul.mubr.bf16.gmra.mrb[0].mxu0 %v2465
        %v2520 = vpop.f32.mrb[0].mxu0
        %v2521 = vadd.f32 0.0, %v2520
        %v2522 = vpop.f32.mrb[0].mxu0
        %v2523 = vpop.f32.mrb[0].mxu0
        %v2524 = vadd.f32 0.0, %v2523
        %v2525 = vpop.f32.mrb[0].mxu0
        %2526 = vmatprep.mubr.bf16.mxu0 0
        %2527 = vmatmul.mubr.bf16.gmra.mrb[0].mxu0 %v2468
        %v2528 = vpop.f32.mrb[0].mxu0
        %v2529 = vadd.f32 0.0, %v2528
        %v2530 = vpop.f32.mrb[0].mxu0
        %v2531 = vpop.f32.mrb[0].mxu0
        %v2532 = vadd.f32 0.0, %v2531
        %v2533 = vpop.f32.mrb[0].mxu0
        %2534 = vdwg.mxu0
        %v2536 = vsel %vm2089, %v2446, 0
        %v2539 = vsel %vm2089, %v2447, 0
        %v2542 = vsel %vm2089, %v2448, 0
        %v2545 = vsel %vm2089, %v2449, 0
        %2547 = vmatprep.subr.bf16.mxu0 0
        %2548 = vmatpush1.bf16.msra.mxu0 %v1720
        %2549 = vmatprep.subr.bf16.mxu0 0
        %2550 = vmatpush1.bf16.msra.mxu0 %v1721
        %2551 = vmatprep.subr.bf16.mxu0 0
        %2552 = vmatpush1.bf16.msra.mxu0 %v1722
        %2553 = vmatprep.subr.bf16.mxu0 0
        %2554 = vmatpush1.bf16.msra.mxu0 %v1723
        %2555 = vmatprep.subr.bf16.mxu0 0
        %2556 = vmatpush1.bf16.msra.mxu0 0
        %2557 = vmatprep.subr.bf16.mxu0 0
        %2558 = vmatpush1.bf16.msra.mxu0 0
        %2559 = vmatprep.subr.bf16.mxu0 0
        %2560 = vmatpush1.bf16.msra.mxu0 0
        %2561 = vmatprep.subr.bf16.mxu0 0
        %2562 = vmatpush1.bf16.msra.mxu0 0
        %2563 = vmatprep.subr.bf16.mxu0 0
        %2564 = vmatpush1.bf16.msra.mxu0 0
        %2565 = vmatprep.subr.bf16.mxu0 0
        %2566 = vmatpush1.bf16.msra.mxu0 0
        %2567 = vmatprep.subr.bf16.mxu0 0
        %2568 = vmatpush1.bf16.msra.mxu0 0
        %2569 = vmatprep.subr.bf16.mxu0 0
        %2570 = vmatpush1.bf16.msra.mxu0 0
        %2571 = vmatprep.subr.bf16.mxu0 0
        %2572 = vmatpush1.bf16.msra.mxu0 0
        %2573 = vmatprep.subr.bf16.mxu0 0
        %2574 = vmatpush1.bf16.msra.mxu0 0
        %2575 = vmatprep.subr.bf16.mxu0 0
        %2576 = vmatpush1.bf16.msra.mxu0 0
        %2577 = vmatprep.subr.bf16.mxu0 0
        %2578 = vmatpush1.bf16.msra.mxu0 0
        %2579 = vmatprep.mubr.bf16.mxu0 0
        %2580 = vmatmul.mubr.bf16.gmra.mrb[0].mxu0 %v2536
        %v2581 = vpop.f32.mrb[0].mxu0
        %v2582 = vadd.f32 0.0, %v2581
        %v2583 = vpop.f32.mrb[0].mxu0
        %v2584 = vpop.f32.mrb[0].mxu0
        %v2585 = vadd.f32 0.0, %v2584
        %v2586 = vpop.f32.mrb[0].mxu0
        %2587 = vmatprep.mubr.bf16.mxu0 0
        %2588 = vmatmul.mubr.bf16.gmra.mrb[0].mxu0 %v2539
        %v2589 = vpop.f32.mrb[0].mxu0
        %v2590 = vadd.f32 0.0, %v2589
        %v2591 = vpop.f32.mrb[0].mxu0
        %v2592 = vpop.f32.mrb[0].mxu0
        %v2593 = vadd.f32 0.0, %v2592
        %v2594 = vpop.f32.mrb[0].mxu0
        %2595 = vmatprep.mubr.bf16.mxu0 0
        %2596 = vmatmul.mubr.bf16.gmra.mrb[0].mxu0 %v2542
        %v2597 = vpop.f32.mrb[0].mxu0
        %v2598 = vadd.f32 0.0, %v2597
        %v2599 = vpop.f32.mrb[0].mxu0
        %v2600 = vpop.f32.mrb[0].mxu0
        %v2601 = vadd.f32 0.0, %v2600
        %v2602 = vpop.f32.mrb[0].mxu0
        %2603 = vmatprep.mubr.bf16.mxu0 0
        %2604 = vmatmul.mubr.bf16.gmra.mrb[0].mxu0 %v2545
        %v2605 = vpop.f32.mrb[0].mxu0
        %v2606 = vadd.f32 0.0, %v2605
        %v2607 = vpop.f32.mrb[0].mxu0
        %v2608 = vpop.f32.mrb[0].mxu0
        %v2609 = vadd.f32 0.0, %v2608
        %v2610 = vpop.f32.mrb[0].mxu0
        %2611 = vdwg.mxu0
        %v2613 = vsel %vm2089, %v2450, 0
        %v2616 = vsel %vm2089, %v2451, 0
        %v2619 = vsel %vm2089, %v2452, 0
        %v2622 = vsel %vm2089, %v2453, 0
        %2624 = vmatprep.subr.bf16.mxu0 0
        %2625 = vmatpush1.bf16.msra.mxu0 %v1724
        %2626 = vmatprep.subr.bf16.mxu0 0
        %2627 = vmatpush1.bf16.msra.mxu0 %v1725
        %2628 = vmatprep.subr.bf16.mxu0 0
        %2629 = vmatpush1.bf16.msra.mxu0 %v1726
        %2630 = vmatprep.subr.bf16.mxu0 0
        %2631 = vmatpush1.bf16.msra.mxu0 %v1727
        %2632 = vmatprep.subr.bf16.mxu0 0
        %2633 = vmatpush1.bf16.msra.mxu0 0
        %2634 = vmatprep.subr.bf16.mxu0 0
        %2635 = vmatpush1.bf16.msra.mxu0 0
        %2636 = vmatprep.subr.bf16.mxu0 0
        %2637 = vmatpush1.bf16.msra.mxu0 0
        %2638 = vmatprep.subr.bf16.mxu0 0
        %2639 = vmatpush1.bf16.msra.mxu0 0
        %2640 = vmatprep.subr.bf16.mxu0 0
        %2641 = vmatpush1.bf16.msra.mxu0 0
        %2642 = vmatprep.subr.bf16.mxu0 0
        %2643 = vmatpush1.bf16.msra.mxu0 0
        %2644 = vmatprep.subr.bf16.mxu0 0
        %2645 = vmatpush1.bf16.msra.mxu0 0
        %2646 = vmatprep.subr.bf16.mxu0 0
        %2647 = vmatpush1.bf16.msra.mxu0 0
        %2648 = vmatprep.subr.bf16.mxu0 0
        %2649 = vmatpush1.bf16.msra.mxu0 0
        %2650 = vmatprep.subr.bf16.mxu0 0
        %2651 = vmatpush1.bf16.msra.mxu0 0
        %2652 = vmatprep.subr.bf16.mxu0 0
        %2653 = vmatpush1.bf16.msra.mxu0 0
        %2654 = vmatprep.subr.bf16.mxu0 0
        %2655 = vmatpush1.bf16.msra.mxu0 0
        %2656 = vmatprep.mubr.bf16.mxu0 0
        %2657 = vmatmul.mubr.bf16.gmra.mrb[0].mxu0 %v2613
        %v2658 = vpop.f32.mrb[0].mxu0
        %v2659 = vadd.f32 0.0, %v2658
        %v2660 = vpop.f32.mrb[0].mxu0
        %v2661 = vpop.f32.mrb[0].mxu0
        %v2662 = vadd.f32 0.0, %v2661
        %v2663 = vpop.f32.mrb[0].mxu0
        %2664 = vmatprep.mubr.bf16.mxu0 0
        %2665 = vmatmul.mubr.bf16.gmra.mrb[0].mxu0 %v2616
        %v2666 = vpop.f32.mrb[0].mxu0
        %v2667 = vadd.f32 0.0, %v2666
        %v2668 = vpop.f32.mrb[0].mxu0
        %v2669 = vpop.f32.mrb[0].mxu0
        %v2670 = vadd.f32 0.0, %v2669
        %v2671 = vpop.f32.mrb[0].mxu0
        %2672 = vmatprep.mubr.bf16.mxu0 0
        %2673 = vmatmul.mubr.bf16.gmra.mrb[0].mxu0 %v2619
        %v2674 = vpop.f32.mrb[0].mxu0
        %v2675 = vadd.f32 0.0, %v2674
        %v2676 = vpop.f32.mrb[0].mxu0
        %v2677 = vpop.f32.mrb[0].mxu0
        %v2678 = vadd.f32 0.0, %v2677
        %v2679 = vpop.f32.mrb[0].mxu0
        %2680 = vmatprep.mubr.bf16.mxu0 0
        %2681 = vmatmul.mubr.bf16.gmra.mrb[0].mxu0 %v2622
        %v2682 = vpop.f32.mrb[0].mxu0
        %v2683 = vadd.f32 0.0, %v2682
        %v2684 = vpop.f32.mrb[0].mxu0
        %v2685 = vpop.f32.mrb[0].mxu0
        %v2686 = vadd.f32 0.0, %v2685
        %v2687 = vpop.f32.mrb[0].mxu0
        %2688 = vdwg.mxu0
        %v2690 = vsel %vm2089, %v2454, 0
        %v2693 = vsel %vm2089, %v2455, 0
        %v2696 = vsel %vm2089, %v2456, 0
        %v2699 = vsel %vm2089, %v2457, 0
        %2701 = vmatprep.subr.bf16.mxu0 0
        %2702 = vmatpush1.bf16.msra.mxu0 %v1728
        %2703 = vmatprep.subr.bf16.mxu0 0
        %2704 = vmatpush1.bf16.msra.mxu0 %v1729
        %2705 = vmatprep.subr.bf16.mxu0 0
        %2706 = vmatpush1.bf16.msra.mxu0 %v1730
        %2707 = vmatprep.subr.bf16.mxu0 0
        %2708 = vmatpush1.bf16.msra.mxu0 %v1731
        %2709 = vmatprep.subr.bf16.mxu0 0
        %2710 = vmatpush1.bf16.msra.mxu0 0
        %2711 = vmatprep.subr.bf16.mxu0 0
        %2712 = vmatpush1.bf16.msra.mxu0 0
        %2713 = vmatprep.subr.bf16.mxu0 0
        %2714 = vmatpush1.bf16.msra.mxu0 0
        %2715 = vmatprep.subr.bf16.mxu0 0
        %2716 = vmatpush1.bf16.msra.mxu0 0
        %2717 = vmatprep.subr.bf16.mxu0 0
        %2718 = vmatpush1.bf16.msra.mxu0 0
        %2719 = vmatprep.subr.bf16.mxu0 0
        %2720 = vmatpush1.bf16.msra.mxu0 0
        %2721 = vmatprep.subr.bf16.mxu0 0
        %2722 = vmatpush1.bf16.msra.mxu0 0
        %2723 = vmatprep.subr.bf16.mxu0 0
        %2724 = vmatpush1.bf16.msra.mxu0 0
        %2725 = vmatprep.subr.bf16.mxu0 0
        %2726 = vmatpush1.bf16.msra.mxu0 0
        %2727 = vmatprep.subr.bf16.mxu0 0
        %2728 = vmatpush1.bf16.msra.mxu0 0
        %2729 = vmatprep.subr.bf16.mxu0 0
        %2730 = vmatpush1.bf16.msra.mxu0 0
        %2731 = vmatprep.subr.bf16.mxu0 0
        %2732 = vmatpush1.bf16.msra.mxu0 0
        %2733 = vmatprep.mubr.bf16.mxu0 0
        %2734 = vmatmul.mubr.bf16.gmra.mrb[0].mxu0 %v2690
        %v2735 = vpop.f32.mrb[0].mxu0
        %v2736 = vadd.f32 0.0, %v2735
        %v2737 = vpop.f32.mrb[0].mxu0
        %v2738 = vpop.f32.mrb[0].mxu0
        %v2739 = vadd.f32 0.0, %v2738
        %v2740 = vpop.f32.mrb[0].mxu0
        %2741 = vmatprep.mubr.bf16.mxu0 0
        %2742 = vmatmul.mubr.bf16.gmra.mrb[0].mxu0 %v2693
        %v2743 = vpop.f32.mrb[0].mxu0
        %v2744 = vadd.f32 0.0, %v2743
        %v2745 = vpop.f32.mrb[0].mxu0
        %v2746 = vpop.f32.mrb[0].mxu0
        %v2747 = vadd.f32 0.0, %v2746
        %v2748 = vpop.f32.mrb[0].mxu0
        %2749 = vmatprep.mubr.bf16.mxu0 0
        %2750 = vmatmul.mubr.bf16.gmra.mrb[0].mxu0 %v2696
        %v2751 = vpop.f32.mrb[0].mxu0
        %v2752 = vadd.f32 0.0, %v2751
        %v2753 = vpop.f32.mrb[0].mxu0
        %v2754 = vpop.f32.mrb[0].mxu0
        %v2755 = vadd.f32 0.0, %v2754
        %v2756 = vpop.f32.mrb[0].mxu0
        %2757 = vmatprep.mubr.bf16.mxu0 0
        %2758 = vmatmul.mubr.bf16.gmra.mrb[0].mxu0 %v2699
        %v2759 = vpop.f32.mrb[0].mxu0
        %v2760 = vadd.f32 0.0, %v2759
        %v2761 = vpop.f32.mrb[0].mxu0
        %v2762 = vpop.f32.mrb[0].mxu0
        %v2763 = vadd.f32 0.0, %v2762
        %v2764 = vpop.f32.mrb[0].mxu0
        %2765 = vdwg.mxu0
        %2766 = vst.msk [vmem:[#allocation3] sm:$0xff] %vm1732, %v2505
        %2767 = vst.msk [vmem:[#allocation3 + $0x8] sm:$0xff] %vm1732, %v2508
        %2768 = vst.msk [vmem:[#allocation3 + $0x10] sm:$0xff] %vm1732, %v2513
        %2769 = vst.msk [vmem:[#allocation3 + $0x18] sm:$0xff] %vm1732, %v2516
        %2770 = vst.msk [vmem:[#allocation3 + $0x20] sm:$0xff] %vm1732, %v2521
        %2771 = vst.msk [vmem:[#allocation3 + $0x28] sm:$0xff] %vm1732, %v2524
        %2772 = vst.msk [vmem:[#allocation3 + $0x30] sm:$0xff] %vm1732, %v2529
        %2773 = vst.msk [vmem:[#allocation3 + $0x38] sm:$0xff] %vm1732, %v2532
        %2774 = vst.msk [vmem:[#allocation3 + $0x40] sm:$0xff] %vm1732, %v2582
        %2775 = vst.msk [vmem:[#allocation3 + $0x48] sm:$0xff] %vm1732, %v2585
        %2776 = vst.msk [vmem:[#allocation3 + $0x50] sm:$0xff] %vm1732, %v2590
        %2777 = vst.msk [vmem:[#allocation3 + $0x58] sm:$0xff] %vm1732, %v2593
        %2778 = vst.msk [vmem:[#allocation3 + $0x60] sm:$0xff] %vm1732, %v2598
        %2779 = vst.msk [vmem:[#allocation3 + $0x68] sm:$0xff] %vm1732, %v2601
        %2780 = vst.msk [vmem:[#allocation3 + $0x70] sm:$0xff] %vm1732, %v2606
        %2781 = vst.msk [vmem:[#allocation3 + $0x78] sm:$0xff] %vm1732, %v2609
        %2782 = vst.msk [vmem:[#allocation3 + $0x80] sm:$0xff] %vm1732, %v2659
        %2783 = vst.msk [vmem:[#allocation3 + $0x88] sm:$0xff] %vm1732, %v2662
        %2784 = vst.msk [vmem:[#allocation3 + $0x90] sm:$0xff] %vm1732, %v2667
        %2785 = vst.msk [vmem:[#allocation3 + $0x98] sm:$0xff] %vm1732, %v2670
        %2786 = vst.msk [vmem:[#allocation3 + $0xa0] sm:$0xff] %vm1732, %v2675
        %2787 = vst.msk [vmem:[#allocation3 + $0xa8] sm:$0xff] %vm1732, %v2678
        %2788 = vst.msk [vmem:[#allocation3 + $0xb0] sm:$0xff] %vm1732, %v2683
        %2789 = vst.msk [vmem:[#allocation3 + $0xb8] sm:$0xff] %vm1732, %v2686
        %2790 = vst.msk [vmem:[#allocation3 + $0xc0] sm:$0xff] %vm1732, %v2736
        %2791 = vst.msk [vmem:[#allocation3 + $0xc8] sm:$0xff] %vm1732, %v2739
        %2792 = vst.msk [vmem:[#allocation3 + $0xd0] sm:$0xff] %vm1732, %v2744
        %2793 = vst.msk [vmem:[#allocation3 + $0xd8] sm:$0xff] %vm1732, %v2747
        %2794 = vst.msk [vmem:[#allocation3 + $0xe0] sm:$0xff] %vm1732, %v2752
        %2795 = vst.msk [vmem:[#allocation3 + $0xe8] sm:$0xff] %vm1732, %v2755
        %2796 = vst.msk [vmem:[#allocation3 + $0xf0] sm:$0xff] %vm1732, %v2760
        %2797 = vst.msk [vmem:[#allocation3 + $0xf8] sm:$0xff] %vm1732, %v2763
        %2802 = vrot.lane.b32.xlu0 %v1684, 96
        %v2803 = vpop.permute.xlu0 %2802
        %2804 = vrot.lane.b32.xlu0 %v1685, 96
        %v2805 = vpop.permute.xlu0 %2804
        %2806 = vrot.lane.b32.xlu0 %v1686, 96
        %v2807 = vpop.permute.xlu0 %2806
        %2808 = vrot.lane.b32.xlu0 %v1687, 96
        %v2809 = vpop.permute.xlu0 %2808
        %2814 = vrot.lane.b32.xlu0 %v1700, 96
        %v2815 = vpop.permute.xlu0 %2814
        %2816 = vrot.lane.b32.xlu0 %v1701, 96
        %v2817 = vpop.permute.xlu0 %2816
        %2818 = vrot.lane.b32.xlu0 %v1702, 96
        %v2819 = vpop.permute.xlu0 %2818
        %2820 = vrot.lane.b32.xlu0 %v1703, 96
        %v2821 = vpop.permute.xlu0 %2820
        %v2823 = vsel %vm1732, %v2803, 0
        %v2826 = vsel %vm1732, %v2805, 0
        %v2829 = vsel %vm1732, %v2807, 0
        %v2832 = vsel %vm1732, %v2809, 0
        %v2835 = vsel %vm1732, %v2815, 0
        %v2838 = vsel %vm1732, %v2817, 0
        %v2841 = vsel %vm1732, %v2819, 0
        %v2844 = vsel %vm1732, %v2821, 0
        %2846 = vmatprep.subr.bf16.mxu0 0
        %2847 = vmatpush1.bf16.xpose.msra.mxu0 %v2835
        %2848 = vmatprep.subr.bf16.mxu0 0
        %2849 = vmatpush1.bf16.xpose.msra.mxu0 %v2838
        %2850 = vmatprep.subr.bf16.mxu0 0
        %2851 = vmatpush1.bf16.xpose.msra.mxu0 %v2841
        %2852 = vmatprep.subr.bf16.mxu0 0
        %2853 = vmatpush1.bf16.xpose.msra.mxu0 %v2844
        %2854 = vmatprep.subr.bf16.mxu0 0
        %2855 = vmatpush1.bf16.xpose.msra.mxu0 0
        %2856 = vmatprep.subr.bf16.mxu0 0
        %2857 = vmatpush1.bf16.xpose.msra.mxu0 0
        %2858 = vmatprep.subr.bf16.mxu0 0
        %2859 = vmatpush1.bf16.xpose.msra.mxu0 0
        %2860 = vmatprep.subr.bf16.mxu0 0
        %2861 = vmatpush1.bf16.xpose.msra.mxu0 0
        %2862 = vmatprep.subr.bf16.mxu0 0
        %2863 = vmatpush1.bf16.xpose.msra.mxu0 0
        %2864 = vmatprep.subr.bf16.mxu0 0
        %2865 = vmatpush1.bf16.xpose.msra.mxu0 0
        %2866 = vmatprep.subr.bf16.mxu0 0
        %2867 = vmatpush1.bf16.xpose.msra.mxu0 0
        %2868 = vmatprep.subr.bf16.mxu0 0
        %2869 = vmatpush1.bf16.xpose.msra.mxu0 0
        %2870 = vmatprep.subr.bf16.mxu0 0
        %2871 = vmatpush1.bf16.xpose.msra.mxu0 0
        %2872 = vmatprep.subr.bf16.mxu0 0
        %2873 = vmatpush1.bf16.xpose.msra.mxu0 0
        %2874 = vmatprep.subr.bf16.mxu0 0
        %2875 = vmatpush1.bf16.xpose.msra.mxu0 0
        %2876 = vmatprep.subr.bf16.mxu0 0
        %2877 = vmatpush1.bf16.xpose.msra.mxu0 0
        %2878 = vmatprep.mubr.bf16.mxu0 0
        %2879 = vmatmul.mubr.bf16.gmra.mrb[0].mxu0 %v2823
        %v2880 = vpop.f32.mrb[0].mxu0
        %v2881 = vadd.f32 %v1114, %v2880
        %v2882 = vpop.f32.mrb[0].mxu0
        %v2883 = vpop.f32.mrb[0].mxu0
        %v2884 = vadd.f32 %v1115, %v2883
        %v2885 = vpop.f32.mrb[0].mxu0
        %2886 = vmatprep.mubr.bf16.mxu0 0
        %2887 = vmatmul.mubr.bf16.gmra.mrb[0].mxu0 %v2826
        %v2888 = vpop.f32.mrb[0].mxu0
        %v2889 = vadd.f32 %v1116, %v2888
        %v2890 = vpop.f32.mrb[0].mxu0
        %v2891 = vpop.f32.mrb[0].mxu0
        %v2892 = vadd.f32 %v1117, %v2891
        %v2893 = vpop.f32.mrb[0].mxu0
        %2894 = vmatprep.mubr.bf16.mxu0 0
        %2895 = vmatmul.mubr.bf16.gmra.mrb[0].mxu0 %v2829
        %v2896 = vpop.f32.mrb[0].mxu0
        %v2897 = vadd.f32 %v1118, %v2896
        %v2898 = vpop.f32.mrb[0].mxu0
        %v2899 = vpop.f32.mrb[0].mxu0
        %v2900 = vadd.f32 %v1119, %v2899
        %v2901 = vpop.f32.mrb[0].mxu0
        %2902 = vmatprep.mubr.bf16.mxu0 0
        %2903 = vmatmul.mubr.bf16.gmra.mrb[0].mxu0 %v2832
        %v2904 = vpop.f32.mrb[0].mxu0
        %v2905 = vadd.f32 %v1120, %v2904
        %v2906 = vpop.f32.mrb[0].mxu0
        %v2907 = vpop.f32.mrb[0].mxu0
        %v2908 = vadd.f32 %v1121, %v2907
        %v2909 = vpop.f32.mrb[0].mxu0
        %2910 = vdwg.mxu0
        %2915 = vrot.lane.b32.xlu0 %v1688, 96
        %v2916 = vpop.permute.xlu0 %2915
        %2917 = vrot.lane.b32.xlu0 %v1689, 96
        %v2918 = vpop.permute.xlu0 %2917
        %2919 = vrot.lane.b32.xlu0 %v1690, 96
        %v2920 = vpop.permute.xlu0 %2919
        %2921 = vrot.lane.b32.xlu0 %v1691, 96
        %v2922 = vpop.permute.xlu0 %2921
        %2927 = vrot.lane.b32.xlu0 %v1704, 96
        %v2928 = vpop.permute.xlu0 %2927
        %2929 = vrot.lane.b32.xlu0 %v1705, 96
        %v2930 = vpop.permute.xlu0 %2929
        %2931 = vrot.lane.b32.xlu0 %v1706, 96
        %v2932 = vpop.permute.xlu0 %2931
        %2933 = vrot.lane.b32.xlu0 %v1707, 96
        %v2934 = vpop.permute.xlu0 %2933
        %v2936 = vsel %vm1732, %v2916, 0
        %v2939 = vsel %vm1732, %v2918, 0
        %v2942 = vsel %vm1732, %v2920, 0
        %v2945 = vsel %vm1732, %v2922, 0
        %v2948 = vsel %vm1732, %v2928, 0
        %v2951 = vsel %vm1732, %v2930, 0
        %v2954 = vsel %vm1732, %v2932, 0
        %v2957 = vsel %vm1732, %v2934, 0
        %2959 = vmatprep.subr.bf16.mxu0 0
        %2960 = vmatpush1.bf16.xpose.msra.mxu0 %v2948
        %2961 = vmatprep.subr.bf16.mxu0 0
        %2962 = vmatpush1.bf16.xpose.msra.mxu0 %v2951
        %2963 = vmatprep.subr.bf16.mxu0 0
        %2964 = vmatpush1.bf16.xpose.msra.mxu0 %v2954
        %2965 = vmatprep.subr.bf16.mxu0 0
        %2966 = vmatpush1.bf16.xpose.msra.mxu0 %v2957
        %2967 = vmatprep.subr.bf16.mxu0 0
        %2968 = vmatpush1.bf16.xpose.msra.mxu0 0
        %2969 = vmatprep.subr.bf16.mxu0 0
        %2970 = vmatpush1.bf16.xpose.msra.mxu0 0
        %2971 = vmatprep.subr.bf16.mxu0 0
        %2972 = vmatpush1.bf16.xpose.msra.mxu0 0
        %2973 = vmatprep.subr.bf16.mxu0 0
        %2974 = vmatpush1.bf16.xpose.msra.mxu0 0
        %2975 = vmatprep.subr.bf16.mxu0 0
        %2976 = vmatpush1.bf16.xpose.msra.mxu0 0
        %2977 = vmatprep.subr.bf16.mxu0 0
        %2978 = vmatpush1.bf16.xpose.msra.mxu0 0
        %2979 = vmatprep.subr.bf16.mxu0 0
        %2980 = vmatpush1.bf16.xpose.msra.mxu0 0
        %2981 = vmatprep.subr.bf16.mxu0 0
        %2982 = vmatpush1.bf16.xpose.msra.mxu0 0
        %2983 = vmatprep.subr.bf16.mxu0 0
        %2984 = vmatpush1.bf16.xpose.msra.mxu0 0
        %2985 = vmatprep.subr.bf16.mxu0 0
        %2986 = vmatpush1.bf16.xpose.msra.mxu0 0
        %2987 = vmatprep.subr.bf16.mxu0 0
        %2988 = vmatpush1.bf16.xpose.msra.mxu0 0
        %2989 = vmatprep.subr.bf16.mxu0 0
        %2990 = vmatpush1.bf16.xpose.msra.mxu0 0
        %2991 = vmatprep.mubr.bf16.mxu0 0
        %2992 = vmatmul.mubr.bf16.gmra.mrb[0].mxu0 %v2936
        %v2993 = vpop.f32.mrb[0].mxu0
        %v2994 = vadd.f32 %v1114, %v2993
        %v2995 = vpop.f32.mrb[0].mxu0
        %v2996 = vpop.f32.mrb[0].mxu0
        %v2997 = vadd.f32 %v1115, %v2996
        %v2998 = vpop.f32.mrb[0].mxu0
        %2999 = vmatprep.mubr.bf16.mxu0 0
        %3000 = vmatmul.mubr.bf16.gmra.mrb[0].mxu0 %v2939
        %v3001 = vpop.f32.mrb[0].mxu0
        %v3002 = vadd.f32 %v1116, %v3001
        %v3003 = vpop.f32.mrb[0].mxu0
        %v3004 = vpop.f32.mrb[0].mxu0
        %v3005 = vadd.f32 %v1117, %v3004
        %v3006 = vpop.f32.mrb[0].mxu0
        %3007 = vmatprep.mubr.bf16.mxu0 0
        %3008 = vmatmul.mubr.bf16.gmra.mrb[0].mxu0 %v2942
        %v3009 = vpop.f32.mrb[0].mxu0
        %v3010 = vadd.f32 %v1118, %v3009
        %v3011 = vpop.f32.mrb[0].mxu0
        %v3012 = vpop.f32.mrb[0].mxu0
        %v3013 = vadd.f32 %v1119, %v3012
        %v3014 = vpop.f32.mrb[0].mxu0
        %3015 = vmatprep.mubr.bf16.mxu0 0
        %3016 = vmatmul.mubr.bf16.gmra.mrb[0].mxu0 %v2945
        %v3017 = vpop.f32.mrb[0].mxu0
        %v3018 = vadd.f32 %v1120, %v3017
        %v3019 = vpop.f32.mrb[0].mxu0
        %v3020 = vpop.f32.mrb[0].mxu0
        %v3021 = vadd.f32 %v1121, %v3020
        %v3022 = vpop.f32.mrb[0].mxu0
        %3023 = vdwg.mxu0
        %3028 = vrot.lane.b32.xlu0 %v1692, 96
        %v3029 = vpop.permute.xlu0 %3028
        %3030 = vrot.lane.b32.xlu0 %v1693, 96
        %v3031 = vpop.permute.xlu0 %3030
        %3032 = vrot.lane.b32.xlu0 %v1694, 96
        %v3033 = vpop.permute.xlu0 %3032
        %3034 = vrot.lane.b32.xlu0 %v1695, 96
        %v3035 = vpop.permute.xlu0 %3034
        %3040 = vrot.lane.b32.xlu0 %v1708, 96
        %v3041 = vpop.permute.xlu0 %3040
        %3042 = vrot.lane.b32.xlu0 %v1709, 96
        %v3043 = vpop.permute.xlu0 %3042
        %3044 = vrot.lane.b32.xlu0 %v1710, 96
        %v3045 = vpop.permute.xlu0 %3044
        %3046 = vrot.lane.b32.xlu0 %v1711, 96
        %v3047 = vpop.permute.xlu0 %3046
        %v3049 = vsel %vm1732, %v3029, 0
        %v3052 = vsel %vm1732, %v3031, 0
        %v3055 = vsel %vm1732, %v3033, 0
        %v3058 = vsel %vm1732, %v3035, 0
        %v3061 = vsel %vm1732, %v3041, 0
        %v3064 = vsel %vm1732, %v3043, 0
        %v3067 = vsel %vm1732, %v3045, 0
        %v3070 = vsel %vm1732, %v3047, 0
        %3072 = vmatprep.subr.bf16.mxu0 0
        %3073 = vmatpush1.bf16.xpose.msra.mxu0 %v3061
        %3074 = vmatprep.subr.bf16.mxu0 0
        %3075 = vmatpush1.bf16.xpose.msra.mxu0 %v3064
        %3076 = vmatprep.subr.bf16.mxu0 0
        %3077 = vmatpush1.bf16.xpose.msra.mxu0 %v3067
        %3078 = vmatprep.subr.bf16.mxu0 0
        %3079 = vmatpush1.bf16.xpose.msra.mxu0 %v3070
        %3080 = vmatprep.subr.bf16.mxu0 0
        %3081 = vmatpush1.bf16.xpose.msra.mxu0 0
        %3082 = vmatprep.subr.bf16.mxu0 0
        %3083 = vmatpush1.bf16.xpose.msra.mxu0 0
        %3084 = vmatprep.subr.bf16.mxu0 0
        %3085 = vmatpush1.bf16.xpose.msra.mxu0 0
        %3086 = vmatprep.subr.bf16.mxu0 0
        %3087 = vmatpush1.bf16.xpose.msra.mxu0 0
        %3088 = vmatprep.subr.bf16.mxu0 0
        %3089 = vmatpush1.bf16.xpose.msra.mxu0 0
        %3090 = vmatprep.subr.bf16.mxu0 0
        %3091 = vmatpush1.bf16.xpose.msra.mxu0 0
        %3092 = vmatprep.subr.bf16.mxu0 0
        %3093 = vmatpush1.bf16.xpose.msra.mxu0 0
        %3094 = vmatprep.subr.bf16.mxu0 0
        %3095 = vmatpush1.bf16.xpose.msra.mxu0 0
        %3096 = vmatprep.subr.bf16.mxu0 0
        %3097 = vmatpush1.bf16.xpose.msra.mxu0 0
        %3098 = vmatprep.subr.bf16.mxu0 0
        %3099 = vmatpush1.bf16.xpose.msra.mxu0 0
        %3100 = vmatprep.subr.bf16.mxu0 0
        %3101 = vmatpush1.bf16.xpose.msra.mxu0 0
        %3102 = vmatprep.subr.bf16.mxu0 0
        %3103 = vmatpush1.bf16.xpose.msra.mxu0 0
        %3104 = vmatprep.mubr.bf16.mxu0 0
        %3105 = vmatmul.mubr.bf16.gmra.mrb[0].mxu0 %v3049
        %v3106 = vpop.f32.mrb[0].mxu0
        %v3107 = vadd.f32 %v1114, %v3106
        %v3108 = vpop.f32.mrb[0].mxu0
        %v3109 = vpop.f32.mrb[0].mxu0
        %v3110 = vadd.f32 %v1115, %v3109
        %v3111 = vpop.f32.mrb[0].mxu0
        %3112 = vmatprep.mubr.bf16.mxu0 0
        %3113 = vmatmul.mubr.bf16.gmra.mrb[0].mxu0 %v3052
        %v3114 = vpop.f32.mrb[0].mxu0
        %v3115 = vadd.f32 %v1116, %v3114
        %v3116 = vpop.f32.mrb[0].mxu0
        %v3117 = vpop.f32.mrb[0].mxu0
        %v3118 = vadd.f32 %v1117, %v3117
        %v3119 = vpop.f32.mrb[0].mxu0
        %3120 = vmatprep.mubr.bf16.mxu0 0
        %3121 = vmatmul.mubr.bf16.gmra.mrb[0].mxu0 %v3055
        %v3122 = vpop.f32.mrb[0].mxu0
        %v3123 = vadd.f32 %v1118, %v3122
        %v3124 = vpop.f32.mrb[0].mxu0
        %v3125 = vpop.f32.mrb[0].mxu0
        %v3126 = vadd.f32 %v1119, %v3125
        %v3127 = vpop.f32.mrb[0].mxu0
        %3128 = vmatprep.mubr.bf16.mxu0 0
        %3129 = vmatmul.mubr.bf16.gmra.mrb[0].mxu0 %v3058
        %v3130 = vpop.f32.mrb[0].mxu0
        %v3131 = vadd.f32 %v1120, %v3130
        %v3132 = vpop.f32.mrb[0].mxu0
        %v3133 = vpop.f32.mrb[0].mxu0
        %v3134 = vadd.f32 %v1121, %v3133
        %v3135 = vpop.f32.mrb[0].mxu0
        %3136 = vdwg.mxu0
        %3141 = vrot.lane.b32.xlu0 %v1696, 96
        %v3142 = vpop.permute.xlu0 %3141
        %3143 = vrot.lane.b32.xlu0 %v1697, 96
        %v3144 = vpop.permute.xlu0 %3143
        %3145 = vrot.lane.b32.xlu0 %v1698, 96
        %v3146 = vpop.permute.xlu0 %3145
        %3147 = vrot.lane.b32.xlu0 %v1699, 96
        %v3148 = vpop.permute.xlu0 %3147
        %3153 = vrot.lane.b32.xlu0 %v1712, 96
        %v3154 = vpop.permute.xlu0 %3153
        %3155 = vrot.lane.b32.xlu0 %v1713, 96
        %v3156 = vpop.permute.xlu0 %3155
        %3157 = vrot.lane.b32.xlu0 %v1714, 96
        %v3158 = vpop.permute.xlu0 %3157
        %3159 = vrot.lane.b32.xlu0 %v1715, 96
        %v3160 = vpop.permute.xlu0 %3159
        %v3162 = vsel %vm1732, %v3142, 0
        %v3165 = vsel %vm1732, %v3144, 0
        %v3168 = vsel %vm1732, %v3146, 0
        %v3171 = vsel %vm1732, %v3148, 0
        %v3174 = vsel %vm1732, %v3154, 0
        %v3177 = vsel %vm1732, %v3156, 0
        %v3180 = vsel %vm1732, %v3158, 0
        %v3183 = vsel %vm1732, %v3160, 0
        %3185 = vmatprep.subr.bf16.mxu0 0
        %3186 = vmatpush1.bf16.xpose.msra.mxu0 %v3174
        %3187 = vmatprep.subr.bf16.mxu0 0
        %3188 = vmatpush1.bf16.xpose.msra.mxu0 %v3177
        %3189 = vmatprep.subr.bf16.mxu0 0
        %3190 = vmatpush1.bf16.xpose.msra.mxu0 %v3180
        %3191 = vmatprep.subr.bf16.mxu0 0
        %3192 = vmatpush1.bf16.xpose.msra.mxu0 %v3183
        %3193 = vmatprep.subr.bf16.mxu0 0
        %3194 = vmatpush1.bf16.xpose.msra.mxu0 0
        %3195 = vmatprep.subr.bf16.mxu0 0
        %3196 = vmatpush1.bf16.xpose.msra.mxu0 0
        %3197 = vmatprep.subr.bf16.mxu0 0
        %3198 = vmatpush1.bf16.xpose.msra.mxu0 0
        %3199 = vmatprep.subr.bf16.mxu0 0
        %3200 = vmatpush1.bf16.xpose.msra.mxu0 0
        %3201 = vmatprep.subr.bf16.mxu0 0
        %3202 = vmatpush1.bf16.xpose.msra.mxu0 0
        %3203 = vmatprep.subr.bf16.mxu0 0
        %3204 = vmatpush1.bf16.xpose.msra.mxu0 0
        %3205 = vmatprep.subr.bf16.mxu0 0
        %3206 = vmatpush1.bf16.xpose.msra.mxu0 0
        %3207 = vmatprep.subr.bf16.mxu0 0
        %3208 = vmatpush1.bf16.xpose.msra.mxu0 0
        %3209 = vmatprep.subr.bf16.mxu0 0
        %3210 = vmatpush1.bf16.xpose.msra.mxu0 0
        %3211 = vmatprep.subr.bf16.mxu0 0
        %3212 = vmatpush1.bf16.xpose.msra.mxu0 0
        %3213 = vmatprep.subr.bf16.mxu0 0
        %3214 = vmatpush1.bf16.xpose.msra.mxu0 0
        %3215 = vmatprep.subr.bf16.mxu0 0
        %3216 = vmatpush1.bf16.xpose.msra.mxu0 0
        %3217 = vmatprep.mubr.bf16.mxu0 0
        %3218 = vmatmul.mubr.bf16.gmra.mrb[0].mxu0 %v3162
        %v3219 = vpop.f32.mrb[0].mxu0
        %v3220 = vadd.f32 %v1114, %v3219
        %v3221 = vpop.f32.mrb[0].mxu0
        %v3222 = vpop.f32.mrb[0].mxu0
        %v3223 = vadd.f32 %v1115, %v3222
        %v3224 = vpop.f32.mrb[0].mxu0
        %3225 = vmatprep.mubr.bf16.mxu0 0
        %3226 = vmatmul.mubr.bf16.gmra.mrb[0].mxu0 %v3165
        %v3227 = vpop.f32.mrb[0].mxu0
        %v3228 = vadd.f32 %v1116, %v3227
        %v3229 = vpop.f32.mrb[0].mxu0
        %v3230 = vpop.f32.mrb[0].mxu0
        %v3231 = vadd.f32 %v1117, %v3230
        %v3232 = vpop.f32.mrb[0].mxu0
        %3233 = vmatprep.mubr.bf16.mxu0 0
        %3234 = vmatmul.mubr.bf16.gmra.mrb[0].mxu0 %v3168
        %v3235 = vpop.f32.mrb[0].mxu0
        %v3236 = vadd.f32 %v1118, %v3235
        %v3237 = vpop.f32.mrb[0].mxu0
        %v3238 = vpop.f32.mrb[0].mxu0
        %v3239 = vadd.f32 %v1119, %v3238
        %v3240 = vpop.f32.mrb[0].mxu0
        %3241 = vmatprep.mubr.bf16.mxu0 0
        %3242 = vmatmul.mubr.bf16.gmra.mrb[0].mxu0 %v3171
        %v3243 = vpop.f32.mrb[0].mxu0
        %v3244 = vadd.f32 %v1120, %v3243
        %v3245 = vpop.f32.mrb[0].mxu0
        %v3246 = vpop.f32.mrb[0].mxu0
        %v3247 = vadd.f32 %v1121, %v3246
        %v3248 = vpop.f32.mrb[0].mxu0
        %3249 = vdwg.mxu0
        %v3250 = vsel %vm2089, %v2881, -inf
        %3251 = vmax.xlane.f32.xlu0 %v3250
        %v3252 = vpop.xlane.xlu0 %3251
        %v3253 = vsel %vm2089, %v2884, -inf
        %3254 = vmax.xlane.f32.xlu0 %v3253
        %v3255 = vpop.xlane.xlu0 %3254
        %v3256 = vsel %vm2089, %v2889, -inf
        %3257 = vmax.xlane.f32.xlu0 %v3256
        %v3258 = vpop.xlane.xlu0 %3257
        %v3259 = vsel %vm2089, %v2892, -inf
        %3260 = vmax.xlane.f32.xlu0 %v3259
        %v3261 = vpop.xlane.xlu0 %3260
        %v3262 = vsel %vm2089, %v2897, -inf
        %3263 = vmax.xlane.f32.xlu0 %v3262
        %v3264 = vpop.xlane.xlu0 %3263
        %v3265 = vsel %vm2089, %v2900, -inf
        %3266 = vmax.xlane.f32.xlu0 %v3265
        %v3267 = vpop.xlane.xlu0 %3266
        %v3268 = vsel %vm2089, %v2905, -inf
        %3269 = vmax.xlane.f32.xlu0 %v3268
        %v3270 = vpop.xlane.xlu0 %3269
        %v3271 = vsel %vm2089, %v2908, -inf
        %3272 = vmax.xlane.f32.xlu0 %v3271
        %v3273 = vpop.xlane.xlu0 %3272
        %v3274 = vsel %vm2089, %v2994, -inf
        %3275 = vmax.xlane.f32.xlu0 %v3274
        %v3276 = vpop.xlane.xlu0 %3275
        %v3277 = vsel %vm2089, %v2997, -inf
        %3278 = vmax.xlane.f32.xlu0 %v3277
        %v3279 = vpop.xlane.xlu0 %3278
        %v3280 = vsel %vm2089, %v3002, -inf
        %3281 = vmax.xlane.f32.xlu0 %v3280
        %v3282 = vpop.xlane.xlu0 %3281
        %v3283 = vsel %vm2089, %v3005, -inf
        %3284 = vmax.xlane.f32.xlu0 %v3283
        %v3285 = vpop.xlane.xlu0 %3284
        %v3286 = vsel %vm2089, %v3010, -inf
        %3287 = vmax.xlane.f32.xlu0 %v3286
        %v3288 = vpop.xlane.xlu0 %3287
        %v3289 = vsel %vm2089, %v3013, -inf
        %3290 = vmax.xlane.f32.xlu0 %v3289
        %v3291 = vpop.xlane.xlu0 %3290
        %v3292 = vsel %vm2089, %v3018, -inf
        %3293 = vmax.xlane.f32.xlu0 %v3292
        %v3294 = vpop.xlane.xlu0 %3293
        %v3295 = vsel %vm2089, %v3021, -inf
        %3296 = vmax.xlane.f32.xlu0 %v3295
        %v3297 = vpop.xlane.xlu0 %3296
        %v3298 = vsel %vm2089, %v3107, -inf
        %3299 = vmax.xlane.f32.xlu0 %v3298
        %v3300 = vpop.xlane.xlu0 %3299
        %v3301 = vsel %vm2089, %v3110, -inf
        %3302 = vmax.xlane.f32.xlu0 %v3301
        %v3303 = vpop.xlane.xlu0 %3302
        %v3304 = vsel %vm2089, %v3115, -inf
        %3305 = vmax.xlane.f32.xlu0 %v3304
        %v3306 = vpop.xlane.xlu0 %3305
        %v3307 = vsel %vm2089, %v3118, -inf
        %3308 = vmax.xlane.f32.xlu0 %v3307
        %v3309 = vpop.xlane.xlu0 %3308
        %v3310 = vsel %vm2089, %v3123, -inf
        %3311 = vmax.xlane.f32.xlu0 %v3310
        %v3312 = vpop.xlane.xlu0 %3311
        %v3313 = vsel %vm2089, %v3126, -inf
        %3314 = vmax.xlane.f32.xlu0 %v3313
        %v3315 = vpop.xlane.xlu0 %3314
        %v3316 = vsel %vm2089, %v3131, -inf
        %3317 = vmax.xlane.f32.xlu0 %v3316
        %v3318 = vpop.xlane.xlu0 %3317
        %v3319 = vsel %vm2089, %v3134, -inf
        %3320 = vmax.xlane.f32.xlu0 %v3319
        %v3321 = vpop.xlane.xlu0 %3320
        %v3322 = vsel %vm2089, %v3220, -inf
        %3323 = vmax.xlane.f32.xlu0 %v3322
        %v3324 = vpop.xlane.xlu0 %3323
        %v3325 = vsel %vm2089, %v3223, -inf
        %3326 = vmax.xlane.f32.xlu0 %v3325
        %v3327 = vpop.xlane.xlu0 %3326
        %v3328 = vsel %vm2089, %v3228, -inf
        %3329 = vmax.xlane.f32.xlu0 %v3328
        %v3330 = vpop.xlane.xlu0 %3329
        %v3331 = vsel %vm2089, %v3231, -inf
        %3332 = vmax.xlane.f32.xlu0 %v3331
        %v3333 = vpop.xlane.xlu0 %3332
        %v3334 = vsel %vm2089, %v3236, -inf
        %3335 = vmax.xlane.f32.xlu0 %v3334
        %v3336 = vpop.xlane.xlu0 %3335
        %v3337 = vsel %vm2089, %v3239, -inf
        %3338 = vmax.xlane.f32.xlu0 %v3337
        %v3339 = vpop.xlane.xlu0 %3338
        %v3340 = vsel %vm2089, %v3244, -inf
        %3341 = vmax.xlane.f32.xlu0 %v3340
        %v3342 = vpop.xlane.xlu0 %3341
        %v3343 = vsel %vm2089, %v3247, -inf
        %3344 = vmax.xlane.f32.xlu0 %v3343
        %v3345 = vpop.xlane.xlu0 %3344
        %v3346 = vsub.f32 %v2881, %v3252
        %v3347 = vsub.f32 %v2884, %v3255
        %v3348 = vsub.f32 %v2889, %v3258
        %v3349 = vsub.f32 %v2892, %v3261
        %v3350 = vsub.f32 %v2897, %v3264
        %v3351 = vsub.f32 %v2900, %v3267
        %v3352 = vsub.f32 %v2905, %v3270
        %v3353 = vsub.f32 %v2908, %v3273
        %v3354 = vsub.f32 %v2994, %v3276
        %v3355 = vsub.f32 %v2997, %v3279
        %v3356 = vsub.f32 %v3002, %v3282
        %v3357 = vsub.f32 %v3005, %v3285
        %v3358 = vsub.f32 %v3010, %v3288
        %v3359 = vsub.f32 %v3013, %v3291
        %v3360 = vsub.f32 %v3018, %v3294
        %v3361 = vsub.f32 %v3021, %v3297
        %v3362 = vsub.f32 %v3107, %v3300
        %v3363 = vsub.f32 %v3110, %v3303
        %v3364 = vsub.f32 %v3115, %v3306
        %v3365 = vsub.f32 %v3118, %v3309
        %v3366 = vsub.f32 %v3123, %v3312
        %v3367 = vsub.f32 %v3126, %v3315
        %v3368 = vsub.f32 %v3131, %v3318
        %v3369 = vsub.f32 %v3134, %v3321
        %v3370 = vsub.f32 %v3220, %v3324
        %v3371 = vsub.f32 %v3223, %v3327
        %v3372 = vsub.f32 %v3228, %v3330
        %v3373 = vsub.f32 %v3231, %v3333
        %v3374 = vsub.f32 %v3236, %v3336
        %v3375 = vsub.f32 %v3239, %v3339
        %v3376 = vsub.f32 %v3244, %v3342
        %v3377 = vsub.f32 %v3247, %v3345
        %v3378 = vmul.f32 %v3346, 1.442695
        %v3379 = vpow.pop %v3378
        %v3380 = vmul.f32 %v3347, 1.442695
        %v3381 = vpow.pop %v3380
        %v3382 = vmul.f32 %v3348, 1.442695
        %v3383 = vpow.pop %v3382
        %v3384 = vmul.f32 %v3349, 1.442695
        %v3385 = vpow.pop %v3384
        %v3386 = vmul.f32 %v3350, 1.442695
        %v3387 = vpow.pop %v3386
        %v3388 = vmul.f32 %v3351, 1.442695
        %v3389 = vpow.pop %v3388
        %v3390 = vmul.f32 %v3352, 1.442695
        %v3391 = vpow.pop %v3390
        %v3392 = vmul.f32 %v3353, 1.442695
        %v3393 = vpow.pop %v3392
        %v3394 = vmul.f32 %v3354, 1.442695
        %v3395 = vpow.pop %v3394
        %v3396 = vmul.f32 %v3355, 1.442695
        %v3397 = vpow.pop %v3396
        %v3398 = vmul.f32 %v3356, 1.442695
        %v3399 = vpow.pop %v3398
        %v3400 = vmul.f32 %v3357, 1.442695
        %v3401 = vpow.pop %v3400
        %v3402 = vmul.f32 %v3358, 1.442695
        %v3403 = vpow.pop %v3402
        %v3404 = vmul.f32 %v3359, 1.442695
        %v3405 = vpow.pop %v3404
        %v3406 = vmul.f32 %v3360, 1.442695
        %v3407 = vpow.pop %v3406
        %v3408 = vmul.f32 %v3361, 1.442695
        %v3409 = vpow.pop %v3408
        %v3410 = vmul.f32 %v3362, 1.442695
        %v3411 = vpow.pop %v3410
        %v3412 = vmul.f32 %v3363, 1.442695
        %v3413 = vpow.pop %v3412
        %v3414 = vmul.f32 %v3364, 1.442695
        %v3415 = vpow.pop %v3414
        %v3416 = vmul.f32 %v3365, 1.442695
        %v3417 = vpow.pop %v3416
        %v3418 = vmul.f32 %v3366, 1.442695
        %v3419 = vpow.pop %v3418
        %v3420 = vmul.f32 %v3367, 1.442695
        %v3421 = vpow.pop %v3420
        %v3422 = vmul.f32 %v3368, 1.442695
        %v3423 = vpow.pop %v3422
        %v3424 = vmul.f32 %v3369, 1.442695
        %v3425 = vpow.pop %v3424
        %v3426 = vmul.f32 %v3370, 1.442695
        %v3427 = vpow.pop %v3426
        %v3428 = vmul.f32 %v3371, 1.442695
        %v3429 = vpow.pop %v3428
        %v3430 = vmul.f32 %v3372, 1.442695
        %v3431 = vpow.pop %v3430
        %v3432 = vmul.f32 %v3373, 1.442695
        %v3433 = vpow.pop %v3432
        %v3434 = vmul.f32 %v3374, 1.442695
        %v3435 = vpow.pop %v3434
        %v3436 = vmul.f32 %v3375, 1.442695
        %v3437 = vpow.pop %v3436
        %v3438 = vmul.f32 %v3376, 1.442695
        %v3439 = vpow.pop %v3438
        %v3440 = vmul.f32 %v3377, 1.442695
        %v3441 = vpow.pop %v3440
        %v3442 = vsel %vm2089, %v3379, 0.0
        %3443 = vadd.xlane.f32.xlu0 %v3442
        %v3444 = vpop.xlane.xlu0 %3443
        %v3445 = vsel %vm2089, %v3381, 0.0
        %3446 = vadd.xlane.f32.xlu0 %v3445
        %v3447 = vpop.xlane.xlu0 %3446
        %v3448 = vsel %vm2089, %v3383, 0.0
        %3449 = vadd.xlane.f32.xlu0 %v3448
        %v3450 = vpop.xlane.xlu0 %3449
        %v3451 = vsel %vm2089, %v3385, 0.0
        %3452 = vadd.xlane.f32.xlu0 %v3451
        %v3453 = vpop.xlane.xlu0 %3452
        %v3454 = vsel %vm2089, %v3387, 0.0
        %3455 = vadd.xlane.f32.xlu0 %v3454
        %v3456 = vpop.xlane.xlu0 %3455
        %v3457 = vsel %vm2089, %v3389, 0.0
        %3458 = vadd.xlane.f32.xlu0 %v3457
        %v3459 = vpop.xlane.xlu0 %3458
        %v3460 = vsel %vm2089, %v3391, 0.0
        %3461 = vadd.xlane.f32.xlu0 %v3460
        %v3462 = vpop.xlane.xlu0 %3461
        %v3463 = vsel %vm2089, %v3393, 0.0
        %3464 = vadd.xlane.f32.xlu0 %v3463
        %v3465 = vpop.xlane.xlu0 %3464
        %v3466 = vsel %vm2089, %v3395, 0.0
        %3467 = vadd.xlane.f32.xlu0 %v3466
        %v3468 = vpop.xlane.xlu0 %3467
        %v3469 = vsel %vm2089, %v3397, 0.0
        %3470 = vadd.xlane.f32.xlu0 %v3469
        %v3471 = vpop.xlane.xlu0 %3470
        %v3472 = vsel %vm2089, %v3399, 0.0
        %3473 = vadd.xlane.f32.xlu0 %v3472
        %v3474 = vpop.xlane.xlu0 %3473
        %v3475 = vsel %vm2089, %v3401, 0.0
        %3476 = vadd.xlane.f32.xlu0 %v3475
        %v3477 = vpop.xlane.xlu0 %3476
        %v3478 = vsel %vm2089, %v3403, 0.0
        %3479 = vadd.xlane.f32.xlu0 %v3478
        %v3480 = vpop.xlane.xlu0 %3479
        %v3481 = vsel %vm2089, %v3405, 0.0
        %3482 = vadd.xlane.f32.xlu0 %v3481
        %v3483 = vpop.xlane.xlu0 %3482
        %v3484 = vsel %vm2089, %v3407, 0.0
        %3485 = vadd.xlane.f32.xlu0 %v3484
        %v3486 = vpop.xlane.xlu0 %3485
        %v3487 = vsel %vm2089, %v3409, 0.0
        %3488 = vadd.xlane.f32.xlu0 %v3487
        %v3489 = vpop.xlane.xlu0 %3488
        %v3490 = vsel %vm2089, %v3411, 0.0
        %3491 = vadd.xlane.f32.xlu0 %v3490
        %v3492 = vpop.xlane.xlu0 %3491
        %v3493 = vsel %vm2089, %v3413, 0.0
        %3494 = vadd.xlane.f32.xlu0 %v3493
        %v3495 = vpop.xlane.xlu0 %3494
        %v3496 = vsel %vm2089, %v3415, 0.0
        %3497 = vadd.xlane.f32.xlu0 %v3496
        %v3498 = vpop.xlane.xlu0 %3497
        %v3499 = vsel %vm2089, %v3417, 0.0
        %3500 = vadd.xlane.f32.xlu0 %v3499
        %v3501 = vpop.xlane.xlu0 %3500
        %v3502 = vsel %vm2089, %v3419, 0.0
        %3503 = vadd.xlane.f32.xlu0 %v3502
        %v3504 = vpop.xlane.xlu0 %3503
        %v3505 = vsel %vm2089, %v3421, 0.0
        %3506 = vadd.xlane.f32.xlu0 %v3505
        %v3507 = vpop.xlane.xlu0 %3506
        %v3508 = vsel %vm2089, %v3423, 0.0
        %3509 = vadd.xlane.f32.xlu0 %v3508
        %v3510 = vpop.xlane.xlu0 %3509
        %v3511 = vsel %vm2089, %v3425, 0.0
        %3512 = vadd.xlane.f32.xlu0 %v3511
        %v3513 = vpop.xlane.xlu0 %3512
        %v3514 = vsel %vm2089, %v3427, 0.0
        %3515 = vadd.xlane.f32.xlu0 %v3514
        %v3516 = vpop.xlane.xlu0 %3515
        %v3517 = vsel %vm2089, %v3429, 0.0
        %3518 = vadd.xlane.f32.xlu0 %v3517
        %v3519 = vpop.xlane.xlu0 %3518
        %v3520 = vsel %vm2089, %v3431, 0.0
        %3521 = vadd.xlane.f32.xlu0 %v3520
        %v3522 = vpop.xlane.xlu0 %3521
        %v3523 = vsel %vm2089, %v3433, 0.0
        %3524 = vadd.xlane.f32.xlu0 %v3523
        %v3525 = vpop.xlane.xlu0 %3524
        %v3526 = vsel %vm2089, %v3435, 0.0
        %3527 = vadd.xlane.f32.xlu0 %v3526
        %v3528 = vpop.xlane.xlu0 %3527
        %v3529 = vsel %vm2089, %v3437, 0.0
        %3530 = vadd.xlane.f32.xlu0 %v3529
        %v3531 = vpop.xlane.xlu0 %3530
        %v3532 = vsel %vm2089, %v3439, 0.0
        %3533 = vadd.xlane.f32.xlu0 %v3532
        %v3534 = vpop.xlane.xlu0 %3533
        %v3535 = vsel %vm2089, %v3441, 0.0
        %3536 = vadd.xlane.f32.xlu0 %v3535
        %v3537 = vpop.xlane.xlu0 %3536
        %v3538 = vrcp.pop %v3444
        %v3539 = vrcp.pop %v3447
        %v3540 = vrcp.pop %v3450
        %v3541 = vrcp.pop %v3453
        %v3542 = vrcp.pop %v3456
        %v3543 = vrcp.pop %v3459
        %v3544 = vrcp.pop %v3462
        %v3545 = vrcp.pop %v3465
        %v3546 = vrcp.pop %v3468
        %v3547 = vrcp.pop %v3471
        %v3548 = vrcp.pop %v3474
        %v3549 = vrcp.pop %v3477
        %v3550 = vrcp.pop %v3480
        %v3551 = vrcp.pop %v3483
        %v3552 = vrcp.pop %v3486
        %v3553 = vrcp.pop %v3489
        %v3554 = vrcp.pop %v3492
        %v3555 = vrcp.pop %v3495
        %v3556 = vrcp.pop %v3498
        %v3557 = vrcp.pop %v3501
        %v3558 = vrcp.pop %v3504
        %v3559 = vrcp.pop %v3507
        %v3560 = vrcp.pop %v3510
        %v3561 = vrcp.pop %v3513
        %v3562 = vrcp.pop %v3516
        %v3563 = vrcp.pop %v3519
        %v3564 = vrcp.pop %v3522
        %v3565 = vrcp.pop %v3525
        %v3566 = vrcp.pop %v3528
        %v3567 = vrcp.pop %v3531
        %v3568 = vrcp.pop %v3534
        %v3569 = vrcp.pop %v3537
        %v3570 = vmul.f32 %v3379, %v3538
        %v3571 = vmul.f32 %v3381, %v3539
        %v3572 = vmul.f32 %v3383, %v3540
        %v3573 = vmul.f32 %v3385, %v3541
        %v3574 = vmul.f32 %v3387, %v3542
        %v3575 = vmul.f32 %v3389, %v3543
        %v3576 = vmul.f32 %v3391, %v3544
        %v3577 = vmul.f32 %v3393, %v3545
        %v3578 = vmul.f32 %v3395, %v3546
        %v3579 = vmul.f32 %v3397, %v3547
        %v3580 = vmul.f32 %v3399, %v3548
        %v3581 = vmul.f32 %v3401, %v3549
        %v3582 = vmul.f32 %v3403, %v3550
        %v3583 = vmul.f32 %v3405, %v3551
        %v3584 = vmul.f32 %v3407, %v3552
        %v3585 = vmul.f32 %v3409, %v3553
        %v3586 = vmul.f32 %v3411, %v3554
        %v3587 = vmul.f32 %v3413, %v3555
        %v3588 = vmul.f32 %v3415, %v3556
        %v3589 = vmul.f32 %v3417, %v3557
        %v3590 = vmul.f32 %v3419, %v3558
        %v3591 = vmul.f32 %v3421, %v3559
        %v3592 = vmul.f32 %v3423, %v3560
        %v3593 = vmul.f32 %v3425, %v3561
        %v3594 = vmul.f32 %v3427, %v3562
        %v3595 = vmul.f32 %v3429, %v3563
        %v3596 = vmul.f32 %v3431, %v3564
        %v3597 = vmul.f32 %v3433, %v3565
        %v3598 = vmul.f32 %v3435, %v3566
        %v3599 = vmul.f32 %v3437, %v3567
        %v3600 = vmul.f32 %v3439, %v3568
        %v3601 = vmul.f32 %v3441, %v3569
        %v3602 = vpack.c.bf16 %v3571, %v3570
        %v3603 = vpack.c.bf16 %v3573, %v3572
        %v3604 = vpack.c.bf16 %v3575, %v3574
        %v3605 = vpack.c.bf16 %v3577, %v3576
        %v3606 = vpack.c.bf16 %v3579, %v3578
        %v3607 = vpack.c.bf16 %v3581, %v3580
        %v3608 = vpack.c.bf16 %v3583, %v3582
        %v3609 = vpack.c.bf16 %v3585, %v3584
        %v3610 = vpack.c.bf16 %v3587, %v3586
        %v3611 = vpack.c.bf16 %v3589, %v3588
        %v3612 = vpack.c.bf16 %v3591, %v3590
        %v3613 = vpack.c.bf16 %v3593, %v3592
        %v3614 = vpack.c.bf16 %v3595, %v3594
        %v3615 = vpack.c.bf16 %v3597, %v3596
        %v3616 = vpack.c.bf16 %v3599, %v3598
        %v3617 = vpack.c.bf16 %v3601, %v3600
        %3622 = vrot.lane.b32.xlu0 %v1716, 96
        %v3623 = vpop.permute.xlu0 %3622
        %3624 = vrot.lane.b32.xlu0 %v1717, 96
        %v3625 = vpop.permute.xlu0 %3624
        %3626 = vrot.lane.b32.xlu0 %v1718, 96
        %v3627 = vpop.permute.xlu0 %3626
        %3628 = vrot.lane.b32.xlu0 %v1719, 96
        %v3629 = vpop.permute.xlu0 %3628
        %v3635 = vsel %vm2089, %v3602, 0
        %v3638 = vsel %vm2089, %v3603, 0
        %v3641 = vsel %vm2089, %v3604, 0
        %v3644 = vsel %vm2089, %v3605, 0
        %3646 = vmatprep.subr.bf16.mxu0 0
        %3647 = vmatpush1.bf16.msra.mxu0 %v3623
        %3648 = vmatprep.subr.bf16.mxu0 0
        %3649 = vmatpush1.bf16.msra.mxu0 %v3625
        %3650 = vmatprep.subr.bf16.mxu0 0
        %3651 = vmatpush1.bf16.msra.mxu0 %v3627
        %3652 = vmatprep.subr.bf16.mxu0 0
        %3653 = vmatpush1.bf16.msra.mxu0 %v3629
        %3654 = vmatprep.subr.bf16.mxu0 0
        %3655 = vmatpush1.bf16.msra.mxu0 0
        %3656 = vmatprep.subr.bf16.mxu0 0
        %3657 = vmatpush1.bf16.msra.mxu0 0
        %3658 = vmatprep.subr.bf16.mxu0 0
        %3659 = vmatpush1.bf16.msra.mxu0 0
        %3660 = vmatprep.subr.bf16.mxu0 0
        %3661 = vmatpush1.bf16.msra.mxu0 0
        %3662 = vmatprep.subr.bf16.mxu0 0
        %3663 = vmatpush1.bf16.msra.mxu0 0
        %3664 = vmatprep.subr.bf16.mxu0 0
        %3665 = vmatpush1.bf16.msra.mxu0 0
        %3666 = vmatprep.subr.bf16.mxu0 0
        %3667 = vmatpush1.bf16.msra.mxu0 0
        %3668 = vmatprep.subr.bf16.mxu0 0
        %3669 = vmatpush1.bf16.msra.mxu0 0
        %3670 = vmatprep.subr.bf16.mxu0 0
        %3671 = vmatpush1.bf16.msra.mxu0 0
        %3672 = vmatprep.subr.bf16.mxu0 0
        %3673 = vmatpush1.bf16.msra.mxu0 0
        %3674 = vmatprep.subr.bf16.mxu0 0
        %3675 = vmatpush1.bf16.msra.mxu0 0
        %3676 = vmatprep.subr.bf16.mxu0 0
        %3677 = vmatpush1.bf16.msra.mxu0 0
        %3678 = vmatprep.mubr.bf16.mxu0 0
        %3679 = vmatmul.mubr.bf16.gmra.mrb[0].mxu0 %v3635
        %v3680 = vpop.f32.mrb[0].mxu0
        %v3681 = vadd.f32 0.0, %v3680
        %v3682 = vpop.f32.mrb[0].mxu0
        %v3683 = vpop.f32.mrb[0].mxu0
        %v3684 = vadd.f32 0.0, %v3683
        %v3685 = vpop.f32.mrb[0].mxu0
        %3686 = vmatprep.mubr.bf16.mxu0 0
        %3687 = vmatmul.mubr.bf16.gmra.mrb[0].mxu0 %v3638
        %v3688 = vpop.f32.mrb[0].mxu0
        %v3689 = vadd.f32 0.0, %v3688
        %v3690 = vpop.f32.mrb[0].mxu0
        %v3691 = vpop.f32.mrb[0].mxu0
        %v3692 = vadd.f32 0.0, %v3691
        %v3693 = vpop.f32.mrb[0].mxu0
        %3694 = vmatprep.mubr.bf16.mxu0 0
        %3695 = vmatmul.mubr.bf16.gmra.mrb[0].mxu0 %v3641
        %v3696 = vpop.f32.mrb[0].mxu0
        %v3697 = vadd.f32 0.0, %v3696
        %v3698 = vpop.f32.mrb[0].mxu0
        %v3699 = vpop.f32.mrb[0].mxu0
        %v3700 = vadd.f32 0.0, %v3699
        %v3701 = vpop.f32.mrb[0].mxu0
        %3702 = vmatprep.mubr.bf16.mxu0 0
        %3703 = vmatmul.mubr.bf16.gmra.mrb[0].mxu0 %v3644
        %v3704 = vpop.f32.mrb[0].mxu0
        %v3705 = vadd.f32 0.0, %v3704
        %v3706 = vpop.f32.mrb[0].mxu0
        %v3707 = vpop.f32.mrb[0].mxu0
        %v3708 = vadd.f32 0.0, %v3707
        %v3709 = vpop.f32.mrb[0].mxu0
        %3710 = vdwg.mxu0
        %3715 = vrot.lane.b32.xlu0 %v1720, 96
        %v3716 = vpop.permute.xlu0 %3715
        %3717 = vrot.lane.b32.xlu0 %v1721, 96
        %v3718 = vpop.permute.xlu0 %3717
        %3719 = vrot.lane.b32.xlu0 %v1722, 96
        %v3720 = vpop.permute.xlu0 %3719
        %3721 = vrot.lane.b32.xlu0 %v1723, 96
        %v3722 = vpop.permute.xlu0 %3721
        %v3728 = vsel %vm2089, %v3606, 0
        %v3731 = vsel %vm2089, %v3607, 0
        %v3734 = vsel %vm2089, %v3608, 0
        %v3737 = vsel %vm2089, %v3609, 0
        %3739 = vmatprep.subr.bf16.mxu0 0
        %3740 = vmatpush1.bf16.msra.mxu0 %v3716
        %3741 = vmatprep.subr.bf16.mxu0 0
        %3742 = vmatpush1.bf16.msra.mxu0 %v3718
        %3743 = vmatprep.subr.bf16.mxu0 0
        %3744 = vmatpush1.bf16.msra.mxu0 %v3720
        %3745 = vmatprep.subr.bf16.mxu0 0
        %3746 = vmatpush1.bf16.msra.mxu0 %v3722
        %3747 = vmatprep.subr.bf16.mxu0 0
        %3748 = vmatpush1.bf16.msra.mxu0 0
        %3749 = vmatprep.subr.bf16.mxu0 0
        %3750 = vmatpush1.bf16.msra.mxu0 0
        %3751 = vmatprep.subr.bf16.mxu0 0
        %3752 = vmatpush1.bf16.msra.mxu0 0
        %3753 = vmatprep.subr.bf16.mxu0 0
        %3754 = vmatpush1.bf16.msra.mxu0 0
        %3755 = vmatprep.subr.bf16.mxu0 0
        %3756 = vmatpush1.bf16.msra.mxu0 0
        %3757 = vmatprep.subr.bf16.mxu0 0
        %3758 = vmatpush1.bf16.msra.mxu0 0
        %3759 = vmatprep.subr.bf16.mxu0 0
        %3760 = vmatpush1.bf16.msra.mxu0 0
        %3761 = vmatprep.subr.bf16.mxu0 0
        %3762 = vmatpush1.bf16.msra.mxu0 0
        %3763 = vmatprep.subr.bf16.mxu0 0
        %3764 = vmatpush1.bf16.msra.mxu0 0
        %3765 = vmatprep.subr.bf16.mxu0 0
        %3766 = vmatpush1.bf16.msra.mxu0 0
        %3767 = vmatprep.subr.bf16.mxu0 0
        %3768 = vmatpush1.bf16.msra.mxu0 0
        %3769 = vmatprep.subr.bf16.mxu0 0
        %3770 = vmatpush1.bf16.msra.mxu0 0
        %3771 = vmatprep.mubr.bf16.mxu0 0
        %3772 = vmatmul.mubr.bf16.gmra.mrb[0].mxu0 %v3728
        %v3773 = vpop.f32.mrb[0].mxu0
        %v3774 = vadd.f32 0.0, %v3773
        %v3775 = vpop.f32.mrb[0].mxu0
        %v3776 = vpop.f32.mrb[0].mxu0
        %v3777 = vadd.f32 0.0, %v3776
        %v3778 = vpop.f32.mrb[0].mxu0
        %3779 = vmatprep.mubr.bf16.mxu0 0
        %3780 = vmatmul.mubr.bf16.gmra.mrb[0].mxu0 %v3731
        %v3781 = vpop.f32.mrb[0].mxu0
        %v3782 = vadd.f32 0.0, %v3781
        %v3783 = vpop.f32.mrb[0].mxu0
        %v3784 = vpop.f32.mrb[0].mxu0
        %v3785 = vadd.f32 0.0, %v3784
        %v3786 = vpop.f32.mrb[0].mxu0
        %3787 = vmatprep.mubr.bf16.mxu0 0
        %3788 = vmatmul.mubr.bf16.gmra.mrb[0].mxu0 %v3734
        %v3789 = vpop.f32.mrb[0].mxu0
        %v3790 = vadd.f32 0.0, %v3789
        %v3791 = vpop.f32.mrb[0].mxu0
        %v3792 = vpop.f32.mrb[0].mxu0
        %v3793 = vadd.f32 0.0, %v3792
        %v3794 = vpop.f32.mrb[0].mxu0
        %3795 = vmatprep.mubr.bf16.mxu0 0
        %3796 = vmatmul.mubr.bf16.gmra.mrb[0].mxu0 %v3737
        %v3797 = vpop.f32.mrb[0].mxu0
        %v3798 = vadd.f32 0.0, %v3797
        %v3799 = vpop.f32.mrb[0].mxu0
        %v3800 = vpop.f32.mrb[0].mxu0
        %v3801 = vadd.f32 0.0, %v3800
        %v3802 = vpop.f32.mrb[0].mxu0
        %3803 = vdwg.mxu0
        %3808 = vrot.lane.b32.xlu0 %v1724, 96
        %v3809 = vpop.permute.xlu0 %3808
        %3810 = vrot.lane.b32.xlu0 %v1725, 96
        %v3811 = vpop.permute.xlu0 %3810
        %3812 = vrot.lane.b32.xlu0 %v1726, 96
        %v3813 = vpop.permute.xlu0 %3812
        %3814 = vrot.lane.b32.xlu0 %v1727, 96
        %v3815 = vpop.permute.xlu0 %3814
        %v3821 = vsel %vm2089, %v3610, 0
        %v3824 = vsel %vm2089, %v3611, 0
        %v3827 = vsel %vm2089, %v3612, 0
        %v3830 = vsel %vm2089, %v3613, 0
        %3832 = vmatprep.subr.bf16.mxu0 0
        %3833 = vmatpush1.bf16.msra.mxu0 %v3809
        %3834 = vmatprep.subr.bf16.mxu0 0
        %3835 = vmatpush1.bf16.msra.mxu0 %v3811
        %3836 = vmatprep.subr.bf16.mxu0 0
        %3837 = vmatpush1.bf16.msra.mxu0 %v3813
        %3838 = vmatprep.subr.bf16.mxu0 0
        %3839 = vmatpush1.bf16.msra.mxu0 %v3815
        %3840 = vmatprep.subr.bf16.mxu0 0
        %3841 = vmatpush1.bf16.msra.mxu0 0
        %3842 = vmatprep.subr.bf16.mxu0 0
        %3843 = vmatpush1.bf16.msra.mxu0 0
        %3844 = vmatprep.subr.bf16.mxu0 0
        %3845 = vmatpush1.bf16.msra.mxu0 0
        %3846 = vmatprep.subr.bf16.mxu0 0
        %3847 = vmatpush1.bf16.msra.mxu0 0
        %3848 = vmatprep.subr.bf16.mxu0 0
        %3849 = vmatpush1.bf16.msra.mxu0 0
        %3850 = vmatprep.subr.bf16.mxu0 0
        %3851 = vmatpush1.bf16.msra.mxu0 0
        %3852 = vmatprep.subr.bf16.mxu0 0
        %3853 = vmatpush1.bf16.msra.mxu0 0
        %3854 = vmatprep.subr.bf16.mxu0 0
        %3855 = vmatpush1.bf16.msra.mxu0 0
        %3856 = vmatprep.subr.bf16.mxu0 0
        %3857 = vmatpush1.bf16.msra.mxu0 0
        %3858 = vmatprep.subr.bf16.mxu0 0
        %3859 = vmatpush1.bf16.msra.mxu0 0
        %3860 = vmatprep.subr.bf16.mxu0 0
        %3861 = vmatpush1.bf16.msra.mxu0 0
        %3862 = vmatprep.subr.bf16.mxu0 0
        %3863 = vmatpush1.bf16.msra.mxu0 0
        %3864 = vmatprep.mubr.bf16.mxu0 0
        %3865 = vmatmul.mubr.bf16.gmra.mrb[0].mxu0 %v3821
        %v3866 = vpop.f32.mrb[0].mxu0
        %v3867 = vadd.f32 0.0, %v3866
        %v3868 = vpop.f32.mrb[0].mxu0
        %v3869 = vpop.f32.mrb[0].mxu0
        %v3870 = vadd.f32 0.0, %v3869
        %v3871 = vpop.f32.mrb[0].mxu0
        %3872 = vmatprep.mubr.bf16.mxu0 0
        %3873 = vmatmul.mubr.bf16.gmra.mrb[0].mxu0 %v3824
        %v3874 = vpop.f32.mrb[0].mxu0
        %v3875 = vadd.f32 0.0, %v3874
        %v3876 = vpop.f32.mrb[0].mxu0
        %v3877 = vpop.f32.mrb[0].mxu0
        %v3878 = vadd.f32 0.0, %v3877
        %v3879 = vpop.f32.mrb[0].mxu0
        %3880 = vmatprep.mubr.bf16.mxu0 0
        %3881 = vmatmul.mubr.bf16.gmra.mrb[0].mxu0 %v3827
        %v3882 = vpop.f32.mrb[0].mxu0
        %v3883 = vadd.f32 0.0, %v3882
        %v3884 = vpop.f32.mrb[0].mxu0
        %v3885 = vpop.f32.mrb[0].mxu0
        %v3886 = vadd.f32 0.0, %v3885
        %v3887 = vpop.f32.mrb[0].mxu0
        %3888 = vmatprep.mubr.bf16.mxu0 0
        %3889 = vmatmul.mubr.bf16.gmra.mrb[0].mxu0 %v3830
        %v3890 = vpop.f32.mrb[0].mxu0
        %v3891 = vadd.f32 0.0, %v3890
        %v3892 = vpop.f32.mrb[0].mxu0
        %v3893 = vpop.f32.mrb[0].mxu0
        %v3894 = vadd.f32 0.0, %v3893
        %v3895 = vpop.f32.mrb[0].mxu0
        %3896 = vdwg.mxu0
        %3901 = vrot.lane.b32.xlu0 %v1728, 96
        %v3902 = vpop.permute.xlu0 %3901
        %3903 = vrot.lane.b32.xlu0 %v1729, 96
        %v3904 = vpop.permute.xlu0 %3903
        %3905 = vrot.lane.b32.xlu0 %v1730, 96
        %v3906 = vpop.permute.xlu0 %3905
        %3907 = vrot.lane.b32.xlu0 %v1731, 96
        %v3908 = vpop.permute.xlu0 %3907
        %v3914 = vsel %vm2089, %v3614, 0
        %v3917 = vsel %vm2089, %v3615, 0
        %v3920 = vsel %vm2089, %v3616, 0
        %v3923 = vsel %vm2089, %v3617, 0
        %3925 = vmatprep.subr.bf16.mxu0 0
        %3926 = vmatpush1.bf16.msra.mxu0 %v3902
        %3927 = vmatprep.subr.bf16.mxu0 0
        %3928 = vmatpush1.bf16.msra.mxu0 %v3904
        %3929 = vmatprep.subr.bf16.mxu0 0
        %3930 = vmatpush1.bf16.msra.mxu0 %v3906
        %3931 = vmatprep.subr.bf16.mxu0 0
        %3932 = vmatpush1.bf16.msra.mxu0 %v3908
        %3933 = vmatprep.subr.bf16.mxu0 0
        %3934 = vmatpush1.bf16.msra.mxu0 0
        %3935 = vmatprep.subr.bf16.mxu0 0
        %3936 = vmatpush1.bf16.msra.mxu0 0
        %3937 = vmatprep.subr.bf16.mxu0 0
        %3938 = vmatpush1.bf16.msra.mxu0 0
        %3939 = vmatprep.subr.bf16.mxu0 0
        %3940 = vmatpush1.bf16.msra.mxu0 0
        %3941 = vmatprep.subr.bf16.mxu0 0
        %3942 = vmatpush1.bf16.msra.mxu0 0
        %3943 = vmatprep.subr.bf16.mxu0 0
        %3944 = vmatpush1.bf16.msra.mxu0 0
        %3945 = vmatprep.subr.bf16.mxu0 0
        %3946 = vmatpush1.bf16.msra.mxu0 0
        %3947 = vmatprep.subr.bf16.mxu0 0
        %3948 = vmatpush1.bf16.msra.mxu0 0
        %3949 = vmatprep.subr.bf16.mxu0 0
        %3950 = vmatpush1.bf16.msra.mxu0 0
        %3951 = vmatprep.subr.bf16.mxu0 0
        %3952 = vmatpush1.bf16.msra.mxu0 0
        %3953 = vmatprep.subr.bf16.mxu0 0
        %3954 = vmatpush1.bf16.msra.mxu0 0
        %3955 = vmatprep.subr.bf16.mxu0 0
        %3956 = vmatpush1.bf16.msra.mxu0 0
        %3957 = vmatprep.mubr.bf16.mxu0 0
        %3958 = vmatmul.mubr.bf16.gmra.mrb[0].mxu0 %v3914
        %v3959 = vpop.f32.mrb[0].mxu0
        %v3960 = vadd.f32 0.0, %v3959
        %v3961 = vpop.f32.mrb[0].mxu0
        %v3962 = vpop.f32.mrb[0].mxu0
        %v3963 = vadd.f32 0.0, %v3962
        %v3964 = vpop.f32.mrb[0].mxu0
        %3965 = vmatprep.mubr.bf16.mxu0 0
        %3966 = vmatmul.mubr.bf16.gmra.mrb[0].mxu0 %v3917
        %v3967 = vpop.f32.mrb[0].mxu0
        %v3968 = vadd.f32 0.0, %v3967
        %v3969 = vpop.f32.mrb[0].mxu0
        %v3970 = vpop.f32.mrb[0].mxu0
        %v3971 = vadd.f32 0.0, %v3970
        %v3972 = vpop.f32.mrb[0].mxu0
        %3973 = vmatprep.mubr.bf16.mxu0 0
        %3974 = vmatmul.mubr.bf16.gmra.mrb[0].mxu0 %v3920
        %v3975 = vpop.f32.mrb[0].mxu0
        %v3976 = vadd.f32 0.0, %v3975
        %v3977 = vpop.f32.mrb[0].mxu0
        %v3978 = vpop.f32.mrb[0].mxu0
        %v3979 = vadd.f32 0.0, %v3978
        %v3980 = vpop.f32.mrb[0].mxu0
        %3981 = vmatprep.mubr.bf16.mxu0 0
        %3982 = vmatmul.mubr.bf16.gmra.mrb[0].mxu0 %v3923
        %v3983 = vpop.f32.mrb[0].mxu0
        %v3984 = vadd.f32 0.0, %v3983
        %v3985 = vpop.f32.mrb[0].mxu0
        %v3986 = vpop.f32.mrb[0].mxu0
        %v3987 = vadd.f32 0.0, %v3986
        %v3988 = vpop.f32.mrb[0].mxu0
        %3989 = vdwg.mxu0
        %4022 = vrot.lane.b32.xlu0 %v3681, 32
        %v4023 = vpop.permute.xlu0 %4022
        %4024 = vrot.lane.b32.xlu0 %v3684, 32
        %v4025 = vpop.permute.xlu0 %4024
        %4026 = vrot.lane.b32.xlu0 %v3689, 32
        %v4027 = vpop.permute.xlu0 %4026
        %4028 = vrot.lane.b32.xlu0 %v3692, 32
        %v4029 = vpop.permute.xlu0 %4028
        %4030 = vrot.lane.b32.xlu0 %v3697, 32
        %v4031 = vpop.permute.xlu0 %4030
        %4032 = vrot.lane.b32.xlu0 %v3700, 32
        %v4033 = vpop.permute.xlu0 %4032
        %4034 = vrot.lane.b32.xlu0 %v3705, 32
        %v4035 = vpop.permute.xlu0 %4034
        %4036 = vrot.lane.b32.xlu0 %v3708, 32
        %v4037 = vpop.permute.xlu0 %4036
        %4038 = vrot.lane.b32.xlu0 %v3774, 32
        %v4039 = vpop.permute.xlu0 %4038
        %4040 = vrot.lane.b32.xlu0 %v3777, 32
        %v4041 = vpop.permute.xlu0 %4040
        %4042 = vrot.lane.b32.xlu0 %v3782, 32
        %v4043 = vpop.permute.xlu0 %4042
        %4044 = vrot.lane.b32.xlu0 %v3785, 32
        %v4045 = vpop.permute.xlu0 %4044
        %4046 = vrot.lane.b32.xlu0 %v3790, 32
        %v4047 = vpop.permute.xlu0 %4046
        %4048 = vrot.lane.b32.xlu0 %v3793, 32
        %v4049 = vpop.permute.xlu0 %4048
        %4050 = vrot.lane.b32.xlu0 %v3798, 32
        %v4051 = vpop.permute.xlu0 %4050
        %4052 = vrot.lane.b32.xlu0 %v3801, 32
        %v4053 = vpop.permute.xlu0 %4052
        %4054 = vrot.lane.b32.xlu0 %v3867, 32
        %v4055 = vpop.permute.xlu0 %4054
        %4056 = vrot.lane.b32.xlu0 %v3870, 32
        %v4057 = vpop.permute.xlu0 %4056
        %4058 = vrot.lane.b32.xlu0 %v3875, 32
        %v4059 = vpop.permute.xlu0 %4058
        %4060 = vrot.lane.b32.xlu0 %v3878, 32
        %v4061 = vpop.permute.xlu0 %4060
        %4062 = vrot.lane.b32.xlu0 %v3883, 32
        %v4063 = vpop.permute.xlu0 %4062
        %4064 = vrot.lane.b32.xlu0 %v3886, 32
        %v4065 = vpop.permute.xlu0 %4064
        %4066 = vrot.lane.b32.xlu0 %v3891, 32
        %v4067 = vpop.permute.xlu0 %4066
        %4068 = vrot.lane.b32.xlu0 %v3894, 32
        %v4069 = vpop.permute.xlu0 %4068
        %4070 = vrot.lane.b32.xlu0 %v3960, 32
        %v4071 = vpop.permute.xlu0 %4070
        %4072 = vrot.lane.b32.xlu0 %v3963, 32
        %v4073 = vpop.permute.xlu0 %4072
        %4074 = vrot.lane.b32.xlu0 %v3968, 32
        %v4075 = vpop.permute.xlu0 %4074
        %4076 = vrot.lane.b32.xlu0 %v3971, 32
        %v4077 = vpop.permute.xlu0 %4076
        %4078 = vrot.lane.b32.xlu0 %v3976, 32
        %v4079 = vpop.permute.xlu0 %4078
        %4080 = vrot.lane.b32.xlu0 %v3979, 32
        %v4081 = vpop.permute.xlu0 %4080
        %4082 = vrot.lane.b32.xlu0 %v3984, 32
        %v4083 = vpop.permute.xlu0 %4082
        %4084 = vrot.lane.b32.xlu0 %v3987, 32
        %v4085 = vpop.permute.xlu0 %4084
        %vm4118 = vcmask 523520
        %4119 = vst.msk [vmem:[#allocation3] sm:$0xff] %vm4118, %v4023
        %4120 = vst.msk [vmem:[#allocation3 + $0x8] sm:$0xff] %vm4118, %v4025
        %4121 = vst.msk [vmem:[#allocation3 + $0x10] sm:$0xff] %vm4118, %v4027
        %4122 = vst.msk [vmem:[#allocation3 + $0x18] sm:$0xff] %vm4118, %v4029
        %4123 = vst.msk [vmem:[#allocation3 + $0x20] sm:$0xff] %vm4118, %v4031
        %4124 = vst.msk [vmem:[#allocation3 + $0x28] sm:$0xff] %vm4118, %v4033
        %4125 = vst.msk [vmem:[#allocation3 + $0x30] sm:$0xff] %vm4118, %v4035
        %4126 = vst.msk [vmem:[#allocation3 + $0x38] sm:$0xff] %vm4118, %v4037
        %4127 = vst.msk [vmem:[#allocation3 + $0x40] sm:$0xff] %vm4118, %v4039
        %4128 = vst.msk [vmem:[#allocation3 + $0x48] sm:$0xff] %vm4118, %v4041
        %4129 = vst.msk [vmem:[#allocation3 + $0x50] sm:$0xff] %vm4118, %v4043
        %4130 = vst.msk [vmem:[#allocation3 + $0x58] sm:$0xff] %vm4118, %v4045
        %4131 = vst.msk [vmem:[#allocation3 + $0x60] sm:$0xff] %vm4118, %v4047
        %4132 = vst.msk [vmem:[#allocation3 + $0x68] sm:$0xff] %vm4118, %v4049
        %4133 = vst.msk [vmem:[#allocation3 + $0x70] sm:$0xff] %vm4118, %v4051
        %4134 = vst.msk [vmem:[#allocation3 + $0x78] sm:$0xff] %vm4118, %v4053
        %4135 = vst.msk [vmem:[#allocation3 + $0x80] sm:$0xff] %vm4118, %v4055
        %4136 = vst.msk [vmem:[#allocation3 + $0x88] sm:$0xff] %vm4118, %v4057
        %4137 = vst.msk [vmem:[#allocation3 + $0x90] sm:$0xff] %vm4118, %v4059
        %4138 = vst.msk [vmem:[#allocation3 + $0x98] sm:$0xff] %vm4118, %v4061
        %4139 = vst.msk [vmem:[#allocation3 + $0xa0] sm:$0xff] %vm4118, %v4063
        %4140 = vst.msk [vmem:[#allocation3 + $0xa8] sm:$0xff] %vm4118, %v4065
        %4141 = vst.msk [vmem:[#allocation3 + $0xb0] sm:$0xff] %vm4118, %v4067
        %4142 = vst.msk [vmem:[#allocation3 + $0xb8] sm:$0xff] %vm4118, %v4069
        %4143 = vst.msk [vmem:[#allocation3 + $0xc0] sm:$0xff] %vm4118, %v4071
        %4144 = vst.msk [vmem:[#allocation3 + $0xc8] sm:$0xff] %vm4118, %v4073
        %4145 = vst.msk [vmem:[#allocation3 + $0xd0] sm:$0xff] %vm4118, %v4075
        %4146 = vst.msk [vmem:[#allocation3 + $0xd8] sm:$0xff] %vm4118, %v4077
        %4147 = vst.msk [vmem:[#allocation3 + $0xe0] sm:$0xff] %vm4118, %v4079
        %4148 = vst.msk [vmem:[#allocation3 + $0xe8] sm:$0xff] %vm4118, %v4081
        %4149 = vst.msk [vmem:[#allocation3 + $0xf0] sm:$0xff] %vm4118, %v4083
        %4150 = vst.msk [vmem:[#allocation3 + $0xf8] sm:$0xff] %vm4118, %v4085
        %4151 = vrot.lane.b32.xlu0 %v1684, 64
        %v4152 = vpop.permute.xlu0 %4151
        %4153 = vrot.lane.b32.xlu0 %v1685, 64
        %v4154 = vpop.permute.xlu0 %4153
        %4155 = vrot.lane.b32.xlu0 %v1686, 64
        %v4156 = vpop.permute.xlu0 %4155
        %4157 = vrot.lane.b32.xlu0 %v1687, 64
        %v4158 = vpop.permute.xlu0 %4157
        %4159 = vrot.lane.b32.xlu0 %v1700, 64
        %v4160 = vpop.permute.xlu0 %4159
        %4161 = vrot.lane.b32.xlu0 %v1701, 64
        %v4162 = vpop.permute.xlu0 %4161
        %4163 = vrot.lane.b32.xlu0 %v1702, 64
        %v4164 = vpop.permute.xlu0 %4163
        %4165 = vrot.lane.b32.xlu0 %v1703, 64
        %v4166 = vpop.permute.xlu0 %4165
        %v4168 = vsel %vm1732, %v4152, 0
        %v4171 = vsel %vm1732, %v4154, 0
        %v4174 = vsel %vm1732, %v4156, 0
        %v4177 = vsel %vm1732, %v4158, 0
        %v4180 = vsel %vm1732, %v4160, 0
        %v4183 = vsel %vm1732, %v4162, 0
        %v4186 = vsel %vm1732, %v4164, 0
        %v4189 = vsel %vm1732, %v4166, 0
        %4191 = vmatprep.subr.bf16.mxu0 0
        %4192 = vmatpush1.bf16.xpose.msra.mxu0 %v4180
        %4193 = vmatprep.subr.bf16.mxu0 0
        %4194 = vmatpush1.bf16.xpose.msra.mxu0 %v4183
        %4195 = vmatprep.subr.bf16.mxu0 0
        %4196 = vmatpush1.bf16.xpose.msra.mxu0 %v4186
        %4197 = vmatprep.subr.bf16.mxu0 0
        %4198 = vmatpush1.bf16.xpose.msra.mxu0 %v4189
        %4199 = vmatprep.subr.bf16.mxu0 0
        %4200 = vmatpush1.bf16.xpose.msra.mxu0 0
        %4201 = vmatprep.subr.bf16.mxu0 0
        %4202 = vmatpush1.bf16.xpose.msra.mxu0 0
        %4203 = vmatprep.subr.bf16.mxu0 0
        %4204 = vmatpush1.bf16.xpose.msra.mxu0 0
        %4205 = vmatprep.subr.bf16.mxu0 0
        %4206 = vmatpush1.bf16.xpose.msra.mxu0 0
        %4207 = vmatprep.subr.bf16.mxu0 0
        %4208 = vmatpush1.bf16.xpose.msra.mxu0 0
        %4209 = vmatprep.subr.bf16.mxu0 0
        %4210 = vmatpush1.bf16.xpose.msra.mxu0 0
        %4211 = vmatprep.subr.bf16.mxu0 0
        %4212 = vmatpush1.bf16.xpose.msra.mxu0 0
        %4213 = vmatprep.subr.bf16.mxu0 0
        %4214 = vmatpush1.bf16.xpose.msra.mxu0 0
        %4215 = vmatprep.subr.bf16.mxu0 0
        %4216 = vmatpush1.bf16.xpose.msra.mxu0 0
        %4217 = vmatprep.subr.bf16.mxu0 0
        %4218 = vmatpush1.bf16.xpose.msra.mxu0 0
        %4219 = vmatprep.subr.bf16.mxu0 0
        %4220 = vmatpush1.bf16.xpose.msra.mxu0 0
        %4221 = vmatprep.subr.bf16.mxu0 0
        %4222 = vmatpush1.bf16.xpose.msra.mxu0 0
        %4223 = vmatprep.mubr.bf16.mxu0 0
        %4224 = vmatmul.mubr.bf16.gmra.mrb[0].mxu0 %v4168
        %v4225 = vpop.f32.mrb[0].mxu0
        %v4226 = vadd.f32 %v1114, %v4225
        %v4227 = vpop.f32.mrb[0].mxu0
        %v4228 = vpop.f32.mrb[0].mxu0
        %v4229 = vadd.f32 %v1115, %v4228
        %v4230 = vpop.f32.mrb[0].mxu0
        %4231 = vmatprep.mubr.bf16.mxu0 0
        %4232 = vmatmul.mubr.bf16.gmra.mrb[0].mxu0 %v4171
        %v4233 = vpop.f32.mrb[0].mxu0
        %v4234 = vadd.f32 %v1116, %v4233
        %v4235 = vpop.f32.mrb[0].mxu0
        %v4236 = vpop.f32.mrb[0].mxu0
        %v4237 = vadd.f32 %v1117, %v4236
        %v4238 = vpop.f32.mrb[0].mxu0
        %4239 = vmatprep.mubr.bf16.mxu0 0
        %4240 = vmatmul.mubr.bf16.gmra.mrb[0].mxu0 %v4174
        %v4241 = vpop.f32.mrb[0].mxu0
        %v4242 = vadd.f32 %v1118, %v4241
        %v4243 = vpop.f32.mrb[0].mxu0
        %v4244 = vpop.f32.mrb[0].mxu0
        %v4245 = vadd.f32 %v1119, %v4244
        %v4246 = vpop.f32.mrb[0].mxu0
        %4247 = vmatprep.mubr.bf16.mxu0 0
        %4248 = vmatmul.mubr.bf16.gmra.mrb[0].mxu0 %v4177
        %v4249 = vpop.f32.mrb[0].mxu0
        %v4250 = vadd.f32 %v1120, %v4249
        %v4251 = vpop.f32.mrb[0].mxu0
        %v4252 = vpop.f32.mrb[0].mxu0
        %v4253 = vadd.f32 %v1121, %v4252
        %v4254 = vpop.f32.mrb[0].mxu0
        %4255 = vdwg.mxu0
        %4256 = vrot.lane.b32.xlu0 %v1688, 64
        %v4257 = vpop.permute.xlu0 %4256
        %4258 = vrot.lane.b32.xlu0 %v1689, 64
        %v4259 = vpop.permute.xlu0 %4258
        %4260 = vrot.lane.b32.xlu0 %v1690, 64
        %v4261 = vpop.permute.xlu0 %4260
        %4262 = vrot.lane.b32.xlu0 %v1691, 64
        %v4263 = vpop.permute.xlu0 %4262
        %4264 = vrot.lane.b32.xlu0 %v1704, 64
        %v4265 = vpop.permute.xlu0 %4264
        %4266 = vrot.lane.b32.xlu0 %v1705, 64
        %v4267 = vpop.permute.xlu0 %4266
        %4268 = vrot.lane.b32.xlu0 %v1706, 64
        %v4269 = vpop.permute.xlu0 %4268
        %4270 = vrot.lane.b32.xlu0 %v1707, 64
        %v4271 = vpop.permute.xlu0 %4270
        %v4273 = vsel %vm1732, %v4257, 0
        %v4276 = vsel %vm1732, %v4259, 0
        %v4279 = vsel %vm1732, %v4261, 0
        %v4282 = vsel %vm1732, %v4263, 0
        %v4285 = vsel %vm1732, %v4265, 0
        %v4288 = vsel %vm1732, %v4267, 0
        %v4291 = vsel %vm1732, %v4269, 0
        %v4294 = vsel %vm1732, %v4271, 0
        %4296 = vmatprep.subr.bf16.mxu0 0
        %4297 = vmatpush1.bf16.xpose.msra.mxu0 %v4285
        %4298 = vmatprep.subr.bf16.mxu0 0
        %4299 = vmatpush1.bf16.xpose.msra.mxu0 %v4288
        %4300 = vmatprep.subr.bf16.mxu0 0
        %4301 = vmatpush1.bf16.xpose.msra.mxu0 %v4291
        %4302 = vmatprep.subr.bf16.mxu0 0
        %4303 = vmatpush1.bf16.xpose.msra.mxu0 %v4294
        %4304 = vmatprep.subr.bf16.mxu0 0
        %4305 = vmatpush1.bf16.xpose.msra.mxu0 0
        %4306 = vmatprep.subr.bf16.mxu0 0
        %4307 = vmatpush1.bf16.xpose.msra.mxu0 0
        %4308 = vmatprep.subr.bf16.mxu0 0
        %4309 = vmatpush1.bf16.xpose.msra.mxu0 0
        %4310 = vmatprep.subr.bf16.mxu0 0
        %4311 = vmatpush1.bf16.xpose.msra.mxu0 0
        %4312 = vmatprep.subr.bf16.mxu0 0
        %4313 = vmatpush1.bf16.xpose.msra.mxu0 0
        %4314 = vmatprep.subr.bf16.mxu0 0
        %4315 = vmatpush1.bf16.xpose.msra.mxu0 0
        %4316 = vmatprep.subr.bf16.mxu0 0
        %4317 = vmatpush1.bf16.xpose.msra.mxu0 0
        %4318 = vmatprep.subr.bf16.mxu0 0
        %4319 = vmatpush1.bf16.xpose.msra.mxu0 0
        %4320 = vmatprep.subr.bf16.mxu0 0
        %4321 = vmatpush1.bf16.xpose.msra.mxu0 0
        %4322 = vmatprep.subr.bf16.mxu0 0
        %4323 = vmatpush1.bf16.xpose.msra.mxu0 0
        %4324 = vmatprep.subr.bf16.mxu0 0
        %4325 = vmatpush1.bf16.xpose.msra.mxu0 0
        %4326 = vmatprep.subr.bf16.mxu0 0
        %4327 = vmatpush1.bf16.xpose.msra.mxu0 0
        %4328 = vmatprep.mubr.bf16.mxu0 0
        %4329 = vmatmul.mubr.bf16.gmra.mrb[0].mxu0 %v4273
        %v4330 = vpop.f32.mrb[0].mxu0
        %v4331 = vadd.f32 %v1114, %v4330
        %v4332 = vpop.f32.mrb[0].mxu0
        %v4333 = vpop.f32.mrb[0].mxu0
        %v4334 = vadd.f32 %v1115, %v4333
        %v4335 = vpop.f32.mrb[0].mxu0
        %4336 = vmatprep.mubr.bf16.mxu0 0
        %4337 = vmatmul.mubr.bf16.gmra.mrb[0].mxu0 %v4276
        %v4338 = vpop.f32.mrb[0].mxu0
        %v4339 = vadd.f32 %v1116, %v4338
        %v4340 = vpop.f32.mrb[0].mxu0
        %v4341 = vpop.f32.mrb[0].mxu0
        %v4342 = vadd.f32 %v1117, %v4341
        %v4343 = vpop.f32.mrb[0].mxu0
        %4344 = vmatprep.mubr.bf16.mxu0 0
        %4345 = vmatmul.mubr.bf16.gmra.mrb[0].mxu0 %v4279
        %v4346 = vpop.f32.mrb[0].mxu0
        %v4347 = vadd.f32 %v1118, %v4346
        %v4348 = vpop.f32.mrb[0].mxu0
        %v4349 = vpop.f32.mrb[0].mxu0
        %v4350 = vadd.f32 %v1119, %v4349
        %v4351 = vpop.f32.mrb[0].mxu0
        %4352 = vmatprep.mubr.bf16.mxu0 0
        %4353 = vmatmul.mubr.bf16.gmra.mrb[0].mxu0 %v4282
        %v4354 = vpop.f32.mrb[0].mxu0
        %v4355 = vadd.f32 %v1120, %v4354
        %v4356 = vpop.f32.mrb[0].mxu0
        %v4357 = vpop.f32.mrb[0].mxu0
        %v4358 = vadd.f32 %v1121, %v4357
        %v4359 = vpop.f32.mrb[0].mxu0
        %4360 = vdwg.mxu0
        %4361 = vrot.lane.b32.xlu0 %v1692, 64
        %v4362 = vpop.permute.xlu0 %4361
        %4363 = vrot.lane.b32.xlu0 %v1693, 64
        %v4364 = vpop.permute.xlu0 %4363
        %4365 = vrot.lane.b32.xlu0 %v1694, 64
        %v4366 = vpop.permute.xlu0 %4365
        %4367 = vrot.lane.b32.xlu0 %v1695, 64
        %v4368 = vpop.permute.xlu0 %4367
        %4369 = vrot.lane.b32.xlu0 %v1708, 64
        %v4370 = vpop.permute.xlu0 %4369
        %4371 = vrot.lane.b32.xlu0 %v1709, 64
        %v4372 = vpop.permute.xlu0 %4371
        %4373 = vrot.lane.b32.xlu0 %v1710, 64
        %v4374 = vpop.permute.xlu0 %4373
        %4375 = vrot.lane.b32.xlu0 %v1711, 64
        %v4376 = vpop.permute.xlu0 %4375
        %v4378 = vsel %vm1732, %v4362, 0
        %v4381 = vsel %vm1732, %v4364, 0
        %v4384 = vsel %vm1732, %v4366, 0
        %v4387 = vsel %vm1732, %v4368, 0
        %v4390 = vsel %vm1732, %v4370, 0
        %v4393 = vsel %vm1732, %v4372, 0
        %v4396 = vsel %vm1732, %v4374, 0
        %v4399 = vsel %vm1732, %v4376, 0
        %4401 = vmatprep.subr.bf16.mxu0 0
        %4402 = vmatpush1.bf16.xpose.msra.mxu0 %v4390
        %4403 = vmatprep.subr.bf16.mxu0 0
        %4404 = vmatpush1.bf16.xpose.msra.mxu0 %v4393
        %4405 = vmatprep.subr.bf16.mxu0 0
        %4406 = vmatpush1.bf16.xpose.msra.mxu0 %v4396
        %4407 = vmatprep.subr.bf16.mxu0 0
        %4408 = vmatpush1.bf16.xpose.msra.mxu0 %v4399
        %4409 = vmatprep.subr.bf16.mxu0 0
        %4410 = vmatpush1.bf16.xpose.msra.mxu0 0
        %4411 = vmatprep.subr.bf16.mxu0 0
        %4412 = vmatpush1.bf16.xpose.msra.mxu0 0
        %4413 = vmatprep.subr.bf16.mxu0 0
        %4414 = vmatpush1.bf16.xpose.msra.mxu0 0
        %4415 = vmatprep.subr.bf16.mxu0 0
        %4416 = vmatpush1.bf16.xpose.msra.mxu0 0
        %4417 = vmatprep.subr.bf16.mxu0 0
        %4418 = vmatpush1.bf16.xpose.msra.mxu0 0
        %4419 = vmatprep.subr.bf16.mxu0 0
        %4420 = vmatpush1.bf16.xpose.msra.mxu0 0
        %4421 = vmatprep.subr.bf16.mxu0 0
        %4422 = vmatpush1.bf16.xpose.msra.mxu0 0
        %4423 = vmatprep.subr.bf16.mxu0 0
        %4424 = vmatpush1.bf16.xpose.msra.mxu0 0
        %4425 = vmatprep.subr.bf16.mxu0 0
        %4426 = vmatpush1.bf16.xpose.msra.mxu0 0
        %4427 = vmatprep.subr.bf16.mxu0 0
        %4428 = vmatpush1.bf16.xpose.msra.mxu0 0
        %4429 = vmatprep.subr.bf16.mxu0 0
        %4430 = vmatpush1.bf16.xpose.msra.mxu0 0
        %4431 = vmatprep.subr.bf16.mxu0 0
        %4432 = vmatpush1.bf16.xpose.msra.mxu0 0
        %4433 = vmatprep.mubr.bf16.mxu0 0
        %4434 = vmatmul.mubr.bf16.gmra.mrb[0].mxu0 %v4378
        %v4435 = vpop.f32.mrb[0].mxu0
        %v4436 = vadd.f32 %v1114, %v4435
        %v4437 = vpop.f32.mrb[0].mxu0
        %v4438 = vpop.f32.mrb[0].mxu0
        %v4439 = vadd.f32 %v1115, %v4438
        %v4440 = vpop.f32.mrb[0].mxu0
        %4441 = vmatprep.mubr.bf16.mxu0 0
        %4442 = vmatmul.mubr.bf16.gmra.mrb[0].mxu0 %v4381
        %v4443 = vpop.f32.mrb[0].mxu0
        %v4444 = vadd.f32 %v1116, %v4443
        %v4445 = vpop.f32.mrb[0].mxu0
        %v4446 = vpop.f32.mrb[0].mxu0
        %v4447 = vadd.f32 %v1117, %v4446
        %v4448 = vpop.f32.mrb[0].mxu0
        %4449 = vmatprep.mubr.bf16.mxu0 0
        %4450 = vmatmul.mubr.bf16.gmra.mrb[0].mxu0 %v4384
        %v4451 = vpop.f32.mrb[0].mxu0
        %v4452 = vadd.f32 %v1118, %v4451
        %v4453 = vpop.f32.mrb[0].mxu0
        %v4454 = vpop.f32.mrb[0].mxu0
        %v4455 = vadd.f32 %v1119, %v4454
        %v4456 = vpop.f32.mrb[0].mxu0
        %4457 = vmatprep.mubr.bf16.mxu0 0
        %4458 = vmatmul.mubr.bf16.gmra.mrb[0].mxu0 %v4387
        %v4459 = vpop.f32.mrb[0].mxu0
        %v4460 = vadd.f32 %v1120, %v4459
        %v4461 = vpop.f32.mrb[0].mxu0
        %v4462 = vpop.f32.mrb[0].mxu0
        %v4463 = vadd.f32 %v1121, %v4462
        %v4464 = vpop.f32.mrb[0].mxu0
        %4465 = vdwg.mxu0
        %4466 = vrot.lane.b32.xlu0 %v1696, 64
        %v4467 = vpop.permute.xlu0 %4466
        %4468 = vrot.lane.b32.xlu0 %v1697, 64
        %v4469 = vpop.permute.xlu0 %4468
        %4470 = vrot.lane.b32.xlu0 %v1698, 64
        %v4471 = vpop.permute.xlu0 %4470
        %4472 = vrot.lane.b32.xlu0 %v1699, 64
        %v4473 = vpop.permute.xlu0 %4472
        %4474 = vrot.lane.b32.xlu0 %v1712, 64
        %v4475 = vpop.permute.xlu0 %4474
        %4476 = vrot.lane.b32.xlu0 %v1713, 64
        %v4477 = vpop.permute.xlu0 %4476
        %4478 = vrot.lane.b32.xlu0 %v1714, 64
        %v4479 = vpop.permute.xlu0 %4478
        %4480 = vrot.lane.b32.xlu0 %v1715, 64
        %v4481 = vpop.permute.xlu0 %4480
        %v4483 = vsel %vm1732, %v4467, 0
        %v4486 = vsel %vm1732, %v4469, 0
        %v4489 = vsel %vm1732, %v4471, 0
        %v4492 = vsel %vm1732, %v4473, 0
        %v4495 = vsel %vm1732, %v4475, 0
        %v4498 = vsel %vm1732, %v4477, 0
        %v4501 = vsel %vm1732, %v4479, 0
        %v4504 = vsel %vm1732, %v4481, 0
        %4506 = vmatprep.subr.bf16.mxu0 0
        %4507 = vmatpush1.bf16.xpose.msra.mxu0 %v4495
        %4508 = vmatprep.subr.bf16.mxu0 0
        %4509 = vmatpush1.bf16.xpose.msra.mxu0 %v4498
        %4510 = vmatprep.subr.bf16.mxu0 0
        %4511 = vmatpush1.bf16.xpose.msra.mxu0 %v4501
        %4512 = vmatprep.subr.bf16.mxu0 0
        %4513 = vmatpush1.bf16.xpose.msra.mxu0 %v4504
        %4514 = vmatprep.subr.bf16.mxu0 0
        %4515 = vmatpush1.bf16.xpose.msra.mxu0 0
        %4516 = vmatprep.subr.bf16.mxu0 0
        %4517 = vmatpush1.bf16.xpose.msra.mxu0 0
        %4518 = vmatprep.subr.bf16.mxu0 0
        %4519 = vmatpush1.bf16.xpose.msra.mxu0 0
        %4520 = vmatprep.subr.bf16.mxu0 0
        %4521 = vmatpush1.bf16.xpose.msra.mxu0 0
        %4522 = vmatprep.subr.bf16.mxu0 0
        %4523 = vmatpush1.bf16.xpose.msra.mxu0 0
        %4524 = vmatprep.subr.bf16.mxu0 0
        %4525 = vmatpush1.bf16.xpose.msra.mxu0 0
        %4526 = vmatprep.subr.bf16.mxu0 0
        %4527 = vmatpush1.bf16.xpose.msra.mxu0 0
        %4528 = vmatprep.subr.bf16.mxu0 0
        %4529 = vmatpush1.bf16.xpose.msra.mxu0 0
        %4530 = vmatprep.subr.bf16.mxu0 0
        %4531 = vmatpush1.bf16.xpose.msra.mxu0 0
        %4532 = vmatprep.subr.bf16.mxu0 0
        %4533 = vmatpush1.bf16.xpose.msra.mxu0 0
        %4534 = vmatprep.subr.bf16.mxu0 0
        %4535 = vmatpush1.bf16.xpose.msra.mxu0 0
        %4536 = vmatprep.subr.bf16.mxu0 0
        %4537 = vmatpush1.bf16.xpose.msra.mxu0 0
        %4538 = vmatprep.mubr.bf16.mxu0 0
        %4539 = vmatmul.mubr.bf16.gmra.mrb[0].mxu0 %v4483
        %v4540 = vpop.f32.mrb[0].mxu0
        %v4541 = vadd.f32 %v1114, %v4540
        %v4542 = vpop.f32.mrb[0].mxu0
        %v4543 = vpop.f32.mrb[0].mxu0
        %v4544 = vadd.f32 %v1115, %v4543
        %v4545 = vpop.f32.mrb[0].mxu0
        %4546 = vmatprep.mubr.bf16.mxu0 0
        %4547 = vmatmul.mubr.bf16.gmra.mrb[0].mxu0 %v4486
        %v4548 = vpop.f32.mrb[0].mxu0
        %v4549 = vadd.f32 %v1116, %v4548
        %v4550 = vpop.f32.mrb[0].mxu0
        %v4551 = vpop.f32.mrb[0].mxu0
        %v4552 = vadd.f32 %v1117, %v4551
        %v4553 = vpop.f32.mrb[0].mxu0
        %4554 = vmatprep.mubr.bf16.mxu0 0
        %4555 = vmatmul.mubr.bf16.gmra.mrb[0].mxu0 %v4489
        %v4556 = vpop.f32.mrb[0].mxu0
        %v4557 = vadd.f32 %v1118, %v4556
        %v4558 = vpop.f32.mrb[0].mxu0
        %v4559 = vpop.f32.mrb[0].mxu0
        %v4560 = vadd.f32 %v1119, %v4559
        %v4561 = vpop.f32.mrb[0].mxu0
        %4562 = vmatprep.mubr.bf16.mxu0 0
        %4563 = vmatmul.mubr.bf16.gmra.mrb[0].mxu0 %v4492
        %v4564 = vpop.f32.mrb[0].mxu0
        %v4565 = vadd.f32 %v1120, %v4564
        %v4566 = vpop.f32.mrb[0].mxu0
        %v4567 = vpop.f32.mrb[0].mxu0
        %v4568 = vadd.f32 %v1121, %v4567
        %v4569 = vpop.f32.mrb[0].mxu0
        %4570 = vdwg.mxu0
        %v4571 = vsel %vm2089, %v4226, -inf
        %4572 = vmax.xlane.f32.xlu0 %v4571
        %v4573 = vpop.xlane.xlu0 %4572
        %v4574 = vsel %vm2089, %v4229, -inf
        %4575 = vmax.xlane.f32.xlu0 %v4574
        %v4576 = vpop.xlane.xlu0 %4575
        %v4577 = vsel %vm2089, %v4234, -inf
        %4578 = vmax.xlane.f32.xlu0 %v4577
        %v4579 = vpop.xlane.xlu0 %4578
        %v4580 = vsel %vm2089, %v4237, -inf
        %4581 = vmax.xlane.f32.xlu0 %v4580
        %v4582 = vpop.xlane.xlu0 %4581
        %v4583 = vsel %vm2089, %v4242, -inf
        %4584 = vmax.xlane.f32.xlu0 %v4583
        %v4585 = vpop.xlane.xlu0 %4584
        %v4586 = vsel %vm2089, %v4245, -inf
        %4587 = vmax.xlane.f32.xlu0 %v4586
        %v4588 = vpop.xlane.xlu0 %4587
        %v4589 = vsel %vm2089, %v4250, -inf
        %4590 = vmax.xlane.f32.xlu0 %v4589
        %v4591 = vpop.xlane.xlu0 %4590
        %v4592 = vsel %vm2089, %v4253, -inf
        %4593 = vmax.xlane.f32.xlu0 %v4592
        %v4594 = vpop.xlane.xlu0 %4593
        %v4595 = vsel %vm2089, %v4331, -inf
        %4596 = vmax.xlane.f32.xlu0 %v4595
        %v4597 = vpop.xlane.xlu0 %4596
        %v4598 = vsel %vm2089, %v4334, -inf
        %4599 = vmax.xlane.f32.xlu0 %v4598
        %v4600 = vpop.xlane.xlu0 %4599
        %v4601 = vsel %vm2089, %v4339, -inf
        %4602 = vmax.xlane.f32.xlu0 %v4601
        %v4603 = vpop.xlane.xlu0 %4602
        %v4604 = vsel %vm2089, %v4342, -inf
        %4605 = vmax.xlane.f32.xlu0 %v4604
        %v4606 = vpop.xlane.xlu0 %4605
        %v4607 = vsel %vm2089, %v4347, -inf
        %4608 = vmax.xlane.f32.xlu0 %v4607
        %v4609 = vpop.xlane.xlu0 %4608
        %v4610 = vsel %vm2089, %v4350, -inf
        %4611 = vmax.xlane.f32.xlu0 %v4610
        %v4612 = vpop.xlane.xlu0 %4611
        %v4613 = vsel %vm2089, %v4355, -inf
        %4614 = vmax.xlane.f32.xlu0 %v4613
        %v4615 = vpop.xlane.xlu0 %4614
        %v4616 = vsel %vm2089, %v4358, -inf
        %4617 = vmax.xlane.f32.xlu0 %v4616
        %v4618 = vpop.xlane.xlu0 %4617
        %v4619 = vsel %vm2089, %v4436, -inf
        %4620 = vmax.xlane.f32.xlu0 %v4619
        %v4621 = vpop.xlane.xlu0 %4620
        %v4622 = vsel %vm2089, %v4439, -inf
        %4623 = vmax.xlane.f32.xlu0 %v4622
        %v4624 = vpop.xlane.xlu0 %4623
        %v4625 = vsel %vm2089, %v4444, -inf
        %4626 = vmax.xlane.f32.xlu0 %v4625
        %v4627 = vpop.xlane.xlu0 %4626
        %v4628 = vsel %vm2089, %v4447, -inf
        %4629 = vmax.xlane.f32.xlu0 %v4628
        %v4630 = vpop.xlane.xlu0 %4629
        %v4631 = vsel %vm2089, %v4452, -inf
        %4632 = vmax.xlane.f32.xlu0 %v4631
        %v4633 = vpop.xlane.xlu0 %4632
        %v4634 = vsel %vm2089, %v4455, -inf
        %4635 = vmax.xlane.f32.xlu0 %v4634
        %v4636 = vpop.xlane.xlu0 %4635
        %v4637 = vsel %vm2089, %v4460, -inf
        %4638 = vmax.xlane.f32.xlu0 %v4637
        %v4639 = vpop.xlane.xlu0 %4638
        %v4640 = vsel %vm2089, %v4463, -inf
        %4641 = vmax.xlane.f32.xlu0 %v4640
        %v4642 = vpop.xlane.xlu0 %4641
        %v4643 = vsel %vm2089, %v4541, -inf
        %4644 = vmax.xlane.f32.xlu0 %v4643
        %v4645 = vpop.xlane.xlu0 %4644
        %v4646 = vsel %vm2089, %v4544, -inf
        %4647 = vmax.xlane.f32.xlu0 %v4646
        %v4648 = vpop.xlane.xlu0 %4647
        %v4649 = vsel %vm2089, %v4549, -inf
        %4650 = vmax.xlane.f32.xlu0 %v4649
        %v4651 = vpop.xlane.xlu0 %4650
        %v4652 = vsel %vm2089, %v4552, -inf
        %4653 = vmax.xlane.f32.xlu0 %v4652
        %v4654 = vpop.xlane.xlu0 %4653
        %v4655 = vsel %vm2089, %v4557, -inf
        %4656 = vmax.xlane.f32.xlu0 %v4655
        %v4657 = vpop.xlane.xlu0 %4656
        %v4658 = vsel %vm2089, %v4560, -inf
        %4659 = vmax.xlane.f32.xlu0 %v4658
        %v4660 = vpop.xlane.xlu0 %4659
        %v4661 = vsel %vm2089, %v4565, -inf
        %4662 = vmax.xlane.f32.xlu0 %v4661
        %v4663 = vpop.xlane.xlu0 %4662
        %v4664 = vsel %vm2089, %v4568, -inf
        %4665 = vmax.xlane.f32.xlu0 %v4664
        %v4666 = vpop.xlane.xlu0 %4665
        %v4667 = vsub.f32 %v4226, %v4573
        %v4668 = vsub.f32 %v4229, %v4576
        %v4669 = vsub.f32 %v4234, %v4579
        %v4670 = vsub.f32 %v4237, %v4582
        %v4671 = vsub.f32 %v4242, %v4585
        %v4672 = vsub.f32 %v4245, %v4588
        %v4673 = vsub.f32 %v4250, %v4591
        %v4674 = vsub.f32 %v4253, %v4594
        %v4675 = vsub.f32 %v4331, %v4597
        %v4676 = vsub.f32 %v4334, %v4600
        %v4677 = vsub.f32 %v4339, %v4603
        %v4678 = vsub.f32 %v4342, %v4606
        %v4679 = vsub.f32 %v4347, %v4609
        %v4680 = vsub.f32 %v4350, %v4612
        %v4681 = vsub.f32 %v4355, %v4615
        %v4682 = vsub.f32 %v4358, %v4618
        %v4683 = vsub.f32 %v4436, %v4621
        %v4684 = vsub.f32 %v4439, %v4624
        %v4685 = vsub.f32 %v4444, %v4627
        %v4686 = vsub.f32 %v4447, %v4630
        %v4687 = vsub.f32 %v4452, %v4633
        %v4688 = vsub.f32 %v4455, %v4636
        %v4689 = vsub.f32 %v4460, %v4639
        %v4690 = vsub.f32 %v4463, %v4642
        %v4691 = vsub.f32 %v4541, %v4645
        %v4692 = vsub.f32 %v4544, %v4648
        %v4693 = vsub.f32 %v4549, %v4651
        %v4694 = vsub.f32 %v4552, %v4654
        %v4695 = vsub.f32 %v4557, %v4657
        %v4696 = vsub.f32 %v4560, %v4660
        %v4697 = vsub.f32 %v4565, %v4663
        %v4698 = vsub.f32 %v4568, %v4666
        %v4699 = vmul.f32 %v4667, 1.442695
        %v4700 = vpow.pop %v4699
        %v4701 = vmul.f32 %v4668, 1.442695
        %v4702 = vpow.pop %v4701
        %v4703 = vmul.f32 %v4669, 1.442695
        %v4704 = vpow.pop %v4703
        %v4705 = vmul.f32 %v4670, 1.442695
        %v4706 = vpow.pop %v4705
        %v4707 = vmul.f32 %v4671, 1.442695
        %v4708 = vpow.pop %v4707
        %v4709 = vmul.f32 %v4672, 1.442695
        %v4710 = vpow.pop %v4709
        %v4711 = vmul.f32 %v4673, 1.442695
        %v4712 = vpow.pop %v4711
        %v4713 = vmul.f32 %v4674, 1.442695
        %v4714 = vpow.pop %v4713
        %v4715 = vmul.f32 %v4675, 1.442695
        %v4716 = vpow.pop %v4715
        %v4717 = vmul.f32 %v4676, 1.442695
        %v4718 = vpow.pop %v4717
        %v4719 = vmul.f32 %v4677, 1.442695
        %v4720 = vpow.pop %v4719
        %v4721 = vmul.f32 %v4678, 1.442695
        %v4722 = vpow.pop %v4721
        %v4723 = vmul.f32 %v4679, 1.442695
        %v4724 = vpow.pop %v4723
        %v4725 = vmul.f32 %v4680, 1.442695
        %v4726 = vpow.pop %v4725
        %v4727 = vmul.f32 %v4681, 1.442695
        %v4728 = vpow.pop %v4727
        %v4729 = vmul.f32 %v4682, 1.442695
        %v4730 = vpow.pop %v4729
        %v4731 = vmul.f32 %v4683, 1.442695
        %v4732 = vpow.pop %v4731
        %v4733 = vmul.f32 %v4684, 1.442695
        %v4734 = vpow.pop %v4733
        %v4735 = vmul.f32 %v4685, 1.442695
        %v4736 = vpow.pop %v4735
        %v4737 = vmul.f32 %v4686, 1.442695
        %v4738 = vpow.pop %v4737
        %v4739 = vmul.f32 %v4687, 1.442695
        %v4740 = vpow.pop %v4739
        %v4741 = vmul.f32 %v4688, 1.442695
        %v4742 = vpow.pop %v4741
        %v4743 = vmul.f32 %v4689, 1.442695
        %v4744 = vpow.pop %v4743
        %v4745 = vmul.f32 %v4690, 1.442695
        %v4746 = vpow.pop %v4745
        %v4747 = vmul.f32 %v4691, 1.442695
        %v4748 = vpow.pop %v4747
        %v4749 = vmul.f32 %v4692, 1.442695
        %v4750 = vpow.pop %v4749
        %v4751 = vmul.f32 %v4693, 1.442695
        %v4752 = vpow.pop %v4751
        %v4753 = vmul.f32 %v4694, 1.442695
        %v4754 = vpow.pop %v4753
        %v4755 = vmul.f32 %v4695, 1.442695
        %v4756 = vpow.pop %v4755
        %v4757 = vmul.f32 %v4696, 1.442695
        %v4758 = vpow.pop %v4757
        %v4759 = vmul.f32 %v4697, 1.442695
        %v4760 = vpow.pop %v4759
        %v4761 = vmul.f32 %v4698, 1.442695
        %v4762 = vpow.pop %v4761
        %v4763 = vsel %vm2089, %v4700, 0.0
        %4764 = vadd.xlane.f32.xlu0 %v4763
        %v4765 = vpop.xlane.xlu0 %4764
        %v4766 = vsel %vm2089, %v4702, 0.0
        %4767 = vadd.xlane.f32.xlu0 %v4766
        %v4768 = vpop.xlane.xlu0 %4767
        %v4769 = vsel %vm2089, %v4704, 0.0
        %4770 = vadd.xlane.f32.xlu0 %v4769
        %v4771 = vpop.xlane.xlu0 %4770
        %v4772 = vsel %vm2089, %v4706, 0.0
        %4773 = vadd.xlane.f32.xlu0 %v4772
        %v4774 = vpop.xlane.xlu0 %4773
        %v4775 = vsel %vm2089, %v4708, 0.0
        %4776 = vadd.xlane.f32.xlu0 %v4775
        %v4777 = vpop.xlane.xlu0 %4776
        %v4778 = vsel %vm2089, %v4710, 0.0
        %4779 = vadd.xlane.f32.xlu0 %v4778
        %v4780 = vpop.xlane.xlu0 %4779
        %v4781 = vsel %vm2089, %v4712, 0.0
        %4782 = vadd.xlane.f32.xlu0 %v4781
        %v4783 = vpop.xlane.xlu0 %4782
        %v4784 = vsel %vm2089, %v4714, 0.0
        %4785 = vadd.xlane.f32.xlu0 %v4784
        %v4786 = vpop.xlane.xlu0 %4785
        %v4787 = vsel %vm2089, %v4716, 0.0
        %4788 = vadd.xlane.f32.xlu0 %v4787
        %v4789 = vpop.xlane.xlu0 %4788
        %v4790 = vsel %vm2089, %v4718, 0.0
        %4791 = vadd.xlane.f32.xlu0 %v4790
        %v4792 = vpop.xlane.xlu0 %4791
        %v4793 = vsel %vm2089, %v4720, 0.0
        %4794 = vadd.xlane.f32.xlu0 %v4793
        %v4795 = vpop.xlane.xlu0 %4794
        %v4796 = vsel %vm2089, %v4722, 0.0
        %4797 = vadd.xlane.f32.xlu0 %v4796
        %v4798 = vpop.xlane.xlu0 %4797
        %v4799 = vsel %vm2089, %v4724, 0.0
        %4800 = vadd.xlane.f32.xlu0 %v4799
        %v4801 = vpop.xlane.xlu0 %4800
        %v4802 = vsel %vm2089, %v4726, 0.0
        %4803 = vadd.xlane.f32.xlu0 %v4802
        %v4804 = vpop.xlane.xlu0 %4803
        %v4805 = vsel %vm2089, %v4728, 0.0
        %4806 = vadd.xlane.f32.xlu0 %v4805
        %v4807 = vpop.xlane.xlu0 %4806
        %v4808 = vsel %vm2089, %v4730, 0.0
        %4809 = vadd.xlane.f32.xlu0 %v4808
        %v4810 = vpop.xlane.xlu0 %4809
        %v4811 = vsel %vm2089, %v4732, 0.0
        %4812 = vadd.xlane.f32.xlu0 %v4811
        %v4813 = vpop.xlane.xlu0 %4812
        %v4814 = vsel %vm2089, %v4734, 0.0
        %4815 = vadd.xlane.f32.xlu0 %v4814
        %v4816 = vpop.xlane.xlu0 %4815
        %v4817 = vsel %vm2089, %v4736, 0.0
        %4818 = vadd.xlane.f32.xlu0 %v4817
        %v4819 = vpop.xlane.xlu0 %4818
        %v4820 = vsel %vm2089, %v4738, 0.0
        %4821 = vadd.xlane.f32.xlu0 %v4820
        %v4822 = vpop.xlane.xlu0 %4821
        %v4823 = vsel %vm2089, %v4740, 0.0
        %4824 = vadd.xlane.f32.xlu0 %v4823
        %v4825 = vpop.xlane.xlu0 %4824
        %v4826 = vsel %vm2089, %v4742, 0.0
        %4827 = vadd.xlane.f32.xlu0 %v4826
        %v4828 = vpop.xlane.xlu0 %4827
        %v4829 = vsel %vm2089, %v4744, 0.0
        %4830 = vadd.xlane.f32.xlu0 %v4829
        %v4831 = vpop.xlane.xlu0 %4830
        %v4832 = vsel %vm2089, %v4746, 0.0
        %4833 = vadd.xlane.f32.xlu0 %v4832
        %v4834 = vpop.xlane.xlu0 %4833
        %v4835 = vsel %vm2089, %v4748, 0.0
        %4836 = vadd.xlane.f32.xlu0 %v4835
        %v4837 = vpop.xlane.xlu0 %4836
        %v4838 = vsel %vm2089, %v4750, 0.0
        %4839 = vadd.xlane.f32.xlu0 %v4838
        %v4840 = vpop.xlane.xlu0 %4839
        %v4841 = vsel %vm2089, %v4752, 0.0
        %4842 = vadd.xlane.f32.xlu0 %v4841
        %v4843 = vpop.xlane.xlu0 %4842
        %v4844 = vsel %vm2089, %v4754, 0.0
        %4845 = vadd.xlane.f32.xlu0 %v4844
        %v4846 = vpop.xlane.xlu0 %4845
        %v4847 = vsel %vm2089, %v4756, 0.0
        %4848 = vadd.xlane.f32.xlu0 %v4847
        %v4849 = vpop.xlane.xlu0 %4848
        %v4850 = vsel %vm2089, %v4758, 0.0
        %4851 = vadd.xlane.f32.xlu0 %v4850
        %v4852 = vpop.xlane.xlu0 %4851
        %v4853 = vsel %vm2089, %v4760, 0.0
        %4854 = vadd.xlane.f32.xlu0 %v4853
        %v4855 = vpop.xlane.xlu0 %4854
        %v4856 = vsel %vm2089, %v4762, 0.0
        %4857 = vadd.xlane.f32.xlu0 %v4856
        %v4858 = vpop.xlane.xlu0 %4857
        %v4859 = vrcp.pop %v4765
        %v4860 = vrcp.pop %v4768
        %v4861 = vrcp.pop %v4771
        %v4862 = vrcp.pop %v4774
        %v4863 = vrcp.pop %v4777
        %v4864 = vrcp.pop %v4780
        %v4865 = vrcp.pop %v4783
        %v4866 = vrcp.pop %v4786
        %v4867 = vrcp.pop %v4789
        %v4868 = vrcp.pop %v4792
        %v4869 = vrcp.pop %v4795
        %v4870 = vrcp.pop %v4798
        %v4871 = vrcp.pop %v4801
        %v4872 = vrcp.pop %v4804
        %v4873 = vrcp.pop %v4807
        %v4874 = vrcp.pop %v4810
        %v4875 = vrcp.pop %v4813
        %v4876 = vrcp.pop %v4816
        %v4877 = vrcp.pop %v4819
        %v4878 = vrcp.pop %v4822
        %v4879 = vrcp.pop %v4825
        %v4880 = vrcp.pop %v4828
        %v4881 = vrcp.pop %v4831
        %v4882 = vrcp.pop %v4834
        %v4883 = vrcp.pop %v4837
        %v4884 = vrcp.pop %v4840
        %v4885 = vrcp.pop %v4843
        %v4886 = vrcp.pop %v4846
        %v4887 = vrcp.pop %v4849
        %v4888 = vrcp.pop %v4852
        %v4889 = vrcp.pop %v4855
        %v4890 = vrcp.pop %v4858
        %v4891 = vmul.f32 %v4700, %v4859
        %v4892 = vmul.f32 %v4702, %v4860
        %v4893 = vmul.f32 %v4704, %v4861
        %v4894 = vmul.f32 %v4706, %v4862
        %v4895 = vmul.f32 %v4708, %v4863
        %v4896 = vmul.f32 %v4710, %v4864
        %v4897 = vmul.f32 %v4712, %v4865
        %v4898 = vmul.f32 %v4714, %v4866
        %v4899 = vmul.f32 %v4716, %v4867
        %v4900 = vmul.f32 %v4718, %v4868
        %v4901 = vmul.f32 %v4720, %v4869
        %v4902 = vmul.f32 %v4722, %v4870
        %v4903 = vmul.f32 %v4724, %v4871
        %v4904 = vmul.f32 %v4726, %v4872
        %v4905 = vmul.f32 %v4728, %v4873
        %v4906 = vmul.f32 %v4730, %v4874
        %v4907 = vmul.f32 %v4732, %v4875
        %v4908 = vmul.f32 %v4734, %v4876
        %v4909 = vmul.f32 %v4736, %v4877
        %v4910 = vmul.f32 %v4738, %v4878
        %v4911 = vmul.f32 %v4740, %v4879
        %v4912 = vmul.f32 %v4742, %v4880
        %v4913 = vmul.f32 %v4744, %v4881
        %v4914 = vmul.f32 %v4746, %v4882
        %v4915 = vmul.f32 %v4748, %v4883
        %v4916 = vmul.f32 %v4750, %v4884
        %v4917 = vmul.f32 %v4752, %v4885
        %v4918 = vmul.f32 %v4754, %v4886
        %v4919 = vmul.f32 %v4756, %v4887
        %v4920 = vmul.f32 %v4758, %v4888
        %v4921 = vmul.f32 %v4760, %v4889
        %v4922 = vmul.f32 %v4762, %v4890
        %v4923 = vpack.c.bf16 %v4892, %v4891
        %v4924 = vpack.c.bf16 %v4894, %v4893
        %v4925 = vpack.c.bf16 %v4896, %v4895
        %v4926 = vpack.c.bf16 %v4898, %v4897
        %v4927 = vpack.c.bf16 %v4900, %v4899
        %v4928 = vpack.c.bf16 %v4902, %v4901
        %v4929 = vpack.c.bf16 %v4904, %v4903
        %v4930 = vpack.c.bf16 %v4906, %v4905
        %v4931 = vpack.c.bf16 %v4908, %v4907
        %v4932 = vpack.c.bf16 %v4910, %v4909
        %v4933 = vpack.c.bf16 %v4912, %v4911
        %v4934 = vpack.c.bf16 %v4914, %v4913
        %v4935 = vpack.c.bf16 %v4916, %v4915
        %v4936 = vpack.c.bf16 %v4918, %v4917
        %v4937 = vpack.c.bf16 %v4920, %v4919
        %v4938 = vpack.c.bf16 %v4922, %v4921
        %4939 = vrot.lane.b32.xlu0 %v1716, 64
        %v4940 = vpop.permute.xlu0 %4939
        %4941 = vrot.lane.b32.xlu0 %v1717, 64
        %v4942 = vpop.permute.xlu0 %4941
        %4943 = vrot.lane.b32.xlu0 %v1718, 64
        %v4944 = vpop.permute.xlu0 %4943
        %4945 = vrot.lane.b32.xlu0 %v1719, 64
        %v4946 = vpop.permute.xlu0 %4945
        %v4952 = vsel %vm2089, %v4923, 0
        %v4955 = vsel %vm2089, %v4924, 0
        %v4958 = vsel %vm2089, %v4925, 0
        %v4961 = vsel %vm2089, %v4926, 0
        %4963 = vmatprep.subr.bf16.mxu0 0
        %4964 = vmatpush1.bf16.msra.mxu0 %v4940
        %4965 = vmatprep.subr.bf16.mxu0 0
        %4966 = vmatpush1.bf16.msra.mxu0 %v4942
        %4967 = vmatprep.subr.bf16.mxu0 0
        %4968 = vmatpush1.bf16.msra.mxu0 %v4944
        %4969 = vmatprep.subr.bf16.mxu0 0
        %4970 = vmatpush1.bf16.msra.mxu0 %v4946
        %4971 = vmatprep.subr.bf16.mxu0 0
        %4972 = vmatpush1.bf16.msra.mxu0 0
        %4973 = vmatprep.subr.bf16.mxu0 0
        %4974 = vmatpush1.bf16.msra.mxu0 0
        %4975 = vmatprep.subr.bf16.mxu0 0
        %4976 = vmatpush1.bf16.msra.mxu0 0
        %4977 = vmatprep.subr.bf16.mxu0 0
        %4978 = vmatpush1.bf16.msra.mxu0 0
        %4979 = vmatprep.subr.bf16.mxu0 0
        %4980 = vmatpush1.bf16.msra.mxu0 0
        %4981 = vmatprep.subr.bf16.mxu0 0
        %4982 = vmatpush1.bf16.msra.mxu0 0
        %4983 = vmatprep.subr.bf16.mxu0 0
        %4984 = vmatpush1.bf16.msra.mxu0 0
        %4985 = vmatprep.subr.bf16.mxu0 0
        %4986 = vmatpush1.bf16.msra.mxu0 0
        %4987 = vmatprep.subr.bf16.mxu0 0
        %4988 = vmatpush1.bf16.msra.mxu0 0
        %4989 = vmatprep.subr.bf16.mxu0 0
        %4990 = vmatpush1.bf16.msra.mxu0 0
        %4991 = vmatprep.subr.bf16.mxu0 0
        %4992 = vmatpush1.bf16.msra.mxu0 0
        %4993 = vmatprep.subr.bf16.mxu0 0
        %4994 = vmatpush1.bf16.msra.mxu0 0
        %4995 = vmatprep.mubr.bf16.mxu0 0
        %4996 = vmatmul.mubr.bf16.gmra.mrb[0].mxu0 %v4952
        %v4997 = vpop.f32.mrb[0].mxu0
        %v4998 = vadd.f32 0.0, %v4997
        %v4999 = vpop.f32.mrb[0].mxu0
        %v5000 = vpop.f32.mrb[0].mxu0
        %v5001 = vadd.f32 0.0, %v5000
        %v5002 = vpop.f32.mrb[0].mxu0
        %5003 = vmatprep.mubr.bf16.mxu0 0
        %5004 = vmatmul.mubr.bf16.gmra.mrb[0].mxu0 %v4955
        %v5005 = vpop.f32.mrb[0].mxu0
        %v5006 = vadd.f32 0.0, %v5005
        %v5007 = vpop.f32.mrb[0].mxu0
        %v5008 = vpop.f32.mrb[0].mxu0
        %v5009 = vadd.f32 0.0, %v5008
        %v5010 = vpop.f32.mrb[0].mxu0
        %5011 = vmatprep.mubr.bf16.mxu0 0
        %5012 = vmatmul.mubr.bf16.gmra.mrb[0].mxu0 %v4958
        %v5013 = vpop.f32.mrb[0].mxu0
        %v5014 = vadd.f32 0.0, %v5013
        %v5015 = vpop.f32.mrb[0].mxu0
        %v5016 = vpop.f32.mrb[0].mxu0
        %v5017 = vadd.f32 0.0, %v5016
        %v5018 = vpop.f32.mrb[0].mxu0
        %5019 = vmatprep.mubr.bf16.mxu0 0
        %5020 = vmatmul.mubr.bf16.gmra.mrb[0].mxu0 %v4961
        %v5021 = vpop.f32.mrb[0].mxu0
        %v5022 = vadd.f32 0.0, %v5021
        %v5023 = vpop.f32.mrb[0].mxu0
        %v5024 = vpop.f32.mrb[0].mxu0
        %v5025 = vadd.f32 0.0, %v5024
        %v5026 = vpop.f32.mrb[0].mxu0
        %5027 = vdwg.mxu0
        %5028 = vrot.lane.b32.xlu0 %v1720, 64
        %v5029 = vpop.permute.xlu0 %5028
        %5030 = vrot.lane.b32.xlu0 %v1721, 64
        %v5031 = vpop.permute.xlu0 %5030
        %5032 = vrot.lane.b32.xlu0 %v1722, 64
        %v5033 = vpop.permute.xlu0 %5032
        %5034 = vrot.lane.b32.xlu0 %v1723, 64
        %v5035 = vpop.permute.xlu0 %5034
        %v5041 = vsel %vm2089, %v4927, 0
        %v5044 = vsel %vm2089, %v4928, 0
        %v5047 = vsel %vm2089, %v4929, 0
        %v5050 = vsel %vm2089, %v4930, 0
        %5052 = vmatprep.subr.bf16.mxu0 0
        %5053 = vmatpush1.bf16.msra.mxu0 %v5029
        %5054 = vmatprep.subr.bf16.mxu0 0
        %5055 = vmatpush1.bf16.msra.mxu0 %v5031
        %5056 = vmatprep.subr.bf16.mxu0 0
        %5057 = vmatpush1.bf16.msra.mxu0 %v5033
        %5058 = vmatprep.subr.bf16.mxu0 0
        %5059 = vmatpush1.bf16.msra.mxu0 %v5035
        %5060 = vmatprep.subr.bf16.mxu0 0
        %5061 = vmatpush1.bf16.msra.mxu0 0
        %5062 = vmatprep.subr.bf16.mxu0 0
        %5063 = vmatpush1.bf16.msra.mxu0 0
        %5064 = vmatprep.subr.bf16.mxu0 0
        %5065 = vmatpush1.bf16.msra.mxu0 0
        %5066 = vmatprep.subr.bf16.mxu0 0
        %5067 = vmatpush1.bf16.msra.mxu0 0
        %5068 = vmatprep.subr.bf16.mxu0 0
        %5069 = vmatpush1.bf16.msra.mxu0 0
        %5070 = vmatprep.subr.bf16.mxu0 0
        %5071 = vmatpush1.bf16.msra.mxu0 0
        %5072 = vmatprep.subr.bf16.mxu0 0
        %5073 = vmatpush1.bf16.msra.mxu0 0
        %5074 = vmatprep.subr.bf16.mxu0 0
        %5075 = vmatpush1.bf16.msra.mxu0 0
        %5076 = vmatprep.subr.bf16.mxu0 0
        %5077 = vmatpush1.bf16.msra.mxu0 0
        %5078 = vmatprep.subr.bf16.mxu0 0
        %5079 = vmatpush1.bf16.msra.mxu0 0
        %5080 = vmatprep.subr.bf16.mxu0 0
        %5081 = vmatpush1.bf16.msra.mxu0 0
        %5082 = vmatprep.subr.bf16.mxu0 0
        %5083 = vmatpush1.bf16.msra.mxu0 0
        %5084 = vmatprep.mubr.bf16.mxu0 0
        %5085 = vmatmul.mubr.bf16.gmra.mrb[0].mxu0 %v5041
        %v5086 = vpop.f32.mrb[0].mxu0
        %v5087 = vadd.f32 0.0, %v5086
        %v5088 = vpop.f32.mrb[0].mxu0
        %v5089 = vpop.f32.mrb[0].mxu0
        %v5090 = vadd.f32 0.0, %v5089
        %v5091 = vpop.f32.mrb[0].mxu0
        %5092 = vmatprep.mubr.bf16.mxu0 0
        %5093 = vmatmul.mubr.bf16.gmra.mrb[0].mxu0 %v5044
        %v5094 = vpop.f32.mrb[0].mxu0
        %v5095 = vadd.f32 0.0, %v5094
        %v5096 = vpop.f32.mrb[0].mxu0
        %v5097 = vpop.f32.mrb[0].mxu0
        %v5098 = vadd.f32 0.0, %v5097
        %v5099 = vpop.f32.mrb[0].mxu0
        %5100 = vmatprep.mubr.bf16.mxu0 0
        %5101 = vmatmul.mubr.bf16.gmra.mrb[0].mxu0 %v5047
        %v5102 = vpop.f32.mrb[0].mxu0
        %v5103 = vadd.f32 0.0, %v5102
        %v5104 = vpop.f32.mrb[0].mxu0
        %v5105 = vpop.f32.mrb[0].mxu0
        %v5106 = vadd.f32 0.0, %v5105
        %v5107 = vpop.f32.mrb[0].mxu0
        %5108 = vmatprep.mubr.bf16.mxu0 0
        %5109 = vmatmul.mubr.bf16.gmra.mrb[0].mxu0 %v5050
        %v5110 = vpop.f32.mrb[0].mxu0
        %v5111 = vadd.f32 0.0, %v5110
        %v5112 = vpop.f32.mrb[0].mxu0
        %v5113 = vpop.f32.mrb[0].mxu0
        %v5114 = vadd.f32 0.0, %v5113
        %v5115 = vpop.f32.mrb[0].mxu0
        %5116 = vdwg.mxu0
        %5117 = vrot.lane.b32.xlu0 %v1724, 64
        %v5118 = vpop.permute.xlu0 %5117
        %5119 = vrot.lane.b32.xlu0 %v1725, 64
        %v5120 = vpop.permute.xlu0 %5119
        %5121 = vrot.lane.b32.xlu0 %v1726, 64
        %v5122 = vpop.permute.xlu0 %5121
        %5123 = vrot.lane.b32.xlu0 %v1727, 64
        %v5124 = vpop.permute.xlu0 %5123
        %v5130 = vsel %vm2089, %v4931, 0
        %v5133 = vsel %vm2089, %v4932, 0
        %v5136 = vsel %vm2089, %v4933, 0
        %v5139 = vsel %vm2089, %v4934, 0
        %5141 = vmatprep.subr.bf16.mxu0 0
        %5142 = vmatpush1.bf16.msra.mxu0 %v5118
        %5143 = vmatprep.subr.bf16.mxu0 0
        %5144 = vmatpush1.bf16.msra.mxu0 %v5120
        %5145 = vmatprep.subr.bf16.mxu0 0
        %5146 = vmatpush1.bf16.msra.mxu0 %v5122
        %5147 = vmatprep.subr.bf16.mxu0 0
        %5148 = vmatpush1.bf16.msra.mxu0 %v5124
        %5149 = vmatprep.subr.bf16.mxu0 0
        %5150 = vmatpush1.bf16.msra.mxu0 0
        %5151 = vmatprep.subr.bf16.mxu0 0
        %5152 = vmatpush1.bf16.msra.mxu0 0
        %5153 = vmatprep.subr.bf16.mxu0 0
        %5154 = vmatpush1.bf16.msra.mxu0 0
        %5155 = vmatprep.subr.bf16.mxu0 0
        %5156 = vmatpush1.bf16.msra.mxu0 0
        %5157 = vmatprep.subr.bf16.mxu0 0
        %5158 = vmatpush1.bf16.msra.mxu0 0
        %5159 = vmatprep.subr.bf16.mxu0 0
        %5160 = vmatpush1.bf16.msra.mxu0 0
        %5161 = vmatprep.subr.bf16.mxu0 0
        %5162 = vmatpush1.bf16.msra.mxu0 0
        %5163 = vmatprep.subr.bf16.mxu0 0
        %5164 = vmatpush1.bf16.msra.mxu0 0
        %5165 = vmatprep.subr.bf16.mxu0 0
        %5166 = vmatpush1.bf16.msra.mxu0 0
        %5167 = vmatprep.subr.bf16.mxu0 0
        %5168 = vmatpush1.bf16.msra.mxu0 0
        %5169 = vmatprep.subr.bf16.mxu0 0
        %5170 = vmatpush1.bf16.msra.mxu0 0
        %5171 = vmatprep.subr.bf16.mxu0 0
        %5172 = vmatpush1.bf16.msra.mxu0 0
        %5173 = vmatprep.mubr.bf16.mxu0 0
        %5174 = vmatmul.mubr.bf16.gmra.mrb[0].mxu0 %v5130
        %v5175 = vpop.f32.mrb[0].mxu0
        %v5176 = vadd.f32 0.0, %v5175
        %v5177 = vpop.f32.mrb[0].mxu0
        %v5178 = vpop.f32.mrb[0].mxu0
        %v5179 = vadd.f32 0.0, %v5178
        %v5180 = vpop.f32.mrb[0].mxu0
        %5181 = vmatprep.mubr.bf16.mxu0 0
        %5182 = vmatmul.mubr.bf16.gmra.mrb[0].mxu0 %v5133
        %v5183 = vpop.f32.mrb[0].mxu0
        %v5184 = vadd.f32 0.0, %v5183
        %v5185 = vpop.f32.mrb[0].mxu0
        %v5186 = vpop.f32.mrb[0].mxu0
        %v5187 = vadd.f32 0.0, %v5186
        %v5188 = vpop.f32.mrb[0].mxu0
        %5189 = vmatprep.mubr.bf16.mxu0 0
        %5190 = vmatmul.mubr.bf16.gmra.mrb[0].mxu0 %v5136
        %v5191 = vpop.f32.mrb[0].mxu0
        %v5192 = vadd.f32 0.0, %v5191
        %v5193 = vpop.f32.mrb[0].mxu0
        %v5194 = vpop.f32.mrb[0].mxu0
        %v5195 = vadd.f32 0.0, %v5194
        %v5196 = vpop.f32.mrb[0].mxu0
        %5197 = vmatprep.mubr.bf16.mxu0 0
        %5198 = vmatmul.mubr.bf16.gmra.mrb[0].mxu0 %v5139
        %v5199 = vpop.f32.mrb[0].mxu0
        %v5200 = vadd.f32 0.0, %v5199
        %v5201 = vpop.f32.mrb[0].mxu0
        %v5202 = vpop.f32.mrb[0].mxu0
        %v5203 = vadd.f32 0.0, %v5202
        %v5204 = vpop.f32.mrb[0].mxu0
        %5205 = vdwg.mxu0
        %5206 = vrot.lane.b32.xlu0 %v1728, 64
        %v5207 = vpop.permute.xlu0 %5206
        %5208 = vrot.lane.b32.xlu0 %v1729, 64
        %v5209 = vpop.permute.xlu0 %5208
        %5210 = vrot.lane.b32.xlu0 %v1730, 64
        %v5211 = vpop.permute.xlu0 %5210
        %5212 = vrot.lane.b32.xlu0 %v1731, 64
        %v5213 = vpop.permute.xlu0 %5212
        %v5219 = vsel %vm2089, %v4935, 0
        %v5222 = vsel %vm2089, %v4936, 0
        %v5225 = vsel %vm2089, %v4937, 0
        %v5228 = vsel %vm2089, %v4938, 0
        %5230 = vmatprep.subr.bf16.mxu0 0
        %5231 = vmatpush1.bf16.msra.mxu0 %v5207
        %5232 = vmatprep.subr.bf16.mxu0 0
        %5233 = vmatpush1.bf16.msra.mxu0 %v5209
        %5234 = vmatprep.subr.bf16.mxu0 0
        %5235 = vmatpush1.bf16.msra.mxu0 %v5211
        %5236 = vmatprep.subr.bf16.mxu0 0
        %5237 = vmatpush1.bf16.msra.mxu0 %v5213
        %5238 = vmatprep.subr.bf16.mxu0 0
        %5239 = vmatpush1.bf16.msra.mxu0 0
        %5240 = vmatprep.subr.bf16.mxu0 0
        %5241 = vmatpush1.bf16.msra.mxu0 0
        %5242 = vmatprep.subr.bf16.mxu0 0
        %5243 = vmatpush1.bf16.msra.mxu0 0
        %5244 = vmatprep.subr.bf16.mxu0 0
        %5245 = vmatpush1.bf16.msra.mxu0 0
        %5246 = vmatprep.subr.bf16.mxu0 0
        %5247 = vmatpush1.bf16.msra.mxu0 0
        %5248 = vmatprep.subr.bf16.mxu0 0
        %5249 = vmatpush1.bf16.msra.mxu0 0
        %5250 = vmatprep.subr.bf16.mxu0 0
        %5251 = vmatpush1.bf16.msra.mxu0 0
        %5252 = vmatprep.subr.bf16.mxu0 0
        %5253 = vmatpush1.bf16.msra.mxu0 0
        %5254 = vmatprep.subr.bf16.mxu0 0
        %5255 = vmatpush1.bf16.msra.mxu0 0
        %5256 = vmatprep.subr.bf16.mxu0 0
        %5257 = vmatpush1.bf16.msra.mxu0 0
        %5258 = vmatprep.subr.bf16.mxu0 0
        %5259 = vmatpush1.bf16.msra.mxu0 0
        %5260 = vmatprep.subr.bf16.mxu0 0
        %5261 = vmatpush1.bf16.msra.mxu0 0
        %5262 = vmatprep.mubr.bf16.mxu0 0
        %5263 = vmatmul.mubr.bf16.gmra.mrb[0].mxu0 %v5219
        %v5264 = vpop.f32.mrb[0].mxu0
        %v5265 = vadd.f32 0.0, %v5264
        %v5266 = vpop.f32.mrb[0].mxu0
        %v5267 = vpop.f32.mrb[0].mxu0
        %v5268 = vadd.f32 0.0, %v5267
        %v5269 = vpop.f32.mrb[0].mxu0
        %5270 = vmatprep.mubr.bf16.mxu0 0
        %5271 = vmatmul.mubr.bf16.gmra.mrb[0].mxu0 %v5222
        %v5272 = vpop.f32.mrb[0].mxu0
        %v5273 = vadd.f32 0.0, %v5272
        %v5274 = vpop.f32.mrb[0].mxu0
        %v5275 = vpop.f32.mrb[0].mxu0
        %v5276 = vadd.f32 0.0, %v5275
        %v5277 = vpop.f32.mrb[0].mxu0
        %5278 = vmatprep.mubr.bf16.mxu0 0
        %5279 = vmatmul.mubr.bf16.gmra.mrb[0].mxu0 %v5225
        %v5280 = vpop.f32.mrb[0].mxu0
        %v5281 = vadd.f32 0.0, %v5280
        %v5282 = vpop.f32.mrb[0].mxu0
        %v5283 = vpop.f32.mrb[0].mxu0
        %v5284 = vadd.f32 0.0, %v5283
        %v5285 = vpop.f32.mrb[0].mxu0
        %5286 = vmatprep.mubr.bf16.mxu0 0
        %5287 = vmatmul.mubr.bf16.gmra.mrb[0].mxu0 %v5228
        %v5288 = vpop.f32.mrb[0].mxu0
        %v5289 = vadd.f32 0.0, %v5288
        %v5290 = vpop.f32.mrb[0].mxu0
        %v5291 = vpop.f32.mrb[0].mxu0
        %v5292 = vadd.f32 0.0, %v5291
        %v5293 = vpop.f32.mrb[0].mxu0
        %5294 = vdwg.mxu0
        %5327 = vrot.lane.b32.xlu0 %v4998, 64
        %v5328 = vpop.permute.xlu0 %5327
        %5329 = vrot.lane.b32.xlu0 %v5001, 64
        %v5330 = vpop.permute.xlu0 %5329
        %5331 = vrot.lane.b32.xlu0 %v5006, 64
        %v5332 = vpop.permute.xlu0 %5331
        %5333 = vrot.lane.b32.xlu0 %v5009, 64
        %v5334 = vpop.permute.xlu0 %5333
        %5335 = vrot.lane.b32.xlu0 %v5014, 64
        %v5336 = vpop.permute.xlu0 %5335
        %5337 = vrot.lane.b32.xlu0 %v5017, 64
        %v5338 = vpop.permute.xlu0 %5337
        %5339 = vrot.lane.b32.xlu0 %v5022, 64
        %v5340 = vpop.permute.xlu0 %5339
        %5341 = vrot.lane.b32.xlu0 %v5025, 64
        %v5342 = vpop.permute.xlu0 %5341
        %5343 = vrot.lane.b32.xlu0 %v5087, 64
        %v5344 = vpop.permute.xlu0 %5343
        %5345 = vrot.lane.b32.xlu0 %v5090, 64
        %v5346 = vpop.permute.xlu0 %5345
        %5347 = vrot.lane.b32.xlu0 %v5095, 64
        %v5348 = vpop.permute.xlu0 %5347
        %5349 = vrot.lane.b32.xlu0 %v5098, 64
        %v5350 = vpop.permute.xlu0 %5349
        %5351 = vrot.lane.b32.xlu0 %v5103, 64
        %v5352 = vpop.permute.xlu0 %5351
        %5353 = vrot.lane.b32.xlu0 %v5106, 64
        %v5354 = vpop.permute.xlu0 %5353
        %5355 = vrot.lane.b32.xlu0 %v5111, 64
        %v5356 = vpop.permute.xlu0 %5355
        %5357 = vrot.lane.b32.xlu0 %v5114, 64
        %v5358 = vpop.permute.xlu0 %5357
        %5359 = vrot.lane.b32.xlu0 %v5176, 64
        %v5360 = vpop.permute.xlu0 %5359
        %5361 = vrot.lane.b32.xlu0 %v5179, 64
        %v5362 = vpop.permute.xlu0 %5361
        %5363 = vrot.lane.b32.xlu0 %v5184, 64
        %v5364 = vpop.permute.xlu0 %5363
        %5365 = vrot.lane.b32.xlu0 %v5187, 64
        %v5366 = vpop.permute.xlu0 %5365
        %5367 = vrot.lane.b32.xlu0 %v5192, 64
        %v5368 = vpop.permute.xlu0 %5367
        %5369 = vrot.lane.b32.xlu0 %v5195, 64
        %v5370 = vpop.permute.xlu0 %5369
        %5371 = vrot.lane.b32.xlu0 %v5200, 64
        %v5372 = vpop.permute.xlu0 %5371
        %5373 = vrot.lane.b32.xlu0 %v5203, 64
        %v5374 = vpop.permute.xlu0 %5373
        %5375 = vrot.lane.b32.xlu0 %v5265, 64
        %v5376 = vpop.permute.xlu0 %5375
        %5377 = vrot.lane.b32.xlu0 %v5268, 64
        %v5378 = vpop.permute.xlu0 %5377
        %5379 = vrot.lane.b32.xlu0 %v5273, 64
        %v5380 = vpop.permute.xlu0 %5379
        %5381 = vrot.lane.b32.xlu0 %v5276, 64
        %v5382 = vpop.permute.xlu0 %5381
        %5383 = vrot.lane.b32.xlu0 %v5281, 64
        %v5384 = vpop.permute.xlu0 %5383
        %5385 = vrot.lane.b32.xlu0 %v5284, 64
        %v5386 = vpop.permute.xlu0 %5385
        %5387 = vrot.lane.b32.xlu0 %v5289, 64
        %v5388 = vpop.permute.xlu0 %5387
        %5389 = vrot.lane.b32.xlu0 %v5292, 64
        %v5390 = vpop.permute.xlu0 %5389
        %vm5423 = vcmask 785920
        %5424 = vst.msk [vmem:[#allocation3] sm:$0xff] %vm5423, %v5328
        %5425 = vst.msk [vmem:[#allocation3 + $0x8] sm:$0xff] %vm5423, %v5330
        %5426 = vst.msk [vmem:[#allocation3 + $0x10] sm:$0xff] %vm5423, %v5332
        %5427 = vst.msk [vmem:[#allocation3 + $0x18] sm:$0xff] %vm5423, %v5334
        %5428 = vst.msk [vmem:[#allocation3 + $0x20] sm:$0xff] %vm5423, %v5336
        %5429 = vst.msk [vmem:[#allocation3 + $0x28] sm:$0xff] %vm5423, %v5338
        %5430 = vst.msk [vmem:[#allocation3 + $0x30] sm:$0xff] %vm5423, %v5340
        %5431 = vst.msk [vmem:[#allocation3 + $0x38] sm:$0xff] %vm5423, %v5342
        %5432 = vst.msk [vmem:[#allocation3 + $0x40] sm:$0xff] %vm5423, %v5344
        %5433 = vst.msk [vmem:[#allocation3 + $0x48] sm:$0xff] %vm5423, %v5346
        %5434 = vst.msk [vmem:[#allocation3 + $0x50] sm:$0xff] %vm5423, %v5348
        %5435 = vst.msk [vmem:[#allocation3 + $0x58] sm:$0xff] %vm5423, %v5350
        %5436 = vst.msk [vmem:[#allocation3 + $0x60] sm:$0xff] %vm5423, %v5352
        %5437 = vst.msk [vmem:[#allocation3 + $0x68] sm:$0xff] %vm5423, %v5354
        %5438 = vst.msk [vmem:[#allocation3 + $0x70] sm:$0xff] %vm5423, %v5356
        %5439 = vst.msk [vmem:[#allocation3 + $0x78] sm:$0xff] %vm5423, %v5358
        %5440 = vst.msk [vmem:[#allocation3 + $0x80] sm:$0xff] %vm5423, %v5360
        %5441 = vst.msk [vmem:[#allocation3 + $0x88] sm:$0xff] %vm5423, %v5362
        %5442 = vst.msk [vmem:[#allocation3 + $0x90] sm:$0xff] %vm5423, %v5364
        %5443 = vst.msk [vmem:[#allocation3 + $0x98] sm:$0xff] %vm5423, %v5366
        %5444 = vst.msk [vmem:[#allocation3 + $0xa0] sm:$0xff] %vm5423, %v5368
        %5445 = vst.msk [vmem:[#allocation3 + $0xa8] sm:$0xff] %vm5423, %v5370
        %5446 = vst.msk [vmem:[#allocation3 + $0xb0] sm:$0xff] %vm5423, %v5372
        %5447 = vst.msk [vmem:[#allocation3 + $0xb8] sm:$0xff] %vm5423, %v5374
        %5448 = vst.msk [vmem:[#allocation3 + $0xc0] sm:$0xff] %vm5423, %v5376
        %5449 = vst.msk [vmem:[#allocation3 + $0xc8] sm:$0xff] %vm5423, %v5378
        %5450 = vst.msk [vmem:[#allocation3 + $0xd0] sm:$0xff] %vm5423, %v5380
        %5451 = vst.msk [vmem:[#allocation3 + $0xd8] sm:$0xff] %vm5423, %v5382
        %5452 = vst.msk [vmem:[#allocation3 + $0xe0] sm:$0xff] %vm5423, %v5384
        %5453 = vst.msk [vmem:[#allocation3 + $0xe8] sm:$0xff] %vm5423, %v5386
        %5454 = vst.msk [vmem:[#allocation3 + $0xf0] sm:$0xff] %vm5423, %v5388
        %5455 = vst.msk [vmem:[#allocation3 + $0xf8] sm:$0xff] %vm5423, %v5390
        %5456 = vrot.lane.b32.xlu0 %v1684, 32
        %v5457 = vpop.permute.xlu0 %5456
        %5458 = vrot.lane.b32.xlu0 %v1685, 32
        %v5459 = vpop.permute.xlu0 %5458
        %5460 = vrot.lane.b32.xlu0 %v1686, 32
        %v5461 = vpop.permute.xlu0 %5460
        %5462 = vrot.lane.b32.xlu0 %v1687, 32
        %v5463 = vpop.permute.xlu0 %5462
        %5464 = vrot.lane.b32.xlu0 %v1700, 32
        %v5465 = vpop.permute.xlu0 %5464
        %5466 = vrot.lane.b32.xlu0 %v1701, 32
        %v5467 = vpop.permute.xlu0 %5466
        %5468 = vrot.lane.b32.xlu0 %v1702, 32
        %v5469 = vpop.permute.xlu0 %5468
        %5470 = vrot.lane.b32.xlu0 %v1703, 32
        %v5471 = vpop.permute.xlu0 %5470
        %v5473 = vsel %vm1732, %v5457, 0
        %v5476 = vsel %vm1732, %v5459, 0
        %v5479 = vsel %vm1732, %v5461, 0
        %v5482 = vsel %vm1732, %v5463, 0
        %v5485 = vsel %vm1732, %v5465, 0
        %v5488 = vsel %vm1732, %v5467, 0
        %v5491 = vsel %vm1732, %v5469, 0
        %v5494 = vsel %vm1732, %v5471, 0
        %5496 = vmatprep.subr.bf16.mxu0 0
        %5497 = vmatpush1.bf16.xpose.msra.mxu0 %v5485
        %5498 = vmatprep.subr.bf16.mxu0 0
        %5499 = vmatpush1.bf16.xpose.msra.mxu0 %v5488
        %5500 = vmatprep.subr.bf16.mxu0 0
        %5501 = vmatpush1.bf16.xpose.msra.mxu0 %v5491
        %5502 = vmatprep.subr.bf16.mxu0 0
        %5503 = vmatpush1.bf16.xpose.msra.mxu0 %v5494
        %5504 = vmatprep.subr.bf16.mxu0 0
        %5505 = vmatpush1.bf16.xpose.msra.mxu0 0
        %5506 = vmatprep.subr.bf16.mxu0 0
        %5507 = vmatpush1.bf16.xpose.msra.mxu0 0
        %5508 = vmatprep.subr.bf16.mxu0 0
        %5509 = vmatpush1.bf16.xpose.msra.mxu0 0
        %5510 = vmatprep.subr.bf16.mxu0 0
        %5511 = vmatpush1.bf16.xpose.msra.mxu0 0
        %5512 = vmatprep.subr.bf16.mxu0 0
        %5513 = vmatpush1.bf16.xpose.msra.mxu0 0
        %5514 = vmatprep.subr.bf16.mxu0 0
        %5515 = vmatpush1.bf16.xpose.msra.mxu0 0
        %5516 = vmatprep.subr.bf16.mxu0 0
        %5517 = vmatpush1.bf16.xpose.msra.mxu0 0
        %5518 = vmatprep.subr.bf16.mxu0 0
        %5519 = vmatpush1.bf16.xpose.msra.mxu0 0
        %5520 = vmatprep.subr.bf16.mxu0 0
        %5521 = vmatpush1.bf16.xpose.msra.mxu0 0
        %5522 = vmatprep.subr.bf16.mxu0 0
        %5523 = vmatpush1.bf16.xpose.msra.mxu0 0
        %5524 = vmatprep.subr.bf16.mxu0 0
        %5525 = vmatpush1.bf16.xpose.msra.mxu0 0
        %5526 = vmatprep.subr.bf16.mxu0 0
        %5527 = vmatpush1.bf16.xpose.msra.mxu0 0
        %5528 = vmatprep.mubr.bf16.mxu0 0
        %5529 = vmatmul.mubr.bf16.gmra.mrb[0].mxu0 %v5473
        %v5530 = vpop.f32.mrb[0].mxu0
        %v5531 = vadd.f32 %v1114, %v5530
        %v5532 = vpop.f32.mrb[0].mxu0
        %v5533 = vpop.f32.mrb[0].mxu0
        %v5534 = vadd.f32 %v1115, %v5533
        %v5535 = vpop.f32.mrb[0].mxu0
        %5536 = vmatprep.mubr.bf16.mxu0 0
        %5537 = vmatmul.mubr.bf16.gmra.mrb[0].mxu0 %v5476
        %v5538 = vpop.f32.mrb[0].mxu0
        %v5539 = vadd.f32 %v1116, %v5538
        %v5540 = vpop.f32.mrb[0].mxu0
        %v5541 = vpop.f32.mrb[0].mxu0
        %v5542 = vadd.f32 %v1117, %v5541
        %v5543 = vpop.f32.mrb[0].mxu0
        %5544 = vmatprep.mubr.bf16.mxu0 0
        %5545 = vmatmul.mubr.bf16.gmra.mrb[0].mxu0 %v5479
        %v5546 = vpop.f32.mrb[0].mxu0
        %v5547 = vadd.f32 %v1118, %v5546
        %v5548 = vpop.f32.mrb[0].mxu0
        %v5549 = vpop.f32.mrb[0].mxu0
        %v5550 = vadd.f32 %v1119, %v5549
        %v5551 = vpop.f32.mrb[0].mxu0
        %5552 = vmatprep.mubr.bf16.mxu0 0
        %5553 = vmatmul.mubr.bf16.gmra.mrb[0].mxu0 %v5482
        %v5554 = vpop.f32.mrb[0].mxu0
        %v5555 = vadd.f32 %v1120, %v5554
        %v5556 = vpop.f32.mrb[0].mxu0
        %v5557 = vpop.f32.mrb[0].mxu0
        %v5558 = vadd.f32 %v1121, %v5557
        %v5559 = vpop.f32.mrb[0].mxu0
        %5560 = vdwg.mxu0
        %5561 = vrot.lane.b32.xlu0 %v1688, 32
        %v5562 = vpop.permute.xlu0 %5561
        %5563 = vrot.lane.b32.xlu0 %v1689, 32
        %v5564 = vpop.permute.xlu0 %5563
        %5565 = vrot.lane.b32.xlu0 %v1690, 32
        %v5566 = vpop.permute.xlu0 %5565
        %5567 = vrot.lane.b32.xlu0 %v1691, 32
        %v5568 = vpop.permute.xlu0 %5567
        %5569 = vrot.lane.b32.xlu0 %v1704, 32
        %v5570 = vpop.permute.xlu0 %5569
        %5571 = vrot.lane.b32.xlu0 %v1705, 32
        %v5572 = vpop.permute.xlu0 %5571
        %5573 = vrot.lane.b32.xlu0 %v1706, 32
        %v5574 = vpop.permute.xlu0 %5573
        %5575 = vrot.lane.b32.xlu0 %v1707, 32
        %v5576 = vpop.permute.xlu0 %5575
        %v5578 = vsel %vm1732, %v5562, 0
        %v5581 = vsel %vm1732, %v5564, 0
        %v5584 = vsel %vm1732, %v5566, 0
        %v5587 = vsel %vm1732, %v5568, 0
        %v5590 = vsel %vm1732, %v5570, 0
        %v5593 = vsel %vm1732, %v5572, 0
        %v5596 = vsel %vm1732, %v5574, 0
        %v5599 = vsel %vm1732, %v5576, 0
        %5601 = vmatprep.subr.bf16.mxu0 0
        %5602 = vmatpush1.bf16.xpose.msra.mxu0 %v5590
        %5603 = vmatprep.subr.bf16.mxu0 0
        %5604 = vmatpush1.bf16.xpose.msra.mxu0 %v5593
        %5605 = vmatprep.subr.bf16.mxu0 0
        %5606 = vmatpush1.bf16.xpose.msra.mxu0 %v5596
        %5607 = vmatprep.subr.bf16.mxu0 0
        %5608 = vmatpush1.bf16.xpose.msra.mxu0 %v5599
        %5609 = vmatprep.subr.bf16.mxu0 0
        %5610 = vmatpush1.bf16.xpose.msra.mxu0 0
        %5611 = vmatprep.subr.bf16.mxu0 0
        %5612 = vmatpush1.bf16.xpose.msra.mxu0 0
        %5613 = vmatprep.subr.bf16.mxu0 0
        %5614 = vmatpush1.bf16.xpose.msra.mxu0 0
        %5615 = vmatprep.subr.bf16.mxu0 0
        %5616 = vmatpush1.bf16.xpose.msra.mxu0 0
        %5617 = vmatprep.subr.bf16.mxu0 0
        %5618 = vmatpush1.bf16.xpose.msra.mxu0 0
        %5619 = vmatprep.subr.bf16.mxu0 0
        %5620 = vmatpush1.bf16.xpose.msra.mxu0 0
        %5621 = vmatprep.subr.bf16.mxu0 0
        %5622 = vmatpush1.bf16.xpose.msra.mxu0 0
        %5623 = vmatprep.subr.bf16.mxu0 0
        %5624 = vmatpush1.bf16.xpose.msra.mxu0 0
        %5625 = vmatprep.subr.bf16.mxu0 0
        %5626 = vmatpush1.bf16.xpose.msra.mxu0 0
        %5627 = vmatprep.subr.bf16.mxu0 0
        %5628 = vmatpush1.bf16.xpose.msra.mxu0 0
        %5629 = vmatprep.subr.bf16.mxu0 0
        %5630 = vmatpush1.bf16.xpose.msra.mxu0 0
        %5631 = vmatprep.subr.bf16.mxu0 0
        %5632 = vmatpush1.bf16.xpose.msra.mxu0 0
        %5633 = vmatprep.mubr.bf16.mxu0 0
        %5634 = vmatmul.mubr.bf16.gmra.mrb[0].mxu0 %v5578
        %v5635 = vpop.f32.mrb[0].mxu0
        %v5636 = vadd.f32 %v1114, %v5635
        %v5637 = vpop.f32.mrb[0].mxu0
        %v5638 = vpop.f32.mrb[0].mxu0
        %v5639 = vadd.f32 %v1115, %v5638
        %v5640 = vpop.f32.mrb[0].mxu0
        %5641 = vmatprep.mubr.bf16.mxu0 0
        %5642 = vmatmul.mubr.bf16.gmra.mrb[0].mxu0 %v5581
        %v5643 = vpop.f32.mrb[0].mxu0
        %v5644 = vadd.f32 %v1116, %v5643
        %v5645 = vpop.f32.mrb[0].mxu0
        %v5646 = vpop.f32.mrb[0].mxu0
        %v5647 = vadd.f32 %v1117, %v5646
        %v5648 = vpop.f32.mrb[0].mxu0
        %5649 = vmatprep.mubr.bf16.mxu0 0
        %5650 = vmatmul.mubr.bf16.gmra.mrb[0].mxu0 %v5584
        %v5651 = vpop.f32.mrb[0].mxu0
        %v5652 = vadd.f32 %v1118, %v5651
        %v5653 = vpop.f32.mrb[0].mxu0
        %v5654 = vpop.f32.mrb[0].mxu0
        %v5655 = vadd.f32 %v1119, %v5654
        %v5656 = vpop.f32.mrb[0].mxu0
        %5657 = vmatprep.mubr.bf16.mxu0 0
        %5658 = vmatmul.mubr.bf16.gmra.mrb[0].mxu0 %v5587
        %v5659 = vpop.f32.mrb[0].mxu0
        %v5660 = vadd.f32 %v1120, %v5659
        %v5661 = vpop.f32.mrb[0].mxu0
        %v5662 = vpop.f32.mrb[0].mxu0
        %v5663 = vadd.f32 %v1121, %v5662
        %v5664 = vpop.f32.mrb[0].mxu0
        %5665 = vdwg.mxu0
        %5666 = vrot.lane.b32.xlu0 %v1692, 32
        %v5667 = vpop.permute.xlu0 %5666
        %5668 = vrot.lane.b32.xlu0 %v1693, 32
        %v5669 = vpop.permute.xlu0 %5668
        %5670 = vrot.lane.b32.xlu0 %v1694, 32
        %v5671 = vpop.permute.xlu0 %5670
        %5672 = vrot.lane.b32.xlu0 %v1695, 32
        %v5673 = vpop.permute.xlu0 %5672
        %5674 = vrot.lane.b32.xlu0 %v1708, 32
        %v5675 = vpop.permute.xlu0 %5674
        %5676 = vrot.lane.b32.xlu0 %v1709, 32
        %v5677 = vpop.permute.xlu0 %5676
        %5678 = vrot.lane.b32.xlu0 %v1710, 32
        %v5679 = vpop.permute.xlu0 %5678
        %5680 = vrot.lane.b32.xlu0 %v1711, 32
        %v5681 = vpop.permute.xlu0 %5680
        %v5683 = vsel %vm1732, %v5667, 0
        %v5686 = vsel %vm1732, %v5669, 0
        %v5689 = vsel %vm1732, %v5671, 0
        %v5692 = vsel %vm1732, %v5673, 0
        %v5695 = vsel %vm1732, %v5675, 0
        %v5698 = vsel %vm1732, %v5677, 0
        %v5701 = vsel %vm1732, %v5679, 0
        %v5704 = vsel %vm1732, %v5681, 0
        %5706 = vmatprep.subr.bf16.mxu0 0
        %5707 = vmatpush1.bf16.xpose.msra.mxu0 %v5695
        %5708 = vmatprep.subr.bf16.mxu0 0
        %5709 = vmatpush1.bf16.xpose.msra.mxu0 %v5698
        %5710 = vmatprep.subr.bf16.mxu0 0
        %5711 = vmatpush1.bf16.xpose.msra.mxu0 %v5701
        %5712 = vmatprep.subr.bf16.mxu0 0
        %5713 = vmatpush1.bf16.xpose.msra.mxu0 %v5704
        %5714 = vmatprep.subr.bf16.mxu0 0
        %5715 = vmatpush1.bf16.xpose.msra.mxu0 0
        %5716 = vmatprep.subr.bf16.mxu0 0
        %5717 = vmatpush1.bf16.xpose.msra.mxu0 0
        %5718 = vmatprep.subr.bf16.mxu0 0
        %5719 = vmatpush1.bf16.xpose.msra.mxu0 0
        %5720 = vmatprep.subr.bf16.mxu0 0
        %5721 = vmatpush1.bf16.xpose.msra.mxu0 0
        %5722 = vmatprep.subr.bf16.mxu0 0
        %5723 = vmatpush1.bf16.xpose.msra.mxu0 0
        %5724 = vmatprep.subr.bf16.mxu0 0
        %5725 = vmatpush1.bf16.xpose.msra.mxu0 0
        %5726 = vmatprep.subr.bf16.mxu0 0
        %5727 = vmatpush1.bf16.xpose.msra.mxu0 0
        %5728 = vmatprep.subr.bf16.mxu0 0
        %5729 = vmatpush1.bf16.xpose.msra.mxu0 0
        %5730 = vmatprep.subr.bf16.mxu0 0
        %5731 = vmatpush1.bf16.xpose.msra.mxu0 0
        %5732 = vmatprep.subr.bf16.mxu0 0
        %5733 = vmatpush1.bf16.xpose.msra.mxu0 0
        %5734 = vmatprep.subr.bf16.mxu0 0
        %5735 = vmatpush1.bf16.xpose.msra.mxu0 0
        %5736 = vmatprep.subr.bf16.mxu0 0
        %5737 = vmatpush1.bf16.xpose.msra.mxu0 0
        %5738 = vmatprep.mubr.bf16.mxu0 0
        %5739 = vmatmul.mubr.bf16.gmra.mrb[0].mxu0 %v5683
        %v5740 = vpop.f32.mrb[0].mxu0
        %v5741 = vadd.f32 %v1114, %v5740
        %v5742 = vpop.f32.mrb[0].mxu0
        %v5743 = vpop.f32.mrb[0].mxu0
        %v5744 = vadd.f32 %v1115, %v5743
        %v5745 = vpop.f32.mrb[0].mxu0
        %5746 = vmatprep.mubr.bf16.mxu0 0
        %5747 = vmatmul.mubr.bf16.gmra.mrb[0].mxu0 %v5686
        %v5748 = vpop.f32.mrb[0].mxu0
        %v5749 = vadd.f32 %v1116, %v5748
        %v5750 = vpop.f32.mrb[0].mxu0
        %v5751 = vpop.f32.mrb[0].mxu0
        %v5752 = vadd.f32 %v1117, %v5751
        %v5753 = vpop.f32.mrb[0].mxu0
        %5754 = vmatprep.mubr.bf16.mxu0 0
        %5755 = vmatmul.mubr.bf16.gmra.mrb[0].mxu0 %v5689
        %v5756 = vpop.f32.mrb[0].mxu0
        %v5757 = vadd.f32 %v1118, %v5756
        %v5758 = vpop.f32.mrb[0].mxu0
        %v5759 = vpop.f32.mrb[0].mxu0
        %v5760 = vadd.f32 %v1119, %v5759
        %v5761 = vpop.f32.mrb[0].mxu0
        %5762 = vmatprep.mubr.bf16.mxu0 0
        %5763 = vmatmul.mubr.bf16.gmra.mrb[0].mxu0 %v5692
        %v5764 = vpop.f32.mrb[0].mxu0
        %v5765 = vadd.f32 %v1120, %v5764
        %v5766 = vpop.f32.mrb[0].mxu0
        %v5767 = vpop.f32.mrb[0].mxu0
        %v5768 = vadd.f32 %v1121, %v5767
        %v5769 = vpop.f32.mrb[0].mxu0
        %5770 = vdwg.mxu0
        %5771 = vrot.lane.b32.xlu0 %v1696, 32
        %v5772 = vpop.permute.xlu0 %5771
        %5773 = vrot.lane.b32.xlu0 %v1697, 32
        %v5774 = vpop.permute.xlu0 %5773
        %5775 = vrot.lane.b32.xlu0 %v1698, 32
        %v5776 = vpop.permute.xlu0 %5775
        %5777 = vrot.lane.b32.xlu0 %v1699, 32
        %v5778 = vpop.permute.xlu0 %5777
        %5779 = vrot.lane.b32.xlu0 %v1712, 32
        %v5780 = vpop.permute.xlu0 %5779
        %5781 = vrot.lane.b32.xlu0 %v1713, 32
        %v5782 = vpop.permute.xlu0 %5781
        %5783 = vrot.lane.b32.xlu0 %v1714, 32
        %v5784 = vpop.permute.xlu0 %5783
        %5785 = vrot.lane.b32.xlu0 %v1715, 32
        %v5786 = vpop.permute.xlu0 %5785
        %v5788 = vsel %vm1732, %v5772, 0
        %v5791 = vsel %vm1732, %v5774, 0
        %v5794 = vsel %vm1732, %v5776, 0
        %v5797 = vsel %vm1732, %v5778, 0
        %v5800 = vsel %vm1732, %v5780, 0
        %v5803 = vsel %vm1732, %v5782, 0
        %v5806 = vsel %vm1732, %v5784, 0
        %v5809 = vsel %vm1732, %v5786, 0
        %5811 = vmatprep.subr.bf16.mxu0 0
        %5812 = vmatpush1.bf16.xpose.msra.mxu0 %v5800
        %5813 = vmatprep.subr.bf16.mxu0 0
        %5814 = vmatpush1.bf16.xpose.msra.mxu0 %v5803
        %5815 = vmatprep.subr.bf16.mxu0 0
        %5816 = vmatpush1.bf16.xpose.msra.mxu0 %v5806
        %5817 = vmatprep.subr.bf16.mxu0 0
        %5818 = vmatpush1.bf16.xpose.msra.mxu0 %v5809
        %5819 = vmatprep.subr.bf16.mxu0 0
        %5820 = vmatpush1.bf16.xpose.msra.mxu0 0
        %5821 = vmatprep.subr.bf16.mxu0 0
        %5822 = vmatpush1.bf16.xpose.msra.mxu0 0
        %5823 = vmatprep.subr.bf16.mxu0 0
        %5824 = vmatpush1.bf16.xpose.msra.mxu0 0
        %5825 = vmatprep.subr.bf16.mxu0 0
        %5826 = vmatpush1.bf16.xpose.msra.mxu0 0
        %5827 = vmatprep.subr.bf16.mxu0 0
        %5828 = vmatpush1.bf16.xpose.msra.mxu0 0
        %5829 = vmatprep.subr.bf16.mxu0 0
        %5830 = vmatpush1.bf16.xpose.msra.mxu0 0
        %5831 = vmatprep.subr.bf16.mxu0 0
        %5832 = vmatpush1.bf16.xpose.msra.mxu0 0
        %5833 = vmatprep.subr.bf16.mxu0 0
        %5834 = vmatpush1.bf16.xpose.msra.mxu0 0
        %5835 = vmatprep.subr.bf16.mxu0 0
        %5836 = vmatpush1.bf16.xpose.msra.mxu0 0
        %5837 = vmatprep.subr.bf16.mxu0 0
        %5838 = vmatpush1.bf16.xpose.msra.mxu0 0
        %5839 = vmatprep.subr.bf16.mxu0 0
        %5840 = vmatpush1.bf16.xpose.msra.mxu0 0
        %5841 = vmatprep.subr.bf16.mxu0 0
        %5842 = vmatpush1.bf16.xpose.msra.mxu0 0
        %5843 = vmatprep.mubr.bf16.mxu0 0
        %5844 = vmatmul.mubr.bf16.gmra.mrb[0].mxu0 %v5788
        %v5845 = vpop.f32.mrb[0].mxu0
        %v5846 = vadd.f32 %v1114, %v5845
        %v5847 = vpop.f32.mrb[0].mxu0
        %v5848 = vpop.f32.mrb[0].mxu0
        %v5849 = vadd.f32 %v1115, %v5848
        %v5850 = vpop.f32.mrb[0].mxu0
        %5851 = vmatprep.mubr.bf16.mxu0 0
        %5852 = vmatmul.mubr.bf16.gmra.mrb[0].mxu0 %v5791
        %v5853 = vpop.f32.mrb[0].mxu0
        %v5854 = vadd.f32 %v1116, %v5853
        %v5855 = vpop.f32.mrb[0].mxu0
        %v5856 = vpop.f32.mrb[0].mxu0
        %v5857 = vadd.f32 %v1117, %v5856
        %v5858 = vpop.f32.mrb[0].mxu0
        %5859 = vmatprep.mubr.bf16.mxu0 0
        %5860 = vmatmul.mubr.bf16.gmra.mrb[0].mxu0 %v5794
        %v5861 = vpop.f32.mrb[0].mxu0
        %v5862 = vadd.f32 %v1118, %v5861
        %v5863 = vpop.f32.mrb[0].mxu0
        %v5864 = vpop.f32.mrb[0].mxu0
        %v5865 = vadd.f32 %v1119, %v5864
        %v5866 = vpop.f32.mrb[0].mxu0
        %5867 = vmatprep.mubr.bf16.mxu0 0
        %5868 = vmatmul.mubr.bf16.gmra.mrb[0].mxu0 %v5797
        %v5869 = vpop.f32.mrb[0].mxu0
        %v5870 = vadd.f32 %v1120, %v5869
        %v5871 = vpop.f32.mrb[0].mxu0
        %v5872 = vpop.f32.mrb[0].mxu0
        %v5873 = vadd.f32 %v1121, %v5872
        %v5874 = vpop.f32.mrb[0].mxu0
        %5875 = vdwg.mxu0
        %v5876 = vsel %vm2089, %v5531, -inf
        %5877 = vmax.xlane.f32.xlu0 %v5876
        %v5878 = vpop.xlane.xlu0 %5877
        %v5879 = vsel %vm2089, %v5534, -inf
        %5880 = vmax.xlane.f32.xlu0 %v5879
        %v5881 = vpop.xlane.xlu0 %5880
        %v5882 = vsel %vm2089, %v5539, -inf
        %5883 = vmax.xlane.f32.xlu0 %v5882
        %v5884 = vpop.xlane.xlu0 %5883
        %v5885 = vsel %vm2089, %v5542, -inf
        %5886 = vmax.xlane.f32.xlu0 %v5885
        %v5887 = vpop.xlane.xlu0 %5886
        %v5888 = vsel %vm2089, %v5547, -inf
        %5889 = vmax.xlane.f32.xlu0 %v5888
        %v5890 = vpop.xlane.xlu0 %5889
        %v5891 = vsel %vm2089, %v5550, -inf
        %5892 = vmax.xlane.f32.xlu0 %v5891
        %v5893 = vpop.xlane.xlu0 %5892
        %v5894 = vsel %vm2089, %v5555, -inf
        %5895 = vmax.xlane.f32.xlu0 %v5894
        %v5896 = vpop.xlane.xlu0 %5895
        %v5897 = vsel %vm2089, %v5558, -inf
        %5898 = vmax.xlane.f32.xlu0 %v5897
        %v5899 = vpop.xlane.xlu0 %5898
        %v5900 = vsel %vm2089, %v5636, -inf
        %5901 = vmax.xlane.f32.xlu0 %v5900
        %v5902 = vpop.xlane.xlu0 %5901
        %v5903 = vsel %vm2089, %v5639, -inf
        %5904 = vmax.xlane.f32.xlu0 %v5903
        %v5905 = vpop.xlane.xlu0 %5904
        %v5906 = vsel %vm2089, %v5644, -inf
        %5907 = vmax.xlane.f32.xlu0 %v5906
        %v5908 = vpop.xlane.xlu0 %5907
        %v5909 = vsel %vm2089, %v5647, -inf
        %5910 = vmax.xlane.f32.xlu0 %v5909
        %v5911 = vpop.xlane.xlu0 %5910
        %v5912 = vsel %vm2089, %v5652, -inf
        %5913 = vmax.xlane.f32.xlu0 %v5912
        %v5914 = vpop.xlane.xlu0 %5913
        %v5915 = vsel %vm2089, %v5655, -inf
        %5916 = vmax.xlane.f32.xlu0 %v5915
        %v5917 = vpop.xlane.xlu0 %5916
        %v5918 = vsel %vm2089, %v5660, -inf
        %5919 = vmax.xlane.f32.xlu0 %v5918
        %v5920 = vpop.xlane.xlu0 %5919
        %v5921 = vsel %vm2089, %v5663, -inf
        %5922 = vmax.xlane.f32.xlu0 %v5921
        %v5923 = vpop.xlane.xlu0 %5922
        %v5924 = vsel %vm2089, %v5741, -inf
        %5925 = vmax.xlane.f32.xlu0 %v5924
        %v5926 = vpop.xlane.xlu0 %5925
        %v5927 = vsel %vm2089, %v5744, -inf
        %5928 = vmax.xlane.f32.xlu0 %v5927
        %v5929 = vpop.xlane.xlu0 %5928
        %v5930 = vsel %vm2089, %v5749, -inf
        %5931 = vmax.xlane.f32.xlu0 %v5930
        %v5932 = vpop.xlane.xlu0 %5931
        %v5933 = vsel %vm2089, %v5752, -inf
        %5934 = vmax.xlane.f32.xlu0 %v5933
        %v5935 = vpop.xlane.xlu0 %5934
        %v5936 = vsel %vm2089, %v5757, -inf
        %5937 = vmax.xlane.f32.xlu0 %v5936
        %v5938 = vpop.xlane.xlu0 %5937
        %v5939 = vsel %vm2089, %v5760, -inf
        %5940 = vmax.xlane.f32.xlu0 %v5939
        %v5941 = vpop.xlane.xlu0 %5940
        %v5942 = vsel %vm2089, %v5765, -inf
        %5943 = vmax.xlane.f32.xlu0 %v5942
        %v5944 = vpop.xlane.xlu0 %5943
        %v5945 = vsel %vm2089, %v5768, -inf
        %5946 = vmax.xlane.f32.xlu0 %v5945
        %v5947 = vpop.xlane.xlu0 %5946
        %v5948 = vsel %vm2089, %v5846, -inf
        %5949 = vmax.xlane.f32.xlu0 %v5948
        %v5950 = vpop.xlane.xlu0 %5949
        %v5951 = vsel %vm2089, %v5849, -inf
        %5952 = vmax.xlane.f32.xlu0 %v5951
        %v5953 = vpop.xlane.xlu0 %5952
        %v5954 = vsel %vm2089, %v5854, -inf
        %5955 = vmax.xlane.f32.xlu0 %v5954
        %v5956 = vpop.xlane.xlu0 %5955
        %v5957 = vsel %vm2089, %v5857, -inf
        %5958 = vmax.xlane.f32.xlu0 %v5957
        %v5959 = vpop.xlane.xlu0 %5958
        %v5960 = vsel %vm2089, %v5862, -inf
        %5961 = vmax.xlane.f32.xlu0 %v5960
        %v5962 = vpop.xlane.xlu0 %5961
        %v5963 = vsel %vm2089, %v5865, -inf
        %5964 = vmax.xlane.f32.xlu0 %v5963
        %v5965 = vpop.xlane.xlu0 %5964
        %v5966 = vsel %vm2089, %v5870, -inf
        %5967 = vmax.xlane.f32.xlu0 %v5966
        %v5968 = vpop.xlane.xlu0 %5967
        %v5969 = vsel %vm2089, %v5873, -inf
        %5970 = vmax.xlane.f32.xlu0 %v5969
        %v5971 = vpop.xlane.xlu0 %5970
        %v5972 = vsub.f32 %v5531, %v5878
        %v5973 = vsub.f32 %v5534, %v5881
        %v5974 = vsub.f32 %v5539, %v5884
        %v5975 = vsub.f32 %v5542, %v5887
        %v5976 = vsub.f32 %v5547, %v5890
        %v5977 = vsub.f32 %v5550, %v5893
        %v5978 = vsub.f32 %v5555, %v5896
        %v5979 = vsub.f32 %v5558, %v5899
        %v5980 = vsub.f32 %v5636, %v5902
        %v5981 = vsub.f32 %v5639, %v5905
        %v5982 = vsub.f32 %v5644, %v5908
        %v5983 = vsub.f32 %v5647, %v5911
        %v5984 = vsub.f32 %v5652, %v5914
        %v5985 = vsub.f32 %v5655, %v5917
        %v5986 = vsub.f32 %v5660, %v5920
        %v5987 = vsub.f32 %v5663, %v5923
        %v5988 = vsub.f32 %v5741, %v5926
        %v5989 = vsub.f32 %v5744, %v5929
        %v5990 = vsub.f32 %v5749, %v5932
        %v5991 = vsub.f32 %v5752, %v5935
        %v5992 = vsub.f32 %v5757, %v5938
        %v5993 = vsub.f32 %v5760, %v5941
        %v5994 = vsub.f32 %v5765, %v5944
        %v5995 = vsub.f32 %v5768, %v5947
        %v5996 = vsub.f32 %v5846, %v5950
        %v5997 = vsub.f32 %v5849, %v5953
        %v5998 = vsub.f32 %v5854, %v5956
        %v5999 = vsub.f32 %v5857, %v5959
        %v6000 = vsub.f32 %v5862, %v5962
        %v6001 = vsub.f32 %v5865, %v5965
        %v6002 = vsub.f32 %v5870, %v5968
        %v6003 = vsub.f32 %v5873, %v5971
        %v6004 = vmul.f32 %v5972, 1.442695
        %v6005 = vpow.pop %v6004
        %v6006 = vmul.f32 %v5973, 1.442695
        %v6007 = vpow.pop %v6006
        %v6008 = vmul.f32 %v5974, 1.442695
        %v6009 = vpow.pop %v6008
        %v6010 = vmul.f32 %v5975, 1.442695
        %v6011 = vpow.pop %v6010
        %v6012 = vmul.f32 %v5976, 1.442695
        %v6013 = vpow.pop %v6012
        %v6014 = vmul.f32 %v5977, 1.442695
        %v6015 = vpow.pop %v6014
        %v6016 = vmul.f32 %v5978, 1.442695
        %v6017 = vpow.pop %v6016
        %v6018 = vmul.f32 %v5979, 1.442695
        %v6019 = vpow.pop %v6018
        %v6020 = vmul.f32 %v5980, 1.442695
        %v6021 = vpow.pop %v6020
        %v6022 = vmul.f32 %v5981, 1.442695
        %v6023 = vpow.pop %v6022
        %v6024 = vmul.f32 %v5982, 1.442695
        %v6025 = vpow.pop %v6024
        %v6026 = vmul.f32 %v5983, 1.442695
        %v6027 = vpow.pop %v6026
        %v6028 = vmul.f32 %v5984, 1.442695
        %v6029 = vpow.pop %v6028
        %v6030 = vmul.f32 %v5985, 1.442695
        %v6031 = vpow.pop %v6030
        %v6032 = vmul.f32 %v5986, 1.442695
        %v6033 = vpow.pop %v6032
        %v6034 = vmul.f32 %v5987, 1.442695
        %v6035 = vpow.pop %v6034
        %v6036 = vmul.f32 %v5988, 1.442695
        %v6037 = vpow.pop %v6036
        %v6038 = vmul.f32 %v5989, 1.442695
        %v6039 = vpow.pop %v6038
        %v6040 = vmul.f32 %v5990, 1.442695
        %v6041 = vpow.pop %v6040
        %v6042 = vmul.f32 %v5991, 1.442695
        %v6043 = vpow.pop %v6042
        %v6044 = vmul.f32 %v5992, 1.442695
        %v6045 = vpow.pop %v6044
        %v6046 = vmul.f32 %v5993, 1.442695
        %v6047 = vpow.pop %v6046
        %v6048 = vmul.f32 %v5994, 1.442695
        %v6049 = vpow.pop %v6048
        %v6050 = vmul.f32 %v5995, 1.442695
        %v6051 = vpow.pop %v6050
        %v6052 = vmul.f32 %v5996, 1.442695
        %v6053 = vpow.pop %v6052
        %v6054 = vmul.f32 %v5997, 1.442695
        %v6055 = vpow.pop %v6054
        %v6056 = vmul.f32 %v5998, 1.442695
        %v6057 = vpow.pop %v6056
        %v6058 = vmul.f32 %v5999, 1.442695
        %v6059 = vpow.pop %v6058
        %v6060 = vmul.f32 %v6000, 1.442695
        %v6061 = vpow.pop %v6060
        %v6062 = vmul.f32 %v6001, 1.442695
        %v6063 = vpow.pop %v6062
        %v6064 = vmul.f32 %v6002, 1.442695
        %v6065 = vpow.pop %v6064
        %v6066 = vmul.f32 %v6003, 1.442695
        %v6067 = vpow.pop %v6066
        %v6068 = vsel %vm2089, %v6005, 0.0
        %6069 = vadd.xlane.f32.xlu0 %v6068
        %v6070 = vpop.xlane.xlu0 %6069
        %v6071 = vsel %vm2089, %v6007, 0.0
        %6072 = vadd.xlane.f32.xlu0 %v6071
        %v6073 = vpop.xlane.xlu0 %6072
        %v6074 = vsel %vm2089, %v6009, 0.0
        %6075 = vadd.xlane.f32.xlu0 %v6074
        %v6076 = vpop.xlane.xlu0 %6075
        %v6077 = vsel %vm2089, %v6011, 0.0
        %6078 = vadd.xlane.f32.xlu0 %v6077
        %v6079 = vpop.xlane.xlu0 %6078
        %v6080 = vsel %vm2089, %v6013, 0.0
        %6081 = vadd.xlane.f32.xlu0 %v6080
        %v6082 = vpop.xlane.xlu0 %6081
        %v6083 = vsel %vm2089, %v6015, 0.0
        %6084 = vadd.xlane.f32.xlu0 %v6083
        %v6085 = vpop.xlane.xlu0 %6084
        %v6086 = vsel %vm2089, %v6017, 0.0
        %6087 = vadd.xlane.f32.xlu0 %v6086
        %v6088 = vpop.xlane.xlu0 %6087
        %v6089 = vsel %vm2089, %v6019, 0.0
        %6090 = vadd.xlane.f32.xlu0 %v6089
        %v6091 = vpop.xlane.xlu0 %6090
        %v6092 = vsel %vm2089, %v6021, 0.0
        %6093 = vadd.xlane.f32.xlu0 %v6092
        %v6094 = vpop.xlane.xlu0 %6093
        %v6095 = vsel %vm2089, %v6023, 0.0
        %6096 = vadd.xlane.f32.xlu0 %v6095
        %v6097 = vpop.xlane.xlu0 %6096
        %v6098 = vsel %vm2089, %v6025, 0.0
        %6099 = vadd.xlane.f32.xlu0 %v6098
        %v6100 = vpop.xlane.xlu0 %6099
        %v6101 = vsel %vm2089, %v6027, 0.0
        %6102 = vadd.xlane.f32.xlu0 %v6101
        %v6103 = vpop.xlane.xlu0 %6102
        %v6104 = vsel %vm2089, %v6029, 0.0
        %6105 = vadd.xlane.f32.xlu0 %v6104
        %v6106 = vpop.xlane.xlu0 %6105
        %v6107 = vsel %vm2089, %v6031, 0.0
        %6108 = vadd.xlane.f32.xlu0 %v6107
        %v6109 = vpop.xlane.xlu0 %6108
        %v6110 = vsel %vm2089, %v6033, 0.0
        %6111 = vadd.xlane.f32.xlu0 %v6110
        %v6112 = vpop.xlane.xlu0 %6111
        %v6113 = vsel %vm2089, %v6035, 0.0
        %6114 = vadd.xlane.f32.xlu0 %v6113
        %v6115 = vpop.xlane.xlu0 %6114
        %v6116 = vsel %vm2089, %v6037, 0.0
        %6117 = vadd.xlane.f32.xlu0 %v6116
        %v6118 = vpop.xlane.xlu0 %6117
        %v6119 = vsel %vm2089, %v6039, 0.0
        %6120 = vadd.xlane.f32.xlu0 %v6119
        %v6121 = vpop.xlane.xlu0 %6120
        %v6122 = vsel %vm2089, %v6041, 0.0
        %6123 = vadd.xlane.f32.xlu0 %v6122
        %v6124 = vpop.xlane.xlu0 %6123
        %v6125 = vsel %vm2089, %v6043, 0.0
        %6126 = vadd.xlane.f32.xlu0 %v6125
        %v6127 = vpop.xlane.xlu0 %6126
        %v6128 = vsel %vm2089, %v6045, 0.0
        %6129 = vadd.xlane.f32.xlu0 %v6128
        %v6130 = vpop.xlane.xlu0 %6129
        %v6131 = vsel %vm2089, %v6047, 0.0
        %6132 = vadd.xlane.f32.xlu0 %v6131
        %v6133 = vpop.xlane.xlu0 %6132
        %v6134 = vsel %vm2089, %v6049, 0.0
        %6135 = vadd.xlane.f32.xlu0 %v6134
        %v6136 = vpop.xlane.xlu0 %6135
        %v6137 = vsel %vm2089, %v6051, 0.0
        %6138 = vadd.xlane.f32.xlu0 %v6137
        %v6139 = vpop.xlane.xlu0 %6138
        %v6140 = vsel %vm2089, %v6053, 0.0
        %6141 = vadd.xlane.f32.xlu0 %v6140
        %v6142 = vpop.xlane.xlu0 %6141
        %v6143 = vsel %vm2089, %v6055, 0.0
        %6144 = vadd.xlane.f32.xlu0 %v6143
        %v6145 = vpop.xlane.xlu0 %6144
        %v6146 = vsel %vm2089, %v6057, 0.0
        %6147 = vadd.xlane.f32.xlu0 %v6146
        %v6148 = vpop.xlane.xlu0 %6147
        %v6149 = vsel %vm2089, %v6059, 0.0
        %6150 = vadd.xlane.f32.xlu0 %v6149
        %v6151 = vpop.xlane.xlu0 %6150
        %v6152 = vsel %vm2089, %v6061, 0.0
        %6153 = vadd.xlane.f32.xlu0 %v6152
        %v6154 = vpop.xlane.xlu0 %6153
        %v6155 = vsel %vm2089, %v6063, 0.0
        %6156 = vadd.xlane.f32.xlu0 %v6155
        %v6157 = vpop.xlane.xlu0 %6156
        %v6158 = vsel %vm2089, %v6065, 0.0
        %6159 = vadd.xlane.f32.xlu0 %v6158
        %v6160 = vpop.xlane.xlu0 %6159
        %v6161 = vsel %vm2089, %v6067, 0.0
        %6162 = vadd.xlane.f32.xlu0 %v6161
        %v6163 = vpop.xlane.xlu0 %6162
        %v6164 = vrcp.pop %v6070
        %v6165 = vrcp.pop %v6073
        %v6166 = vrcp.pop %v6076
        %v6167 = vrcp.pop %v6079
        %v6168 = vrcp.pop %v6082
        %v6169 = vrcp.pop %v6085
        %v6170 = vrcp.pop %v6088
        %v6171 = vrcp.pop %v6091
        %v6172 = vrcp.pop %v6094
        %v6173 = vrcp.pop %v6097
        %v6174 = vrcp.pop %v6100
        %v6175 = vrcp.pop %v6103
        %v6176 = vrcp.pop %v6106
        %v6177 = vrcp.pop %v6109
        %v6178 = vrcp.pop %v6112
        %v6179 = vrcp.pop %v6115
        %v6180 = vrcp.pop %v6118
        %v6181 = vrcp.pop %v6121
        %v6182 = vrcp.pop %v6124
        %v6183 = vrcp.pop %v6127
        %v6184 = vrcp.pop %v6130
        %v6185 = vrcp.pop %v6133
        %v6186 = vrcp.pop %v6136
        %v6187 = vrcp.pop %v6139
        %v6188 = vrcp.pop %v6142
        %v6189 = vrcp.pop %v6145
        %v6190 = vrcp.pop %v6148
        %v6191 = vrcp.pop %v6151
        %v6192 = vrcp.pop %v6154
        %v6193 = vrcp.pop %v6157
        %v6194 = vrcp.pop %v6160
        %v6195 = vrcp.pop %v6163
        %v6196 = vmul.f32 %v6005, %v6164
        %v6197 = vmul.f32 %v6007, %v6165
        %v6198 = vmul.f32 %v6009, %v6166
        %v6199 = vmul.f32 %v6011, %v6167
        %v6200 = vmul.f32 %v6013, %v6168
        %v6201 = vmul.f32 %v6015, %v6169
        %v6202 = vmul.f32 %v6017, %v6170
        %v6203 = vmul.f32 %v6019, %v6171
        %v6204 = vmul.f32 %v6021, %v6172
        %v6205 = vmul.f32 %v6023, %v6173
        %v6206 = vmul.f32 %v6025, %v6174
        %v6207 = vmul.f32 %v6027, %v6175
        %v6208 = vmul.f32 %v6029, %v6176
        %v6209 = vmul.f32 %v6031, %v6177
        %v6210 = vmul.f32 %v6033, %v6178
        %v6211 = vmul.f32 %v6035, %v6179
        %v6212 = vmul.f32 %v6037, %v6180
        %v6213 = vmul.f32 %v6039, %v6181
        %v6214 = vmul.f32 %v6041, %v6182
        %v6215 = vmul.f32 %v6043, %v6183
        %v6216 = vmul.f32 %v6045, %v6184
        %v6217 = vmul.f32 %v6047, %v6185
        %v6218 = vmul.f32 %v6049, %v6186
        %v6219 = vmul.f32 %v6051, %v6187
        %v6220 = vmul.f32 %v6053, %v6188
        %v6221 = vmul.f32 %v6055, %v6189
        %v6222 = vmul.f32 %v6057, %v6190
        %v6223 = vmul.f32 %v6059, %v6191
        %v6224 = vmul.f32 %v6061, %v6192
        %v6225 = vmul.f32 %v6063, %v6193
        %v6226 = vmul.f32 %v6065, %v6194
        %v6227 = vmul.f32 %v6067, %v6195
        %v6228 = vpack.c.bf16 %v6197, %v6196
        %v6229 = vpack.c.bf16 %v6199, %v6198
        %v6230 = vpack.c.bf16 %v6201, %v6200
        %v6231 = vpack.c.bf16 %v6203, %v6202
        %v6232 = vpack.c.bf16 %v6205, %v6204
        %v6233 = vpack.c.bf16 %v6207, %v6206
        %v6234 = vpack.c.bf16 %v6209, %v6208
        %v6235 = vpack.c.bf16 %v6211, %v6210
        %v6236 = vpack.c.bf16 %v6213, %v6212
        %v6237 = vpack.c.bf16 %v6215, %v6214
        %v6238 = vpack.c.bf16 %v6217, %v6216
        %v6239 = vpack.c.bf16 %v6219, %v6218
        %v6240 = vpack.c.bf16 %v6221, %v6220
        %v6241 = vpack.c.bf16 %v6223, %v6222
        %v6242 = vpack.c.bf16 %v6225, %v6224
        %v6243 = vpack.c.bf16 %v6227, %v6226
        %6244 = vrot.lane.b32.xlu0 %v1716, 32
        %v6245 = vpop.permute.xlu0 %6244
        %6246 = vrot.lane.b32.xlu0 %v1717, 32
        %v6247 = vpop.permute.xlu0 %6246
        %6248 = vrot.lane.b32.xlu0 %v1718, 32
        %v6249 = vpop.permute.xlu0 %6248
        %6250 = vrot.lane.b32.xlu0 %v1719, 32
        %v6251 = vpop.permute.xlu0 %6250
        %v6257 = vsel %vm2089, %v6228, 0
        %v6260 = vsel %vm2089, %v6229, 0
        %v6263 = vsel %vm2089, %v6230, 0
        %v6266 = vsel %vm2089, %v6231, 0
        %6268 = vmatprep.subr.bf16.mxu0 0
        %6269 = vmatpush1.bf16.msra.mxu0 %v6245
        %6270 = vmatprep.subr.bf16.mxu0 0
        %6271 = vmatpush1.bf16.msra.mxu0 %v6247
        %6272 = vmatprep.subr.bf16.mxu0 0
        %6273 = vmatpush1.bf16.msra.mxu0 %v6249
        %6274 = vmatprep.subr.bf16.mxu0 0
        %6275 = vmatpush1.bf16.msra.mxu0 %v6251
        %6276 = vmatprep.subr.bf16.mxu0 0
        %6277 = vmatpush1.bf16.msra.mxu0 0
        %6278 = vmatprep.subr.bf16.mxu0 0
        %6279 = vmatpush1.bf16.msra.mxu0 0
        %6280 = vmatprep.subr.bf16.mxu0 0
        %6281 = vmatpush1.bf16.msra.mxu0 0
        %6282 = vmatprep.subr.bf16.mxu0 0
        %6283 = vmatpush1.bf16.msra.mxu0 0
        %6284 = vmatprep.subr.bf16.mxu0 0
        %6285 = vmatpush1.bf16.msra.mxu0 0
        %6286 = vmatprep.subr.bf16.mxu0 0
        %6287 = vmatpush1.bf16.msra.mxu0 0
        %6288 = vmatprep.subr.bf16.mxu0 0
        %6289 = vmatpush1.bf16.msra.mxu0 0
        %6290 = vmatprep.subr.bf16.mxu0 0
        %6291 = vmatpush1.bf16.msra.mxu0 0
        %6292 = vmatprep.subr.bf16.mxu0 0
        %6293 = vmatpush1.bf16.msra.mxu0 0
        %6294 = vmatprep.subr.bf16.mxu0 0
        %6295 = vmatpush1.bf16.msra.mxu0 0
        %6296 = vmatprep.subr.bf16.mxu0 0
        %6297 = vmatpush1.bf16.msra.mxu0 0
        %6298 = vmatprep.subr.bf16.mxu0 0
        %6299 = vmatpush1.bf16.msra.mxu0 0
        %6300 = vmatprep.mubr.bf16.mxu0 0
        %6301 = vmatmul.mubr.bf16.gmra.mrb[0].mxu0 %v6257
        %v6302 = vpop.f32.mrb[0].mxu0
        %v6303 = vadd.f32 0.0, %v6302
        %v6304 = vpop.f32.mrb[0].mxu0
        %v6305 = vpop.f32.mrb[0].mxu0
        %v6306 = vadd.f32 0.0, %v6305
        %v6307 = vpop.f32.mrb[0].mxu0
        %6308 = vmatprep.mubr.bf16.mxu0 0
        %6309 = vmatmul.mubr.bf16.gmra.mrb[0].mxu0 %v6260
        %v6310 = vpop.f32.mrb[0].mxu0
        %v6311 = vadd.f32 0.0, %v6310
        %v6312 = vpop.f32.mrb[0].mxu0
        %v6313 = vpop.f32.mrb[0].mxu0
        %v6314 = vadd.f32 0.0, %v6313
        %v6315 = vpop.f32.mrb[0].mxu0
        %6316 = vmatprep.mubr.bf16.mxu0 0
        %6317 = vmatmul.mubr.bf16.gmra.mrb[0].mxu0 %v6263
        %v6318 = vpop.f32.mrb[0].mxu0
        %v6319 = vadd.f32 0.0, %v6318
        %v6320 = vpop.f32.mrb[0].mxu0
        %v6321 = vpop.f32.mrb[0].mxu0
        %v6322 = vadd.f32 0.0, %v6321
        %v6323 = vpop.f32.mrb[0].mxu0
        %6324 = vmatprep.mubr.bf16.mxu0 0
        %6325 = vmatmul.mubr.bf16.gmra.mrb[0].mxu0 %v6266
        %v6326 = vpop.f32.mrb[0].mxu0
        %v6327 = vadd.f32 0.0, %v6326
        %v6328 = vpop.f32.mrb[0].mxu0
        %v6329 = vpop.f32.mrb[0].mxu0
        %v6330 = vadd.f32 0.0, %v6329
        %v6331 = vpop.f32.mrb[0].mxu0
        %6332 = vdwg.mxu0
        %6333 = vrot.lane.b32.xlu0 %v1720, 32
        %v6334 = vpop.permute.xlu0 %6333
        %6335 = vrot.lane.b32.xlu0 %v1721, 32
        %v6336 = vpop.permute.xlu0 %6335
        %6337 = vrot.lane.b32.xlu0 %v1722, 32
        %v6338 = vpop.permute.xlu0 %6337
        %6339 = vrot.lane.b32.xlu0 %v1723, 32
        %v6340 = vpop.permute.xlu0 %6339
        %v6346 = vsel %vm2089, %v6232, 0
        %v6349 = vsel %vm2089, %v6233, 0
        %v6352 = vsel %vm2089, %v6234, 0
        %v6355 = vsel %vm2089, %v6235, 0
        %6357 = vmatprep.subr.bf16.mxu0 0
        %6358 = vmatpush1.bf16.msra.mxu0 %v6334
        %6359 = vmatprep.subr.bf16.mxu0 0
        %6360 = vmatpush1.bf16.msra.mxu0 %v6336
        %6361 = vmatprep.subr.bf16.mxu0 0
        %6362 = vmatpush1.bf16.msra.mxu0 %v6338
        %6363 = vmatprep.subr.bf16.mxu0 0
        %6364 = vmatpush1.bf16.msra.mxu0 %v6340
        %6365 = vmatprep.subr.bf16.mxu0 0
        %6366 = vmatpush1.bf16.msra.mxu0 0
        %6367 = vmatprep.subr.bf16.mxu0 0
        %6368 = vmatpush1.bf16.msra.mxu0 0
        %6369 = vmatprep.subr.bf16.mxu0 0
        %6370 = vmatpush1.bf16.msra.mxu0 0
        %6371 = vmatprep.subr.bf16.mxu0 0
        %6372 = vmatpush1.bf16.msra.mxu0 0
        %6373 = vmatprep.subr.bf16.mxu0 0
        %6374 = vmatpush1.bf16.msra.mxu0 0
        %6375 = vmatprep.subr.bf16.mxu0 0
        %6376 = vmatpush1.bf16.msra.mxu0 0
        %6377 = vmatprep.subr.bf16.mxu0 0
        %6378 = vmatpush1.bf16.msra.mxu0 0
        %6379 = vmatprep.subr.bf16.mxu0 0
        %6380 = vmatpush1.bf16.msra.mxu0 0
        %6381 = vmatprep.subr.bf16.mxu0 0
        %6382 = vmatpush1.bf16.msra.mxu0 0
        %6383 = vmatprep.subr.bf16.mxu0 0
        %6384 = vmatpush1.bf16.msra.mxu0 0
        %6385 = vmatprep.subr.bf16.mxu0 0
        %6386 = vmatpush1.bf16.msra.mxu0 0
        %6387 = vmatprep.subr.bf16.mxu0 0
        %6388 = vmatpush1.bf16.msra.mxu0 0
        %6389 = vmatprep.mubr.bf16.mxu0 0
        %6390 = vmatmul.mubr.bf16.gmra.mrb[0].mxu0 %v6346
        %v6391 = vpop.f32.mrb[0].mxu0
        %v6392 = vadd.f32 0.0, %v6391
        %v6393 = vpop.f32.mrb[0].mxu0
        %v6394 = vpop.f32.mrb[0].mxu0
        %v6395 = vadd.f32 0.0, %v6394
        %v6396 = vpop.f32.mrb[0].mxu0
        %6397 = vmatprep.mubr.bf16.mxu0 0
        %6398 = vmatmul.mubr.bf16.gmra.mrb[0].mxu0 %v6349
        %v6399 = vpop.f32.mrb[0].mxu0
        %v6400 = vadd.f32 0.0, %v6399
        %v6401 = vpop.f32.mrb[0].mxu0
        %v6402 = vpop.f32.mrb[0].mxu0
        %v6403 = vadd.f32 0.0, %v6402
        %v6404 = vpop.f32.mrb[0].mxu0
        %6405 = vmatprep.mubr.bf16.mxu0 0
        %6406 = vmatmul.mubr.bf16.gmra.mrb[0].mxu0 %v6352
        %v6407 = vpop.f32.mrb[0].mxu0
        %v6408 = vadd.f32 0.0, %v6407
        %v6409 = vpop.f32.mrb[0].mxu0
        %v6410 = vpop.f32.mrb[0].mxu0
        %v6411 = vadd.f32 0.0, %v6410
        %v6412 = vpop.f32.mrb[0].mxu0
        %6413 = vmatprep.mubr.bf16.mxu0 0
        %6414 = vmatmul.mubr.bf16.gmra.mrb[0].mxu0 %v6355
        %v6415 = vpop.f32.mrb[0].mxu0
        %v6416 = vadd.f32 0.0, %v6415
        %v6417 = vpop.f32.mrb[0].mxu0
        %v6418 = vpop.f32.mrb[0].mxu0
        %v6419 = vadd.f32 0.0, %v6418
        %v6420 = vpop.f32.mrb[0].mxu0
        %6421 = vdwg.mxu0
        %6422 = vrot.lane.b32.xlu0 %v1724, 32
        %v6423 = vpop.permute.xlu0 %6422
        %6424 = vrot.lane.b32.xlu0 %v1725, 32
        %v6425 = vpop.permute.xlu0 %6424
        %6426 = vrot.lane.b32.xlu0 %v1726, 32
        %v6427 = vpop.permute.xlu0 %6426
        %6428 = vrot.lane.b32.xlu0 %v1727, 32
        %v6429 = vpop.permute.xlu0 %6428
        %v6435 = vsel %vm2089, %v6236, 0
        %v6438 = vsel %vm2089, %v6237, 0
        %v6441 = vsel %vm2089, %v6238, 0
        %v6444 = vsel %vm2089, %v6239, 0
        %6446 = vmatprep.subr.bf16.mxu0 0
        %6447 = vmatpush1.bf16.msra.mxu0 %v6423
        %6448 = vmatprep.subr.bf16.mxu0 0
        %6449 = vmatpush1.bf16.msra.mxu0 %v6425
        %6450 = vmatprep.subr.bf16.mxu0 0
        %6451 = vmatpush1.bf16.msra.mxu0 %v6427
        %6452 = vmatprep.subr.bf16.mxu0 0
        %6453 = vmatpush1.bf16.msra.mxu0 %v6429
        %6454 = vmatprep.subr.bf16.mxu0 0
        %6455 = vmatpush1.bf16.msra.mxu0 0
        %6456 = vmatprep.subr.bf16.mxu0 0
        %6457 = vmatpush1.bf16.msra.mxu0 0
        %6458 = vmatprep.subr.bf16.mxu0 0
        %6459 = vmatpush1.bf16.msra.mxu0 0
        %6460 = vmatprep.subr.bf16.mxu0 0
        %6461 = vmatpush1.bf16.msra.mxu0 0
        %6462 = vmatprep.subr.bf16.mxu0 0
        %6463 = vmatpush1.bf16.msra.mxu0 0
        %6464 = vmatprep.subr.bf16.mxu0 0
        %6465 = vmatpush1.bf16.msra.mxu0 0
        %6466 = vmatprep.subr.bf16.mxu0 0
        %6467 = vmatpush1.bf16.msra.mxu0 0
        %6468 = vmatprep.subr.bf16.mxu0 0
        %6469 = vmatpush1.bf16.msra.mxu0 0
        %6470 = vmatprep.subr.bf16.mxu0 0
        %6471 = vmatpush1.bf16.msra.mxu0 0
        %6472 = vmatprep.subr.bf16.mxu0 0
        %6473 = vmatpush1.bf16.msra.mxu0 0
        %6474 = vmatprep.subr.bf16.mxu0 0
        %6475 = vmatpush1.bf16.msra.mxu0 0
        %6476 = vmatprep.subr.bf16.mxu0 0
        %6477 = vmatpush1.bf16.msra.mxu0 0
        %6478 = vmatprep.mubr.bf16.mxu0 0
        %6479 = vmatmul.mubr.bf16.gmra.mrb[0].mxu0 %v6435
        %v6480 = vpop.f32.mrb[0].mxu0
        %v6481 = vadd.f32 0.0, %v6480
        %v6482 = vpop.f32.mrb[0].mxu0
        %v6483 = vpop.f32.mrb[0].mxu0
        %v6484 = vadd.f32 0.0, %v6483
        %v6485 = vpop.f32.mrb[0].mxu0
        %6486 = vmatprep.mubr.bf16.mxu0 0
        %6487 = vmatmul.mubr.bf16.gmra.mrb[0].mxu0 %v6438
        %v6488 = vpop.f32.mrb[0].mxu0
        %v6489 = vadd.f32 0.0, %v6488
        %v6490 = vpop.f32.mrb[0].mxu0
        %v6491 = vpop.f32.mrb[0].mxu0
        %v6492 = vadd.f32 0.0, %v6491
        %v6493 = vpop.f32.mrb[0].mxu0
        %6494 = vmatprep.mubr.bf16.mxu0 0
        %6495 = vmatmul.mubr.bf16.gmra.mrb[0].mxu0 %v6441
        %v6496 = vpop.f32.mrb[0].mxu0
        %v6497 = vadd.f32 0.0, %v6496
        %v6498 = vpop.f32.mrb[0].mxu0
        %v6499 = vpop.f32.mrb[0].mxu0
        %v6500 = vadd.f32 0.0, %v6499
        %v6501 = vpop.f32.mrb[0].mxu0
        %6502 = vmatprep.mubr.bf16.mxu0 0
        %6503 = vmatmul.mubr.bf16.gmra.mrb[0].mxu0 %v6444
        %v6504 = vpop.f32.mrb[0].mxu0
        %v6505 = vadd.f32 0.0, %v6504
        %v6506 = vpop.f32.mrb[0].mxu0
        %v6507 = vpop.f32.mrb[0].mxu0
        %v6508 = vadd.f32 0.0, %v6507
        %v6509 = vpop.f32.mrb[0].mxu0
        %6510 = vdwg.mxu0
        %6511 = vrot.lane.b32.xlu0 %v1728, 32
        %v6512 = vpop.permute.xlu0 %6511
        %6513 = vrot.lane.b32.xlu0 %v1729, 32
        %v6514 = vpop.permute.xlu0 %6513
        %6515 = vrot.lane.b32.xlu0 %v1730, 32
        %v6516 = vpop.permute.xlu0 %6515
        %6517 = vrot.lane.b32.xlu0 %v1731, 32
        %v6518 = vpop.permute.xlu0 %6517
        %v6524 = vsel %vm2089, %v6240, 0
        %v6527 = vsel %vm2089, %v6241, 0
        %v6530 = vsel %vm2089, %v6242, 0
        %v6533 = vsel %vm2089, %v6243, 0
        %6535 = vmatprep.subr.bf16.mxu0 0
        %6536 = vmatpush1.bf16.msra.mxu0 %v6512
        %6537 = vmatprep.subr.bf16.mxu0 0
        %6538 = vmatpush1.bf16.msra.mxu0 %v6514
        %6539 = vmatprep.subr.bf16.mxu0 0
        %6540 = vmatpush1.bf16.msra.mxu0 %v6516
        %6541 = vmatprep.subr.bf16.mxu0 0
        %6542 = vmatpush1.bf16.msra.mxu0 %v6518
        %6543 = vmatprep.subr.bf16.mxu0 0
        %6544 = vmatpush1.bf16.msra.mxu0 0
        %6545 = vmatprep.subr.bf16.mxu0 0
        %6546 = vmatpush1.bf16.msra.mxu0 0
        %6547 = vmatprep.subr.bf16.mxu0 0
        %6548 = vmatpush1.bf16.msra.mxu0 0
        %6549 = vmatprep.subr.bf16.mxu0 0
        %6550 = vmatpush1.bf16.msra.mxu0 0
        %6551 = vmatprep.subr.bf16.mxu0 0
        %6552 = vmatpush1.bf16.msra.mxu0 0
        %6553 = vmatprep.subr.bf16.mxu0 0
        %6554 = vmatpush1.bf16.msra.mxu0 0
        %6555 = vmatprep.subr.bf16.mxu0 0
        %6556 = vmatpush1.bf16.msra.mxu0 0
        %6557 = vmatprep.subr.bf16.mxu0 0
        %6558 = vmatpush1.bf16.msra.mxu0 0
        %6559 = vmatprep.subr.bf16.mxu0 0
        %6560 = vmatpush1.bf16.msra.mxu0 0
        %6561 = vmatprep.subr.bf16.mxu0 0
        %6562 = vmatpush1.bf16.msra.mxu0 0
        %6563 = vmatprep.subr.bf16.mxu0 0
        %6564 = vmatpush1.bf16.msra.mxu0 0
        %6565 = vmatprep.subr.bf16.mxu0 0
        %6566 = vmatpush1.bf16.msra.mxu0 0
        %6567 = vmatprep.mubr.bf16.mxu0 0
        %6568 = vmatmul.mubr.bf16.gmra.mrb[0].mxu0 %v6524
        %v6569 = vpop.f32.mrb[0].mxu0
        %v6570 = vadd.f32 0.0, %v6569
        %v6571 = vpop.f32.mrb[0].mxu0
        %v6572 = vpop.f32.mrb[0].mxu0
        %v6573 = vadd.f32 0.0, %v6572
        %v6574 = vpop.f32.mrb[0].mxu0
        %6575 = vmatprep.mubr.bf16.mxu0 0
        %6576 = vmatmul.mubr.bf16.gmra.mrb[0].mxu0 %v6527
        %v6577 = vpop.f32.mrb[0].mxu0
        %v6578 = vadd.f32 0.0, %v6577
        %v6579 = vpop.f32.mrb[0].mxu0
        %v6580 = vpop.f32.mrb[0].mxu0
        %v6581 = vadd.f32 0.0, %v6580
        %v6582 = vpop.f32.mrb[0].mxu0
        %6583 = vmatprep.mubr.bf16.mxu0 0
        %6584 = vmatmul.mubr.bf16.gmra.mrb[0].mxu0 %v6530
        %v6585 = vpop.f32.mrb[0].mxu0
        %v6586 = vadd.f32 0.0, %v6585
        %v6587 = vpop.f32.mrb[0].mxu0
        %v6588 = vpop.f32.mrb[0].mxu0
        %v6589 = vadd.f32 0.0, %v6588
        %v6590 = vpop.f32.mrb[0].mxu0
        %6591 = vmatprep.mubr.bf16.mxu0 0
        %6592 = vmatmul.mubr.bf16.gmra.mrb[0].mxu0 %v6533
        %v6593 = vpop.f32.mrb[0].mxu0
        %v6594 = vadd.f32 0.0, %v6593
        %v6595 = vpop.f32.mrb[0].mxu0
        %v6596 = vpop.f32.mrb[0].mxu0
        %v6597 = vadd.f32 0.0, %v6596
        %v6598 = vpop.f32.mrb[0].mxu0
        %6599 = vdwg.mxu0
        %6632 = vrot.lane.b32.xlu0 %v6303, 96
        %v6633 = vpop.permute.xlu0 %6632
        %6634 = vrot.lane.b32.xlu0 %v6306, 96
        %v6635 = vpop.permute.xlu0 %6634
        %6636 = vrot.lane.b32.xlu0 %v6311, 96
        %v6637 = vpop.permute.xlu0 %6636
        %6638 = vrot.lane.b32.xlu0 %v6314, 96
        %v6639 = vpop.permute.xlu0 %6638
        %6640 = vrot.lane.b32.xlu0 %v6319, 96
        %v6641 = vpop.permute.xlu0 %6640
        %6642 = vrot.lane.b32.xlu0 %v6322, 96
        %v6643 = vpop.permute.xlu0 %6642
        %6644 = vrot.lane.b32.xlu0 %v6327, 96
        %v6645 = vpop.permute.xlu0 %6644
        %6646 = vrot.lane.b32.xlu0 %v6330, 96
        %v6647 = vpop.permute.xlu0 %6646
        %6648 = vrot.lane.b32.xlu0 %v6392, 96
        %v6649 = vpop.permute.xlu0 %6648
        %6650 = vrot.lane.b32.xlu0 %v6395, 96
        %v6651 = vpop.permute.xlu0 %6650
        %6652 = vrot.lane.b32.xlu0 %v6400, 96
        %v6653 = vpop.permute.xlu0 %6652
        %6654 = vrot.lane.b32.xlu0 %v6403, 96
        %v6655 = vpop.permute.xlu0 %6654
        %6656 = vrot.lane.b32.xlu0 %v6408, 96
        %v6657 = vpop.permute.xlu0 %6656
        %6658 = vrot.lane.b32.xlu0 %v6411, 96
        %v6659 = vpop.permute.xlu0 %6658
        %6660 = vrot.lane.b32.xlu0 %v6416, 96
        %v6661 = vpop.permute.xlu0 %6660
        %6662 = vrot.lane.b32.xlu0 %v6419, 96
        %v6663 = vpop.permute.xlu0 %6662
        %6664 = vrot.lane.b32.xlu0 %v6481, 96
        %v6665 = vpop.permute.xlu0 %6664
        %6666 = vrot.lane.b32.xlu0 %v6484, 96
        %v6667 = vpop.permute.xlu0 %6666
        %6668 = vrot.lane.b32.xlu0 %v6489, 96
        %v6669 = vpop.permute.xlu0 %6668
        %6670 = vrot.lane.b32.xlu0 %v6492, 96
        %v6671 = vpop.permute.xlu0 %6670
        %6672 = vrot.lane.b32.xlu0 %v6497, 96
        %v6673 = vpop.permute.xlu0 %6672
        %6674 = vrot.lane.b32.xlu0 %v6500, 96
        %v6675 = vpop.permute.xlu0 %6674
        %6676 = vrot.lane.b32.xlu0 %v6505, 96
        %v6677 = vpop.permute.xlu0 %6676
        %6678 = vrot.lane.b32.xlu0 %v6508, 96
        %v6679 = vpop.permute.xlu0 %6678
        %6680 = vrot.lane.b32.xlu0 %v6570, 96
        %v6681 = vpop.permute.xlu0 %6680
        %6682 = vrot.lane.b32.xlu0 %v6573, 96
        %v6683 = vpop.permute.xlu0 %6682
        %6684 = vrot.lane.b32.xlu0 %v6578, 96
        %v6685 = vpop.permute.xlu0 %6684
        %6686 = vrot.lane.b32.xlu0 %v6581, 96
        %v6687 = vpop.permute.xlu0 %6686
        %6688 = vrot.lane.b32.xlu0 %v6586, 96
        %v6689 = vpop.permute.xlu0 %6688
        %6690 = vrot.lane.b32.xlu0 %v6589, 96
        %v6691 = vpop.permute.xlu0 %6690
        %6692 = vrot.lane.b32.xlu0 %v6594, 96
        %v6693 = vpop.permute.xlu0 %6692
        %6694 = vrot.lane.b32.xlu0 %v6597, 96
        %v6695 = vpop.permute.xlu0 %6694
        %vm6728 = vcmask 1048320
        %6729 = vst.msk [vmem:[#allocation3] sm:$0xff] %vm6728, %v6633
        %6730 = vst.msk [vmem:[#allocation3 + $0x8] sm:$0xff] %vm6728, %v6635
        %6731 = vst.msk [vmem:[#allocation3 + $0x10] sm:$0xff] %vm6728, %v6637
        %6732 = vst.msk [vmem:[#allocation3 + $0x18] sm:$0xff] %vm6728, %v6639
        %6733 = vst.msk [vmem:[#allocation3 + $0x20] sm:$0xff] %vm6728, %v6641
        %6734 = vst.msk [vmem:[#allocation3 + $0x28] sm:$0xff] %vm6728, %v6643
        %6735 = vst.msk [vmem:[#allocation3 + $0x30] sm:$0xff] %vm6728, %v6645
        %6736 = vst.msk [vmem:[#allocation3 + $0x38] sm:$0xff] %vm6728, %v6647
        %6737 = vst.msk [vmem:[#allocation3 + $0x40] sm:$0xff] %vm6728, %v6649
        %6738 = vst.msk [vmem:[#allocation3 + $0x48] sm:$0xff] %vm6728, %v6651
        %6739 = vst.msk [vmem:[#allocation3 + $0x50] sm:$0xff] %vm6728, %v6653
        %6740 = vst.msk [vmem:[#allocation3 + $0x58] sm:$0xff] %vm6728, %v6655
        %6741 = vst.msk [vmem:[#allocation3 + $0x60] sm:$0xff] %vm6728, %v6657
        %6742 = vst.msk [vmem:[#allocation3 + $0x68] sm:$0xff] %vm6728, %v6659
        %6743 = vst.msk [vmem:[#allocation3 + $0x70] sm:$0xff] %vm6728, %v6661
        %6744 = vst.msk [vmem:[#allocation3 + $0x78] sm:$0xff] %vm6728, %v6663
        %6745 = vst.msk [vmem:[#allocation3 + $0x80] sm:$0xff] %vm6728, %v6665
        %6746 = vst.msk [vmem:[#allocation3 + $0x88] sm:$0xff] %vm6728, %v6667
        %6747 = vst.msk [vmem:[#allocation3 + $0x90] sm:$0xff] %vm6728, %v6669
        %6748 = vst.msk [vmem:[#allocation3 + $0x98] sm:$0xff] %vm6728, %v6671
        %6749 = vst.msk [vmem:[#allocation3 + $0xa0] sm:$0xff] %vm6728, %v6673
        %6750 = vst.msk [vmem:[#allocation3 + $0xa8] sm:$0xff] %vm6728, %v6675
        %6751 = vst.msk [vmem:[#allocation3 + $0xb0] sm:$0xff] %vm6728, %v6677
        %6752 = vst.msk [vmem:[#allocation3 + $0xb8] sm:$0xff] %vm6728, %v6679
        %6753 = vst.msk [vmem:[#allocation3 + $0xc0] sm:$0xff] %vm6728, %v6681
        %6754 = vst.msk [vmem:[#allocation3 + $0xc8] sm:$0xff] %vm6728, %v6683
        %6755 = vst.msk [vmem:[#allocation3 + $0xd0] sm:$0xff] %vm6728, %v6685
        %6756 = vst.msk [vmem:[#allocation3 + $0xd8] sm:$0xff] %vm6728, %v6687
        %6757 = vst.msk [vmem:[#allocation3 + $0xe0] sm:$0xff] %vm6728, %v6689
        %6758 = vst.msk [vmem:[#allocation3 + $0xe8] sm:$0xff] %vm6728, %v6691
        %6759 = vst.msk [vmem:[#allocation3 + $0xf0] sm:$0xff] %vm6728, %v6693
        %6760 = vst.msk [vmem:[#allocation3 + $0xf8] sm:$0xff] %vm6728, %v6695
        %v6761 = vld [vmem:[#allocation3] sm:$0xff]
        %v6762 = vld [vmem:[#allocation3 + $0x8] sm:$0xff]
        %v6763 = vld [vmem:[#allocation3 + $0x10] sm:$0xff]
        %v6764 = vld [vmem:[#allocation3 + $0x18] sm:$0xff]
        %v6765 = vld [vmem:[#allocation3 + $0x20] sm:$0xff]
        %v6766 = vld [vmem:[#allocation3 + $0x28] sm:$0xff]
        %v6767 = vld [vmem:[#allocation3 + $0x30] sm:$0xff]
        %v6768 = vld [vmem:[#allocation3 + $0x38] sm:$0xff]
        %v6769 = vld [vmem:[#allocation3 + $0x40] sm:$0xff]
        %v6770 = vld [vmem:[#allocation3 + $0x48] sm:$0xff]
        %v6771 = vld [vmem:[#allocation3 + $0x50] sm:$0xff]
        %v6772 = vld [vmem:[#allocation3 + $0x58] sm:$0xff]
        %v6773 = vld [vmem:[#allocation3 + $0x60] sm:$0xff]
        %v6774 = vld [vmem:[#allocation3 + $0x68] sm:$0xff]
        %v6775 = vld [vmem:[#allocation3 + $0x70] sm:$0xff]
        %v6776 = vld [vmem:[#allocation3 + $0x78] sm:$0xff]
        %v6777 = vld [vmem:[#allocation3 + $0x80] sm:$0xff]
        %v6778 = vld [vmem:[#allocation3 + $0x88] sm:$0xff]
        %v6779 = vld [vmem:[#allocation3 + $0x90] sm:$0xff]
        %v6780 = vld [vmem:[#allocation3 + $0x98] sm:$0xff]
        %v6781 = vld [vmem:[#allocation3 + $0xa0] sm:$0xff]
        %v6782 = vld [vmem:[#allocation3 + $0xa8] sm:$0xff]
        %v6783 = vld [vmem:[#allocation3 + $0xb0] sm:$0xff]
        %v6784 = vld [vmem:[#allocation3 + $0xb8] sm:$0xff]
        %v6785 = vld [vmem:[#allocation3 + $0xc0] sm:$0xff]
        %v6786 = vld [vmem:[#allocation3 + $0xc8] sm:$0xff]
        %v6787 = vld [vmem:[#allocation3 + $0xd0] sm:$0xff]
        %v6788 = vld [vmem:[#allocation3 + $0xd8] sm:$0xff]
        %v6789 = vld [vmem:[#allocation3 + $0xe0] sm:$0xff]
        %v6790 = vld [vmem:[#allocation3 + $0xe8] sm:$0xff]
        %v6791 = vld [vmem:[#allocation3 + $0xf0] sm:$0xff]
        %v6792 = vld [vmem:[#allocation3 + $0xf8] sm:$0xff]
        %v6793 = vpack.c.bf16 %v6762, %v6761
        %v6794 = vpack.c.bf16 %v6764, %v6763
        %v6795 = vpack.c.bf16 %v6766, %v6765
        %v6796 = vpack.c.bf16 %v6768, %v6767
        %v6797 = vpack.c.bf16 %v6770, %v6769
        %v6798 = vpack.c.bf16 %v6772, %v6771
        %v6799 = vpack.c.bf16 %v6774, %v6773
        %v6800 = vpack.c.bf16 %v6776, %v6775
        %v6801 = vpack.c.bf16 %v6778, %v6777
        %v6802 = vpack.c.bf16 %v6780, %v6779
        %v6803 = vpack.c.bf16 %v6782, %v6781
        %v6804 = vpack.c.bf16 %v6784, %v6783
        %v6805 = vpack.c.bf16 %v6786, %v6785
        %v6806 = vpack.c.bf16 %v6788, %v6787
        %v6807 = vpack.c.bf16 %v6790, %v6789
        %v6808 = vpack.c.bf16 %v6792, %v6791
        %v6809 = vld [vmem:[%s803] sm:$0xf]
        %v6810 = vld [vmem:[%s803 + $0x4] sm:$0xf]
        %v6811 = vld [vmem:[%s803 + $0x8] sm:$0xf]
        %v6812 = vld [vmem:[%s803 + $0xc] sm:$0xf]
        %v6813 = vld [vmem:[%s803 + $0x10] sm:$0xf]
        %v6814 = vld [vmem:[%s803 + $0x14] sm:$0xf]
        %v6815 = vld [vmem:[%s803 + $0x18] sm:$0xf]
        %v6816 = vld [vmem:[%s803 + $0x1c] sm:$0xf]
        %v6817 = vld [vmem:[%s803 + $0x20] sm:$0xf]
        %v6818 = vld [vmem:[%s803 + $0x24] sm:$0xf]
        %v6819 = vld [vmem:[%s803 + $0x28] sm:$0xf]
        %v6820 = vld [vmem:[%s803 + $0x2c] sm:$0xf]
        %v6821 = vld [vmem:[%s803 + $0x30] sm:$0xf]
        %v6822 = vld [vmem:[%s803 + $0x34] sm:$0xf]
        %v6823 = vld [vmem:[%s803 + $0x38] sm:$0xf]
        %v6824 = vld [vmem:[%s803 + $0x3c] sm:$0xf]
        %v6825 = vld [vmem:[%s811] sm:$0x1]
        %v6827 = vlaneseq
        %v6828 = vshrl.u32 %v6827, 7
        %v6829 = vsub.s32 0, %v6828
        %v6830 = vrot.slane %v6825, %v6829
        %v6848 = vunpack.c.l.b16 %v6809
        %v6849 = vunpack.c.l.b16 %v6810
        %v6850 = vunpack.c.l.b16 %v6811
        %v6851 = vunpack.c.l.b16 %v6812
        %v6852 = vunpack.c.l.b16 %v6813
        %v6853 = vunpack.c.l.b16 %v6814
        %v6854 = vunpack.c.l.b16 %v6815
        %v6855 = vunpack.c.l.b16 %v6816
        %v6856 = vunpack.c.l.b16 %v6817
        %v6857 = vunpack.c.l.b16 %v6818
        %v6858 = vunpack.c.l.b16 %v6819
        %v6859 = vunpack.c.l.b16 %v6820
        %v6860 = vunpack.c.l.b16 %v6821
        %v6861 = vunpack.c.l.b16 %v6822
        %v6862 = vunpack.c.l.b16 %v6823
        %v6863 = vunpack.c.l.b16 %v6824
        %v6864 = vpack.c.b16 %v6849, %v6848
        %v6865 = vpack.c.b16 %v6851, %v6850
        %v6866 = vpack.c.b16 %v6853, %v6852
        %v6867 = vpack.c.b16 %v6855, %v6854
        %v6868 = vpack.c.b16 %v6857, %v6856
        %v6869 = vpack.c.b16 %v6859, %v6858
        %v6870 = vpack.c.b16 %v6861, %v6860
        %v6871 = vpack.c.b16 %v6863, %v6862
        %6880 = vmatprep.subr.bf16.mxu0 0
        %6881 = vmatpush1.bf16.msra.mxu0 %v6864
        %6882 = vmatprep.subr.bf16.mxu0 0
        %6883 = vmatpush1.bf16.msra.mxu0 %v6865
        %6884 = vmatprep.subr.bf16.mxu0 0
        %6885 = vmatpush1.bf16.msra.mxu0 %v6866
        %6886 = vmatprep.subr.bf16.mxu0 0
        %6887 = vmatpush1.bf16.msra.mxu0 %v6867
        %6888 = vmatprep.subr.bf16.mxu0 0
        %6889 = vmatpush1.bf16.msra.mxu0 %v6868
        %6890 = vmatprep.subr.bf16.mxu0 0
        %6891 = vmatpush1.bf16.msra.mxu0 %v6869
        %6892 = vmatprep.subr.bf16.mxu0 0
        %6893 = vmatpush1.bf16.msra.mxu0 %v6870
        %6894 = vmatprep.subr.bf16.mxu0 0
        %6895 = vmatpush1.bf16.msra.mxu0 %v6871
        %6896 = vmatprep.subr.bf16.mxu0 0
        %6897 = vmatpush1.bf16.msra.mxu0 0
        %6898 = vmatprep.subr.bf16.mxu0 0
        %6899 = vmatpush1.bf16.msra.mxu0 0
        %6900 = vmatprep.subr.bf16.mxu0 0
        %6901 = vmatpush1.bf16.msra.mxu0 0
        %6902 = vmatprep.subr.bf16.mxu0 0
        %6903 = vmatpush1.bf16.msra.mxu0 0
        %6904 = vmatprep.subr.bf16.mxu0 0
        %6905 = vmatpush1.bf16.msra.mxu0 0
        %6906 = vmatprep.subr.bf16.mxu0 0
        %6907 = vmatpush1.bf16.msra.mxu0 0
        %6908 = vmatprep.subr.bf16.mxu0 0
        %6909 = vmatpush1.bf16.msra.mxu0 0
        %6910 = vmatprep.subr.bf16.mxu0 0
        %6911 = vmatpush1.bf16.msra.mxu0 0
        %6912 = vmatprep.mubr.bf16.mxu0 0
        %6913 = vmatmul.mubr.bf16.gmra.mrb[0].mxu0 %v6793
        %v6914 = vpop.f32.mrb[0].mxu0
        %v6915 = vadd.f32 %v6830, %v6914
        %v6916 = vpop.f32.mrb[0].mxu0
        %v6917 = vpop.f32.mrb[0].mxu0
        %v6918 = vadd.f32 %v6830, %v6917
        %v6919 = vpop.f32.mrb[0].mxu0
        %6920 = vmatprep.mubr.bf16.mxu0 0
        %6921 = vmatmul.mubr.bf16.gmra.mrb[0].mxu0 %v6794
        %v6922 = vpop.f32.mrb[0].mxu0
        %v6923 = vadd.f32 %v6830, %v6922
        %v6924 = vpop.f32.mrb[0].mxu0
        %v6925 = vpop.f32.mrb[0].mxu0
        %v6926 = vadd.f32 %v6830, %v6925
        %v6927 = vpop.f32.mrb[0].mxu0
        %6928 = vmatprep.mubr.bf16.mxu0 0
        %6929 = vmatmul.mubr.bf16.gmra.mrb[0].mxu0 %v6795
        %v6930 = vpop.f32.mrb[0].mxu0
        %v6931 = vadd.f32 %v6830, %v6930
        %v6932 = vpop.f32.mrb[0].mxu0
        %v6933 = vpop.f32.mrb[0].mxu0
        %v6934 = vadd.f32 %v6830, %v6933
        %v6935 = vpop.f32.mrb[0].mxu0
        %6936 = vmatprep.mubr.bf16.mxu0 0
        %6937 = vmatmul.mubr.bf16.gmra.mrb[0].mxu0 %v6796
        %v6938 = vpop.f32.mrb[0].mxu0
        %v6939 = vadd.f32 %v6830, %v6938
        %v6940 = vpop.f32.mrb[0].mxu0
        %v6941 = vpop.f32.mrb[0].mxu0
        %v6942 = vadd.f32 %v6830, %v6941
        %v6943 = vpop.f32.mrb[0].mxu0
        %6944 = vmatprep.mubr.bf16.mxu0 0
        %6945 = vmatmul.mubr.bf16.gmra.mrb[0].mxu0 %v6797
        %v6946 = vpop.f32.mrb[0].mxu0
        %v6947 = vadd.f32 %v6830, %v6946
        %v6948 = vpop.f32.mrb[0].mxu0
        %v6949 = vpop.f32.mrb[0].mxu0
        %v6950 = vadd.f32 %v6830, %v6949
        %v6951 = vpop.f32.mrb[0].mxu0
        %6952 = vmatprep.mubr.bf16.mxu0 0
        %6953 = vmatmul.mubr.bf16.gmra.mrb[0].mxu0 %v6798
        %v6954 = vpop.f32.mrb[0].mxu0
        %v6955 = vadd.f32 %v6830, %v6954
        %v6956 = vpop.f32.mrb[0].mxu0
        %v6957 = vpop.f32.mrb[0].mxu0
        %v6958 = vadd.f32 %v6830, %v6957
        %v6959 = vpop.f32.mrb[0].mxu0
        %6960 = vmatprep.mubr.bf16.mxu0 0
        %6961 = vmatmul.mubr.bf16.gmra.mrb[0].mxu0 %v6799
        %v6962 = vpop.f32.mrb[0].mxu0
        %v6963 = vadd.f32 %v6830, %v6962
        %v6964 = vpop.f32.mrb[0].mxu0
        %v6965 = vpop.f32.mrb[0].mxu0
        %v6966 = vadd.f32 %v6830, %v6965
        %v6967 = vpop.f32.mrb[0].mxu0
        %6968 = vmatprep.mubr.bf16.mxu0 0
        %6969 = vmatmul.mubr.bf16.gmra.mrb[0].mxu0 %v6800
        %v6970 = vpop.f32.mrb[0].mxu0
        %v6971 = vadd.f32 %v6830, %v6970
        %v6972 = vpop.f32.mrb[0].mxu0
        %v6973 = vpop.f32.mrb[0].mxu0
        %v6974 = vadd.f32 %v6830, %v6973
        %v6975 = vpop.f32.mrb[0].mxu0
        %6976 = vmatprep.mubr.bf16.mxu0 0
        %6977 = vmatmul.mubr.bf16.gmra.mrb[0].mxu0 %v6801
        %v6978 = vpop.f32.mrb[0].mxu0
        %v6979 = vadd.f32 %v6830, %v6978
        %v6980 = vpop.f32.mrb[0].mxu0
        %v6981 = vpop.f32.mrb[0].mxu0
        %v6982 = vadd.f32 %v6830, %v6981
        %v6983 = vpop.f32.mrb[0].mxu0
        %6984 = vmatprep.mubr.bf16.mxu0 0
        %6985 = vmatmul.mubr.bf16.gmra.mrb[0].mxu0 %v6802
        %v6986 = vpop.f32.mrb[0].mxu0
        %v6987 = vadd.f32 %v6830, %v6986
        %v6988 = vpop.f32.mrb[0].mxu0
        %v6989 = vpop.f32.mrb[0].mxu0
        %v6990 = vadd.f32 %v6830, %v6989
        %v6991 = vpop.f32.mrb[0].mxu0
        %6992 = vmatprep.mubr.bf16.mxu0 0
        %6993 = vmatmul.mubr.bf16.gmra.mrb[0].mxu0 %v6803
        %v6994 = vpop.f32.mrb[0].mxu0
        %v6995 = vadd.f32 %v6830, %v6994
        %v6996 = vpop.f32.mrb[0].mxu0
        %v6997 = vpop.f32.mrb[0].mxu0
        %v6998 = vadd.f32 %v6830, %v6997
        %v6999 = vpop.f32.mrb[0].mxu0
        %7000 = vmatprep.mubr.bf16.mxu0 0
        %7001 = vmatmul.mubr.bf16.gmra.mrb[0].mxu0 %v6804
        %v7002 = vpop.f32.mrb[0].mxu0
        %v7003 = vadd.f32 %v6830, %v7002
        %v7004 = vpop.f32.mrb[0].mxu0
        %v7005 = vpop.f32.mrb[0].mxu0
        %v7006 = vadd.f32 %v6830, %v7005
        %v7007 = vpop.f32.mrb[0].mxu0
        %7008 = vmatprep.mubr.bf16.mxu0 0
        %7009 = vmatmul.mubr.bf16.gmra.mrb[0].mxu0 %v6805
        %v7010 = vpop.f32.mrb[0].mxu0
        %v7011 = vadd.f32 %v6830, %v7010
        %v7012 = vpop.f32.mrb[0].mxu0
        %v7013 = vpop.f32.mrb[0].mxu0
        %v7014 = vadd.f32 %v6830, %v7013
        %v7015 = vpop.f32.mrb[0].mxu0
        %7016 = vmatprep.mubr.bf16.mxu0 0
        %7017 = vmatmul.mubr.bf16.gmra.mrb[0].mxu0 %v6806
        %v7018 = vpop.f32.mrb[0].mxu0
        %v7019 = vadd.f32 %v6830, %v7018
        %v7020 = vpop.f32.mrb[0].mxu0
        %v7021 = vpop.f32.mrb[0].mxu0
        %v7022 = vadd.f32 %v6830, %v7021
        %v7023 = vpop.f32.mrb[0].mxu0
        %7024 = vmatprep.mubr.bf16.mxu0 0
        %7025 = vmatmul.mubr.bf16.gmra.mrb[0].mxu0 %v6807
        %v7026 = vpop.f32.mrb[0].mxu0
        %v7027 = vadd.f32 %v6830, %v7026
        %v7028 = vpop.f32.mrb[0].mxu0
        %v7029 = vpop.f32.mrb[0].mxu0
        %v7030 = vadd.f32 %v6830, %v7029
        %v7031 = vpop.f32.mrb[0].mxu0
        %7032 = vmatprep.mubr.bf16.mxu0 0
        %7033 = vmatmul.mubr.bf16.gmra.mrb[0].mxu0 %v6808
        %v7034 = vpop.f32.mrb[0].mxu0
        %v7035 = vadd.f32 %v6830, %v7034
        %v7036 = vpop.f32.mrb[0].mxu0
        %v7037 = vpop.f32.mrb[0].mxu0
        %v7038 = vadd.f32 %v6830, %v7037
        %v7039 = vpop.f32.mrb[0].mxu0
        %7040 = vdwg.mxu0
        %v7041 = vadd.f32 %v1063, %v6915
        %v7042 = vadd.f32 %v1064, %v6918
        %v7043 = vadd.f32 %v1065, %v6923
        %v7044 = vadd.f32 %v1066, %v6926
        %v7045 = vadd.f32 %v1067, %v6931
        %v7046 = vadd.f32 %v1068, %v6934
        %v7047 = vadd.f32 %v1069, %v6939
        %v7048 = vadd.f32 %v1070, %v6942
        %v7049 = vadd.f32 %v1071, %v6947
        %v7050 = vadd.f32 %v1072, %v6950
        %v7051 = vadd.f32 %v1073, %v6955
        %v7052 = vadd.f32 %v1074, %v6958
        %v7053 = vadd.f32 %v1075, %v6963
        %v7054 = vadd.f32 %v1076, %v6966
        %v7055 = vadd.f32 %v1077, %v6971
        %v7056 = vadd.f32 %v1078, %v6974
        %v7057 = vadd.f32 %v1079, %v6979
        %v7058 = vadd.f32 %v1080, %v6982
        %v7059 = vadd.f32 %v1081, %v6987
        %v7060 = vadd.f32 %v1082, %v6990
        %v7061 = vadd.f32 %v1083, %v6995
        %v7062 = vadd.f32 %v1084, %v6998
        %v7063 = vadd.f32 %v1085, %v7003
        %v7064 = vadd.f32 %v1086, %v7006
        %v7065 = vadd.f32 %v1087, %v7011
        %v7066 = vadd.f32 %v1088, %v7014
        %v7067 = vadd.f32 %v1089, %v7019
        %v7068 = vadd.f32 %v1090, %v7022
        %v7069 = vadd.f32 %v1091, %v7027
        %v7070 = vadd.f32 %v1092, %v7030
        %v7071 = vadd.f32 %v1093, %v7035
        %v7072 = vadd.f32 %v1094, %v7038
        %v7073 = vld [vmem:[%s819] sm:$0x1]
        %v7074 = vld [vmem:[%s827] sm:$0x1]
        %7075 = vadd.xlane.f32.xlu0 %v7041
        %v7076 = vpop.xlane.xlu0 %7075
        %7077 = vadd.xlane.f32.xlu0 %v7042
        %v7078 = vpop.xlane.xlu0 %7077
        %7079 = vadd.xlane.f32.xlu0 %v7043
        %v7080 = vpop.xlane.xlu0 %7079
        %7081 = vadd.xlane.f32.xlu0 %v7044
        %v7082 = vpop.xlane.xlu0 %7081
        %7083 = vadd.xlane.f32.xlu0 %v7045
        %v7084 = vpop.xlane.xlu0 %7083
        %7085 = vadd.xlane.f32.xlu0 %v7046
        %v7086 = vpop.xlane.xlu0 %7085
        %7087 = vadd.xlane.f32.xlu0 %v7047
        %v7088 = vpop.xlane.xlu0 %7087
        %7089 = vadd.xlane.f32.xlu0 %v7048
        %v7090 = vpop.xlane.xlu0 %7089
        %7091 = vadd.xlane.f32.xlu0 %v7049
        %v7092 = vpop.xlane.xlu0 %7091
        %7093 = vadd.xlane.f32.xlu0 %v7050
        %v7094 = vpop.xlane.xlu0 %7093
        %7095 = vadd.xlane.f32.xlu0 %v7051
        %v7096 = vpop.xlane.xlu0 %7095
        %7097 = vadd.xlane.f32.xlu0 %v7052
        %v7098 = vpop.xlane.xlu0 %7097
        %7099 = vadd.xlane.f32.xlu0 %v7053
        %v7100 = vpop.xlane.xlu0 %7099
        %7101 = vadd.xlane.f32.xlu0 %v7054
        %v7102 = vpop.xlane.xlu0 %7101
        %7103 = vadd.xlane.f32.xlu0 %v7055
        %v7104 = vpop.xlane.xlu0 %7103
        %7105 = vadd.xlane.f32.xlu0 %v7056
        %v7106 = vpop.xlane.xlu0 %7105
        %7107 = vadd.xlane.f32.xlu0 %v7057
        %v7108 = vpop.xlane.xlu0 %7107
        %7109 = vadd.xlane.f32.xlu0 %v7058
        %v7110 = vpop.xlane.xlu0 %7109
        %7111 = vadd.xlane.f32.xlu0 %v7059
        %v7112 = vpop.xlane.xlu0 %7111
        %7113 = vadd.xlane.f32.xlu0 %v7060
        %v7114 = vpop.xlane.xlu0 %7113
        %7115 = vadd.xlane.f32.xlu0 %v7061
        %v7116 = vpop.xlane.xlu0 %7115
        %7117 = vadd.xlane.f32.xlu0 %v7062
        %v7118 = vpop.xlane.xlu0 %7117
        %7119 = vadd.xlane.f32.xlu0 %v7063
        %v7120 = vpop.xlane.xlu0 %7119
        %7121 = vadd.xlane.f32.xlu0 %v7064
        %v7122 = vpop.xlane.xlu0 %7121
        %7123 = vadd.xlane.f32.xlu0 %v7065
        %v7124 = vpop.xlane.xlu0 %7123
        %7125 = vadd.xlane.f32.xlu0 %v7066
        %v7126 = vpop.xlane.xlu0 %7125
        %7127 = vadd.xlane.f32.xlu0 %v7067
        %v7128 = vpop.xlane.xlu0 %7127
        %7129 = vadd.xlane.f32.xlu0 %v7068
        %v7130 = vpop.xlane.xlu0 %7129
        %7131 = vadd.xlane.f32.xlu0 %v7069
        %v7132 = vpop.xlane.xlu0 %7131
        %7133 = vadd.xlane.f32.xlu0 %v7070
        %v7134 = vpop.xlane.xlu0 %7133
        %7135 = vadd.xlane.f32.xlu0 %v7071
        %v7136 = vpop.xlane.xlu0 %7135
        %7137 = vadd.xlane.f32.xlu0 %v7072
        %v7138 = vpop.xlane.xlu0 %7137
        %v7139 = vrcp.pop 128.0
        %v7140 = vmul.f32 %v7076, %v7139
        %v7141 = vmul.f32 %v7078, %v7139
        %v7142 = vmul.f32 %v7080, %v7139
        %v7143 = vmul.f32 %v7082, %v7139
        %v7144 = vmul.f32 %v7084, %v7139
        %v7145 = vmul.f32 %v7086, %v7139
        %v7146 = vmul.f32 %v7088, %v7139
        %v7147 = vmul.f32 %v7090, %v7139
        %v7148 = vmul.f32 %v7092, %v7139
        %v7149 = vmul.f32 %v7094, %v7139
        %v7150 = vmul.f32 %v7096, %v7139
        %v7151 = vmul.f32 %v7098, %v7139
        %v7152 = vmul.f32 %v7100, %v7139
        %v7153 = vmul.f32 %v7102, %v7139
        %v7154 = vmul.f32 %v7104, %v7139
        %v7155 = vmul.f32 %v7106, %v7139
        %v7156 = vmul.f32 %v7108, %v7139
        %v7157 = vmul.f32 %v7110, %v7139
        %v7158 = vmul.f32 %v7112, %v7139
        %v7159 = vmul.f32 %v7114, %v7139
        %v7160 = vmul.f32 %v7116, %v7139
        %v7161 = vmul.f32 %v7118, %v7139
        %v7162 = vmul.f32 %v7120, %v7139
        %v7163 = vmul.f32 %v7122, %v7139
        %v7164 = vmul.f32 %v7124, %v7139
        %v7165 = vmul.f32 %v7126, %v7139
        %v7166 = vmul.f32 %v7128, %v7139
        %v7167 = vmul.f32 %v7130, %v7139
        %v7168 = vmul.f32 %v7132, %v7139
        %v7169 = vmul.f32 %v7134, %v7139
        %v7170 = vmul.f32 %v7136, %v7139
        %v7171 = vmul.f32 %v7138, %v7139
        %v7172 = vsub.f32 %v7041, %v7140
        %v7173 = vsub.f32 %v7042, %v7141
        %v7174 = vsub.f32 %v7043, %v7142
        %v7175 = vsub.f32 %v7044, %v7143
        %v7176 = vsub.f32 %v7045, %v7144
        %v7177 = vsub.f32 %v7046, %v7145
        %v7178 = vsub.f32 %v7047, %v7146
        %v7179 = vsub.f32 %v7048, %v7147
        %v7180 = vsub.f32 %v7049, %v7148
        %v7181 = vsub.f32 %v7050, %v7149
        %v7182 = vsub.f32 %v7051, %v7150
        %v7183 = vsub.f32 %v7052, %v7151
        %v7184 = vsub.f32 %v7053, %v7152
        %v7185 = vsub.f32 %v7054, %v7153
        %v7186 = vsub.f32 %v7055, %v7154
        %v7187 = vsub.f32 %v7056, %v7155
        %v7188 = vsub.f32 %v7057, %v7156
        %v7189 = vsub.f32 %v7058, %v7157
        %v7190 = vsub.f32 %v7059, %v7158
        %v7191 = vsub.f32 %v7060, %v7159
        %v7192 = vsub.f32 %v7061, %v7160
        %v7193 = vsub.f32 %v7062, %v7161
        %v7194 = vsub.f32 %v7063, %v7162
        %v7195 = vsub.f32 %v7064, %v7163
        %v7196 = vsub.f32 %v7065, %v7164
        %v7197 = vsub.f32 %v7066, %v7165
        %v7198 = vsub.f32 %v7067, %v7166
        %v7199 = vsub.f32 %v7068, %v7167
        %v7200 = vsub.f32 %v7069, %v7168
        %v7201 = vsub.f32 %v7070, %v7169
        %v7202 = vsub.f32 %v7071, %v7170
        %v7203 = vsub.f32 %v7072, %v7171
        %v7204 = vmul.f32 %v7172, %v7172
        %v7205 = vmul.f32 %v7173, %v7173
        %v7206 = vmul.f32 %v7174, %v7174
        %v7207 = vmul.f32 %v7175, %v7175
        %v7208 = vmul.f32 %v7176, %v7176
        %v7209 = vmul.f32 %v7177, %v7177
        %v7210 = vmul.f32 %v7178, %v7178
        %v7211 = vmul.f32 %v7179, %v7179
        %v7212 = vmul.f32 %v7180, %v7180
        %v7213 = vmul.f32 %v7181, %v7181
        %v7214 = vmul.f32 %v7182, %v7182
        %v7215 = vmul.f32 %v7183, %v7183
        %v7216 = vmul.f32 %v7184, %v7184
        %v7217 = vmul.f32 %v7185, %v7185
        %v7218 = vmul.f32 %v7186, %v7186
        %v7219 = vmul.f32 %v7187, %v7187
        %v7220 = vmul.f32 %v7188, %v7188
        %v7221 = vmul.f32 %v7189, %v7189
        %v7222 = vmul.f32 %v7190, %v7190
        %v7223 = vmul.f32 %v7191, %v7191
        %v7224 = vmul.f32 %v7192, %v7192
        %v7225 = vmul.f32 %v7193, %v7193
        %v7226 = vmul.f32 %v7194, %v7194
        %v7227 = vmul.f32 %v7195, %v7195
        %v7228 = vmul.f32 %v7196, %v7196
        %v7229 = vmul.f32 %v7197, %v7197
        %v7230 = vmul.f32 %v7198, %v7198
        %v7231 = vmul.f32 %v7199, %v7199
        %v7232 = vmul.f32 %v7200, %v7200
        %v7233 = vmul.f32 %v7201, %v7201
        %v7234 = vmul.f32 %v7202, %v7202
        %v7235 = vmul.f32 %v7203, %v7203
        %7236 = vadd.xlane.f32.xlu0 %v7204
        %v7237 = vpop.xlane.xlu0 %7236
        %7238 = vadd.xlane.f32.xlu0 %v7205
        %v7239 = vpop.xlane.xlu0 %7238
        %7240 = vadd.xlane.f32.xlu0 %v7206
        %v7241 = vpop.xlane.xlu0 %7240
        %7242 = vadd.xlane.f32.xlu0 %v7207
        %v7243 = vpop.xlane.xlu0 %7242
        %7244 = vadd.xlane.f32.xlu0 %v7208
        %v7245 = vpop.xlane.xlu0 %7244
        %7246 = vadd.xlane.f32.xlu0 %v7209
        %v7247 = vpop.xlane.xlu0 %7246
        %7248 = vadd.xlane.f32.xlu0 %v7210
        %v7249 = vpop.xlane.xlu0 %7248
        %7250 = vadd.xlane.f32.xlu0 %v7211
        %v7251 = vpop.xlane.xlu0 %7250
        %7252 = vadd.xlane.f32.xlu0 %v7212
        %v7253 = vpop.xlane.xlu0 %7252
        %7254 = vadd.xlane.f32.xlu0 %v7213
        %v7255 = vpop.xlane.xlu0 %7254
        %7256 = vadd.xlane.f32.xlu0 %v7214
        %v7257 = vpop.xlane.xlu0 %7256
        %7258 = vadd.xlane.f32.xlu0 %v7215
        %v7259 = vpop.xlane.xlu0 %7258
        %7260 = vadd.xlane.f32.xlu0 %v7216
        %v7261 = vpop.xlane.xlu0 %7260
        %7262 = vadd.xlane.f32.xlu0 %v7217
        %v7263 = vpop.xlane.xlu0 %7262
        %7264 = vadd.xlane.f32.xlu0 %v7218
        %v7265 = vpop.xlane.xlu0 %7264
        %7266 = vadd.xlane.f32.xlu0 %v7219
        %v7267 = vpop.xlane.xlu0 %7266
        %7268 = vadd.xlane.f32.xlu0 %v7220
        %v7269 = vpop.xlane.xlu0 %7268
        %7270 = vadd.xlane.f32.xlu0 %v7221
        %v7271 = vpop.xlane.xlu0 %7270
        %7272 = vadd.xlane.f32.xlu0 %v7222
        %v7273 = vpop.xlane.xlu0 %7272
        %7274 = vadd.xlane.f32.xlu0 %v7223
        %v7275 = vpop.xlane.xlu0 %7274
        %7276 = vadd.xlane.f32.xlu0 %v7224
        %v7277 = vpop.xlane.xlu0 %7276
        %7278 = vadd.xlane.f32.xlu0 %v7225
        %v7279 = vpop.xlane.xlu0 %7278
        %7280 = vadd.xlane.f32.xlu0 %v7226
        %v7281 = vpop.xlane.xlu0 %7280
        %7282 = vadd.xlane.f32.xlu0 %v7227
        %v7283 = vpop.xlane.xlu0 %7282
        %7284 = vadd.xlane.f32.xlu0 %v7228
        %v7285 = vpop.xlane.xlu0 %7284
        %7286 = vadd.xlane.f32.xlu0 %v7229
        %v7287 = vpop.xlane.xlu0 %7286
        %7288 = vadd.xlane.f32.xlu0 %v7230
        %v7289 = vpop.xlane.xlu0 %7288
        %7290 = vadd.xlane.f32.xlu0 %v7231
        %v7291 = vpop.xlane.xlu0 %7290
        %7292 = vadd.xlane.f32.xlu0 %v7232
        %v7293 = vpop.xlane.xlu0 %7292
        %7294 = vadd.xlane.f32.xlu0 %v7233
        %v7295 = vpop.xlane.xlu0 %7294
        %7296 = vadd.xlane.f32.xlu0 %v7234
        %v7297 = vpop.xlane.xlu0 %7296
        %7298 = vadd.xlane.f32.xlu0 %v7235
        %v7299 = vpop.xlane.xlu0 %7298
        %v7300 = vmul.f32 %v7237, %v7139
        %v7301 = vmul.f32 %v7239, %v7139
        %v7302 = vmul.f32 %v7241, %v7139
        %v7303 = vmul.f32 %v7243, %v7139
        %v7304 = vmul.f32 %v7245, %v7139
        %v7305 = vmul.f32 %v7247, %v7139
        %v7306 = vmul.f32 %v7249, %v7139
        %v7307 = vmul.f32 %v7251, %v7139
        %v7308 = vmul.f32 %v7253, %v7139
        %v7309 = vmul.f32 %v7255, %v7139
        %v7310 = vmul.f32 %v7257, %v7139
        %v7311 = vmul.f32 %v7259, %v7139
        %v7312 = vmul.f32 %v7261, %v7139
        %v7313 = vmul.f32 %v7263, %v7139
        %v7314 = vmul.f32 %v7265, %v7139
        %v7315 = vmul.f32 %v7267, %v7139
        %v7316 = vmul.f32 %v7269, %v7139
        %v7317 = vmul.f32 %v7271, %v7139
        %v7318 = vmul.f32 %v7273, %v7139
        %v7319 = vmul.f32 %v7275, %v7139
        %v7320 = vmul.f32 %v7277, %v7139
        %v7321 = vmul.f32 %v7279, %v7139
        %v7322 = vmul.f32 %v7281, %v7139
        %v7323 = vmul.f32 %v7283, %v7139
        %v7324 = vmul.f32 %v7285, %v7139
        %v7325 = vmul.f32 %v7287, %v7139
        %v7326 = vmul.f32 %v7289, %v7139
        %v7327 = vmul.f32 %v7291, %v7139
        %v7328 = vmul.f32 %v7293, %v7139
        %v7329 = vmul.f32 %v7295, %v7139
        %v7330 = vmul.f32 %v7297, %v7139
        %v7331 = vmul.f32 %v7299, %v7139
        %v7332 = vadd.f32 %v7300, 1e-05
        %v7333 = vadd.f32 %v7301, 1e-05
        %v7334 = vadd.f32 %v7302, 1e-05
        %v7335 = vadd.f32 %v7303, 1e-05
        %v7336 = vadd.f32 %v7304, 1e-05
        %v7337 = vadd.f32 %v7305, 1e-05
        %v7338 = vadd.f32 %v7306, 1e-05
        %v7339 = vadd.f32 %v7307, 1e-05
        %v7340 = vadd.f32 %v7308, 1e-05
        %v7341 = vadd.f32 %v7309, 1e-05
        %v7342 = vadd.f32 %v7310, 1e-05
        %v7343 = vadd.f32 %v7311, 1e-05
        %v7344 = vadd.f32 %v7312, 1e-05
        %v7345 = vadd.f32 %v7313, 1e-05
        %v7346 = vadd.f32 %v7314, 1e-05
        %v7347 = vadd.f32 %v7315, 1e-05
        %v7348 = vadd.f32 %v7316, 1e-05
        %v7349 = vadd.f32 %v7317, 1e-05
        %v7350 = vadd.f32 %v7318, 1e-05
        %v7351 = vadd.f32 %v7319, 1e-05
        %v7352 = vadd.f32 %v7320, 1e-05
        %v7353 = vadd.f32 %v7321, 1e-05
        %v7354 = vadd.f32 %v7322, 1e-05
        %v7355 = vadd.f32 %v7323, 1e-05
        %v7356 = vadd.f32 %v7324, 1e-05
        %v7357 = vadd.f32 %v7325, 1e-05
        %v7358 = vadd.f32 %v7326, 1e-05
        %v7359 = vadd.f32 %v7327, 1e-05
        %v7360 = vadd.f32 %v7328, 1e-05
        %v7361 = vadd.f32 %v7329, 1e-05
        %v7362 = vadd.f32 %v7330, 1e-05
        %v7363 = vadd.f32 %v7331, 1e-05
        %v7364 = vrsqrt.pop %v7332
        %v7365 = vrsqrt.pop %v7333
        %v7366 = vrsqrt.pop %v7334
        %v7367 = vrsqrt.pop %v7335
        %v7368 = vrsqrt.pop %v7336
        %v7369 = vrsqrt.pop %v7337
        %v7370 = vrsqrt.pop %v7338
        %v7371 = vrsqrt.pop %v7339
        %v7372 = vrsqrt.pop %v7340
        %v7373 = vrsqrt.pop %v7341
        %v7374 = vrsqrt.pop %v7342
        %v7375 = vrsqrt.pop %v7343
        %v7376 = vrsqrt.pop %v7344
        %v7377 = vrsqrt.pop %v7345
        %v7378 = vrsqrt.pop %v7346
        %v7379 = vrsqrt.pop %v7347
        %v7380 = vrsqrt.pop %v7348
        %v7381 = vrsqrt.pop %v7349
        %v7382 = vrsqrt.pop %v7350
        %v7383 = vrsqrt.pop %v7351
        %v7384 = vrsqrt.pop %v7352
        %v7385 = vrsqrt.pop %v7353
        %v7386 = vrsqrt.pop %v7354
        %v7387 = vrsqrt.pop %v7355
        %v7388 = vrsqrt.pop %v7356
        %v7389 = vrsqrt.pop %v7357
        %v7390 = vrsqrt.pop %v7358
        %v7391 = vrsqrt.pop %v7359
        %v7392 = vrsqrt.pop %v7360
        %v7393 = vrsqrt.pop %v7361
        %v7394 = vrsqrt.pop %v7362
        %v7395 = vrsqrt.pop %v7363
        %v7396 = vmul.f32 %v7172, %v7364
        %v7397 = vmul.f32 %v7173, %v7365
        %v7398 = vmul.f32 %v7174, %v7366
        %v7399 = vmul.f32 %v7175, %v7367
        %v7400 = vmul.f32 %v7176, %v7368
        %v7401 = vmul.f32 %v7177, %v7369
        %v7402 = vmul.f32 %v7178, %v7370
        %v7403 = vmul.f32 %v7179, %v7371
        %v7404 = vmul.f32 %v7180, %v7372
        %v7405 = vmul.f32 %v7181, %v7373
        %v7406 = vmul.f32 %v7182, %v7374
        %v7407 = vmul.f32 %v7183, %v7375
        %v7408 = vmul.f32 %v7184, %v7376
        %v7409 = vmul.f32 %v7185, %v7377
        %v7410 = vmul.f32 %v7186, %v7378
        %v7411 = vmul.f32 %v7187, %v7379
        %v7412 = vmul.f32 %v7188, %v7380
        %v7413 = vmul.f32 %v7189, %v7381
        %v7414 = vmul.f32 %v7190, %v7382
        %v7415 = vmul.f32 %v7191, %v7383
        %v7416 = vmul.f32 %v7192, %v7384
        %v7417 = vmul.f32 %v7193, %v7385
        %v7418 = vmul.f32 %v7194, %v7386
        %v7419 = vmul.f32 %v7195, %v7387
        %v7420 = vmul.f32 %v7196, %v7388
        %v7421 = vmul.f32 %v7197, %v7389
        %v7422 = vmul.f32 %v7198, %v7390
        %v7423 = vmul.f32 %v7199, %v7391
        %v7424 = vmul.f32 %v7200, %v7392
        %v7425 = vmul.f32 %v7201, %v7393
        %v7426 = vmul.f32 %v7202, %v7394
        %v7427 = vmul.f32 %v7203, %v7395
        %v7429 = vlaneseq
        %v7430 = vshrl.u32 %v7429, 7
        %v7431 = vsub.s32 0, %v7430
        %v7432 = vrot.slane %v7073, %v7431
        %v7434 = vmul.f32 %v7396, %v7432
        %v7435 = vmul.f32 %v7397, %v7432
        %v7436 = vmul.f32 %v7398, %v7432
        %v7437 = vmul.f32 %v7399, %v7432
        %v7438 = vmul.f32 %v7400, %v7432
        %v7439 = vmul.f32 %v7401, %v7432
        %v7440 = vmul.f32 %v7402, %v7432
        %v7441 = vmul.f32 %v7403, %v7432
        %v7442 = vmul.f32 %v7404, %v7432
        %v7443 = vmul.f32 %v7405, %v7432
        %v7444 = vmul.f32 %v7406, %v7432
        %v7445 = vmul.f32 %v7407, %v7432
        %v7446 = vmul.f32 %v7408, %v7432
        %v7447 = vmul.f32 %v7409, %v7432
        %v7448 = vmul.f32 %v7410, %v7432
        %v7449 = vmul.f32 %v7411, %v7432
        %v7450 = vmul.f32 %v7412, %v7432
        %v7451 = vmul.f32 %v7413, %v7432
        %v7452 = vmul.f32 %v7414, %v7432
        %v7453 = vmul.f32 %v7415, %v7432
        %v7454 = vmul.f32 %v7416, %v7432
        %v7455 = vmul.f32 %v7417, %v7432
        %v7456 = vmul.f32 %v7418, %v7432
        %v7457 = vmul.f32 %v7419, %v7432
        %v7458 = vmul.f32 %v7420, %v7432
        %v7459 = vmul.f32 %v7421, %v7432
        %v7460 = vmul.f32 %v7422, %v7432
        %v7461 = vmul.f32 %v7423, %v7432
        %v7462 = vmul.f32 %v7424, %v7432
        %v7463 = vmul.f32 %v7425, %v7432
        %v7464 = vmul.f32 %v7426, %v7432
        %v7465 = vmul.f32 %v7427, %v7432
        %v7467 = vlaneseq
        %v7468 = vshrl.u32 %v7467, 7
        %v7469 = vsub.s32 0, %v7468
        %v7470 = vrot.slane %v7074, %v7469
        %v7472 = vadd.f32 %v7434, %v7470
        %v7473 = vadd.f32 %v7435, %v7470
        %v7474 = vadd.f32 %v7436, %v7470
        %v7475 = vadd.f32 %v7437, %v7470
        %v7476 = vadd.f32 %v7438, %v7470
        %v7477 = vadd.f32 %v7439, %v7470
        %v7478 = vadd.f32 %v7440, %v7470
        %v7479 = vadd.f32 %v7441, %v7470
        %v7480 = vadd.f32 %v7442, %v7470
        %v7481 = vadd.f32 %v7443, %v7470
        %v7482 = vadd.f32 %v7444, %v7470
        %v7483 = vadd.f32 %v7445, %v7470
        %v7484 = vadd.f32 %v7446, %v7470
        %v7485 = vadd.f32 %v7447, %v7470
        %v7486 = vadd.f32 %v7448, %v7470
        %v7487 = vadd.f32 %v7449, %v7470
        %v7488 = vadd.f32 %v7450, %v7470
        %v7489 = vadd.f32 %v7451, %v7470
        %v7490 = vadd.f32 %v7452, %v7470
        %v7491 = vadd.f32 %v7453, %v7470
        %v7492 = vadd.f32 %v7454, %v7470
        %v7493 = vadd.f32 %v7455, %v7470
        %v7494 = vadd.f32 %v7456, %v7470
        %v7495 = vadd.f32 %v7457, %v7470
        %v7496 = vadd.f32 %v7458, %v7470
        %v7497 = vadd.f32 %v7459, %v7470
        %v7498 = vadd.f32 %v7460, %v7470
        %v7499 = vadd.f32 %v7461, %v7470
        %v7500 = vadd.f32 %v7462, %v7470
        %v7501 = vadd.f32 %v7463, %v7470
        %v7502 = vadd.f32 %v7464, %v7470
        %v7503 = vadd.f32 %v7465, %v7470
        %v7504 = vpack.c.bf16 %v7473, %v7472
        %v7505 = vpack.c.bf16 %v7475, %v7474
        %v7506 = vpack.c.bf16 %v7477, %v7476
        %v7507 = vpack.c.bf16 %v7479, %v7478
        %v7508 = vpack.c.bf16 %v7481, %v7480
        %v7509 = vpack.c.bf16 %v7483, %v7482
        %v7510 = vpack.c.bf16 %v7485, %v7484
        %v7511 = vpack.c.bf16 %v7487, %v7486
        %v7512 = vpack.c.bf16 %v7489, %v7488
        %v7513 = vpack.c.bf16 %v7491, %v7490
        %v7514 = vpack.c.bf16 %v7493, %v7492
        %v7515 = vpack.c.bf16 %v7495, %v7494
        %v7516 = vpack.c.bf16 %v7497, %v7496
        %v7517 = vpack.c.bf16 %v7499, %v7498
        %v7518 = vpack.c.bf16 %v7501, %v7500
        %v7519 = vpack.c.bf16 %v7503, %v7502
        %v7520 = vld [vmem:[%s836] sm:$0xff]
        %v7521 = vld [vmem:[%s836 + $0x8] sm:$0xff]
        %v7522 = vld [vmem:[%s836 + $0x10] sm:$0xff]
        %v7523 = vld [vmem:[%s836 + $0x18] sm:$0xff]
        %v7524 = vld [vmem:[%s836 + $0x20] sm:$0xff]
        %v7525 = vld [vmem:[%s836 + $0x28] sm:$0xff]
        %v7526 = vld [vmem:[%s836 + $0x30] sm:$0xff]
        %v7527 = vld [vmem:[%s836 + $0x38] sm:$0xff]
        %v7528 = vld [vmem:[%s836 + $0x40] sm:$0xff]
        %v7529 = vld [vmem:[%s836 + $0x48] sm:$0xff]
        %v7530 = vld [vmem:[%s836 + $0x50] sm:$0xff]
        %v7531 = vld [vmem:[%s836 + $0x58] sm:$0xff]
        %v7532 = vld [vmem:[%s836 + $0x60] sm:$0xff]
        %v7533 = vld [vmem:[%s836 + $0x68] sm:$0xff]
        %v7534 = vld [vmem:[%s836 + $0x70] sm:$0xff]
        %v7535 = vld [vmem:[%s836 + $0x78] sm:$0xff]
        %v7536 = vld [vmem:[%s836 + $0x80] sm:$0xff]
        %v7537 = vld [vmem:[%s836 + $0x88] sm:$0xff]
        %v7538 = vld [vmem:[%s836 + $0x90] sm:$0xff]
        %v7539 = vld [vmem:[%s836 + $0x98] sm:$0xff]
        %v7540 = vld [vmem:[%s836 + $0xa0] sm:$0xff]
        %v7541 = vld [vmem:[%s836 + $0xa8] sm:$0xff]
        %v7542 = vld [vmem:[%s836 + $0xb0] sm:$0xff]
        %v7543 = vld [vmem:[%s836 + $0xb8] sm:$0xff]
        %v7544 = vld [vmem:[%s836 + $0xc0] sm:$0xff]
        %v7545 = vld [vmem:[%s836 + $0xc8] sm:$0xff]
        %v7546 = vld [vmem:[%s836 + $0xd0] sm:$0xff]
        %v7547 = vld [vmem:[%s836 + $0xd8] sm:$0xff]
        %v7548 = vld [vmem:[%s836 + $0xe0] sm:$0xff]
        %v7549 = vld [vmem:[%s836 + $0xe8] sm:$0xff]
        %v7550 = vld [vmem:[%s836 + $0xf0] sm:$0xff]
        %v7551 = vld [vmem:[%s836 + $0xf8] sm:$0xff]
        %v7552 = vld [vmem:[%s845] sm:$0xf]
        %v7554 = vlaneseq
        %v7555 = vshrl.u32 %v7554, 7
        %v7556 = vsub.s32 0, %v7555
        %v7557 = vrot.slane %v7552, %v7556
        %v7558 = vlaneseq
        %v7559 = vshrl.u32 %v7558, 7
        %v7560 = vsub.s32 1, %v7559
        %v7561 = vrot.slane %v7552, %v7560
        %v7562 = vlaneseq
        %v7563 = vshrl.u32 %v7562, 7
        %v7564 = vsub.s32 2, %v7563
        %v7565 = vrot.slane %v7552, %v7564
        %v7566 = vlaneseq
        %v7567 = vshrl.u32 %v7566, 7
        %v7568 = vsub.s32 3, %v7567
        %v7569 = vrot.slane %v7552, %v7568
        %v7606 = vunpack.c.l.b16 %v7520
        %v7607 = vunpack.c.h.b16 %v7520
        %v7608 = vunpack.c.l.b16 %v7521
        %v7609 = vunpack.c.h.b16 %v7521
        %v7610 = vunpack.c.l.b16 %v7522
        %v7611 = vunpack.c.h.b16 %v7522
        %v7612 = vunpack.c.l.b16 %v7523
        %v7613 = vunpack.c.h.b16 %v7523
        %v7614 = vunpack.c.l.b16 %v7524
        %v7615 = vunpack.c.h.b16 %v7524
        %v7616 = vunpack.c.l.b16 %v7525
        %v7617 = vunpack.c.h.b16 %v7525
        %v7618 = vunpack.c.l.b16 %v7526
        %v7619 = vunpack.c.h.b16 %v7526
        %v7620 = vunpack.c.l.b16 %v7527
        %v7621 = vunpack.c.h.b16 %v7527
        %v7622 = vunpack.c.l.b16 %v7528
        %v7623 = vunpack.c.h.b16 %v7528
        %v7624 = vunpack.c.l.b16 %v7529
        %v7625 = vunpack.c.h.b16 %v7529
        %v7626 = vunpack.c.l.b16 %v7530
        %v7627 = vunpack.c.h.b16 %v7530
        %v7628 = vunpack.c.l.b16 %v7531
        %v7629 = vunpack.c.h.b16 %v7531
        %v7630 = vunpack.c.l.b16 %v7532
        %v7631 = vunpack.c.h.b16 %v7532
        %v7632 = vunpack.c.l.b16 %v7533
        %v7633 = vunpack.c.h.b16 %v7533
        %v7634 = vunpack.c.l.b16 %v7534
        %v7635 = vunpack.c.h.b16 %v7534
        %v7636 = vunpack.c.l.b16 %v7535
        %v7637 = vunpack.c.h.b16 %v7535
        %v7638 = vunpack.c.l.b16 %v7536
        %v7639 = vunpack.c.h.b16 %v7536
        %v7640 = vunpack.c.l.b16 %v7537
        %v7641 = vunpack.c.h.b16 %v7537
        %v7642 = vunpack.c.l.b16 %v7538
        %v7643 = vunpack.c.h.b16 %v7538
        %v7644 = vunpack.c.l.b16 %v7539
        %v7645 = vunpack.c.h.b16 %v7539
        %v7646 = vunpack.c.l.b16 %v7540
        %v7647 = vunpack.c.h.b16 %v7540
        %v7648 = vunpack.c.l.b16 %v7541
        %v7649 = vunpack.c.h.b16 %v7541
        %v7650 = vunpack.c.l.b16 %v7542
        %v7651 = vunpack.c.h.b16 %v7542
        %v7652 = vunpack.c.l.b16 %v7543
        %v7653 = vunpack.c.h.b16 %v7543
        %v7654 = vunpack.c.l.b16 %v7544
        %v7655 = vunpack.c.h.b16 %v7544
        %v7656 = vunpack.c.l.b16 %v7545
        %v7657 = vunpack.c.h.b16 %v7545
        %v7658 = vunpack.c.l.b16 %v7546
        %v7659 = vunpack.c.h.b16 %v7546
        %v7660 = vunpack.c.l.b16 %v7547
        %v7661 = vunpack.c.h.b16 %v7547
        %v7662 = vunpack.c.l.b16 %v7548
        %v7663 = vunpack.c.h.b16 %v7548
        %v7664 = vunpack.c.l.b16 %v7549
        %v7665 = vunpack.c.h.b16 %v7549
        %v7666 = vunpack.c.l.b16 %v7550
        %v7667 = vunpack.c.h.b16 %v7550
        %v7668 = vunpack.c.l.b16 %v7551
        %v7669 = vunpack.c.h.b16 %v7551
        %v7670 = vpack.c.b16 %v7610, %v7606
        %v7671 = vpack.c.b16 %v7611, %v7607
        %v7672 = vpack.c.b16 %v7612, %v7608
        %v7673 = vpack.c.b16 %v7613, %v7609
        %v7674 = vpack.c.b16 %v7618, %v7614
        %v7675 = vpack.c.b16 %v7619, %v7615
        %v7676 = vpack.c.b16 %v7620, %v7616
        %v7677 = vpack.c.b16 %v7621, %v7617
        %v7678 = vpack.c.b16 %v7626, %v7622
        %v7679 = vpack.c.b16 %v7627, %v7623
        %v7680 = vpack.c.b16 %v7628, %v7624
        %v7681 = vpack.c.b16 %v7629, %v7625
        %v7682 = vpack.c.b16 %v7634, %v7630
        %v7683 = vpack.c.b16 %v7635, %v7631
        %v7684 = vpack.c.b16 %v7636, %v7632
        %v7685 = vpack.c.b16 %v7637, %v7633
        %v7686 = vpack.c.b16 %v7642, %v7638
        %v7687 = vpack.c.b16 %v7643, %v7639
        %v7688 = vpack.c.b16 %v7644, %v7640
        %v7689 = vpack.c.b16 %v7645, %v7641
        %v7690 = vpack.c.b16 %v7650, %v7646
        %v7691 = vpack.c.b16 %v7651, %v7647
        %v7692 = vpack.c.b16 %v7652, %v7648
        %v7693 = vpack.c.b16 %v7653, %v7649
        %v7694 = vpack.c.b16 %v7658, %v7654
        %v7695 = vpack.c.b16 %v7659, %v7655
        %v7696 = vpack.c.b16 %v7660, %v7656
        %v7697 = vpack.c.b16 %v7661, %v7657
        %v7698 = vpack.c.b16 %v7666, %v7662
        %v7699 = vpack.c.b16 %v7667, %v7663
        %v7700 = vpack.c.b16 %v7668, %v7664
        %v7701 = vpack.c.b16 %v7669, %v7665
        %7734 = vmatprep.subr.bf16.mxu0 %v7671
        %7735 = vmatpush1.bf16.msra.mxu0 %v7670
        %7736 = vmatprep.subr.bf16.mxu0 %v7675
        %7737 = vmatpush1.bf16.msra.mxu0 %v7674
        %7738 = vmatprep.subr.bf16.mxu0 %v7679
        %7739 = vmatpush1.bf16.msra.mxu0 %v7678
        %7740 = vmatprep.subr.bf16.mxu0 %v7683
        %7741 = vmatpush1.bf16.msra.mxu0 %v7682
        %7742 = vmatprep.subr.bf16.mxu0 %v7687
        %7743 = vmatpush1.bf16.msra.mxu0 %v7686
        %7744 = vmatprep.subr.bf16.mxu0 %v7691
        %7745 = vmatpush1.bf16.msra.mxu0 %v7690
        %7746 = vmatprep.subr.bf16.mxu0 %v7695
        %7747 = vmatpush1.bf16.msra.mxu0 %v7694
        %7748 = vmatprep.subr.bf16.mxu0 %v7699
        %7749 = vmatpush1.bf16.msra.mxu0 %v7698
        %7750 = vmatprep.subr.bf16.mxu0 0
        %7751 = vmatpush1.bf16.msra.mxu0 0
        %7752 = vmatprep.subr.bf16.mxu0 0
        %7753 = vmatpush1.bf16.msra.mxu0 0
        %7754 = vmatprep.subr.bf16.mxu0 0
        %7755 = vmatpush1.bf16.msra.mxu0 0
        %7756 = vmatprep.subr.bf16.mxu0 0
        %7757 = vmatpush1.bf16.msra.mxu0 0
        %7758 = vmatprep.subr.bf16.mxu0 0
        %7759 = vmatpush1.bf16.msra.mxu0 0
        %7760 = vmatprep.subr.bf16.mxu0 0
        %7761 = vmatpush1.bf16.msra.mxu0 0
        %7762 = vmatprep.subr.bf16.mxu0 0
        %7763 = vmatpush1.bf16.msra.mxu0 0
        %7764 = vmatprep.subr.bf16.mxu0 0
        %7765 = vmatpush1.bf16.msra.mxu0 0
        %7766 = vmatprep.mubr.bf16.mxu0 0
        %7767 = vmatmul.mubr.bf16.gmra.mrb[0].mxu0 %v7504
        %v7768 = vpop.f32.mrb[0].mxu0
        %v7769 = vadd.f32 %v7557, %v7768
        %v7770 = vpop.f32.mrb[0].mxu0
        %v7771 = vadd.f32 %v7561, %v7770
        %v7772 = vpop.f32.mrb[0].mxu0
        %v7773 = vadd.f32 %v7557, %v7772
        %v7774 = vpop.f32.mrb[0].mxu0
        %v7775 = vadd.f32 %v7561, %v7774
        %7776 = vmatprep.mubr.bf16.mxu0 0
        %7777 = vmatmul.mubr.bf16.gmra.mrb[0].mxu0 %v7505
        %v7778 = vpop.f32.mrb[0].mxu0
        %v7779 = vadd.f32 %v7557, %v7778
        %v7780 = vpop.f32.mrb[0].mxu0
        %v7781 = vadd.f32 %v7561, %v7780
        %v7782 = vpop.f32.mrb[0].mxu0
        %v7783 = vadd.f32 %v7557, %v7782
        %v7784 = vpop.f32.mrb[0].mxu0
        %v7785 = vadd.f32 %v7561, %v7784
        %7786 = vmatprep.mubr.bf16.mxu0 0
        %7787 = vmatmul.mubr.bf16.gmra.mrb[0].mxu0 %v7506
        %v7788 = vpop.f32.mrb[0].mxu0
        %v7789 = vadd.f32 %v7557, %v7788
        %v7790 = vpop.f32.mrb[0].mxu0
        %v7791 = vadd.f32 %v7561, %v7790
        %v7792 = vpop.f32.mrb[0].mxu0
        %v7793 = vadd.f32 %v7557, %v7792
        %v7794 = vpop.f32.mrb[0].mxu0
        %v7795 = vadd.f32 %v7561, %v7794
        %7796 = vmatprep.mubr.bf16.mxu0 0
        %7797 = vmatmul.mubr.bf16.gmra.mrb[0].mxu0 %v7507
        %v7798 = vpop.f32.mrb[0].mxu0
        %v7799 = vadd.f32 %v7557, %v7798
        %v7800 = vpop.f32.mrb[0].mxu0
        %v7801 = vadd.f32 %v7561, %v7800
        %v7802 = vpop.f32.mrb[0].mxu0
        %v7803 = vadd.f32 %v7557, %v7802
        %v7804 = vpop.f32.mrb[0].mxu0
        %v7805 = vadd.f32 %v7561, %v7804
        %7806 = vmatprep.mubr.bf16.mxu0 0
        %7807 = vmatmul.mubr.bf16.gmra.mrb[0].mxu0 %v7508
        %v7808 = vpop.f32.mrb[0].mxu0
        %v7809 = vadd.f32 %v7557, %v7808
        %v7810 = vpop.f32.mrb[0].mxu0
        %v7811 = vadd.f32 %v7561, %v7810
        %v7812 = vpop.f32.mrb[0].mxu0
        %v7813 = vadd.f32 %v7557, %v7812
        %v7814 = vpop.f32.mrb[0].mxu0
        %v7815 = vadd.f32 %v7561, %v7814
        %7816 = vmatprep.mubr.bf16.mxu0 0
        %7817 = vmatmul.mubr.bf16.gmra.mrb[0].mxu0 %v7509
        %v7818 = vpop.f32.mrb[0].mxu0
        %v7819 = vadd.f32 %v7557, %v7818
        %v7820 = vpop.f32.mrb[0].mxu0
        %v7821 = vadd.f32 %v7561, %v7820
        %v7822 = vpop.f32.mrb[0].mxu0
        %v7823 = vadd.f32 %v7557, %v7822
        %v7824 = vpop.f32.mrb[0].mxu0
        %v7825 = vadd.f32 %v7561, %v7824
        %7826 = vmatprep.mubr.bf16.mxu0 0
        %7827 = vmatmul.mubr.bf16.gmra.mrb[0].mxu0 %v7510
        %v7828 = vpop.f32.mrb[0].mxu0
        %v7829 = vadd.f32 %v7557, %v7828
        %v7830 = vpop.f32.mrb[0].mxu0
        %v7831 = vadd.f32 %v7561, %v7830
        %v7832 = vpop.f32.mrb[0].mxu0
        %v7833 = vadd.f32 %v7557, %v7832
        %v7834 = vpop.f32.mrb[0].mxu0
        %v7835 = vadd.f32 %v7561, %v7834
        %7836 = vmatprep.mubr.bf16.mxu0 0
        %7837 = vmatmul.mubr.bf16.gmra.mrb[0].mxu0 %v7511
        %v7838 = vpop.f32.mrb[0].mxu0
        %v7839 = vadd.f32 %v7557, %v7838
        %v7840 = vpop.f32.mrb[0].mxu0
        %v7841 = vadd.f32 %v7561, %v7840
        %v7842 = vpop.f32.mrb[0].mxu0
        %v7843 = vadd.f32 %v7557, %v7842
        %v7844 = vpop.f32.mrb[0].mxu0
        %v7845 = vadd.f32 %v7561, %v7844
        %7846 = vmatprep.mubr.bf16.mxu0 0
        %7847 = vmatmul.mubr.bf16.gmra.mrb[0].mxu0 %v7512
        %v7848 = vpop.f32.mrb[0].mxu0
        %v7849 = vadd.f32 %v7557, %v7848
        %v7850 = vpop.f32.mrb[0].mxu0
        %v7851 = vadd.f32 %v7561, %v7850
        %v7852 = vpop.f32.mrb[0].mxu0
        %v7853 = vadd.f32 %v7557, %v7852
        %v7854 = vpop.f32.mrb[0].mxu0
        %v7855 = vadd.f32 %v7561, %v7854
        %7856 = vmatprep.mubr.bf16.mxu0 0
        %7857 = vmatmul.mubr.bf16.gmra.mrb[0].mxu0 %v7513
        %v7858 = vpop.f32.mrb[0].mxu0
        %v7859 = vadd.f32 %v7557, %v7858
        %v7860 = vpop.f32.mrb[0].mxu0
        %v7861 = vadd.f32 %v7561, %v7860
        %v7862 = vpop.f32.mrb[0].mxu0
        %v7863 = vadd.f32 %v7557, %v7862
        %v7864 = vpop.f32.mrb[0].mxu0
        %v7865 = vadd.f32 %v7561, %v7864
        %7866 = vmatprep.mubr.bf16.mxu0 0
        %7867 = vmatmul.mubr.bf16.gmra.mrb[0].mxu0 %v7514
        %v7868 = vpop.f32.mrb[0].mxu0
        %v7869 = vadd.f32 %v7557, %v7868
        %v7870 = vpop.f32.mrb[0].mxu0
        %v7871 = vadd.f32 %v7561, %v7870
        %v7872 = vpop.f32.mrb[0].mxu0
        %v7873 = vadd.f32 %v7557, %v7872
        %v7874 = vpop.f32.mrb[0].mxu0
        %v7875 = vadd.f32 %v7561, %v7874
        %7876 = vmatprep.mubr.bf16.mxu0 0
        %7877 = vmatmul.mubr.bf16.gmra.mrb[0].mxu0 %v7515
        %v7878 = vpop.f32.mrb[0].mxu0
        %v7879 = vadd.f32 %v7557, %v7878
        %v7880 = vpop.f32.mrb[0].mxu0
        %v7881 = vadd.f32 %v7561, %v7880
        %v7882 = vpop.f32.mrb[0].mxu0
        %v7883 = vadd.f32 %v7557, %v7882
        %v7884 = vpop.f32.mrb[0].mxu0
        %v7885 = vadd.f32 %v7561, %v7884
        %7886 = vmatprep.mubr.bf16.mxu0 0
        %7887 = vmatmul.mubr.bf16.gmra.mrb[0].mxu0 %v7516
        %v7888 = vpop.f32.mrb[0].mxu0
        %v7889 = vadd.f32 %v7557, %v7888
        %v7890 = vpop.f32.mrb[0].mxu0
        %v7891 = vadd.f32 %v7561, %v7890
        %v7892 = vpop.f32.mrb[0].mxu0
        %v7893 = vadd.f32 %v7557, %v7892
        %v7894 = vpop.f32.mrb[0].mxu0
        %v7895 = vadd.f32 %v7561, %v7894
        %7896 = vmatprep.mubr.bf16.mxu0 0
        %7897 = vmatmul.mubr.bf16.gmra.mrb[0].mxu0 %v7517
        %v7898 = vpop.f32.mrb[0].mxu0
        %v7899 = vadd.f32 %v7557, %v7898
        %v7900 = vpop.f32.mrb[0].mxu0
        %v7901 = vadd.f32 %v7561, %v7900
        %v7902 = vpop.f32.mrb[0].mxu0
        %v7903 = vadd.f32 %v7557, %v7902
        %v7904 = vpop.f32.mrb[0].mxu0
        %v7905 = vadd.f32 %v7561, %v7904
        %7906 = vmatprep.mubr.bf16.mxu0 0
        %7907 = vmatmul.mubr.bf16.gmra.mrb[0].mxu0 %v7518
        %v7908 = vpop.f32.mrb[0].mxu0
        %v7909 = vadd.f32 %v7557, %v7908
        %v7910 = vpop.f32.mrb[0].mxu0
        %v7911 = vadd.f32 %v7561, %v7910
        %v7912 = vpop.f32.mrb[0].mxu0
        %v7913 = vadd.f32 %v7557, %v7912
        %v7914 = vpop.f32.mrb[0].mxu0
        %v7915 = vadd.f32 %v7561, %v7914
        %7916 = vmatprep.mubr.bf16.mxu0 0
        %7917 = vmatmul.mubr.bf16.gmra.mrb[0].mxu0 %v7519
        %v7918 = vpop.f32.mrb[0].mxu0
        %v7919 = vadd.f32 %v7557, %v7918
        %v7920 = vpop.f32.mrb[0].mxu0
        %v7921 = vadd.f32 %v7561, %v7920
        %v7922 = vpop.f32.mrb[0].mxu0
        %v7923 = vadd.f32 %v7557, %v7922
        %v7924 = vpop.f32.mrb[0].mxu0
        %v7925 = vadd.f32 %v7561, %v7924
        %7926 = vdwg.mxu0
        %7927 = vmatprep.subr.bf16.mxu0 %v7673
        %7928 = vmatpush1.bf16.msra.mxu0 %v7672
        %7929 = vmatprep.subr.bf16.mxu0 %v7677
        %7930 = vmatpush1.bf16.msra.mxu0 %v7676
        %7931 = vmatprep.subr.bf16.mxu0 %v7681
        %7932 = vmatpush1.bf16.msra.mxu0 %v7680
        %7933 = vmatprep.subr.bf16.mxu0 %v7685
        %7934 = vmatpush1.bf16.msra.mxu0 %v7684
        %7935 = vmatprep.subr.bf16.mxu0 %v7689
        %7936 = vmatpush1.bf16.msra.mxu0 %v7688
        %7937 = vmatprep.subr.bf16.mxu0 %v7693
        %7938 = vmatpush1.bf16.msra.mxu0 %v7692
        %7939 = vmatprep.subr.bf16.mxu0 %v7697
        %7940 = vmatpush1.bf16.msra.mxu0 %v7696
        %7941 = vmatprep.subr.bf16.mxu0 %v7701
        %7942 = vmatpush1.bf16.msra.mxu0 %v7700
        %7943 = vmatprep.subr.bf16.mxu0 0
        %7944 = vmatpush1.bf16.msra.mxu0 0
        %7945 = vmatprep.subr.bf16.mxu0 0
        %7946 = vmatpush1.bf16.msra.mxu0 0
        %7947 = vmatprep.subr.bf16.mxu0 0
        %7948 = vmatpush1.bf16.msra.mxu0 0
        %7949 = vmatprep.subr.bf16.mxu0 0
        %7950 = vmatpush1.bf16.msra.mxu0 0
        %7951 = vmatprep.subr.bf16.mxu0 0
        %7952 = vmatpush1.bf16.msra.mxu0 0
        %7953 = vmatprep.subr.bf16.mxu0 0
        %7954 = vmatpush1.bf16.msra.mxu0 0
        %7955 = vmatprep.subr.bf16.mxu0 0
        %7956 = vmatpush1.bf16.msra.mxu0 0
        %7957 = vmatprep.subr.bf16.mxu0 0
        %7958 = vmatpush1.bf16.msra.mxu0 0
        %7959 = vmatprep.mubr.bf16.mxu0 0
        %7960 = vmatmul.mubr.bf16.gmra.mrb[0].mxu0 %v7504
        %v7961 = vpop.f32.mrb[0].mxu0
        %v7962 = vadd.f32 %v7565, %v7961
        %v7963 = vpop.f32.mrb[0].mxu0
        %v7964 = vadd.f32 %v7569, %v7963
        %v7965 = vpop.f32.mrb[0].mxu0
        %v7966 = vadd.f32 %v7565, %v7965
        %v7967 = vpop.f32.mrb[0].mxu0
        %v7968 = vadd.f32 %v7569, %v7967
        %7969 = vmatprep.mubr.bf16.mxu0 0
        %7970 = vmatmul.mubr.bf16.gmra.mrb[0].mxu0 %v7505
        %v7971 = vpop.f32.mrb[0].mxu0
        %v7972 = vadd.f32 %v7565, %v7971
        %v7973 = vpop.f32.mrb[0].mxu0
        %v7974 = vadd.f32 %v7569, %v7973
        %v7975 = vpop.f32.mrb[0].mxu0
        %v7976 = vadd.f32 %v7565, %v7975
        %v7977 = vpop.f32.mrb[0].mxu0
        %v7978 = vadd.f32 %v7569, %v7977
        %7979 = vmatprep.mubr.bf16.mxu0 0
        %7980 = vmatmul.mubr.bf16.gmra.mrb[0].mxu0 %v7506
        %v7981 = vpop.f32.mrb[0].mxu0
        %v7982 = vadd.f32 %v7565, %v7981
        %v7983 = vpop.f32.mrb[0].mxu0
        %v7984 = vadd.f32 %v7569, %v7983
        %v7985 = vpop.f32.mrb[0].mxu0
        %v7986 = vadd.f32 %v7565, %v7985
        %v7987 = vpop.f32.mrb[0].mxu0
        %v7988 = vadd.f32 %v7569, %v7987
        %7989 = vmatprep.mubr.bf16.mxu0 0
        %7990 = vmatmul.mubr.bf16.gmra.mrb[0].mxu0 %v7507
        %v7991 = vpop.f32.mrb[0].mxu0
        %v7992 = vadd.f32 %v7565, %v7991
        %v7993 = vpop.f32.mrb[0].mxu0
        %v7994 = vadd.f32 %v7569, %v7993
        %v7995 = vpop.f32.mrb[0].mxu0
        %v7996 = vadd.f32 %v7565, %v7995
        %v7997 = vpop.f32.mrb[0].mxu0
        %v7998 = vadd.f32 %v7569, %v7997
        %7999 = vmatprep.mubr.bf16.mxu0 0
        %8000 = vmatmul.mubr.bf16.gmra.mrb[0].mxu0 %v7508
        %v8001 = vpop.f32.mrb[0].mxu0
        %v8002 = vadd.f32 %v7565, %v8001
        %v8003 = vpop.f32.mrb[0].mxu0
        %v8004 = vadd.f32 %v7569, %v8003
        %v8005 = vpop.f32.mrb[0].mxu0
        %v8006 = vadd.f32 %v7565, %v8005
        %v8007 = vpop.f32.mrb[0].mxu0
        %v8008 = vadd.f32 %v7569, %v8007
        %8009 = vmatprep.mubr.bf16.mxu0 0
        %8010 = vmatmul.mubr.bf16.gmra.mrb[0].mxu0 %v7509
        %v8011 = vpop.f32.mrb[0].mxu0
        %v8012 = vadd.f32 %v7565, %v8011
        %v8013 = vpop.f32.mrb[0].mxu0
        %v8014 = vadd.f32 %v7569, %v8013
        %v8015 = vpop.f32.mrb[0].mxu0
        %v8016 = vadd.f32 %v7565, %v8015
        %v8017 = vpop.f32.mrb[0].mxu0
        %v8018 = vadd.f32 %v7569, %v8017
        %8019 = vmatprep.mubr.bf16.mxu0 0
        %8020 = vmatmul.mubr.bf16.gmra.mrb[0].mxu0 %v7510
        %v8021 = vpop.f32.mrb[0].mxu0
        %v8022 = vadd.f32 %v7565, %v8021
        %v8023 = vpop.f32.mrb[0].mxu0
        %v8024 = vadd.f32 %v7569, %v8023
        %v8025 = vpop.f32.mrb[0].mxu0
        %v8026 = vadd.f32 %v7565, %v8025
        %v8027 = vpop.f32.mrb[0].mxu0
        %v8028 = vadd.f32 %v7569, %v8027
        %8029 = vmatprep.mubr.bf16.mxu0 0
        %8030 = vmatmul.mubr.bf16.gmra.mrb[0].mxu0 %v7511
        %v8031 = vpop.f32.mrb[0].mxu0
        %v8032 = vadd.f32 %v7565, %v8031
        %v8033 = vpop.f32.mrb[0].mxu0
        %v8034 = vadd.f32 %v7569, %v8033
        %v8035 = vpop.f32.mrb[0].mxu0
        %v8036 = vadd.f32 %v7565, %v8035
        %v8037 = vpop.f32.mrb[0].mxu0
        %v8038 = vadd.f32 %v7569, %v8037
        %8039 = vmatprep.mubr.bf16.mxu0 0
        %8040 = vmatmul.mubr.bf16.gmra.mrb[0].mxu0 %v7512
        %v8041 = vpop.f32.mrb[0].mxu0
        %v8042 = vadd.f32 %v7565, %v8041
        %v8043 = vpop.f32.mrb[0].mxu0
        %v8044 = vadd.f32 %v7569, %v8043
        %v8045 = vpop.f32.mrb[0].mxu0
        %v8046 = vadd.f32 %v7565, %v8045
        %v8047 = vpop.f32.mrb[0].mxu0
        %v8048 = vadd.f32 %v7569, %v8047
        %8049 = vmatprep.mubr.bf16.mxu0 0
        %8050 = vmatmul.mubr.bf16.gmra.mrb[0].mxu0 %v7513
        %v8051 = vpop.f32.mrb[0].mxu0
        %v8052 = vadd.f32 %v7565, %v8051
        %v8053 = vpop.f32.mrb[0].mxu0
        %v8054 = vadd.f32 %v7569, %v8053
        %v8055 = vpop.f32.mrb[0].mxu0
        %v8056 = vadd.f32 %v7565, %v8055
        %v8057 = vpop.f32.mrb[0].mxu0
        %v8058 = vadd.f32 %v7569, %v8057
        %8059 = vmatprep.mubr.bf16.mxu0 0
        %8060 = vmatmul.mubr.bf16.gmra.mrb[0].mxu0 %v7514
        %v8061 = vpop.f32.mrb[0].mxu0
        %v8062 = vadd.f32 %v7565, %v8061
        %v8063 = vpop.f32.mrb[0].mxu0
        %v8064 = vadd.f32 %v7569, %v8063
        %v8065 = vpop.f32.mrb[0].mxu0
        %v8066 = vadd.f32 %v7565, %v8065
        %v8067 = vpop.f32.mrb[0].mxu0
        %v8068 = vadd.f32 %v7569, %v8067
        %8069 = vmatprep.mubr.bf16.mxu0 0
        %8070 = vmatmul.mubr.bf16.gmra.mrb[0].mxu0 %v7515
        %v8071 = vpop.f32.mrb[0].mxu0
        %v8072 = vadd.f32 %v7565, %v8071
        %v8073 = vpop.f32.mrb[0].mxu0
        %v8074 = vadd.f32 %v7569, %v8073
        %v8075 = vpop.f32.mrb[0].mxu0
        %v8076 = vadd.f32 %v7565, %v8075
        %v8077 = vpop.f32.mrb[0].mxu0
        %v8078 = vadd.f32 %v7569, %v8077
        %8079 = vmatprep.mubr.bf16.mxu0 0
        %8080 = vmatmul.mubr.bf16.gmra.mrb[0].mxu0 %v7516
        %v8081 = vpop.f32.mrb[0].mxu0
        %v8082 = vadd.f32 %v7565, %v8081
        %v8083 = vpop.f32.mrb[0].mxu0
        %v8084 = vadd.f32 %v7569, %v8083
        %v8085 = vpop.f32.mrb[0].mxu0
        %v8086 = vadd.f32 %v7565, %v8085
        %v8087 = vpop.f32.mrb[0].mxu0
        %v8088 = vadd.f32 %v7569, %v8087
        %8089 = vmatprep.mubr.bf16.mxu0 0
        %8090 = vmatmul.mubr.bf16.gmra.mrb[0].mxu0 %v7517
        %v8091 = vpop.f32.mrb[0].mxu0
        %v8092 = vadd.f32 %v7565, %v8091
        %v8093 = vpop.f32.mrb[0].mxu0
        %v8094 = vadd.f32 %v7569, %v8093
        %v8095 = vpop.f32.mrb[0].mxu0
        %v8096 = vadd.f32 %v7565, %v8095
        %v8097 = vpop.f32.mrb[0].mxu0
        %v8098 = vadd.f32 %v7569, %v8097
        %8099 = vmatprep.mubr.bf16.mxu0 0
        %8100 = vmatmul.mubr.bf16.gmra.mrb[0].mxu0 %v7518
        %v8101 = vpop.f32.mrb[0].mxu0
        %v8102 = vadd.f32 %v7565, %v8101
        %v8103 = vpop.f32.mrb[0].mxu0
        %v8104 = vadd.f32 %v7569, %v8103
        %v8105 = vpop.f32.mrb[0].mxu0
        %v8106 = vadd.f32 %v7565, %v8105
        %v8107 = vpop.f32.mrb[0].mxu0
        %v8108 = vadd.f32 %v7569, %v8107
        %8109 = vmatprep.mubr.bf16.mxu0 0
        %8110 = vmatmul.mubr.bf16.gmra.mrb[0].mxu0 %v7519
        %v8111 = vpop.f32.mrb[0].mxu0
        %v8112 = vadd.f32 %v7565, %v8111
        %v8113 = vpop.f32.mrb[0].mxu0
        %v8114 = vadd.f32 %v7569, %v8113
        %v8115 = vpop.f32.mrb[0].mxu0
        %v8116 = vadd.f32 %v7565, %v8115
        %v8117 = vpop.f32.mrb[0].mxu0
        %v8118 = vadd.f32 %v7569, %v8117
        %8119 = vdwg.mxu0
        %v8120 = vmax.f32 %v7769, 0.0
        %v8121 = vmax.f32 %v7771, 0.0
        %v8122 = vmax.f32 %v7962, 0.0
        %v8123 = vmax.f32 %v7964, 0.0
        %v8124 = vmax.f32 %v7773, 0.0
        %v8125 = vmax.f32 %v7775, 0.0
        %v8126 = vmax.f32 %v7966, 0.0
        %v8127 = vmax.f32 %v7968, 0.0
        %v8128 = vmax.f32 %v7779, 0.0
        %v8129 = vmax.f32 %v7781, 0.0
        %v8130 = vmax.f32 %v7972, 0.0
        %v8131 = vmax.f32 %v7974, 0.0
        %v8132 = vmax.f32 %v7783, 0.0
        %v8133 = vmax.f32 %v7785, 0.0
        %v8134 = vmax.f32 %v7976, 0.0
        %v8135 = vmax.f32 %v7978, 0.0
        %v8136 = vmax.f32 %v7789, 0.0
        %v8137 = vmax.f32 %v7791, 0.0
        %v8138 = vmax.f32 %v7982, 0.0
        %v8139 = vmax.f32 %v7984, 0.0
        %v8140 = vmax.f32 %v7793, 0.0
        %v8141 = vmax.f32 %v7795, 0.0
        %v8142 = vmax.f32 %v7986, 0.0
        %v8143 = vmax.f32 %v7988, 0.0
        %v8144 = vmax.f32 %v7799, 0.0
        %v8145 = vmax.f32 %v7801, 0.0
        %v8146 = vmax.f32 %v7992, 0.0
        %v8147 = vmax.f32 %v7994, 0.0
        %v8148 = vmax.f32 %v7803, 0.0
        %v8149 = vmax.f32 %v7805, 0.0
        %v8150 = vmax.f32 %v7996, 0.0
        %v8151 = vmax.f32 %v7998, 0.0
        %v8152 = vmax.f32 %v7809, 0.0
        %v8153 = vmax.f32 %v7811, 0.0
        %v8154 = vmax.f32 %v8002, 0.0
        %v8155 = vmax.f32 %v8004, 0.0
        %v8156 = vmax.f32 %v7813, 0.0
        %v8157 = vmax.f32 %v7815, 0.0
        %v8158 = vmax.f32 %v8006, 0.0
        %v8159 = vmax.f32 %v8008, 0.0
        %v8160 = vmax.f32 %v7819, 0.0
        %v8161 = vmax.f32 %v7821, 0.0
        %v8162 = vmax.f32 %v8012, 0.0
        %v8163 = vmax.f32 %v8014, 0.0
        %v8164 = vmax.f32 %v7823, 0.0
        %v8165 = vmax.f32 %v7825, 0.0
        %v8166 = vmax.f32 %v8016, 0.0
        %v8167 = vmax.f32 %v8018, 0.0
        %v8168 = vmax.f32 %v7829, 0.0
        %v8169 = vmax.f32 %v7831, 0.0
        %v8170 = vmax.f32 %v8022, 0.0
        %v8171 = vmax.f32 %v8024, 0.0
        %v8172 = vmax.f32 %v7833, 0.0
        %v8173 = vmax.f32 %v7835, 0.0
        %v8174 = vmax.f32 %v8026, 0.0
        %v8175 = vmax.f32 %v8028, 0.0
        %v8176 = vmax.f32 %v7839, 0.0
        %v8177 = vmax.f32 %v7841, 0.0
        %v8178 = vmax.f32 %v8032, 0.0
        %v8179 = vmax.f32 %v8034, 0.0
        %v8180 = vmax.f32 %v7843, 0.0
        %v8181 = vmax.f32 %v7845, 0.0
        %v8182 = vmax.f32 %v8036, 0.0
        %v8183 = vmax.f32 %v8038, 0.0
        %v8184 = vmax.f32 %v7849, 0.0
        %v8185 = vmax.f32 %v7851, 0.0
        %v8186 = vmax.f32 %v8042, 0.0
        %v8187 = vmax.f32 %v8044, 0.0
        %v8188 = vmax.f32 %v7853, 0.0
        %v8189 = vmax.f32 %v7855, 0.0
        %v8190 = vmax.f32 %v8046, 0.0
        %v8191 = vmax.f32 %v8048, 0.0
        %v8192 = vmax.f32 %v7859, 0.0
        %v8193 = vmax.f32 %v7861, 0.0
        %v8194 = vmax.f32 %v8052, 0.0
        %v8195 = vmax.f32 %v8054, 0.0
        %v8196 = vmax.f32 %v7863, 0.0
        %v8197 = vmax.f32 %v7865, 0.0
        %v8198 = vmax.f32 %v8056, 0.0
        %v8199 = vmax.f32 %v8058, 0.0
        %v8200 = vmax.f32 %v7869, 0.0
        %v8201 = vmax.f32 %v7871, 0.0
        %v8202 = vmax.f32 %v8062, 0.0
        %v8203 = vmax.f32 %v8064, 0.0
        %v8204 = vmax.f32 %v7873, 0.0
        %v8205 = vmax.f32 %v7875, 0.0
        %v8206 = vmax.f32 %v8066, 0.0
        %v8207 = vmax.f32 %v8068, 0.0
        %v8208 = vmax.f32 %v7879, 0.0
        %v8209 = vmax.f32 %v7881, 0.0
        %v8210 = vmax.f32 %v8072, 0.0
        %v8211 = vmax.f32 %v8074, 0.0
        %v8212 = vmax.f32 %v7883, 0.0
        %v8213 = vmax.f32 %v7885, 0.0
        %v8214 = vmax.f32 %v8076, 0.0
        %v8215 = vmax.f32 %v8078, 0.0
        %v8216 = vmax.f32 %v7889, 0.0
        %v8217 = vmax.f32 %v7891, 0.0
        %v8218 = vmax.f32 %v8082, 0.0
        %v8219 = vmax.f32 %v8084, 0.0
        %v8220 = vmax.f32 %v7893, 0.0
        %v8221 = vmax.f32 %v7895, 0.0
        %v8222 = vmax.f32 %v8086, 0.0
        %v8223 = vmax.f32 %v8088, 0.0
        %v8224 = vmax.f32 %v7899, 0.0
        %v8225 = vmax.f32 %v7901, 0.0
        %v8226 = vmax.f32 %v8092, 0.0
        %v8227 = vmax.f32 %v8094, 0.0
        %v8228 = vmax.f32 %v7903, 0.0
        %v8229 = vmax.f32 %v7905, 0.0
        %v8230 = vmax.f32 %v8096, 0.0
        %v8231 = vmax.f32 %v8098, 0.0
        %v8232 = vmax.f32 %v7909, 0.0
        %v8233 = vmax.f32 %v7911, 0.0
        %v8234 = vmax.f32 %v8102, 0.0
        %v8235 = vmax.f32 %v8104, 0.0
        %v8236 = vmax.f32 %v7913, 0.0
        %v8237 = vmax.f32 %v7915, 0.0
        %v8238 = vmax.f32 %v8106, 0.0
        %v8239 = vmax.f32 %v8108, 0.0
        %v8240 = vmax.f32 %v7919, 0.0
        %v8241 = vmax.f32 %v7921, 0.0
        %v8242 = vmax.f32 %v8112, 0.0
        %v8243 = vmax.f32 %v8114, 0.0
        %v8244 = vmax.f32 %v7923, 0.0
        %v8245 = vmax.f32 %v7925, 0.0
        %v8246 = vmax.f32 %v8116, 0.0
        %v8247 = vmax.f32 %v8118, 0.0
        %v8248 = vpack.c.bf16 %v8124, %v8120
        %v8249 = vpack.c.bf16 %v8125, %v8121
        %v8250 = vpack.c.bf16 %v8126, %v8122
        %v8251 = vpack.c.bf16 %v8127, %v8123
        %v8252 = vpack.c.bf16 %v8132, %v8128
        %v8253 = vpack.c.bf16 %v8133, %v8129
        %v8254 = vpack.c.bf16 %v8134, %v8130
        %v8255 = vpack.c.bf16 %v8135, %v8131
        %v8256 = vpack.c.bf16 %v8140, %v8136
        %v8257 = vpack.c.bf16 %v8141, %v8137
        %v8258 = vpack.c.bf16 %v8142, %v8138
        %v8259 = vpack.c.bf16 %v8143, %v8139
        %v8260 = vpack.c.bf16 %v8148, %v8144
        %v8261 = vpack.c.bf16 %v8149, %v8145
        %v8262 = vpack.c.bf16 %v8150, %v8146
        %v8263 = vpack.c.bf16 %v8151, %v8147
        %v8264 = vpack.c.bf16 %v8156, %v8152
        %v8265 = vpack.c.bf16 %v8157, %v8153
        %v8266 = vpack.c.bf16 %v8158, %v8154
        %v8267 = vpack.c.bf16 %v8159, %v8155
        %v8268 = vpack.c.bf16 %v8164, %v8160
        %v8269 = vpack.c.bf16 %v8165, %v8161
        %v8270 = vpack.c.bf16 %v8166, %v8162
        %v8271 = vpack.c.bf16 %v8167, %v8163
        %v8272 = vpack.c.bf16 %v8172, %v8168
        %v8273 = vpack.c.bf16 %v8173, %v8169
        %v8274 = vpack.c.bf16 %v8174, %v8170
        %v8275 = vpack.c.bf16 %v8175, %v8171
        %v8276 = vpack.c.bf16 %v8180, %v8176
        %v8277 = vpack.c.bf16 %v8181, %v8177
        %v8278 = vpack.c.bf16 %v8182, %v8178
        %v8279 = vpack.c.bf16 %v8183, %v8179
        %v8280 = vpack.c.bf16 %v8188, %v8184
        %v8281 = vpack.c.bf16 %v8189, %v8185
        %v8282 = vpack.c.bf16 %v8190, %v8186
        %v8283 = vpack.c.bf16 %v8191, %v8187
        %v8284 = vpack.c.bf16 %v8196, %v8192
        %v8285 = vpack.c.bf16 %v8197, %v8193
        %v8286 = vpack.c.bf16 %v8198, %v8194
        %v8287 = vpack.c.bf16 %v8199, %v8195
        %v8288 = vpack.c.bf16 %v8204, %v8200
        %v8289 = vpack.c.bf16 %v8205, %v8201
        %v8290 = vpack.c.bf16 %v8206, %v8202
        %v8291 = vpack.c.bf16 %v8207, %v8203
        %v8292 = vpack.c.bf16 %v8212, %v8208
        %v8293 = vpack.c.bf16 %v8213, %v8209
        %v8294 = vpack.c.bf16 %v8214, %v8210
        %v8295 = vpack.c.bf16 %v8215, %v8211
        %v8296 = vpack.c.bf16 %v8220, %v8216
        %v8297 = vpack.c.bf16 %v8221, %v8217
        %v8298 = vpack.c.bf16 %v8222, %v8218
        %v8299 = vpack.c.bf16 %v8223, %v8219
        %v8300 = vpack.c.bf16 %v8228, %v8224
        %v8301 = vpack.c.bf16 %v8229, %v8225
        %v8302 = vpack.c.bf16 %v8230, %v8226
        %v8303 = vpack.c.bf16 %v8231, %v8227
        %v8304 = vpack.c.bf16 %v8236, %v8232
        %v8305 = vpack.c.bf16 %v8237, %v8233
        %v8306 = vpack.c.bf16 %v8238, %v8234
        %v8307 = vpack.c.bf16 %v8239, %v8235
        %v8308 = vpack.c.bf16 %v8244, %v8240
        %v8309 = vpack.c.bf16 %v8245, %v8241
        %v8310 = vpack.c.bf16 %v8246, %v8242
        %v8311 = vpack.c.bf16 %v8247, %v8243
        %v8312 = vld [vmem:[%s854] sm:$0xf]
        %v8313 = vld [vmem:[%s854 + $0x4] sm:$0xf]
        %v8314 = vld [vmem:[%s854 + $0x8] sm:$0xf]
        %v8315 = vld [vmem:[%s854 + $0xc] sm:$0xf]
        %v8316 = vld [vmem:[%s854 + $0x10] sm:$0xf]
        %v8317 = vld [vmem:[%s854 + $0x14] sm:$0xf]
        %v8318 = vld [vmem:[%s854 + $0x18] sm:$0xf]
        %v8319 = vld [vmem:[%s854 + $0x1c] sm:$0xf]
        %v8320 = vld [vmem:[%s854 + $0x20] sm:$0xf]
        %v8321 = vld [vmem:[%s854 + $0x24] sm:$0xf]
        %v8322 = vld [vmem:[%s854 + $0x28] sm:$0xf]
        %v8323 = vld [vmem:[%s854 + $0x2c] sm:$0xf]
        %v8324 = vld [vmem:[%s854 + $0x30] sm:$0xf]
        %v8325 = vld [vmem:[%s854 + $0x34] sm:$0xf]
        %v8326 = vld [vmem:[%s854 + $0x38] sm:$0xf]
        %v8327 = vld [vmem:[%s854 + $0x3c] sm:$0xf]
        %v8328 = vld [vmem:[%s854 + $0x40] sm:$0xf]
        %v8329 = vld [vmem:[%s854 + $0x44] sm:$0xf]
        %v8330 = vld [vmem:[%s854 + $0x48] sm:$0xf]
        %v8331 = vld [vmem:[%s854 + $0x4c] sm:$0xf]
        %v8332 = vld [vmem:[%s854 + $0x50] sm:$0xf]
        %v8333 = vld [vmem:[%s854 + $0x54] sm:$0xf]
        %v8334 = vld [vmem:[%s854 + $0x58] sm:$0xf]
        %v8335 = vld [vmem:[%s854 + $0x5c] sm:$0xf]
        %v8336 = vld [vmem:[%s854 + $0x60] sm:$0xf]
        %v8337 = vld [vmem:[%s854 + $0x64] sm:$0xf]
        %v8338 = vld [vmem:[%s854 + $0x68] sm:$0xf]
        %v8339 = vld [vmem:[%s854 + $0x6c] sm:$0xf]
        %v8340 = vld [vmem:[%s854 + $0x70] sm:$0xf]
        %v8341 = vld [vmem:[%s854 + $0x74] sm:$0xf]
        %v8342 = vld [vmem:[%s854 + $0x78] sm:$0xf]
        %v8343 = vld [vmem:[%s854 + $0x7c] sm:$0xf]
        %v8344 = vld [vmem:[%s854 + $0x80] sm:$0xf]
        %v8345 = vld [vmem:[%s854 + $0x84] sm:$0xf]
        %v8346 = vld [vmem:[%s854 + $0x88] sm:$0xf]
        %v8347 = vld [vmem:[%s854 + $0x8c] sm:$0xf]
        %v8348 = vld [vmem:[%s854 + $0x90] sm:$0xf]
        %v8349 = vld [vmem:[%s854 + $0x94] sm:$0xf]
        %v8350 = vld [vmem:[%s854 + $0x98] sm:$0xf]
        %v8351 = vld [vmem:[%s854 + $0x9c] sm:$0xf]
        %v8352 = vld [vmem:[%s854 + $0xa0] sm:$0xf]
        %v8353 = vld [vmem:[%s854 + $0xa4] sm:$0xf]
        %v8354 = vld [vmem:[%s854 + $0xa8] sm:$0xf]
        %v8355 = vld [vmem:[%s854 + $0xac] sm:$0xf]
        %v8356 = vld [vmem:[%s854 + $0xb0] sm:$0xf]
        %v8357 = vld [vmem:[%s854 + $0xb4] sm:$0xf]
        %v8358 = vld [vmem:[%s854 + $0xb8] sm:$0xf]
        %v8359 = vld [vmem:[%s854 + $0xbc] sm:$0xf]
        %v8360 = vld [vmem:[%s854 + $0xc0] sm:$0xf]
        %v8361 = vld [vmem:[%s854 + $0xc4] sm:$0xf]
        %v8362 = vld [vmem:[%s854 + $0xc8] sm:$0xf]
        %v8363 = vld [vmem:[%s854 + $0xcc] sm:$0xf]
        %v8364 = vld [vmem:[%s854 + $0xd0] sm:$0xf]
        %v8365 = vld [vmem:[%s854 + $0xd4] sm:$0xf]
        %v8366 = vld [vmem:[%s854 + $0xd8] sm:$0xf]
        %v8367 = vld [vmem:[%s854 + $0xdc] sm:$0xf]
        %v8368 = vld [vmem:[%s854 + $0xe0] sm:$0xf]
        %v8369 = vld [vmem:[%s854 + $0xe4] sm:$0xf]
        %v8370 = vld [vmem:[%s854 + $0xe8] sm:$0xf]
        %v8371 = vld [vmem:[%s854 + $0xec] sm:$0xf]
        %v8372 = vld [vmem:[%s854 + $0xf0] sm:$0xf]
        %v8373 = vld [vmem:[%s854 + $0xf4] sm:$0xf]
        %v8374 = vld [vmem:[%s854 + $0xf8] sm:$0xf]
        %v8375 = vld [vmem:[%s854 + $0xfc] sm:$0xf]
        %v8376 = vld [vmem:[%s862] sm:$0x1]
        %v8378 = vlaneseq
        %v8379 = vshrl.u32 %v8378, 7
        %v8380 = vsub.s32 0, %v8379
        %v8381 = vrot.slane %v8376, %v8380
        %v8447 = vunpack.c.l.b16 %v8312
        %v8448 = vunpack.c.l.b16 %v8313
        %v8449 = vunpack.c.l.b16 %v8314
        %v8450 = vunpack.c.l.b16 %v8315
        %v8451 = vunpack.c.l.b16 %v8316
        %v8452 = vunpack.c.l.b16 %v8317
        %v8453 = vunpack.c.l.b16 %v8318
        %v8454 = vunpack.c.l.b16 %v8319
        %v8455 = vunpack.c.l.b16 %v8320
        %v8456 = vunpack.c.l.b16 %v8321
        %v8457 = vunpack.c.l.b16 %v8322
        %v8458 = vunpack.c.l.b16 %v8323
        %v8459 = vunpack.c.l.b16 %v8324
        %v8460 = vunpack.c.l.b16 %v8325
        %v8461 = vunpack.c.l.b16 %v8326
        %v8462 = vunpack.c.l.b16 %v8327
        %v8463 = vunpack.c.l.b16 %v8328
        %v8464 = vunpack.c.l.b16 %v8329
        %v8465 = vunpack.c.l.b16 %v8330
        %v8466 = vunpack.c.l.b16 %v8331
        %v8467 = vunpack.c.l.b16 %v8332
        %v8468 = vunpack.c.l.b16 %v8333
        %v8469 = vunpack.c.l.b16 %v8334
        %v8470 = vunpack.c.l.b16 %v8335
        %v8471 = vunpack.c.l.b16 %v8336
        %v8472 = vunpack.c.l.b16 %v8337
        %v8473 = vunpack.c.l.b16 %v8338
        %v8474 = vunpack.c.l.b16 %v8339
        %v8475 = vunpack.c.l.b16 %v8340
        %v8476 = vunpack.c.l.b16 %v8341
        %v8477 = vunpack.c.l.b16 %v8342
        %v8478 = vunpack.c.l.b16 %v8343
        %v8479 = vunpack.c.l.b16 %v8344
        %v8480 = vunpack.c.l.b16 %v8345
        %v8481 = vunpack.c.l.b16 %v8346
        %v8482 = vunpack.c.l.b16 %v8347
        %v8483 = vunpack.c.l.b16 %v8348
        %v8484 = vunpack.c.l.b16 %v8349
        %v8485 = vunpack.c.l.b16 %v8350
        %v8486 = vunpack.c.l.b16 %v8351
        %v8487 = vunpack.c.l.b16 %v8352
        %v8488 = vunpack.c.l.b16 %v8353
        %v8489 = vunpack.c.l.b16 %v8354
        %v8490 = vunpack.c.l.b16 %v8355
        %v8491 = vunpack.c.l.b16 %v8356
        %v8492 = vunpack.c.l.b16 %v8357
        %v8493 = vunpack.c.l.b16 %v8358
        %v8494 = vunpack.c.l.b16 %v8359
        %v8495 = vunpack.c.l.b16 %v8360
        %v8496 = vunpack.c.l.b16 %v8361
        %v8497 = vunpack.c.l.b16 %v8362
        %v8498 = vunpack.c.l.b16 %v8363
        %v8499 = vunpack.c.l.b16 %v8364
        %v8500 = vunpack.c.l.b16 %v8365
        %v8501 = vunpack.c.l.b16 %v8366
        %v8502 = vunpack.c.l.b16 %v8367
        %v8503 = vunpack.c.l.b16 %v8368
        %v8504 = vunpack.c.l.b16 %v8369
        %v8505 = vunpack.c.l.b16 %v8370
        %v8506 = vunpack.c.l.b16 %v8371
        %v8507 = vunpack.c.l.b16 %v8372
        %v8508 = vunpack.c.l.b16 %v8373
        %v8509 = vunpack.c.l.b16 %v8374
        %v8510 = vunpack.c.l.b16 %v8375
        %v8511 = vpack.c.b16 %v8448, %v8447
        %v8512 = vpack.c.b16 %v8450, %v8449
        %v8513 = vpack.c.b16 %v8452, %v8451
        %v8514 = vpack.c.b16 %v8454, %v8453
        %v8515 = vpack.c.b16 %v8456, %v8455
        %v8516 = vpack.c.b16 %v8458, %v8457
        %v8517 = vpack.c.b16 %v8460, %v8459
        %v8518 = vpack.c.b16 %v8462, %v8461
        %v8519 = vpack.c.b16 %v8464, %v8463
        %v8520 = vpack.c.b16 %v8466, %v8465
        %v8521 = vpack.c.b16 %v8468, %v8467
        %v8522 = vpack.c.b16 %v8470, %v8469
        %v8523 = vpack.c.b16 %v8472, %v8471
        %v8524 = vpack.c.b16 %v8474, %v8473
        %v8525 = vpack.c.b16 %v8476, %v8475
        %v8526 = vpack.c.b16 %v8478, %v8477
        %v8527 = vpack.c.b16 %v8480, %v8479
        %v8528 = vpack.c.b16 %v8482, %v8481
        %v8529 = vpack.c.b16 %v8484, %v8483
        %v8530 = vpack.c.b16 %v8486, %v8485
        %v8531 = vpack.c.b16 %v8488, %v8487
        %v8532 = vpack.c.b16 %v8490, %v8489
        %v8533 = vpack.c.b16 %v8492, %v8491
        %v8534 = vpack.c.b16 %v8494, %v8493
        %v8535 = vpack.c.b16 %v8496, %v8495
        %v8536 = vpack.c.b16 %v8498, %v8497
        %v8537 = vpack.c.b16 %v8500, %v8499
        %v8538 = vpack.c.b16 %v8502, %v8501
        %v8539 = vpack.c.b16 %v8504, %v8503
        %v8540 = vpack.c.b16 %v8506, %v8505
        %v8541 = vpack.c.b16 %v8508, %v8507
        %v8542 = vpack.c.b16 %v8510, %v8509
        %8575 = vmatprep.subr.bf16.mxu0 0
        %8576 = vmatpush1.bf16.msra.mxu0 %v8511
        %8577 = vmatprep.subr.bf16.mxu0 0
        %8578 = vmatpush1.bf16.msra.mxu0 %v8512
        %8579 = vmatprep.subr.bf16.mxu0 0
        %8580 = vmatpush1.bf16.msra.mxu0 %v8513
        %8581 = vmatprep.subr.bf16.mxu0 0
        %8582 = vmatpush1.bf16.msra.mxu0 %v8514
        %8583 = vmatprep.subr.bf16.mxu0 0
        %8584 = vmatpush1.bf16.msra.mxu0 %v8515
        %8585 = vmatprep.subr.bf16.mxu0 0
        %8586 = vmatpush1.bf16.msra.mxu0 %v8516
        %8587 = vmatprep.subr.bf16.mxu0 0
        %8588 = vmatpush1.bf16.msra.mxu0 %v8517
        %8589 = vmatprep.subr.bf16.mxu0 0
        %8590 = vmatpush1.bf16.msra.mxu0 %v8518
        %8591 = vmatprep.subr.bf16.mxu0 0
        %8592 = vmatpush1.bf16.msra.mxu0 %v8519
        %8593 = vmatprep.subr.bf16.mxu0 0
        %8594 = vmatpush1.bf16.msra.mxu0 %v8520
        %8595 = vmatprep.subr.bf16.mxu0 0
        %8596 = vmatpush1.bf16.msra.mxu0 %v8521
        %8597 = vmatprep.subr.bf16.mxu0 0
        %8598 = vmatpush1.bf16.msra.mxu0 %v8522
        %8599 = vmatprep.subr.bf16.mxu0 0
        %8600 = vmatpush1.bf16.msra.mxu0 %v8523
        %8601 = vmatprep.subr.bf16.mxu0 0
        %8602 = vmatpush1.bf16.msra.mxu0 %v8524
        %8603 = vmatprep.subr.bf16.mxu0 0
        %8604 = vmatpush1.bf16.msra.mxu0 %v8525
        %8605 = vmatprep.subr.bf16.mxu0 0
        %8606 = vmatpush1.bf16.msra.mxu0 %v8526
        %8607 = vmatprep.mubr.bf16.mxu0 %v8249
        %8608 = vmatmul.mubr.bf16.gmra.mrb[0].mxu0 %v8248
        %v8609 = vpop.f32.mrb[0].mxu0
        %v8610 = vadd.f32 %v8381, %v8609
        %v8611 = vpop.f32.mrb[0].mxu0
        %v8612 = vpop.f32.mrb[0].mxu0
        %v8613 = vadd.f32 %v8381, %v8612
        %v8614 = vpop.f32.mrb[0].mxu0
        %8615 = vmatprep.mubr.bf16.mxu0 %v8253
        %8616 = vmatmul.mubr.bf16.gmra.mrb[0].mxu0 %v8252
        %v8617 = vpop.f32.mrb[0].mxu0
        %v8618 = vadd.f32 %v8381, %v8617
        %v8619 = vpop.f32.mrb[0].mxu0
        %v8620 = vpop.f32.mrb[0].mxu0
        %v8621 = vadd.f32 %v8381, %v8620
        %v8622 = vpop.f32.mrb[0].mxu0
        %8623 = vmatprep.mubr.bf16.mxu0 %v8257
        %8624 = vmatmul.mubr.bf16.gmra.mrb[0].mxu0 %v8256
        %v8625 = vpop.f32.mrb[0].mxu0
        %v8626 = vadd.f32 %v8381, %v8625
        %v8627 = vpop.f32.mrb[0].mxu0
        %v8628 = vpop.f32.mrb[0].mxu0
        %v8629 = vadd.f32 %v8381, %v8628
        %v8630 = vpop.f32.mrb[0].mxu0
        %8631 = vmatprep.mubr.bf16.mxu0 %v8261
        %8632 = vmatmul.mubr.bf16.gmra.mrb[0].mxu0 %v8260
        %v8633 = vpop.f32.mrb[0].mxu0
        %v8634 = vadd.f32 %v8381, %v8633
        %v8635 = vpop.f32.mrb[0].mxu0
        %v8636 = vpop.f32.mrb[0].mxu0
        %v8637 = vadd.f32 %v8381, %v8636
        %v8638 = vpop.f32.mrb[0].mxu0
        %8639 = vmatprep.mubr.bf16.mxu0 %v8265
        %8640 = vmatmul.mubr.bf16.gmra.mrb[0].mxu0 %v8264
        %v8641 = vpop.f32.mrb[0].mxu0
        %v8642 = vadd.f32 %v8381, %v8641
        %v8643 = vpop.f32.mrb[0].mxu0
        %v8644 = vpop.f32.mrb[0].mxu0
        %v8645 = vadd.f32 %v8381, %v8644
        %v8646 = vpop.f32.mrb[0].mxu0
        %8647 = vmatprep.mubr.bf16.mxu0 %v8269
        %8648 = vmatmul.mubr.bf16.gmra.mrb[0].mxu0 %v8268
        %v8649 = vpop.f32.mrb[0].mxu0
        %v8650 = vadd.f32 %v8381, %v8649
        %v8651 = vpop.f32.mrb[0].mxu0
        %v8652 = vpop.f32.mrb[0].mxu0
        %v8653 = vadd.f32 %v8381, %v8652
        %v8654 = vpop.f32.mrb[0].mxu0
        %8655 = vmatprep.mubr.bf16.mxu0 %v8273
        %8656 = vmatmul.mubr.bf16.gmra.mrb[0].mxu0 %v8272
        %v8657 = vpop.f32.mrb[0].mxu0
        %v8658 = vadd.f32 %v8381, %v8657
        %v8659 = vpop.f32.mrb[0].mxu0
        %v8660 = vpop.f32.mrb[0].mxu0
        %v8661 = vadd.f32 %v8381, %v8660
        %v8662 = vpop.f32.mrb[0].mxu0
        %8663 = vmatprep.mubr.bf16.mxu0 %v8277
        %8664 = vmatmul.mubr.bf16.gmra.mrb[0].mxu0 %v8276
        %v8665 = vpop.f32.mrb[0].mxu0
        %v8666 = vadd.f32 %v8381, %v8665
        %v8667 = vpop.f32.mrb[0].mxu0
        %v8668 = vpop.f32.mrb[0].mxu0
        %v8669 = vadd.f32 %v8381, %v8668
        %v8670 = vpop.f32.mrb[0].mxu0
        %8671 = vmatprep.mubr.bf16.mxu0 %v8281
        %8672 = vmatmul.mubr.bf16.gmra.mrb[0].mxu0 %v8280
        %v8673 = vpop.f32.mrb[0].mxu0
        %v8674 = vadd.f32 %v8381, %v8673
        %v8675 = vpop.f32.mrb[0].mxu0
        %v8676 = vpop.f32.mrb[0].mxu0
        %v8677 = vadd.f32 %v8381, %v8676
        %v8678 = vpop.f32.mrb[0].mxu0
        %8679 = vmatprep.mubr.bf16.mxu0 %v8285
        %8680 = vmatmul.mubr.bf16.gmra.mrb[0].mxu0 %v8284
        %v8681 = vpop.f32.mrb[0].mxu0
        %v8682 = vadd.f32 %v8381, %v8681
        %v8683 = vpop.f32.mrb[0].mxu0
        %v8684 = vpop.f32.mrb[0].mxu0
        %v8685 = vadd.f32 %v8381, %v8684
        %v8686 = vpop.f32.mrb[0].mxu0
        %8687 = vmatprep.mubr.bf16.mxu0 %v8289
        %8688 = vmatmul.mubr.bf16.gmra.mrb[0].mxu0 %v8288
        %v8689 = vpop.f32.mrb[0].mxu0
        %v8690 = vadd.f32 %v8381, %v8689
        %v8691 = vpop.f32.mrb[0].mxu0
        %v8692 = vpop.f32.mrb[0].mxu0
        %v8693 = vadd.f32 %v8381, %v8692
        %v8694 = vpop.f32.mrb[0].mxu0
        %8695 = vmatprep.mubr.bf16.mxu0 %v8293
        %8696 = vmatmul.mubr.bf16.gmra.mrb[0].mxu0 %v8292
        %v8697 = vpop.f32.mrb[0].mxu0
        %v8698 = vadd.f32 %v8381, %v8697
        %v8699 = vpop.f32.mrb[0].mxu0
        %v8700 = vpop.f32.mrb[0].mxu0
        %v8701 = vadd.f32 %v8381, %v8700
        %v8702 = vpop.f32.mrb[0].mxu0
        %8703 = vmatprep.mubr.bf16.mxu0 %v8297
        %8704 = vmatmul.mubr.bf16.gmra.mrb[0].mxu0 %v8296
        %v8705 = vpop.f32.mrb[0].mxu0
        %v8706 = vadd.f32 %v8381, %v8705
        %v8707 = vpop.f32.mrb[0].mxu0
        %v8708 = vpop.f32.mrb[0].mxu0
        %v8709 = vadd.f32 %v8381, %v8708
        %v8710 = vpop.f32.mrb[0].mxu0
        %8711 = vmatprep.mubr.bf16.mxu0 %v8301
        %8712 = vmatmul.mubr.bf16.gmra.mrb[0].mxu0 %v8300
        %v8713 = vpop.f32.mrb[0].mxu0
        %v8714 = vadd.f32 %v8381, %v8713
        %v8715 = vpop.f32.mrb[0].mxu0
        %v8716 = vpop.f32.mrb[0].mxu0
        %v8717 = vadd.f32 %v8381, %v8716
        %v8718 = vpop.f32.mrb[0].mxu0
        %8719 = vmatprep.mubr.bf16.mxu0 %v8305
        %8720 = vmatmul.mubr.bf16.gmra.mrb[0].mxu0 %v8304
        %v8721 = vpop.f32.mrb[0].mxu0
        %v8722 = vadd.f32 %v8381, %v8721
        %v8723 = vpop.f32.mrb[0].mxu0
        %v8724 = vpop.f32.mrb[0].mxu0
        %v8725 = vadd.f32 %v8381, %v8724
        %v8726 = vpop.f32.mrb[0].mxu0
        %8727 = vmatprep.mubr.bf16.mxu0 %v8309
        %8728 = vmatmul.mubr.bf16.gmra.mrb[0].mxu0 %v8308
        %v8729 = vpop.f32.mrb[0].mxu0
        %v8730 = vadd.f32 %v8381, %v8729
        %v8731 = vpop.f32.mrb[0].mxu0
        %v8732 = vpop.f32.mrb[0].mxu0
        %v8733 = vadd.f32 %v8381, %v8732
        %v8734 = vpop.f32.mrb[0].mxu0
        %8735 = vdwg.mxu0
        %8736 = vmatprep.subr.bf16.mxu0 0
        %8737 = vmatpush1.bf16.msra.mxu0 %v8527
        %8738 = vmatprep.subr.bf16.mxu0 0
        %8739 = vmatpush1.bf16.msra.mxu0 %v8528
        %8740 = vmatprep.subr.bf16.mxu0 0
        %8741 = vmatpush1.bf16.msra.mxu0 %v8529
        %8742 = vmatprep.subr.bf16.mxu0 0
        %8743 = vmatpush1.bf16.msra.mxu0 %v8530
        %8744 = vmatprep.subr.bf16.mxu0 0
        %8745 = vmatpush1.bf16.msra.mxu0 %v8531
        %8746 = vmatprep.subr.bf16.mxu0 0
        %8747 = vmatpush1.bf16.msra.mxu0 %v8532
        %8748 = vmatprep.subr.bf16.mxu0 0
        %8749 = vmatpush1.bf16.msra.mxu0 %v8533
        %8750 = vmatprep.subr.bf16.mxu0 0
        %8751 = vmatpush1.bf16.msra.mxu0 %v8534
        %8752 = vmatprep.subr.bf16.mxu0 0
        %8753 = vmatpush1.bf16.msra.mxu0 %v8535
        %8754 = vmatprep.subr.bf16.mxu0 0
        %8755 = vmatpush1.bf16.msra.mxu0 %v8536
        %8756 = vmatprep.subr.bf16.mxu0 0
        %8757 = vmatpush1.bf16.msra.mxu0 %v8537
        %8758 = vmatprep.subr.bf16.mxu0 0
        %8759 = vmatpush1.bf16.msra.mxu0 %v8538
        %8760 = vmatprep.subr.bf16.mxu0 0
        %8761 = vmatpush1.bf16.msra.mxu0 %v8539
        %8762 = vmatprep.subr.bf16.mxu0 0
        %8763 = vmatpush1.bf16.msra.mxu0 %v8540
        %8764 = vmatprep.subr.bf16.mxu0 0
        %8765 = vmatpush1.bf16.msra.mxu0 %v8541
        %8766 = vmatprep.subr.bf16.mxu0 0
        %8767 = vmatpush1.bf16.msra.mxu0 %v8542
        %8768 = vmatprep.mubr.bf16.mxu0 %v8251
        %8769 = vmatmul.mubr.bf16.gmra.mrb[0].mxu0 %v8250
        %v8770 = vpop.f32.mrb[0].mxu0
        %v8771 = vadd.f32 %v8610, %v8770
        %v8772 = vpop.f32.mrb[0].mxu0
        %v8773 = vpop.f32.mrb[0].mxu0
        %v8774 = vadd.f32 %v8613, %v8773
        %v8775 = vpop.f32.mrb[0].mxu0
        %8776 = vmatprep.mubr.bf16.mxu0 %v8255
        %8777 = vmatmul.mubr.bf16.gmra.mrb[0].mxu0 %v8254
        %v8778 = vpop.f32.mrb[0].mxu0
        %v8779 = vadd.f32 %v8618, %v8778
        %v8780 = vpop.f32.mrb[0].mxu0
        %v8781 = vpop.f32.mrb[0].mxu0
        %v8782 = vadd.f32 %v8621, %v8781
        %v8783 = vpop.f32.mrb[0].mxu0
        %8784 = vmatprep.mubr.bf16.mxu0 %v8259
        %8785 = vmatmul.mubr.bf16.gmra.mrb[0].mxu0 %v8258
        %v8786 = vpop.f32.mrb[0].mxu0
        %v8787 = vadd.f32 %v8626, %v8786
        %v8788 = vpop.f32.mrb[0].mxu0
        %v8789 = vpop.f32.mrb[0].mxu0
        %v8790 = vadd.f32 %v8629, %v8789
        %v8791 = vpop.f32.mrb[0].mxu0
        %8792 = vmatprep.mubr.bf16.mxu0 %v8263
        %8793 = vmatmul.mubr.bf16.gmra.mrb[0].mxu0 %v8262
        %v8794 = vpop.f32.mrb[0].mxu0
        %v8795 = vadd.f32 %v8634, %v8794
        %v8796 = vpop.f32.mrb[0].mxu0
        %v8797 = vpop.f32.mrb[0].mxu0
        %v8798 = vadd.f32 %v8637, %v8797
        %v8799 = vpop.f32.mrb[0].mxu0
        %8800 = vmatprep.mubr.bf16.mxu0 %v8267
        %8801 = vmatmul.mubr.bf16.gmra.mrb[0].mxu0 %v8266
        %v8802 = vpop.f32.mrb[0].mxu0
        %v8803 = vadd.f32 %v8642, %v8802
        %v8804 = vpop.f32.mrb[0].mxu0
        %v8805 = vpop.f32.mrb[0].mxu0
        %v8806 = vadd.f32 %v8645, %v8805
        %v8807 = vpop.f32.mrb[0].mxu0
        %8808 = vmatprep.mubr.bf16.mxu0 %v8271
        %8809 = vmatmul.mubr.bf16.gmra.mrb[0].mxu0 %v8270
        %v8810 = vpop.f32.mrb[0].mxu0
        %v8811 = vadd.f32 %v8650, %v8810
        %v8812 = vpop.f32.mrb[0].mxu0
        %v8813 = vpop.f32.mrb[0].mxu0
        %v8814 = vadd.f32 %v8653, %v8813
        %v8815 = vpop.f32.mrb[0].mxu0
        %8816 = vmatprep.mubr.bf16.mxu0 %v8275
        %8817 = vmatmul.mubr.bf16.gmra.mrb[0].mxu0 %v8274
        %v8818 = vpop.f32.mrb[0].mxu0
        %v8819 = vadd.f32 %v8658, %v8818
        %v8820 = vpop.f32.mrb[0].mxu0
        %v8821 = vpop.f32.mrb[0].mxu0
        %v8822 = vadd.f32 %v8661, %v8821
        %v8823 = vpop.f32.mrb[0].mxu0
        %8824 = vmatprep.mubr.bf16.mxu0 %v8279
        %8825 = vmatmul.mubr.bf16.gmra.mrb[0].mxu0 %v8278
        %v8826 = vpop.f32.mrb[0].mxu0
        %v8827 = vadd.f32 %v8666, %v8826
        %v8828 = vpop.f32.mrb[0].mxu0
        %v8829 = vpop.f32.mrb[0].mxu0
        %v8830 = vadd.f32 %v8669, %v8829
        %v8831 = vpop.f32.mrb[0].mxu0
        %8832 = vmatprep.mubr.bf16.mxu0 %v8283
        %8833 = vmatmul.mubr.bf16.gmra.mrb[0].mxu0 %v8282
        %v8834 = vpop.f32.mrb[0].mxu0
        %v8835 = vadd.f32 %v8674, %v8834
        %v8836 = vpop.f32.mrb[0].mxu0
        %v8837 = vpop.f32.mrb[0].mxu0
        %v8838 = vadd.f32 %v8677, %v8837
        %v8839 = vpop.f32.mrb[0].mxu0
        %8840 = vmatprep.mubr.bf16.mxu0 %v8287
        %8841 = vmatmul.mubr.bf16.gmra.mrb[0].mxu0 %v8286
        %v8842 = vpop.f32.mrb[0].mxu0
        %v8843 = vadd.f32 %v8682, %v8842
        %v8844 = vpop.f32.mrb[0].mxu0
        %v8845 = vpop.f32.mrb[0].mxu0
        %v8846 = vadd.f32 %v8685, %v8845
        %v8847 = vpop.f32.mrb[0].mxu0
        %8848 = vmatprep.mubr.bf16.mxu0 %v8291
        %8849 = vmatmul.mubr.bf16.gmra.mrb[0].mxu0 %v8290
        %v8850 = vpop.f32.mrb[0].mxu0
        %v8851 = vadd.f32 %v8690, %v8850
        %v8852 = vpop.f32.mrb[0].mxu0
        %v8853 = vpop.f32.mrb[0].mxu0
        %v8854 = vadd.f32 %v8693, %v8853
        %v8855 = vpop.f32.mrb[0].mxu0
        %8856 = vmatprep.mubr.bf16.mxu0 %v8295
        %8857 = vmatmul.mubr.bf16.gmra.mrb[0].mxu0 %v8294
        %v8858 = vpop.f32.mrb[0].mxu0
        %v8859 = vadd.f32 %v8698, %v8858
        %v8860 = vpop.f32.mrb[0].mxu0
        %v8861 = vpop.f32.mrb[0].mxu0
        %v8862 = vadd.f32 %v8701, %v8861
        %v8863 = vpop.f32.mrb[0].mxu0
        %8864 = vmatprep.mubr.bf16.mxu0 %v8299
        %8865 = vmatmul.mubr.bf16.gmra.mrb[0].mxu0 %v8298
        %v8866 = vpop.f32.mrb[0].mxu0
        %v8867 = vadd.f32 %v8706, %v8866
        %v8868 = vpop.f32.mrb[0].mxu0
        %v8869 = vpop.f32.mrb[0].mxu0
        %v8870 = vadd.f32 %v8709, %v8869
        %v8871 = vpop.f32.mrb[0].mxu0
        %8872 = vmatprep.mubr.bf16.mxu0 %v8303
        %8873 = vmatmul.mubr.bf16.gmra.mrb[0].mxu0 %v8302
        %v8874 = vpop.f32.mrb[0].mxu0
        %v8875 = vadd.f32 %v8714, %v8874
        %v8876 = vpop.f32.mrb[0].mxu0
        %v8877 = vpop.f32.mrb[0].mxu0
        %v8878 = vadd.f32 %v8717, %v8877
        %v8879 = vpop.f32.mrb[0].mxu0
        %8880 = vmatprep.mubr.bf16.mxu0 %v8307
        %8881 = vmatmul.mubr.bf16.gmra.mrb[0].mxu0 %v8306
        %v8882 = vpop.f32.mrb[0].mxu0
        %v8883 = vadd.f32 %v8722, %v8882
        %v8884 = vpop.f32.mrb[0].mxu0
        %v8885 = vpop.f32.mrb[0].mxu0
        %v8886 = vadd.f32 %v8725, %v8885
        %v8887 = vpop.f32.mrb[0].mxu0
        %8888 = vmatprep.mubr.bf16.mxu0 %v8311
        %8889 = vmatmul.mubr.bf16.gmra.mrb[0].mxu0 %v8310
        %v8890 = vpop.f32.mrb[0].mxu0
        %v8891 = vadd.f32 %v8730, %v8890
        %v8892 = vpop.f32.mrb[0].mxu0
        %v8893 = vpop.f32.mrb[0].mxu0
        %v8894 = vadd.f32 %v8733, %v8893
        %v8895 = vpop.f32.mrb[0].mxu0
        %8896 = vdwg.mxu0
        %v8897 = vadd.f32 %v7472, %v8771
        %v8898 = vadd.f32 %v7473, %v8774
        %v8899 = vadd.f32 %v7474, %v8779
        %v8900 = vadd.f32 %v7475, %v8782
        %v8901 = vadd.f32 %v7476, %v8787
        %v8902 = vadd.f32 %v7477, %v8790
        %v8903 = vadd.f32 %v7478, %v8795
        %v8904 = vadd.f32 %v7479, %v8798
        %v8905 = vadd.f32 %v7480, %v8803
        %v8906 = vadd.f32 %v7481, %v8806
        %v8907 = vadd.f32 %v7482, %v8811
        %v8908 = vadd.f32 %v7483, %v8814
        %v8909 = vadd.f32 %v7484, %v8819
        %v8910 = vadd.f32 %v7485, %v8822
        %v8911 = vadd.f32 %v7486, %v8827
        %v8912 = vadd.f32 %v7487, %v8830
        %v8913 = vadd.f32 %v7488, %v8835
        %v8914 = vadd.f32 %v7489, %v8838
        %v8915 = vadd.f32 %v7490, %v8843
        %v8916 = vadd.f32 %v7491, %v8846
        %v8917 = vadd.f32 %v7492, %v8851
        %v8918 = vadd.f32 %v7493, %v8854
        %v8919 = vadd.f32 %v7494, %v8859
        %v8920 = vadd.f32 %v7495, %v8862
        %v8921 = vadd.f32 %v7496, %v8867
        %v8922 = vadd.f32 %v7497, %v8870
        %v8923 = vadd.f32 %v7498, %v8875
        %v8924 = vadd.f32 %v7499, %v8878
        %v8925 = vadd.f32 %v7500, %v8883
        %v8926 = vadd.f32 %v7501, %v8886
        %v8927 = vadd.f32 %v7502, %v8891
        %v8928 = vadd.f32 %v7503, %v8894
        %v8929 = vld [vmem:[%s870] sm:$0x1]
        %v8930 = vld [vmem:[%s878] sm:$0x1]
        %8931 = vadd.xlane.f32.xlu0 %v8897
        %v8932 = vpop.xlane.xlu0 %8931
        %8933 = vadd.xlane.f32.xlu0 %v8898
        %v8934 = vpop.xlane.xlu0 %8933
        %8935 = vadd.xlane.f32.xlu0 %v8899
        %v8936 = vpop.xlane.xlu0 %8935
        %8937 = vadd.xlane.f32.xlu0 %v8900
        %v8938 = vpop.xlane.xlu0 %8937
        %8939 = vadd.xlane.f32.xlu0 %v8901
        %v8940 = vpop.xlane.xlu0 %8939
        %8941 = vadd.xlane.f32.xlu0 %v8902
        %v8942 = vpop.xlane.xlu0 %8941
        %8943 = vadd.xlane.f32.xlu0 %v8903
        %v8944 = vpop.xlane.xlu0 %8943
        %8945 = vadd.xlane.f32.xlu0 %v8904
        %v8946 = vpop.xlane.xlu0 %8945
        %8947 = vadd.xlane.f32.xlu0 %v8905
        %v8948 = vpop.xlane.xlu0 %8947
        %8949 = vadd.xlane.f32.xlu0 %v8906
        %v8950 = vpop.xlane.xlu0 %8949
        %8951 = vadd.xlane.f32.xlu0 %v8907
        %v8952 = vpop.xlane.xlu0 %8951
        %8953 = vadd.xlane.f32.xlu0 %v8908
        %v8954 = vpop.xlane.xlu0 %8953
        %8955 = vadd.xlane.f32.xlu0 %v8909
        %v8956 = vpop.xlane.xlu0 %8955
        %8957 = vadd.xlane.f32.xlu0 %v8910
        %v8958 = vpop.xlane.xlu0 %8957
        %8959 = vadd.xlane.f32.xlu0 %v8911
        %v8960 = vpop.xlane.xlu0 %8959
        %8961 = vadd.xlane.f32.xlu0 %v8912
        %v8962 = vpop.xlane.xlu0 %8961
        %8963 = vadd.xlane.f32.xlu0 %v8913
        %v8964 = vpop.xlane.xlu0 %8963
        %8965 = vadd.xlane.f32.xlu0 %v8914
        %v8966 = vpop.xlane.xlu0 %8965
        %8967 = vadd.xlane.f32.xlu0 %v8915
        %v8968 = vpop.xlane.xlu0 %8967
        %8969 = vadd.xlane.f32.xlu0 %v8916
        %v8970 = vpop.xlane.xlu0 %8969
        %8971 = vadd.xlane.f32.xlu0 %v8917
        %v8972 = vpop.xlane.xlu0 %8971
        %8973 = vadd.xlane.f32.xlu0 %v8918
        %v8974 = vpop.xlane.xlu0 %8973
        %8975 = vadd.xlane.f32.xlu0 %v8919
        %v8976 = vpop.xlane.xlu0 %8975
        %8977 = vadd.xlane.f32.xlu0 %v8920
        %v8978 = vpop.xlane.xlu0 %8977
        %8979 = vadd.xlane.f32.xlu0 %v8921
        %v8980 = vpop.xlane.xlu0 %8979
        %8981 = vadd.xlane.f32.xlu0 %v8922
        %v8982 = vpop.xlane.xlu0 %8981
        %8983 = vadd.xlane.f32.xlu0 %v8923
        %v8984 = vpop.xlane.xlu0 %8983
        %8985 = vadd.xlane.f32.xlu0 %v8924
        %v8986 = vpop.xlane.xlu0 %8985
        %8987 = vadd.xlane.f32.xlu0 %v8925
        %v8988 = vpop.xlane.xlu0 %8987
        %8989 = vadd.xlane.f32.xlu0 %v8926
        %v8990 = vpop.xlane.xlu0 %8989
        %8991 = vadd.xlane.f32.xlu0 %v8927
        %v8992 = vpop.xlane.xlu0 %8991
        %8993 = vadd.xlane.f32.xlu0 %v8928
        %v8994 = vpop.xlane.xlu0 %8993
        %v8995 = vmul.f32 %v8932, %v7139
        %v8996 = vmul.f32 %v8934, %v7139
        %v8997 = vmul.f32 %v8936, %v7139
        %v8998 = vmul.f32 %v8938, %v7139
        %v8999 = vmul.f32 %v8940, %v7139
        %v9000 = vmul.f32 %v8942, %v7139
        %v9001 = vmul.f32 %v8944, %v7139
        %v9002 = vmul.f32 %v8946, %v7139
        %v9003 = vmul.f32 %v8948, %v7139
        %v9004 = vmul.f32 %v8950, %v7139
        %v9005 = vmul.f32 %v8952, %v7139
        %v9006 = vmul.f32 %v8954, %v7139
        %v9007 = vmul.f32 %v8956, %v7139
        %v9008 = vmul.f32 %v8958, %v7139
        %v9009 = vmul.f32 %v8960, %v7139
        %v9010 = vmul.f32 %v8962, %v7139
        %v9011 = vmul.f32 %v8964, %v7139
        %v9012 = vmul.f32 %v8966, %v7139
        %v9013 = vmul.f32 %v8968, %v7139
        %v9014 = vmul.f32 %v8970, %v7139
        %v9015 = vmul.f32 %v8972, %v7139
        %v9016 = vmul.f32 %v8974, %v7139
        %v9017 = vmul.f32 %v8976, %v7139
        %v9018 = vmul.f32 %v8978, %v7139
        %v9019 = vmul.f32 %v8980, %v7139
        %v9020 = vmul.f32 %v8982, %v7139
        %v9021 = vmul.f32 %v8984, %v7139
        %v9022 = vmul.f32 %v8986, %v7139
        %v9023 = vmul.f32 %v8988, %v7139
        %v9024 = vmul.f32 %v8990, %v7139
        %v9025 = vmul.f32 %v8992, %v7139
        %v9026 = vmul.f32 %v8994, %v7139
        %v9027 = vsub.f32 %v8897, %v8995
        %v9028 = vsub.f32 %v8898, %v8996
        %v9029 = vsub.f32 %v8899, %v8997
        %v9030 = vsub.f32 %v8900, %v8998
        %v9031 = vsub.f32 %v8901, %v8999
        %v9032 = vsub.f32 %v8902, %v9000
        %v9033 = vsub.f32 %v8903, %v9001
        %v9034 = vsub.f32 %v8904, %v9002
        %v9035 = vsub.f32 %v8905, %v9003
        %v9036 = vsub.f32 %v8906, %v9004
        %v9037 = vsub.f32 %v8907, %v9005
        %v9038 = vsub.f32 %v8908, %v9006
        %v9039 = vsub.f32 %v8909, %v9007
        %v9040 = vsub.f32 %v8910, %v9008
        %v9041 = vsub.f32 %v8911, %v9009
        %v9042 = vsub.f32 %v8912, %v9010
        %v9043 = vsub.f32 %v8913, %v9011
        %v9044 = vsub.f32 %v8914, %v9012
        %v9045 = vsub.f32 %v8915, %v9013
        %v9046 = vsub.f32 %v8916, %v9014
        %v9047 = vsub.f32 %v8917, %v9015
        %v9048 = vsub.f32 %v8918, %v9016
        %v9049 = vsub.f32 %v8919, %v9017
        %v9050 = vsub.f32 %v8920, %v9018
        %v9051 = vsub.f32 %v8921, %v9019
        %v9052 = vsub.f32 %v8922, %v9020
        %v9053 = vsub.f32 %v8923, %v9021
        %v9054 = vsub.f32 %v8924, %v9022
        %v9055 = vsub.f32 %v8925, %v9023
        %v9056 = vsub.f32 %v8926, %v9024
        %v9057 = vsub.f32 %v8927, %v9025
        %v9058 = vsub.f32 %v8928, %v9026
        %v9059 = vmul.f32 %v9027, %v9027
        %v9060 = vmul.f32 %v9028, %v9028
        %v9061 = vmul.f32 %v9029, %v9029
        %v9062 = vmul.f32 %v9030, %v9030
        %v9063 = vmul.f32 %v9031, %v9031
        %v9064 = vmul.f32 %v9032, %v9032
        %v9065 = vmul.f32 %v9033, %v9033
        %v9066 = vmul.f32 %v9034, %v9034
        %v9067 = vmul.f32 %v9035, %v9035
        %v9068 = vmul.f32 %v9036, %v9036
        %v9069 = vmul.f32 %v9037, %v9037
        %v9070 = vmul.f32 %v9038, %v9038
        %v9071 = vmul.f32 %v9039, %v9039
        %v9072 = vmul.f32 %v9040, %v9040
        %v9073 = vmul.f32 %v9041, %v9041
        %v9074 = vmul.f32 %v9042, %v9042
        %v9075 = vmul.f32 %v9043, %v9043
        %v9076 = vmul.f32 %v9044, %v9044
        %v9077 = vmul.f32 %v9045, %v9045
        %v9078 = vmul.f32 %v9046, %v9046
        %v9079 = vmul.f32 %v9047, %v9047
        %v9080 = vmul.f32 %v9048, %v9048
        %v9081 = vmul.f32 %v9049, %v9049
        %v9082 = vmul.f32 %v9050, %v9050
        %v9083 = vmul.f32 %v9051, %v9051
        %v9084 = vmul.f32 %v9052, %v9052
        %v9085 = vmul.f32 %v9053, %v9053
        %v9086 = vmul.f32 %v9054, %v9054
        %v9087 = vmul.f32 %v9055, %v9055
        %v9088 = vmul.f32 %v9056, %v9056
        %v9089 = vmul.f32 %v9057, %v9057
        %v9090 = vmul.f32 %v9058, %v9058
        %9091 = vadd.xlane.f32.xlu0 %v9059
        %v9092 = vpop.xlane.xlu0 %9091
        %9093 = vadd.xlane.f32.xlu0 %v9060
        %v9094 = vpop.xlane.xlu0 %9093
        %9095 = vadd.xlane.f32.xlu0 %v9061
        %v9096 = vpop.xlane.xlu0 %9095
        %9097 = vadd.xlane.f32.xlu0 %v9062
        %v9098 = vpop.xlane.xlu0 %9097
        %9099 = vadd.xlane.f32.xlu0 %v9063
        %v9100 = vpop.xlane.xlu0 %9099
        %9101 = vadd.xlane.f32.xlu0 %v9064
        %v9102 = vpop.xlane.xlu0 %9101
        %9103 = vadd.xlane.f32.xlu0 %v9065
        %v9104 = vpop.xlane.xlu0 %9103
        %9105 = vadd.xlane.f32.xlu0 %v9066
        %v9106 = vpop.xlane.xlu0 %9105
        %9107 = vadd.xlane.f32.xlu0 %v9067
        %v9108 = vpop.xlane.xlu0 %9107
        %9109 = vadd.xlane.f32.xlu0 %v9068
        %v9110 = vpop.xlane.xlu0 %9109
        %9111 = vadd.xlane.f32.xlu0 %v9069
        %v9112 = vpop.xlane.xlu0 %9111
        %9113 = vadd.xlane.f32.xlu0 %v9070
        %v9114 = vpop.xlane.xlu0 %9113
        %9115 = vadd.xlane.f32.xlu0 %v9071
        %v9116 = vpop.xlane.xlu0 %9115
        %9117 = vadd.xlane.f32.xlu0 %v9072
        %v9118 = vpop.xlane.xlu0 %9117
        %9119 = vadd.xlane.f32.xlu0 %v9073
        %v9120 = vpop.xlane.xlu0 %9119
        %9121 = vadd.xlane.f32.xlu0 %v9074
        %v9122 = vpop.xlane.xlu0 %9121
        %9123 = vadd.xlane.f32.xlu0 %v9075
        %v9124 = vpop.xlane.xlu0 %9123
        %9125 = vadd.xlane.f32.xlu0 %v9076
        %v9126 = vpop.xlane.xlu0 %9125
        %9127 = vadd.xlane.f32.xlu0 %v9077
        %v9128 = vpop.xlane.xlu0 %9127
        %9129 = vadd.xlane.f32.xlu0 %v9078
        %v9130 = vpop.xlane.xlu0 %9129
        %9131 = vadd.xlane.f32.xlu0 %v9079
        %v9132 = vpop.xlane.xlu0 %9131
        %9133 = vadd.xlane.f32.xlu0 %v9080
        %v9134 = vpop.xlane.xlu0 %9133
        %9135 = vadd.xlane.f32.xlu0 %v9081
        %v9136 = vpop.xlane.xlu0 %9135
        %9137 = vadd.xlane.f32.xlu0 %v9082
        %v9138 = vpop.xlane.xlu0 %9137
        %9139 = vadd.xlane.f32.xlu0 %v9083
        %v9140 = vpop.xlane.xlu0 %9139
        %9141 = vadd.xlane.f32.xlu0 %v9084
        %v9142 = vpop.xlane.xlu0 %9141
        %9143 = vadd.xlane.f32.xlu0 %v9085
        %v9144 = vpop.xlane.xlu0 %9143
        %9145 = vadd.xlane.f32.xlu0 %v9086
        %v9146 = vpop.xlane.xlu0 %9145
        %9147 = vadd.xlane.f32.xlu0 %v9087
        %v9148 = vpop.xlane.xlu0 %9147
        %9149 = vadd.xlane.f32.xlu0 %v9088
        %v9150 = vpop.xlane.xlu0 %9149
        %9151 = vadd.xlane.f32.xlu0 %v9089
        %v9152 = vpop.xlane.xlu0 %9151
        %9153 = vadd.xlane.f32.xlu0 %v9090
        %v9154 = vpop.xlane.xlu0 %9153
        %v9155 = vmul.f32 %v9092, %v7139
        %v9156 = vmul.f32 %v9094, %v7139
        %v9157 = vmul.f32 %v9096, %v7139
        %v9158 = vmul.f32 %v9098, %v7139
        %v9159 = vmul.f32 %v9100, %v7139
        %v9160 = vmul.f32 %v9102, %v7139
        %v9161 = vmul.f32 %v9104, %v7139
        %v9162 = vmul.f32 %v9106, %v7139
        %v9163 = vmul.f32 %v9108, %v7139
        %v9164 = vmul.f32 %v9110, %v7139
        %v9165 = vmul.f32 %v9112, %v7139
        %v9166 = vmul.f32 %v9114, %v7139
        %v9167 = vmul.f32 %v9116, %v7139
        %v9168 = vmul.f32 %v9118, %v7139
        %v9169 = vmul.f32 %v9120, %v7139
        %v9170 = vmul.f32 %v9122, %v7139
        %v9171 = vmul.f32 %v9124, %v7139
        %v9172 = vmul.f32 %v9126, %v7139
        %v9173 = vmul.f32 %v9128, %v7139
        %v9174 = vmul.f32 %v9130, %v7139
        %v9175 = vmul.f32 %v9132, %v7139
        %v9176 = vmul.f32 %v9134, %v7139
        %v9177 = vmul.f32 %v9136, %v7139
        %v9178 = vmul.f32 %v9138, %v7139
        %v9179 = vmul.f32 %v9140, %v7139
        %v9180 = vmul.f32 %v9142, %v7139
        %v9181 = vmul.f32 %v9144, %v7139
        %v9182 = vmul.f32 %v9146, %v7139
        %v9183 = vmul.f32 %v9148, %v7139
        %v9184 = vmul.f32 %v9150, %v7139
        %v9185 = vmul.f32 %v9152, %v7139
        %v9186 = vmul.f32 %v9154, %v7139
        %v9187 = vadd.f32 %v9155, 1e-05
        %v9188 = vadd.f32 %v9156, 1e-05
        %v9189 = vadd.f32 %v9157, 1e-05
        %v9190 = vadd.f32 %v9158, 1e-05
        %v9191 = vadd.f32 %v9159, 1e-05
        %v9192 = vadd.f32 %v9160, 1e-05
        %v9193 = vadd.f32 %v9161, 1e-05
        %v9194 = vadd.f32 %v9162, 1e-05
        %v9195 = vadd.f32 %v9163, 1e-05
        %v9196 = vadd.f32 %v9164, 1e-05
        %v9197 = vadd.f32 %v9165, 1e-05
        %v9198 = vadd.f32 %v9166, 1e-05
        %v9199 = vadd.f32 %v9167, 1e-05
        %v9200 = vadd.f32 %v9168, 1e-05
        %v9201 = vadd.f32 %v9169, 1e-05
        %v9202 = vadd.f32 %v9170, 1e-05
        %v9203 = vadd.f32 %v9171, 1e-05
        %v9204 = vadd.f32 %v9172, 1e-05
        %v9205 = vadd.f32 %v9173, 1e-05
        %v9206 = vadd.f32 %v9174, 1e-05
        %v9207 = vadd.f32 %v9175, 1e-05
        %v9208 = vadd.f32 %v9176, 1e-05
        %v9209 = vadd.f32 %v9177, 1e-05
        %v9210 = vadd.f32 %v9178, 1e-05
        %v9211 = vadd.f32 %v9179, 1e-05
        %v9212 = vadd.f32 %v9180, 1e-05
        %v9213 = vadd.f32 %v9181, 1e-05
        %v9214 = vadd.f32 %v9182, 1e-05
        %v9215 = vadd.f32 %v9183, 1e-05
        %v9216 = vadd.f32 %v9184, 1e-05
        %v9217 = vadd.f32 %v9185, 1e-05
        %v9218 = vadd.f32 %v9186, 1e-05
        %v9219 = vrsqrt.pop %v9187
        %v9220 = vrsqrt.pop %v9188
        %v9221 = vrsqrt.pop %v9189
        %v9222 = vrsqrt.pop %v9190
        %v9223 = vrsqrt.pop %v9191
        %v9224 = vrsqrt.pop %v9192
        %v9225 = vrsqrt.pop %v9193
        %v9226 = vrsqrt.pop %v9194
        %v9227 = vrsqrt.pop %v9195
        %v9228 = vrsqrt.pop %v9196
        %v9229 = vrsqrt.pop %v9197
        %v9230 = vrsqrt.pop %v9198
        %v9231 = vrsqrt.pop %v9199
        %v9232 = vrsqrt.pop %v9200
        %v9233 = vrsqrt.pop %v9201
        %v9234 = vrsqrt.pop %v9202
        %v9235 = vrsqrt.pop %v9203
        %v9236 = vrsqrt.pop %v9204
        %v9237 = vrsqrt.pop %v9205
        %v9238 = vrsqrt.pop %v9206
        %v9239 = vrsqrt.pop %v9207
        %v9240 = vrsqrt.pop %v9208
        %v9241 = vrsqrt.pop %v9209
        %v9242 = vrsqrt.pop %v9210
        %v9243 = vrsqrt.pop %v9211
        %v9244 = vrsqrt.pop %v9212
        %v9245 = vrsqrt.pop %v9213
        %v9246 = vrsqrt.pop %v9214
        %v9247 = vrsqrt.pop %v9215
        %v9248 = vrsqrt.pop %v9216
        %v9249 = vrsqrt.pop %v9217
        %v9250 = vrsqrt.pop %v9218
        %v9251 = vmul.f32 %v9027, %v9219
        %v9252 = vmul.f32 %v9028, %v9220
        %v9253 = vmul.f32 %v9029, %v9221
        %v9254 = vmul.f32 %v9030, %v9222
        %v9255 = vmul.f32 %v9031, %v9223
        %v9256 = vmul.f32 %v9032, %v9224
        %v9257 = vmul.f32 %v9033, %v9225
        %v9258 = vmul.f32 %v9034, %v9226
        %v9259 = vmul.f32 %v9035, %v9227
        %v9260 = vmul.f32 %v9036, %v9228
        %v9261 = vmul.f32 %v9037, %v9229
        %v9262 = vmul.f32 %v9038, %v9230
        %v9263 = vmul.f32 %v9039, %v9231
        %v9264 = vmul.f32 %v9040, %v9232
        %v9265 = vmul.f32 %v9041, %v9233
        %v9266 = vmul.f32 %v9042, %v9234
        %v9267 = vmul.f32 %v9043, %v9235
        %v9268 = vmul.f32 %v9044, %v9236
        %v9269 = vmul.f32 %v9045, %v9237
        %v9270 = vmul.f32 %v9046, %v9238
        %v9271 = vmul.f32 %v9047, %v9239
        %v9272 = vmul.f32 %v9048, %v9240
        %v9273 = vmul.f32 %v9049, %v9241
        %v9274 = vmul.f32 %v9050, %v9242
        %v9275 = vmul.f32 %v9051, %v9243
        %v9276 = vmul.f32 %v9052, %v9244
        %v9277 = vmul.f32 %v9053, %v9245
        %v9278 = vmul.f32 %v9054, %v9246
        %v9279 = vmul.f32 %v9055, %v9247
        %v9280 = vmul.f32 %v9056, %v9248
        %v9281 = vmul.f32 %v9057, %v9249
        %v9282 = vmul.f32 %v9058, %v9250
        %v9284 = vlaneseq
        %v9285 = vshrl.u32 %v9284, 7
        %v9286 = vsub.s32 0, %v9285
        %v9287 = vrot.slane %v8929, %v9286
        %v9289 = vmul.f32 %v9251, %v9287
        %v9290 = vmul.f32 %v9252, %v9287
        %v9291 = vmul.f32 %v9253, %v9287
        %v9292 = vmul.f32 %v9254, %v9287
        %v9293 = vmul.f32 %v9255, %v9287
        %v9294 = vmul.f32 %v9256, %v9287
        %v9295 = vmul.f32 %v9257, %v9287
        %v9296 = vmul.f32 %v9258, %v9287
        %v9297 = vmul.f32 %v9259, %v9287
        %v9298 = vmul.f32 %v9260, %v9287
        %v9299 = vmul.f32 %v9261, %v9287
        %v9300 = vmul.f32 %v9262, %v9287
        %v9301 = vmul.f32 %v9263, %v9287
        %v9302 = vmul.f32 %v9264, %v9287
        %v9303 = vmul.f32 %v9265, %v9287
        %v9304 = vmul.f32 %v9266, %v9287
        %v9305 = vmul.f32 %v9267, %v9287
        %v9306 = vmul.f32 %v9268, %v9287
        %v9307 = vmul.f32 %v9269, %v9287
        %v9308 = vmul.f32 %v9270, %v9287
        %v9309 = vmul.f32 %v9271, %v9287
        %v9310 = vmul.f32 %v9272, %v9287
        %v9311 = vmul.f32 %v9273, %v9287
        %v9312 = vmul.f32 %v9274, %v9287
        %v9313 = vmul.f32 %v9275, %v9287
        %v9314 = vmul.f32 %v9276, %v9287
        %v9315 = vmul.f32 %v9277, %v9287
        %v9316 = vmul.f32 %v9278, %v9287
        %v9317 = vmul.f32 %v9279, %v9287
        %v9318 = vmul.f32 %v9280, %v9287
        %v9319 = vmul.f32 %v9281, %v9287
        %v9320 = vmul.f32 %v9282, %v9287
        %v9322 = vlaneseq
        %v9323 = vshrl.u32 %v9322, 7
        %v9324 = vsub.s32 0, %v9323
        %v9325 = vrot.slane %v8930, %v9324
        %v9327 = vadd.f32 %v9289, %v9325
        %v9328 = vadd.f32 %v9290, %v9325
        %v9329 = vadd.f32 %v9291, %v9325
        %v9330 = vadd.f32 %v9292, %v9325
        %v9331 = vadd.f32 %v9293, %v9325
        %v9332 = vadd.f32 %v9294, %v9325
        %v9333 = vadd.f32 %v9295, %v9325
        %v9334 = vadd.f32 %v9296, %v9325
        %v9335 = vadd.f32 %v9297, %v9325
        %v9336 = vadd.f32 %v9298, %v9325
        %v9337 = vadd.f32 %v9299, %v9325
        %v9338 = vadd.f32 %v9300, %v9325
        %v9339 = vadd.f32 %v9301, %v9325
        %v9340 = vadd.f32 %v9302, %v9325
        %v9341 = vadd.f32 %v9303, %v9325
        %v9342 = vadd.f32 %v9304, %v9325
        %v9343 = vadd.f32 %v9305, %v9325
        %v9344 = vadd.f32 %v9306, %v9325
        %v9345 = vadd.f32 %v9307, %v9325
        %v9346 = vadd.f32 %v9308, %v9325
        %v9347 = vadd.f32 %v9309, %v9325
        %v9348 = vadd.f32 %v9310, %v9325
        %v9349 = vadd.f32 %v9311, %v9325
        %v9350 = vadd.f32 %v9312, %v9325
        %v9351 = vadd.f32 %v9313, %v9325
        %v9352 = vadd.f32 %v9314, %v9325
        %v9353 = vadd.f32 %v9315, %v9325
        %v9354 = vadd.f32 %v9316, %v9325
        %v9355 = vadd.f32 %v9317, %v9325
        %v9356 = vadd.f32 %v9318, %v9325
        %v9357 = vadd.f32 %v9319, %v9325
        %v9358 = vadd.f32 %v9320, %v9325
        %9359 = vst [vmem:[#allocation2] sm:$0xff] %v9327
        %9360 = vst [vmem:[#allocation2 + $0x8] sm:$0xff] %v9328
        %9361 = vst [vmem:[#allocation2 + $0x10] sm:$0xff] %v9329
        %9362 = vst [vmem:[#allocation2 + $0x18] sm:$0xff] %v9330
        %9363 = vst [vmem:[#allocation2 + $0x20] sm:$0xff] %v9331
        %9364 = vst [vmem:[#allocation2 + $0x28] sm:$0xff] %v9332
        %9365 = vst [vmem:[#allocation2 + $0x30] sm:$0xff] %v9333
        %9366 = vst [vmem:[#allocation2 + $0x38] sm:$0xff] %v9334
        %9367 = vst [vmem:[#allocation2 + $0x40] sm:$0xff] %v9335
        %9368 = vst [vmem:[#allocation2 + $0x48] sm:$0xff] %v9336
        %9369 = vst [vmem:[#allocation2 + $0x50] sm:$0xff] %v9337
        %9370 = vst [vmem:[#allocation2 + $0x58] sm:$0xff] %v9338
        %9371 = vst [vmem:[#allocation2 + $0x60] sm:$0xff] %v9339
        %9372 = vst [vmem:[#allocation2 + $0x68] sm:$0xff] %v9340
        %9373 = vst [vmem:[#allocation2 + $0x70] sm:$0xff] %v9341
        %9374 = vst [vmem:[#allocation2 + $0x78] sm:$0xff] %v9342
        %9375 = vst [vmem:[#allocation2 + $0x80] sm:$0xff] %v9343
        %9376 = vst [vmem:[#allocation2 + $0x88] sm:$0xff] %v9344
        %9377 = vst [vmem:[#allocation2 + $0x90] sm:$0xff] %v9345
        %9378 = vst [vmem:[#allocation2 + $0x98] sm:$0xff] %v9346
        %9379 = vst [vmem:[#allocation2 + $0xa0] sm:$0xff] %v9347
        %9380 = vst [vmem:[#allocation2 + $0xa8] sm:$0xff] %v9348
        %9381 = vst [vmem:[#allocation2 + $0xb0] sm:$0xff] %v9349
        %9382 = vst [vmem:[#allocation2 + $0xb8] sm:$0xff] %v9350
        %9383 = vst [vmem:[#allocation2 + $0xc0] sm:$0xff] %v9351
        %9384 = vst [vmem:[#allocation2 + $0xc8] sm:$0xff] %v9352
        %9385 = vst [vmem:[#allocation2 + $0xd0] sm:$0xff] %v9353
        %9386 = vst [vmem:[#allocation2 + $0xd8] sm:$0xff] %v9354
        %9387 = vst [vmem:[#allocation2 + $0xe0] sm:$0xff] %v9355
        %9388 = vst [vmem:[#allocation2 + $0xe8] sm:$0xff] %v9356
        %9389 = vst [vmem:[#allocation2 + $0xf0] sm:$0xff] %v9357
        %9390 = vst [vmem:[#allocation2 + $0xf8] sm:$0xff] %v9358
        %p9391 = scmp.eq.s32.totalorder %s58, 1
        // Predicated region
        $region153: #{transformer_lm_forward.1} parent=83 // pred_check
          %p9392 = pneg %p9391
        $region154: #{transformer_lm_forward.1} parent=83 // pred_check_branch
          %9394 = sbr.rel (%p9392) target = $region156
        $region155: #{transformer_lm_forward.1} parent=83 // pred_region
          %v9395 = vld [vmem:[#allocation24] sm:$0x1]
          %v9396 = vld [vmem:[#allocation25] sm:$0x1]
          %9397 = vadd.xlane.f32.xlu0 %v9327
          %v9398 = vpop.xlane.xlu0 %9397
          %9399 = vadd.xlane.f32.xlu0 %v9328
          %v9400 = vpop.xlane.xlu0 %9399
          %9401 = vadd.xlane.f32.xlu0 %v9329
          %v9402 = vpop.xlane.xlu0 %9401
          %9403 = vadd.xlane.f32.xlu0 %v9330
          %v9404 = vpop.xlane.xlu0 %9403
          %9405 = vadd.xlane.f32.xlu0 %v9331
          %v9406 = vpop.xlane.xlu0 %9405
          %9407 = vadd.xlane.f32.xlu0 %v9332
          %v9408 = vpop.xlane.xlu0 %9407
          %9409 = vadd.xlane.f32.xlu0 %v9333
          %v9410 = vpop.xlane.xlu0 %9409
          %9411 = vadd.xlane.f32.xlu0 %v9334
          %v9412 = vpop.xlane.xlu0 %9411
          %9413 = vadd.xlane.f32.xlu0 %v9335
          %v9414 = vpop.xlane.xlu0 %9413
          %9415 = vadd.xlane.f32.xlu0 %v9336
          %v9416 = vpop.xlane.xlu0 %9415
          %9417 = vadd.xlane.f32.xlu0 %v9337
          %v9418 = vpop.xlane.xlu0 %9417
          %9419 = vadd.xlane.f32.xlu0 %v9338
          %v9420 = vpop.xlane.xlu0 %9419
          %9421 = vadd.xlane.f32.xlu0 %v9339
          %v9422 = vpop.xlane.xlu0 %9421
          %9423 = vadd.xlane.f32.xlu0 %v9340
          %v9424 = vpop.xlane.xlu0 %9423
          %9425 = vadd.xlane.f32.xlu0 %v9341
          %v9426 = vpop.xlane.xlu0 %9425
          %9427 = vadd.xlane.f32.xlu0 %v9342
          %v9428 = vpop.xlane.xlu0 %9427
          %9429 = vadd.xlane.f32.xlu0 %v9343
          %v9430 = vpop.xlane.xlu0 %9429
          %9431 = vadd.xlane.f32.xlu0 %v9344
          %v9432 = vpop.xlane.xlu0 %9431
          %9433 = vadd.xlane.f32.xlu0 %v9345
          %v9434 = vpop.xlane.xlu0 %9433
          %9435 = vadd.xlane.f32.xlu0 %v9346
          %v9436 = vpop.xlane.xlu0 %9435
          %9437 = vadd.xlane.f32.xlu0 %v9347
          %v9438 = vpop.xlane.xlu0 %9437
          %9439 = vadd.xlane.f32.xlu0 %v9348
          %v9440 = vpop.xlane.xlu0 %9439
          %9441 = vadd.xlane.f32.xlu0 %v9349
          %v9442 = vpop.xlane.xlu0 %9441
          %9443 = vadd.xlane.f32.xlu0 %v9350
          %v9444 = vpop.xlane.xlu0 %9443
          %9445 = vadd.xlane.f32.xlu0 %v9351
          %v9446 = vpop.xlane.xlu0 %9445
          %9447 = vadd.xlane.f32.xlu0 %v9352
          %v9448 = vpop.xlane.xlu0 %9447
          %9449 = vadd.xlane.f32.xlu0 %v9353
          %v9450 = vpop.xlane.xlu0 %9449
          %9451 = vadd.xlane.f32.xlu0 %v9354
          %v9452 = vpop.xlane.xlu0 %9451
          %9453 = vadd.xlane.f32.xlu0 %v9355
          %v9454 = vpop.xlane.xlu0 %9453
          %9455 = vadd.xlane.f32.xlu0 %v9356
          %v9456 = vpop.xlane.xlu0 %9455
          %9457 = vadd.xlane.f32.xlu0 %v9357
          %v9458 = vpop.xlane.xlu0 %9457
          %9459 = vadd.xlane.f32.xlu0 %v9358
          %v9460 = vpop.xlane.xlu0 %9459
          %v9461 = vmul.f32 %v9398, %v7139
          %v9462 = vmul.f32 %v9400, %v7139
          %v9463 = vmul.f32 %v9402, %v7139
          %v9464 = vmul.f32 %v9404, %v7139
          %v9465 = vmul.f32 %v9406, %v7139
          %v9466 = vmul.f32 %v9408, %v7139
          %v9467 = vmul.f32 %v9410, %v7139
          %v9468 = vmul.f32 %v9412, %v7139
          %v9469 = vmul.f32 %v9414, %v7139
          %v9470 = vmul.f32 %v9416, %v7139
          %v9471 = vmul.f32 %v9418, %v7139
          %v9472 = vmul.f32 %v9420, %v7139
          %v9473 = vmul.f32 %v9422, %v7139
          %v9474 = vmul.f32 %v9424, %v7139
          %v9475 = vmul.f32 %v9426, %v7139
          %v9476 = vmul.f32 %v9428, %v7139
          %v9477 = vmul.f32 %v9430, %v7139
          %v9478 = vmul.f32 %v9432, %v7139
          %v9479 = vmul.f32 %v9434, %v7139
          %v9480 = vmul.f32 %v9436, %v7139
          %v9481 = vmul.f32 %v9438, %v7139
          %v9482 = vmul.f32 %v9440, %v7139
          %v9483 = vmul.f32 %v9442, %v7139
          %v9484 = vmul.f32 %v9444, %v7139
          %v9485 = vmul.f32 %v9446, %v7139
          %v9486 = vmul.f32 %v9448, %v7139
          %v9487 = vmul.f32 %v9450, %v7139
          %v9488 = vmul.f32 %v9452, %v7139
          %v9489 = vmul.f32 %v9454, %v7139
          %v9490 = vmul.f32 %v9456, %v7139
          %v9491 = vmul.f32 %v9458, %v7139
          %v9492 = vmul.f32 %v9460, %v7139
          %v9493 = vsub.f32 %v9327, %v9461
          %v9494 = vsub.f32 %v9328, %v9462
          %v9495 = vsub.f32 %v9329, %v9463
          %v9496 = vsub.f32 %v9330, %v9464
          %v9497 = vsub.f32 %v9331, %v9465
          %v9498 = vsub.f32 %v9332, %v9466
          %v9499 = vsub.f32 %v9333, %v9467
          %v9500 = vsub.f32 %v9334, %v9468
          %v9501 = vsub.f32 %v9335, %v9469
          %v9502 = vsub.f32 %v9336, %v9470
          %v9503 = vsub.f32 %v9337, %v9471
          %v9504 = vsub.f32 %v9338, %v9472
          %v9505 = vsub.f32 %v9339, %v9473
          %v9506 = vsub.f32 %v9340, %v9474
          %v9507 = vsub.f32 %v9341, %v9475
          %v9508 = vsub.f32 %v9342, %v9476
          %v9509 = vsub.f32 %v9343, %v9477
          %v9510 = vsub.f32 %v9344, %v9478
          %v9511 = vsub.f32 %v9345, %v9479
          %v9512 = vsub.f32 %v9346, %v9480
          %v9513 = vsub.f32 %v9347, %v9481
          %v9514 = vsub.f32 %v9348, %v9482
          %v9515 = vsub.f32 %v9349, %v9483
          %v9516 = vsub.f32 %v9350, %v9484
          %v9517 = vsub.f32 %v9351, %v9485
          %v9518 = vsub.f32 %v9352, %v9486
          %v9519 = vsub.f32 %v9353, %v9487
          %v9520 = vsub.f32 %v9354, %v9488
          %v9521 = vsub.f32 %v9355, %v9489
          %v9522 = vsub.f32 %v9356, %v9490
          %v9523 = vsub.f32 %v9357, %v9491
          %v9524 = vsub.f32 %v9358, %v9492
          %v9525 = vmul.f32 %v9493, %v9493
          %v9526 = vmul.f32 %v9494, %v9494
          %v9527 = vmul.f32 %v9495, %v9495
          %v9528 = vmul.f32 %v9496, %v9496
          %v9529 = vmul.f32 %v9497, %v9497
          %v9530 = vmul.f32 %v9498, %v9498
          %v9531 = vmul.f32 %v9499, %v9499
          %v9532 = vmul.f32 %v9500, %v9500
          %v9533 = vmul.f32 %v9501, %v9501
          %v9534 = vmul.f32 %v9502, %v9502
          %v9535 = vmul.f32 %v9503, %v9503
          %v9536 = vmul.f32 %v9504, %v9504
          %v9537 = vmul.f32 %v9505, %v9505
          %v9538 = vmul.f32 %v9506, %v9506
          %v9539 = vmul.f32 %v9507, %v9507
          %v9540 = vmul.f32 %v9508, %v9508
          %v9541 = vmul.f32 %v9509, %v9509
          %v9542 = vmul.f32 %v9510, %v9510
          %v9543 = vmul.f32 %v9511, %v9511
          %v9544 = vmul.f32 %v9512, %v9512
          %v9545 = vmul.f32 %v9513, %v9513
          %v9546 = vmul.f32 %v9514, %v9514
          %v9547 = vmul.f32 %v9515, %v9515
          %v9548 = vmul.f32 %v9516, %v9516
          %v9549 = vmul.f32 %v9517, %v9517
          %v9550 = vmul.f32 %v9518, %v9518
          %v9551 = vmul.f32 %v9519, %v9519
          %v9552 = vmul.f32 %v9520, %v9520
          %v9553 = vmul.f32 %v9521, %v9521
          %v9554 = vmul.f32 %v9522, %v9522
          %v9555 = vmul.f32 %v9523, %v9523
          %v9556 = vmul.f32 %v9524, %v9524
          %9557 = vadd.xlane.f32.xlu0 %v9525
          %v9558 = vpop.xlane.xlu0 %9557
          %9559 = vadd.xlane.f32.xlu0 %v9526
          %v9560 = vpop.xlane.xlu0 %9559
          %9561 = vadd.xlane.f32.xlu0 %v9527
          %v9562 = vpop.xlane.xlu0 %9561
          %9563 = vadd.xlane.f32.xlu0 %v9528
          %v9564 = vpop.xlane.xlu0 %9563
          %9565 = vadd.xlane.f32.xlu0 %v9529
          %v9566 = vpop.xlane.xlu0 %9565
          %9567 = vadd.xlane.f32.xlu0 %v9530
          %v9568 = vpop.xlane.xlu0 %9567
          %9569 = vadd.xlane.f32.xlu0 %v9531
          %v9570 = vpop.xlane.xlu0 %9569
          %9571 = vadd.xlane.f32.xlu0 %v9532
          %v9572 = vpop.xlane.xlu0 %9571
          %9573 = vadd.xlane.f32.xlu0 %v9533
          %v9574 = vpop.xlane.xlu0 %9573
          %9575 = vadd.xlane.f32.xlu0 %v9534
          %v9576 = vpop.xlane.xlu0 %9575
          %9577 = vadd.xlane.f32.xlu0 %v9535
          %v9578 = vpop.xlane.xlu0 %9577
          %9579 = vadd.xlane.f32.xlu0 %v9536
          %v9580 = vpop.xlane.xlu0 %9579
          %9581 = vadd.xlane.f32.xlu0 %v9537
          %v9582 = vpop.xlane.xlu0 %9581
          %9583 = vadd.xlane.f32.xlu0 %v9538
          %v9584 = vpop.xlane.xlu0 %9583
          %9585 = vadd.xlane.f32.xlu0 %v9539
          %v9586 = vpop.xlane.xlu0 %9585
          %9587 = vadd.xlane.f32.xlu0 %v9540
          %v9588 = vpop.xlane.xlu0 %9587
          %9589 = vadd.xlane.f32.xlu0 %v9541
          %v9590 = vpop.xlane.xlu0 %9589
          %9591 = vadd.xlane.f32.xlu0 %v9542
          %v9592 = vpop.xlane.xlu0 %9591
          %9593 = vadd.xlane.f32.xlu0 %v9543
          %v9594 = vpop.xlane.xlu0 %9593
          %9595 = vadd.xlane.f32.xlu0 %v9544
          %v9596 = vpop.xlane.xlu0 %9595
          %9597 = vadd.xlane.f32.xlu0 %v9545
          %v9598 = vpop.xlane.xlu0 %9597
          %9599 = vadd.xlane.f32.xlu0 %v9546
          %v9600 = vpop.xlane.xlu0 %9599
          %9601 = vadd.xlane.f32.xlu0 %v9547
          %v9602 = vpop.xlane.xlu0 %9601
          %9603 = vadd.xlane.f32.xlu0 %v9548
          %v9604 = vpop.xlane.xlu0 %9603
          %9605 = vadd.xlane.f32.xlu0 %v9549
          %v9606 = vpop.xlane.xlu0 %9605
          %9607 = vadd.xlane.f32.xlu0 %v9550
          %v9608 = vpop.xlane.xlu0 %9607
          %9609 = vadd.xlane.f32.xlu0 %v9551
          %v9610 = vpop.xlane.xlu0 %9609
          %9611 = vadd.xlane.f32.xlu0 %v9552
          %v9612 = vpop.xlane.xlu0 %9611
          %9613 = vadd.xlane.f32.xlu0 %v9553
          %v9614 = vpop.xlane.xlu0 %9613
          %9615 = vadd.xlane.f32.xlu0 %v9554
          %v9616 = vpop.xlane.xlu0 %9615
          %9617 = vadd.xlane.f32.xlu0 %v9555
          %v9618 = vpop.xlane.xlu0 %9617
          %9619 = vadd.xlane.f32.xlu0 %v9556
          %v9620 = vpop.xlane.xlu0 %9619
          %v9621 = vmul.f32 %v9558, %v7139
          %v9622 = vmul.f32 %v9560, %v7139
          %v9623 = vmul.f32 %v9562, %v7139
          %v9624 = vmul.f32 %v9564, %v7139
          %v9625 = vmul.f32 %v9566, %v7139
          %v9626 = vmul.f32 %v9568, %v7139
          %v9627 = vmul.f32 %v9570, %v7139
          %v9628 = vmul.f32 %v9572, %v7139
          %v9629 = vmul.f32 %v9574, %v7139
          %v9630 = vmul.f32 %v9576, %v7139
          %v9631 = vmul.f32 %v9578, %v7139
          %v9632 = vmul.f32 %v9580, %v7139
          %v9633 = vmul.f32 %v9582, %v7139
          %v9634 = vmul.f32 %v9584, %v7139
          %v9635 = vmul.f32 %v9586, %v7139
          %v9636 = vmul.f32 %v9588, %v7139
          %v9637 = vmul.f32 %v9590, %v7139
          %v9638 = vmul.f32 %v9592, %v7139
          %v9639 = vmul.f32 %v9594, %v7139
          %v9640 = vmul.f32 %v9596, %v7139
          %v9641 = vmul.f32 %v9598, %v7139
          %v9642 = vmul.f32 %v9600, %v7139
          %v9643 = vmul.f32 %v9602, %v7139
          %v9644 = vmul.f32 %v9604, %v7139
          %v9645 = vmul.f32 %v9606, %v7139
          %v9646 = vmul.f32 %v9608, %v7139
          %v9647 = vmul.f32 %v9610, %v7139
          %v9648 = vmul.f32 %v9612, %v7139
          %v9649 = vmul.f32 %v9614, %v7139
          %v9650 = vmul.f32 %v9616, %v7139
          %v9651 = vmul.f32 %v9618, %v7139
          %v9652 = vmul.f32 %v9620, %v7139
          %v9653 = vadd.f32 %v9621, 1e-05
          %v9654 = vadd.f32 %v9622, 1e-05
          %v9655 = vadd.f32 %v9623, 1e-05
          %v9656 = vadd.f32 %v9624, 1e-05
          %v9657 = vadd.f32 %v9625, 1e-05
          %v9658 = vadd.f32 %v9626, 1e-05
          %v9659 = vadd.f32 %v9627, 1e-05
          %v9660 = vadd.f32 %v9628, 1e-05
          %v9661 = vadd.f32 %v9629, 1e-05
          %v9662 = vadd.f32 %v9630, 1e-05
          %v9663 = vadd.f32 %v9631, 1e-05
          %v9664 = vadd.f32 %v9632, 1e-05
          %v9665 = vadd.f32 %v9633, 1e-05
          %v9666 = vadd.f32 %v9634, 1e-05
          %v9667 = vadd.f32 %v9635, 1e-05
          %v9668 = vadd.f32 %v9636, 1e-05
          %v9669 = vadd.f32 %v9637, 1e-05
          %v9670 = vadd.f32 %v9638, 1e-05
          %v9671 = vadd.f32 %v9639, 1e-05
          %v9672 = vadd.f32 %v9640, 1e-05
          %v9673 = vadd.f32 %v9641, 1e-05
          %v9674 = vadd.f32 %v9642, 1e-05
          %v9675 = vadd.f32 %v9643, 1e-05
          %v9676 = vadd.f32 %v9644, 1e-05
          %v9677 = vadd.f32 %v9645, 1e-05
          %v9678 = vadd.f32 %v9646, 1e-05
          %v9679 = vadd.f32 %v9647, 1e-05
          %v9680 = vadd.f32 %v9648, 1e-05
          %v9681 = vadd.f32 %v9649, 1e-05
          %v9682 = vadd.f32 %v9650, 1e-05
          %v9683 = vadd.f32 %v9651, 1e-05
          %v9684 = vadd.f32 %v9652, 1e-05
          %v9685 = vrsqrt.pop %v9653
          %v9686 = vrsqrt.pop %v9654
          %v9687 = vrsqrt.pop %v9655
          %v9688 = vrsqrt.pop %v9656
          %v9689 = vrsqrt.pop %v9657
          %v9690 = vrsqrt.pop %v9658
          %v9691 = vrsqrt.pop %v9659
          %v9692 = vrsqrt.pop %v9660
          %v9693 = vrsqrt.pop %v9661
          %v9694 = vrsqrt.pop %v9662
          %v9695 = vrsqrt.pop %v9663
          %v9696 = vrsqrt.pop %v9664
          %v9697 = vrsqrt.pop %v9665
          %v9698 = vrsqrt.pop %v9666
          %v9699 = vrsqrt.pop %v9667
          %v9700 = vrsqrt.pop %v9668
          %v9701 = vrsqrt.pop %v9669
          %v9702 = vrsqrt.pop %v9670
          %v9703 = vrsqrt.pop %v9671
          %v9704 = vrsqrt.pop %v9672
          %v9705 = vrsqrt.pop %v9673
          %v9706 = vrsqrt.pop %v9674
          %v9707 = vrsqrt.pop %v9675
          %v9708 = vrsqrt.pop %v9676
          %v9709 = vrsqrt.pop %v9677
          %v9710 = vrsqrt.pop %v9678
          %v9711 = vrsqrt.pop %v9679
          %v9712 = vrsqrt.pop %v9680
          %v9713 = vrsqrt.pop %v9681
          %v9714 = vrsqrt.pop %v9682
          %v9715 = vrsqrt.pop %v9683
          %v9716 = vrsqrt.pop %v9684
          %v9717 = vmul.f32 %v9493, %v9685
          %v9718 = vmul.f32 %v9494, %v9686
          %v9719 = vmul.f32 %v9495, %v9687
          %v9720 = vmul.f32 %v9496, %v9688
          %v9721 = vmul.f32 %v9497, %v9689
          %v9722 = vmul.f32 %v9498, %v9690
          %v9723 = vmul.f32 %v9499, %v9691
          %v9724 = vmul.f32 %v9500, %v9692
          %v9725 = vmul.f32 %v9501, %v9693
          %v9726 = vmul.f32 %v9502, %v9694
          %v9727 = vmul.f32 %v9503, %v9695
          %v9728 = vmul.f32 %v9504, %v9696
          %v9729 = vmul.f32 %v9505, %v9697
          %v9730 = vmul.f32 %v9506, %v9698
          %v9731 = vmul.f32 %v9507, %v9699
          %v9732 = vmul.f32 %v9508, %v9700
          %v9733 = vmul.f32 %v9509, %v9701
          %v9734 = vmul.f32 %v9510, %v9702
          %v9735 = vmul.f32 %v9511, %v9703
          %v9736 = vmul.f32 %v9512, %v9704
          %v9737 = vmul.f32 %v9513, %v9705
          %v9738 = vmul.f32 %v9514, %v9706
          %v9739 = vmul.f32 %v9515, %v9707
          %v9740 = vmul.f32 %v9516, %v9708
          %v9741 = vmul.f32 %v9517, %v9709
          %v9742 = vmul.f32 %v9518, %v9710
          %v9743 = vmul.f32 %v9519, %v9711
          %v9744 = vmul.f32 %v9520, %v9712
          %v9745 = vmul.f32 %v9521, %v9713
          %v9746 = vmul.f32 %v9522, %v9714
          %v9747 = vmul.f32 %v9523, %v9715
          %v9748 = vmul.f32 %v9524, %v9716
          %v9750 = vlaneseq
          %v9751 = vshrl.u32 %v9750, 7
          %v9752 = vsub.s32 0, %v9751
          %v9753 = vrot.slane %v9395, %v9752
          %v9755 = vmul.f32 %v9717, %v9753
          %v9756 = vmul.f32 %v9718, %v9753
          %v9757 = vmul.f32 %v9719, %v9753
          %v9758 = vmul.f32 %v9720, %v9753
          %v9759 = vmul.f32 %v9721, %v9753
          %v9760 = vmul.f32 %v9722, %v9753
          %v9761 = vmul.f32 %v9723, %v9753
          %v9762 = vmul.f32 %v9724, %v9753
          %v9763 = vmul.f32 %v9725, %v9753
          %v9764 = vmul.f32 %v9726, %v9753
          %v9765 = vmul.f32 %v9727, %v9753
          %v9766 = vmul.f32 %v9728, %v9753
          %v9767 = vmul.f32 %v9729, %v9753
          %v9768 = vmul.f32 %v9730, %v9753
          %v9769 = vmul.f32 %v9731, %v9753
          %v9770 = vmul.f32 %v9732, %v9753
          %v9771 = vmul.f32 %v9733, %v9753
          %v9772 = vmul.f32 %v9734, %v9753
          %v9773 = vmul.f32 %v9735, %v9753
          %v9774 = vmul.f32 %v9736, %v9753
          %v9775 = vmul.f32 %v9737, %v9753
          %v9776 = vmul.f32 %v9738, %v9753
          %v9777 = vmul.f32 %v9739, %v9753
          %v9778 = vmul.f32 %v9740, %v9753
          %v9779 = vmul.f32 %v9741, %v9753
          %v9780 = vmul.f32 %v9742, %v9753
          %v9781 = vmul.f32 %v9743, %v9753
          %v9782 = vmul.f32 %v9744, %v9753
          %v9783 = vmul.f32 %v9745, %v9753
          %v9784 = vmul.f32 %v9746, %v9753
          %v9785 = vmul.f32 %v9747, %v9753
          %v9786 = vmul.f32 %v9748, %v9753
          %v9788 = vlaneseq
          %v9789 = vshrl.u32 %v9788, 7
          %v9790 = vsub.s32 0, %v9789
          %v9791 = vrot.slane %v9396, %v9790
          %v9793 = vadd.f32 %v9755, %v9791
          %v9794 = vadd.f32 %v9756, %v9791
          %v9795 = vadd.f32 %v9757, %v9791
          %v9796 = vadd.f32 %v9758, %v9791
          %v9797 = vadd.f32 %v9759, %v9791
          %v9798 = vadd.f32 %v9760, %v9791
          %v9799 = vadd.f32 %v9761, %v9791
          %v9800 = vadd.f32 %v9762, %v9791
          %v9801 = vadd.f32 %v9763, %v9791
          %v9802 = vadd.f32 %v9764, %v9791
          %v9803 = vadd.f32 %v9765, %v9791
          %v9804 = vadd.f32 %v9766, %v9791
          %v9805 = vadd.f32 %v9767, %v9791
          %v9806 = vadd.f32 %v9768, %v9791
          %v9807 = vadd.f32 %v9769, %v9791
          %v9808 = vadd.f32 %v9770, %v9791
          %v9809 = vadd.f32 %v9771, %v9791
          %v9810 = vadd.f32 %v9772, %v9791
          %v9811 = vadd.f32 %v9773, %v9791
          %v9812 = vadd.f32 %v9774, %v9791
          %v9813 = vadd.f32 %v9775, %v9791
          %v9814 = vadd.f32 %v9776, %v9791
          %v9815 = vadd.f32 %v9777, %v9791
          %v9816 = vadd.f32 %v9778, %v9791
          %v9817 = vadd.f32 %v9779, %v9791
          %v9818 = vadd.f32 %v9780, %v9791
          %v9819 = vadd.f32 %v9781, %v9791
          %v9820 = vadd.f32 %v9782, %v9791
          %v9821 = vadd.f32 %v9783, %v9791
          %v9822 = vadd.f32 %v9784, %v9791
          %v9823 = vadd.f32 %v9785, %v9791
          %v9824 = vadd.f32 %v9786, %v9791
          %v9825 = vpack.c.bf16 %v9794, %v9793
          %v9826 = vpack.c.bf16 %v9796, %v9795
          %v9827 = vpack.c.bf16 %v9798, %v9797
          %v9828 = vpack.c.bf16 %v9800, %v9799
          %v9829 = vpack.c.bf16 %v9802, %v9801
          %v9830 = vpack.c.bf16 %v9804, %v9803
          %v9831 = vpack.c.bf16 %v9806, %v9805
          %v9832 = vpack.c.bf16 %v9808, %v9807
          %v9833 = vpack.c.bf16 %v9810, %v9809
          %v9834 = vpack.c.bf16 %v9812, %v9811
          %v9835 = vpack.c.bf16 %v9814, %v9813
          %v9836 = vpack.c.bf16 %v9816, %v9815
          %v9837 = vpack.c.bf16 %v9818, %v9817
          %v9838 = vpack.c.bf16 %v9820, %v9819
          %v9839 = vpack.c.bf16 %v9822, %v9821
          %v9840 = vpack.c.bf16 %v9824, %v9823
          %v9841 = vld [vmem:[#allocation27] sm:$0xff]
          %v9842 = vld [vmem:[#allocation27 + $0x8] sm:$0xff]
          %v9843 = vld [vmem:[#allocation27 + $0x10] sm:$0xff]
          %v9844 = vld [vmem:[#allocation27 + $0x18] sm:$0xff]
          %v9845 = vld [vmem:[#allocation27 + $0x20] sm:$0xff]
          %v9846 = vld [vmem:[#allocation27 + $0x28] sm:$0xff]
          %v9847 = vld [vmem:[#allocation27 + $0x30] sm:$0xff]
          %v9848 = vld [vmem:[#allocation27 + $0x38] sm:$0xff]
          %v9849 = vld [vmem:[#allocation27 + $0x40] sm:$0xff]
          %v9850 = vld [vmem:[#allocation27 + $0x48] sm:$0xff]
          %v9851 = vld [vmem:[#allocation27 + $0x50] sm:$0xff]
          %v9852 = vld [vmem:[#allocation27 + $0x58] sm:$0xff]
          %v9853 = vld [vmem:[#allocation27 + $0x60] sm:$0xff]
          %v9854 = vld [vmem:[#allocation27 + $0x68] sm:$0xff]
          %v9855 = vld [vmem:[#allocation27 + $0x70] sm:$0xff]
          %v9856 = vld [vmem:[#allocation27 + $0x78] sm:$0xff]
          %v9857 = vld [vmem:[#allocation28] sm:$0x3]
          %v9859 = vlaneseq
          %v9860 = vshrl.u32 %v9859, 7
          %v9861 = vsub.s32 0, %v9860
          %v9862 = vrot.slane %v9857, %v9861
          %v9863 = vlaneseq
          %v9864 = vshrl.u32 %v9863, 7
          %v9865 = vsub.s32 1, %v9864
          %v9866 = vrot.slane %v9857, %v9865
          %v9885 = vunpack.c.l.b16 %v9841
          %v9886 = vunpack.c.h.b16 %v9841
          %v9887 = vunpack.c.l.b16 %v9842
          %v9888 = vunpack.c.h.b16 %v9842
          %v9889 = vunpack.c.l.b16 %v9843
          %v9890 = vunpack.c.h.b16 %v9843
          %v9891 = vunpack.c.l.b16 %v9844
          %v9892 = vunpack.c.h.b16 %v9844
          %v9893 = vunpack.c.l.b16 %v9845
          %v9894 = vunpack.c.h.b16 %v9845
          %v9895 = vunpack.c.l.b16 %v9846
          %v9896 = vunpack.c.h.b16 %v9846
          %v9897 = vunpack.c.l.b16 %v9847
          %v9898 = vunpack.c.h.b16 %v9847
          %v9899 = vunpack.c.l.b16 %v9848
          %v9900 = vunpack.c.h.b16 %v9848
          %v9901 = vunpack.c.l.b16 %v9849
          %v9902 = vunpack.c.h.b16 %v9849
          %v9903 = vunpack.c.l.b16 %v9850
          %v9904 = vunpack.c.h.b16 %v9850
          %v9905 = vunpack.c.l.b16 %v9851
          %v9906 = vunpack.c.h.b16 %v9851
          %v9907 = vunpack.c.l.b16 %v9852
          %v9908 = vunpack.c.h.b16 %v9852
          %v9909 = vunpack.c.l.b16 %v9853
          %v9910 = vunpack.c.h.b16 %v9853
          %v9911 = vunpack.c.l.b16 %v9854
          %v9912 = vunpack.c.h.b16 %v9854
          %v9913 = vunpack.c.l.b16 %v9855
          %v9914 = vunpack.c.h.b16 %v9855
          %v9915 = vunpack.c.l.b16 %v9856
          %v9916 = vunpack.c.h.b16 %v9856
          %v9917 = vpack.c.b16 %v9887, %v9885
          %v9918 = vpack.c.b16 %v9888, %v9886
          %v9919 = vpack.c.b16 %v9891, %v9889
          %v9920 = vpack.c.b16 %v9892, %v9890
          %v9921 = vpack.c.b16 %v9895, %v9893
          %v9922 = vpack.c.b16 %v9896, %v9894
          %v9923 = vpack.c.b16 %v9899, %v9897
          %v9924 = vpack.c.b16 %v9900, %v9898
          %v9925 = vpack.c.b16 %v9903, %v9901
          %v9926 = vpack.c.b16 %v9904, %v9902
          %v9927 = vpack.c.b16 %v9907, %v9905
          %v9928 = vpack.c.b16 %v9908, %v9906
          %v9929 = vpack.c.b16 %v9911, %v9909
          %v9930 = vpack.c.b16 %v9912, %v9910
          %v9931 = vpack.c.b16 %v9915, %v9913
          %v9932 = vpack.c.b16 %v9916, %v9914
          %9949 = vmatprep.subr.bf16.mxu0 %v9918
          %9950 = vmatpush1.bf16.msra.mxu0 %v9917
          %9951 = vmatprep.subr.bf16.mxu0 %v9920
          %9952 = vmatpush1.bf16.msra.mxu0 %v9919
          %9953 = vmatprep.subr.bf16.mxu0 %v9922
          %9954 = vmatpush1.bf16.msra.mxu0 %v9921
          %9955 = vmatprep.subr.bf16.mxu0 %v9924
          %9956 = vmatpush1.bf16.msra.mxu0 %v9923
          %9957 = vmatprep.subr.bf16.mxu0 %v9926
          %9958 = vmatpush1.bf16.msra.mxu0 %v9925
          %9959 = vmatprep.subr.bf16.mxu0 %v9928
          %9960 = vmatpush1.bf16.msra.mxu0 %v9927
          %9961 = vmatprep.subr.bf16.mxu0 %v9930
          %9962 = vmatpush1.bf16.msra.mxu0 %v9929
          %9963 = vmatprep.subr.bf16.mxu0 %v9932
          %9964 = vmatpush1.bf16.msra.mxu0 %v9931
          %9965 = vmatprep.subr.bf16.mxu0 0
          %9966 = vmatpush1.bf16.msra.mxu0 0
          %9967 = vmatprep.subr.bf16.mxu0 0
          %9968 = vmatpush1.bf16.msra.mxu0 0
          %9969 = vmatprep.subr.bf16.mxu0 0
          %9970 = vmatpush1.bf16.msra.mxu0 0
          %9971 = vmatprep.subr.bf16.mxu0 0
          %9972 = vmatpush1.bf16.msra.mxu0 0
          %9973 = vmatprep.subr.bf16.mxu0 0
          %9974 = vmatpush1.bf16.msra.mxu0 0
          %9975 = vmatprep.subr.bf16.mxu0 0
          %9976 = vmatpush1.bf16.msra.mxu0 0
          %9977 = vmatprep.subr.bf16.mxu0 0
          %9978 = vmatpush1.bf16.msra.mxu0 0
          %9979 = vmatprep.subr.bf16.mxu0 0
          %9980 = vmatpush1.bf16.msra.mxu0 0
          %9981 = vmatprep.mubr.bf16.mxu0 0
          %9982 = vmatmul.mubr.bf16.gmra.mrb[0].mxu0 %v9825
          %v9983 = vpop.f32.mrb[0].mxu0
          %v9984 = vadd.f32 %v9862, %v9983
          %v9985 = vpop.f32.mrb[0].mxu0
          %v9986 = vadd.f32 %v9866, %v9985
          %v9987 = vpop.f32.mrb[0].mxu0
          %v9988 = vadd.f32 %v9862, %v9987
          %v9989 = vpop.f32.mrb[0].mxu0
          %v9990 = vadd.f32 %v9866, %v9989
          %9991 = vmatprep.mubr.bf16.mxu0 0
          %9992 = vmatmul.mubr.bf16.gmra.mrb[0].mxu0 %v9826
          %v9993 = vpop.f32.mrb[0].mxu0
          %v9994 = vadd.f32 %v9862, %v9993
          %v9995 = vpop.f32.mrb[0].mxu0
          %v9996 = vadd.f32 %v9866, %v9995
          %v9997 = vpop.f32.mrb[0].mxu0
          %v9998 = vadd.f32 %v9862, %v9997
          %v9999 = vpop.f32.mrb[0].mxu0
          %v10000 = vadd.f32 %v9866, %v9999
          %10001 = vmatprep.mubr.bf16.mxu0 0
          %10002 = vmatmul.mubr.bf16.gmra.mrb[0].mxu0 %v9827
          %v10003 = vpop.f32.mrb[0].mxu0
          %v10004 = vadd.f32 %v9862, %v10003
          %v10005 = vpop.f32.mrb[0].mxu0
          %v10006 = vadd.f32 %v9866, %v10005
          %v10007 = vpop.f32.mrb[0].mxu0
          %v10008 = vadd.f32 %v9862, %v10007
          %v10009 = vpop.f32.mrb[0].mxu0
          %v10010 = vadd.f32 %v9866, %v10009
          %10011 = vmatprep.mubr.bf16.mxu0 0
          %10012 = vmatmul.mubr.bf16.gmra.mrb[0].mxu0 %v9828
          %v10013 = vpop.f32.mrb[0].mxu0
          %v10014 = vadd.f32 %v9862, %v10013
          %v10015 = vpop.f32.mrb[0].mxu0
          %v10016 = vadd.f32 %v9866, %v10015
          %v10017 = vpop.f32.mrb[0].mxu0
          %v10018 = vadd.f32 %v9862, %v10017
          %v10019 = vpop.f32.mrb[0].mxu0
          %v10020 = vadd.f32 %v9866, %v10019
          %10021 = vmatprep.mubr.bf16.mxu0 0
          %10022 = vmatmul.mubr.bf16.gmra.mrb[0].mxu0 %v9829
          %v10023 = vpop.f32.mrb[0].mxu0
          %v10024 = vadd.f32 %v9862, %v10023
          %v10025 = vpop.f32.mrb[0].mxu0
          %v10026 = vadd.f32 %v9866, %v10025
          %v10027 = vpop.f32.mrb[0].mxu0
          %v10028 = vadd.f32 %v9862, %v10027
          %v10029 = vpop.f32.mrb[0].mxu0
          %v10030 = vadd.f32 %v9866, %v10029
          %10031 = vmatprep.mubr.bf16.mxu0 0
          %10032 = vmatmul.mubr.bf16.gmra.mrb[0].mxu0 %v9830
          %v10033 = vpop.f32.mrb[0].mxu0
          %v10034 = vadd.f32 %v9862, %v10033
          %v10035 = vpop.f32.mrb[0].mxu0
          %v10036 = vadd.f32 %v9866, %v10035
          %v10037 = vpop.f32.mrb[0].mxu0
          %v10038 = vadd.f32 %v9862, %v10037
          %v10039 = vpop.f32.mrb[0].mxu0
          %v10040 = vadd.f32 %v9866, %v10039
          %10041 = vmatprep.mubr.bf16.mxu0 0
          %10042 = vmatmul.mubr.bf16.gmra.mrb[0].mxu0 %v9831
          %v10043 = vpop.f32.mrb[0].mxu0
          %v10044 = vadd.f32 %v9862, %v10043
          %v10045 = vpop.f32.mrb[0].mxu0
          %v10046 = vadd.f32 %v9866, %v10045
          %v10047 = vpop.f32.mrb[0].mxu0
          %v10048 = vadd.f32 %v9862, %v10047
          %v10049 = vpop.f32.mrb[0].mxu0
          %v10050 = vadd.f32 %v9866, %v10049
          %10051 = vmatprep.mubr.bf16.mxu0 0
          %10052 = vmatmul.mubr.bf16.gmra.mrb[0].mxu0 %v9832
          %v10053 = vpop.f32.mrb[0].mxu0
          %v10054 = vadd.f32 %v9862, %v10053
          %v10055 = vpop.f32.mrb[0].mxu0
          %v10056 = vadd.f32 %v9866, %v10055
          %v10057 = vpop.f32.mrb[0].mxu0
          %v10058 = vadd.f32 %v9862, %v10057
          %v10059 = vpop.f32.mrb[0].mxu0
          %v10060 = vadd.f32 %v9866, %v10059
          %10061 = vmatprep.mubr.bf16.mxu0 0
          %10062 = vmatmul.mubr.bf16.gmra.mrb[0].mxu0 %v9833
          %v10063 = vpop.f32.mrb[0].mxu0
          %v10064 = vadd.f32 %v9862, %v10063
          %v10065 = vpop.f32.mrb[0].mxu0
          %v10066 = vadd.f32 %v9866, %v10065
          %v10067 = vpop.f32.mrb[0].mxu0
          %v10068 = vadd.f32 %v9862, %v10067
          %v10069 = vpop.f32.mrb[0].mxu0
          %v10070 = vadd.f32 %v9866, %v10069
          %10071 = vmatprep.mubr.bf16.mxu0 0
          %10072 = vmatmul.mubr.bf16.gmra.mrb[0].mxu0 %v9834
          %v10073 = vpop.f32.mrb[0].mxu0
          %v10074 = vadd.f32 %v9862, %v10073
          %v10075 = vpop.f32.mrb[0].mxu0
          %v10076 = vadd.f32 %v9866, %v10075
          %v10077 = vpop.f32.mrb[0].mxu0
          %v10078 = vadd.f32 %v9862, %v10077
          %v10079 = vpop.f32.mrb[0].mxu0
          %v10080 = vadd.f32 %v9866, %v10079
          %10081 = vmatprep.mubr.bf16.mxu0 0
          %10082 = vmatmul.mubr.bf16.gmra.mrb[0].mxu0 %v9835
          %v10083 = vpop.f32.mrb[0].mxu0
          %v10084 = vadd.f32 %v9862, %v10083
          %v10085 = vpop.f32.mrb[0].mxu0
          %v10086 = vadd.f32 %v9866, %v10085
          %v10087 = vpop.f32.mrb[0].mxu0
          %v10088 = vadd.f32 %v9862, %v10087
          %v10089 = vpop.f32.mrb[0].mxu0
          %v10090 = vadd.f32 %v9866, %v10089
          %10091 = vmatprep.mubr.bf16.mxu0 0
          %10092 = vmatmul.mubr.bf16.gmra.mrb[0].mxu0 %v9836
          %v10093 = vpop.f32.mrb[0].mxu0
          %v10094 = vadd.f32 %v9862, %v10093
          %v10095 = vpop.f32.mrb[0].mxu0
          %v10096 = vadd.f32 %v9866, %v10095
          %v10097 = vpop.f32.mrb[0].mxu0
          %v10098 = vadd.f32 %v9862, %v10097
          %v10099 = vpop.f32.mrb[0].mxu0
          %v10100 = vadd.f32 %v9866, %v10099
          %10101 = vmatprep.mubr.bf16.mxu0 0
          %10102 = vmatmul.mubr.bf16.gmra.mrb[0].mxu0 %v9837
          %v10103 = vpop.f32.mrb[0].mxu0
          %v10104 = vadd.f32 %v9862, %v10103
          %v10105 = vpop.f32.mrb[0].mxu0
          %v10106 = vadd.f32 %v9866, %v10105
          %v10107 = vpop.f32.mrb[0].mxu0
          %v10108 = vadd.f32 %v9862, %v10107
          %v10109 = vpop.f32.mrb[0].mxu0
          %v10110 = vadd.f32 %v9866, %v10109
          %10111 = vmatprep.mubr.bf16.mxu0 0
          %10112 = vmatmul.mubr.bf16.gmra.mrb[0].mxu0 %v9838
          %v10113 = vpop.f32.mrb[0].mxu0
          %v10114 = vadd.f32 %v9862, %v10113
          %v10115 = vpop.f32.mrb[0].mxu0
          %v10116 = vadd.f32 %v9866, %v10115
          %v10117 = vpop.f32.mrb[0].mxu0
          %v10118 = vadd.f32 %v9862, %v10117
          %v10119 = vpop.f32.mrb[0].mxu0
          %v10120 = vadd.f32 %v9866, %v10119
          %10121 = vmatprep.mubr.bf16.mxu0 0
          %10122 = vmatmul.mubr.bf16.gmra.mrb[0].mxu0 %v9839
          %v10123 = vpop.f32.mrb[0].mxu0
          %v10124 = vadd.f32 %v9862, %v10123
          %v10125 = vpop.f32.mrb[0].mxu0
          %v10126 = vadd.f32 %v9866, %v10125
          %v10127 = vpop.f32.mrb[0].mxu0
          %v10128 = vadd.f32 %v9862, %v10127
          %v10129 = vpop.f32.mrb[0].mxu0
          %v10130 = vadd.f32 %v9866, %v10129
          %10131 = vmatprep.mubr.bf16.mxu0 0
          %10132 = vmatmul.mubr.bf16.gmra.mrb[0].mxu0 %v9840
          %v10133 = vpop.f32.mrb[0].mxu0
          %v10134 = vadd.f32 %v9862, %v10133
          %v10135 = vpop.f32.mrb[0].mxu0
          %v10136 = vadd.f32 %v9866, %v10135
          %v10137 = vpop.f32.mrb[0].mxu0
          %v10138 = vadd.f32 %v9862, %v10137
          %v10139 = vpop.f32.mrb[0].mxu0
          %v10140 = vadd.f32 %v9866, %v10139
          %10141 = vdwg.mxu0
          %10142 = vst [vmem:[%s991] sm:$0xff] %v9984
          %10143 = vst [vmem:[%s991 + $0x8] sm:$0xff] %v9986
          %10144 = vst [vmem:[%s991 + $0x10] sm:$0xff] %v9988
          %10145 = vst [vmem:[%s991 + $0x18] sm:$0xff] %v9990
          %10146 = vst [vmem:[%s991 + $0x20] sm:$0xff] %v9994
          %10147 = vst [vmem:[%s991 + $0x28] sm:$0xff] %v9996
          %10148 = vst [vmem:[%s991 + $0x30] sm:$0xff] %v9998
          %10149 = vst [vmem:[%s991 + $0x38] sm:$0xff] %v10000
          %10150 = vst [vmem:[%s991 + $0x40] sm:$0xff] %v10004
          %10151 = vst [vmem:[%s991 + $0x48] sm:$0xff] %v10006
          %10152 = vst [vmem:[%s991 + $0x50] sm:$0xff] %v10008
          %10153 = vst [vmem:[%s991 + $0x58] sm:$0xff] %v10010
          %10154 = vst [vmem:[%s991 + $0x60] sm:$0xff] %v10014
          %10155 = vst [vmem:[%s991 + $0x68] sm:$0xff] %v10016
          %10156 = vst [vmem:[%s991 + $0x70] sm:$0xff] %v10018
          %10157 = vst [vmem:[%s991 + $0x78] sm:$0xff] %v10020
          %10158 = vst [vmem:[%s991 + $0x80] sm:$0xff] %v10024
          %10159 = vst [vmem:[%s991 + $0x88] sm:$0xff] %v10026
          %10160 = vst [vmem:[%s991 + $0x90] sm:$0xff] %v10028
          %10161 = vst [vmem:[%s991 + $0x98] sm:$0xff] %v10030
          %10162 = vst [vmem:[%s991 + $0xa0] sm:$0xff] %v10034
          %10163 = vst [vmem:[%s991 + $0xa8] sm:$0xff] %v10036
          %10164 = vst [vmem:[%s991 + $0xb0] sm:$0xff] %v10038
          %10165 = vst [vmem:[%s991 + $0xb8] sm:$0xff] %v10040
          %10166 = vst [vmem:[%s991 + $0xc0] sm:$0xff] %v10044
          %10167 = vst [vmem:[%s991 + $0xc8] sm:$0xff] %v10046
          %10168 = vst [vmem:[%s991 + $0xd0] sm:$0xff] %v10048
          %10169 = vst [vmem:[%s991 + $0xd8] sm:$0xff] %v10050
          %10170 = vst [vmem:[%s991 + $0xe0] sm:$0xff] %v10054
          %10171 = vst [vmem:[%s991 + $0xe8] sm:$0xff] %v10056
          %10172 = vst [vmem:[%s991 + $0xf0] sm:$0xff] %v10058
          %10173 = vst [vmem:[%s991 + $0xf8] sm:$0xff] %v10060
          %10174 = vst [vmem:[%s991 + $0x100] sm:$0xff] %v10064
          %10175 = vst [vmem:[%s991 + $0x108] sm:$0xff] %v10066
          %10176 = vst [vmem:[%s991 + $0x110] sm:$0xff] %v10068
          %10177 = vst [vmem:[%s991 + $0x118] sm:$0xff] %v10070
          %10178 = vst [vmem:[%s991 + $0x120] sm:$0xff] %v10074
          %10179 = vst [vmem:[%s991 + $0x128] sm:$0xff] %v10076
          %10180 = vst [vmem:[%s991 + $0x130] sm:$0xff] %v10078
          %10181 = vst [vmem:[%s991 + $0x138] sm:$0xff] %v10080
          %10182 = vst [vmem:[%s991 + $0x140] sm:$0xff] %v10084
          %10183 = vst [vmem:[%s991 + $0x148] sm:$0xff] %v10086
          %10184 = vst [vmem:[%s991 + $0x150] sm:$0xff] %v10088
          %10185 = vst [vmem:[%s991 + $0x158] sm:$0xff] %v10090
          %10186 = vst [vmem:[%s991 + $0x160] sm:$0xff] %v10094
          %10187 = vst [vmem:[%s991 + $0x168] sm:$0xff] %v10096
          %10188 = vst [vmem:[%s991 + $0x170] sm:$0xff] %v10098
          %10189 = vst [vmem:[%s991 + $0x178] sm:$0xff] %v10100
          %10190 = vst [vmem:[%s991 + $0x180] sm:$0xff] %v10104
          %10191 = vst [vmem:[%s991 + $0x188] sm:$0xff] %v10106
          %10192 = vst [vmem:[%s991 + $0x190] sm:$0xff] %v10108
          %10193 = vst [vmem:[%s991 + $0x198] sm:$0xff] %v10110
          %10194 = vst [vmem:[%s991 + $0x1a0] sm:$0xff] %v10114
          %10195 = vst [vmem:[%s991 + $0x1a8] sm:$0xff] %v10116
          %10196 = vst [vmem:[%s991 + $0x1b0] sm:$0xff] %v10118
          %10197 = vst [vmem:[%s991 + $0x1b8] sm:$0xff] %v10120
          %10198 = vst [vmem:[%s991 + $0x1c0] sm:$0xff] %v10124
          %10199 = vst [vmem:[%s991 + $0x1c8] sm:$0xff] %v10126
          %10200 = vst [vmem:[%s991 + $0x1d0] sm:$0xff] %v10128
          %10201 = vst [vmem:[%s991 + $0x1d8] sm:$0xff] %v10130
          %10202 = vst [vmem:[%s991 + $0x1e0] sm:$0xff] %v10134
          %10203 = vst [vmem:[%s991 + $0x1e8] sm:$0xff] %v10136
          %10204 = vst [vmem:[%s991 + $0x1f0] sm:$0xff] %v10138
          %10205 = vst [vmem:[%s991 + $0x1f8] sm:$0xff] %v10140
        $region156: #{transformer_lm_forward.1} parent=83 // pred_fallthru
          _
        %s10206 = sand.u32 %s469, 1
        %s10207 = scalar_lea.sflag [#allocation6], %s10206
        %s10208 = sand.u32 %s469, 1
        %s10209 = smul.addr %s10208, 512
        %s10210 = scalar_lea.vmem [#allocation30], %s10209
        // Predicated region
        $region157: #{transformer_lm_forward.1} parent=83 // pred_check
          %p10211 = pneg %p479
        $region158: #{transformer_lm_forward.1} parent=83 // pred_check_branch
          %10213 = sbr.rel (%p10211) target = $region160
        $region159: #{transformer_lm_forward.1} parent=83 // pred_region
          %s10214 = smul.u32 4, %s57
          %s10216 = ssub.s32 8192, 8192
          %10217 = vsyncadd %s10207, %s10216
          %s10218 = smul.addr %s10214, 16
          %s10219 = smul.addr %s10218, 128
          %s10220 = scalar_lea.hbm %s16, %s10219
          %s10221 = sshll.u32 %s10210, 4
          %s10222 = int_to_ptr.vmem [resolvable:$true] %s10221
          %10227 = dma.vmem_to_hbm [thread:$0]  %s10222, 8192, %s10220, %s10207, 256, 256, 16
        $region160: #{transformer_lm_forward.1} parent=83 // pred_fallthru
          _
      $region84: #{transformer_lm_forward.1} parent=5 // pred_fallthru
        _
      %p10228 = scmp.le.s32.totalorder 2, %s48
      // Predicated region
      $region161: #{transformer_lm_forward.1} parent=5 // pred_check
        %p10229 = pneg %p10228
      $region162: #{transformer_lm_forward.1} parent=5 // pred_check_branch
        %10231 = sbr.rel (%p10229) target = $region164
      $region163: #{transformer_lm_forward.1} parent=5 // pred_region
        %s10232 = ssub.s32 %s48, 2
        // Predicated region
        $region165: #{transformer_lm_forward.1} parent=163 // pred_check
          %p10233 = pneg %p485
        $region166: #{transformer_lm_forward.1} parent=163 // pred_check_branch
          %10235 = sbr.rel (%p10233) target = $region168
        $region167: #{transformer_lm_forward.1} parent=163 // pred_region
          %s10236 = sand.u32 %s470, 1
          %s10237 = scalar_lea.sflag [#allocation6], %s10236
          %s10238 = sand.u32 %s470, 1
          %s10239 = smul.addr %s10238, 512
          %s10240 = scalar_lea.vmem [#allocation30], %s10239
          %10241 = dma.done %s10237, 8192
        $region168: #{transformer_lm_forward.1} parent=163 // pred_fallthru
          _
      $region164: #{transformer_lm_forward.1} parent=5 // pred_fallthru
        _
    $region6: #{transformer_lm_forward.1} parent=1 // loop_footer
      %s52 = sadd.s32 1, %s48
    $region7: #{transformer_lm_forward.1} parent=1 // loop_footer_branch
      %47 = sbr.rel target = $region3
    $region8: #{transformer_lm_forward.1} parent=1 // loop_exit
      _
    %10242 = vsyncpa [#allocation5], 1
    %s10243 = scalar_lea.sflag [#allocation5], 1
    %10244 = vsyncpa %s10243, 1
    %10245 = vsyncpa [#allocation8], 1
    %s10246 = scalar_lea.sflag [#allocation8], 1
    %10247 = vsyncpa %s10246, 1
    %10248 = vsyncpa [#allocation11], 1
    %s10249 = scalar_lea.sflag [#allocation11], 1
    %10250 = vsyncpa %s10249, 1
    %10251 = vsyncpa [#allocation14], 1
    %s10252 = scalar_lea.sflag [#allocation14], 1
    %10253 = vsyncpa %s10252, 1
    %10254 = vsyncpa [#allocation17], 1
    %s10255 = scalar_lea.sflag [#allocation17], 1
    %10256 = vsyncpa %s10255, 1
    %10257 = vsyncpa [#allocation20], 1
    %s10258 = scalar_lea.sflag [#allocation20], 1
    %10259 = vsyncpa %s10258, 1
    %10260 = vsyncpa [#allocation23], 1
    %s10261 = scalar_lea.sflag [#allocation23], 1
    %10262 = vsyncpa %s10261, 1
    %10263 = vsyncpa [#allocation26], 1
    %10264 = vsyncpa [#allocation29], 1
    %10265 = vsyncpa [#allocation6], 1
    %s10266 = scalar_lea.sflag [#allocation6], 1
    %10267 = vsyncpa %s10266, 1

</llo_original>
